<compile_context>
chip_gen: v6e
topology: v6e:2x2x1
jax: 0.10.0
libtpu: 0.0.40
codegen_flags: <defaults>
</compile_context>

<pallas_src>
import jax
import jax.numpy as jnp
from jax.experimental import pallas as pl
from jax.experimental.pallas import tpu as pltpu


# ---------------------------------------------------------------------------
# Pallas kernel: fused GRU gates for one (batch, N-tile) block
# ---------------------------------------------------------------------------
def point_gru_kernel(s2g_ref, p2g_ref, x1_ref, p1_ref,
                     w_s2_ref, w_dp_ref, w_pt_ref, bias_ref, w_fs_ref,
                     s1_ref):
    # s2g_ref : (1, K, TN, C_out)   gathered S2, channels-last, K-major
    # p2g_ref : (1, K, TN, 3)       gathered P2 (f32)
    # x1_ref  : (1, TN, C_in)       per-point features (not repeated over K)
    # p1_ref  : (1, TN, 3)          query points (f32)
    # w_s2_ref: (C_out, 4*C_out)    fused S2-row weights      [z | r | s_old | 0]
    # w_dp_ref: (3,     4*C_out)    fused disp-row weights    [z | r | s_old | 0]
    # w_pt_ref: (C_in,  4*C_out)    fused per-point weights   [z | r | 0 | fc_x]
    # bias_ref: (1, 4*C_out)        [b_z | b_r | b_s | b_fc]
    # w_fs_ref: (C_out, C_out)      S-part of the final fc (applied to R*S_old)
    # s1_ref  : (1, C_out, TN)      lane-dense transposed output block
    K = s2g_ref.shape[1]
    c4 = w_s2_ref.shape[1]
    c_out = c4 // 4

    # Running max over the K neighbours; live intermediate stays (TN, 4C) f32.
    nb = None
    for k in range(K):  # K is small & static -> unrolled
        acc = (jnp.dot(s2g_ref[0, k], w_s2_ref[...],
                       preferred_element_type=jnp.float32)
               + jnp.dot(p2g_ref[0, k], w_dp_ref[...],
                         preferred_element_type=jnp.float32))
        nb = acc if nb is None else jnp.maximum(nb, acc)

    # Terms constant over k (X1 contribution, -P1 part of the displacement,
    # and the biases) are hoisted out of the neighbour max.
    pt = jnp.dot(x1_ref[0], w_pt_ref[...], preferred_element_type=jnp.float32)
    p1_term = jnp.dot(p1_ref[0], w_dp_ref[...], preferred_element_type=jnp.float32)
    pre = nb + pt - p1_term + bias_ref[...]                       # (TN, 4C) f32

    z = jax.nn.sigmoid(pre[:, 0:c_out])
    r = jax.nn.sigmoid(pre[:, c_out:2 * c_out])
    s_old = pre[:, 2 * c_out:3 * c_out]
    fc_x = pre[:, 3 * c_out:]                       # X1 @ Wfc_x + b_fc

    s_new = jnp.tanh(fc_x + jnp.dot((r * s_old).astype(w_fs_ref.dtype),
                                    w_fs_ref[...],
                                    preferred_element_type=jnp.float32))
    s1 = z * s_old + (1.0 - z) * s_new                            # (TN, C_out)
    # Lane-dense store: transpose to (C_out, TN) so the last dim is >= 128 wide.
    s1_ref[0] = jnp.transpose(s1, (1, 0)).astype(s1_ref.dtype)


# ---------------------------------------------------------------------------
# Glue: ball query + grouping (data-dependent gather) in plain JAX
# ---------------------------------------------------------------------------
def ball_query(radius, nsamples, database, queries):
    """Replicates pointnet2_utils.ball_query(radius, nsamples, xyz=database, new_xyz=queries).
    database: (B, M, 3), queries: (B, N, 3) -> int32 idx (B, N, nsamples)."""
    M = database.shape[1]
    d2 = jnp.sum((queries[:, :, None, :] - database[:, None, :, :]) ** 2, axis=-1)
    in_ball = d2 < radius * radius
    cand = jnp.where(in_ball, jnp.arange(M, dtype=jnp.int32), jnp.int32(M))  # M = sentinel
    firstk = jnp.sort(cand, axis=-1)[..., :nsamples]       # first nsamples hits, in order
    first = firstk[..., :1]
    padded = jnp.where(firstk >= M, first, firstk)          # pad with the first hit
    idx = jnp.where(first >= M, jnp.int32(0), padded)       # no hit at all -> index 0
    return idx.astype(jnp.int32)


def group(feat_nl, idx):
    """feat_nl: (B, M, C) channels-last, idx: (B, ...,) int32 -> (B, ..., C)."""
    return jax.vmap(lambda f, i: f[i])(feat_nl, idx)


def _round_up(x, m):
    return ((x + m - 1) // m) * m


def _choose_tiling(n, batch, max_tile=512):
    """Pick (n_padded, tile_n).

    tile_n is either the full padded point axis (one tile per batch) or a
    multiple of 128 so the transposed (C_out, tile_n) output block stays
    lane-dense.  When batch == 1 we keep >= 2 grid steps (v7x dual-TC)."""
    n_pad8 = _round_up(n, 8)
    if n_pad8 <= max_tile and (batch >= 2 or n_pad8 <= 128):
        return n_pad8, n_pad8
    n_pad = _round_up(n, 128)
    cap = max_tile if batch >= 2 else max(128, n_pad // 2)
    cap = min(cap, n_pad)
    t = (cap // 128) * 128
    while t > 128 and n_pad % t != 0:
        t -= 128
    return n_pad, t


def _pad_axis(x, axis, target):
    pad = target - x.shape[axis]
    if pad == 0:
        return x
    widths = [(0, 0)] * x.ndim
    widths[axis] = (0, pad)
    return jnp.pad(x, widths)


# ---------------------------------------------------------------------------
# Wrapper: gathers neighbours, fuses the weights, calls pallas_call
# ---------------------------------------------------------------------------
def point_gru_cell(P1, X1, P2, S2, params, *, radius, nsamples,
                   matmul_dtype=jnp.bfloat16, out_dtype=jnp.float32,
                   tile_n=None):
    """
    P1: (B, N, 3)   X1: (B, C_in, N)
    P2: (B, N, 3)   S2: (B, C_out, N)
    returns (P1, S1) with S1: (B, C_out, N)   (PyTorch layout)
    """
    B, N, _ = P1.shape
    C_in = X1.shape[1]
    C_out = S2.shape[1]
    K = nsamples
    assert C_in > 0, "this implementation covers the in_channels > 0 branch"

    # --- data-dependent gather (plain JAX) --------------------------------
    idx = ball_query(radius, nsamples, P2, P1)          # (B, N, K)
    idx_km = jnp.transpose(idx, (0, 2, 1))              # (B, K, N)  K-major

    X1_nl = jnp.transpose(X1, (0, 2, 1)).astype(matmul_dtype)   # (B, N, C_in)
    S2_nl = jnp.transpose(S2, (0, 2, 1)).astype(matmul_dtype)   # cast BEFORE gather

    S2_g = group(S2_nl, idx_km)                         # (B, K, N, C_out)  matmul_dtype
    P2_g = group(P2, idx_km)                            # (B, K, N, 3)      f32
    P1_f = P1.astype(jnp.float32)

    # --- tiling / padding of the point axis --------------------------------
    if tile_n is None:
        n_pad, tile_n = _choose_tiling(N, B)
    else:
        assert tile_n % 8 == 0, "tile_n must be a multiple of 8"
        n_pad = _round_up(N, tile_n)
        assert tile_n == n_pad or tile_n % 128 == 0, (
            "multi-tile tile_n must be a multiple of 128 (lane-dense store)")

    S2_g = _pad_axis(S2_g, 2, n_pad)
    P2_g = _pad_axis(P2_g, 2, n_pad)
    X1_nl = _pad_axis(X1_nl, 1, n_pad)
    P1_f = _pad_axis(P1_f, 1, n_pad)

    # --- fuse the gate weights into lane-dense 4*C_out RHS blocks ----------
    c4 = 4 * C_out

    def split_rows(w):  # rows follow torch cat order [S2 | X1 | disp]
        return w[:C_out], w[C_out:C_out + C_in], w[C_out + C_in:]

    wz_s2, wz_x, wz_d = split_rows(params["w_z"])
    wr_s2, wr_x, wr_d = split_rows(params["w_r"])
    ws_s2, ws_d = params["w_s"][:C_out], params["w_s"][C_out:]
    wfc_x, wfc_s = params["w_fc"][:C_in], params["w_fc"][C_in:]

    zero_co = jnp.zeros((C_out, C_out), jnp.float32)
    w_s2 = jnp.concatenate([wz_s2, wr_s2, ws_s2, zero_co],
                           axis=1).astype(matmul_dtype)              # (C_out, 4C)
    w_dp = jnp.concatenate([wz_d, wr_d, ws_d, jnp.zeros((3, C_out), jnp.float32)],
                           axis=1).astype(jnp.float32)               # (3, 4C) f32
    w_pt = jnp.concatenate([wz_x, wr_x, jnp.zeros((C_in, C_out), jnp.float32), wfc_x],
                           axis=1).astype(matmul_dtype)              # (C_in, 4C)
    bias = jnp.concatenate(
        [params["b_z"], params["b_r"], params["b_s"], params["b_fc"]]
    ).reshape(1, c4).astype(jnp.float32)                             # (1, 4C)
    w_fs = wfc_s.astype(matmul_dtype)                                # (C_out, C_out)

    # --- pallas call --------------------------------------------------------
    grid = (B, n_pad // tile_n)

    s1_pad = pl.pallas_call(
        point_gru_kernel,
        grid=grid,
        in_specs=[
            pl.BlockSpec((1, K, tile_n, C_out), lambda b, n: (b, 0, n, 0)),
            pl.BlockSpec((1, K, tile_n, 3), lambda b, n: (b, 0, n, 0)),
            pl.BlockSpec((1, tile_n, C_in), lambda b, n: (b, n, 0)),
            pl.BlockSpec((1, tile_n, 3), lambda b, n: (b, n, 0)),
            pl.BlockSpec((C_out, c4), lambda b, n: (0, 0)),
            pl.BlockSpec((3, c4), lambda b, n: (0, 0)),
            pl.BlockSpec((C_in, c4), lambda b, n: (0, 0)),
            pl.BlockSpec((1, c4), lambda b, n: (0, 0)),
            pl.BlockSpec((C_out, C_out), lambda b, n: (0, 0)),
        ],
        out_specs=pl.BlockSpec((1, C_out, tile_n), lambda b, n: (b, 0, n)),
        out_shape=jax.ShapeDtypeStruct((B, C_out, n_pad), out_dtype),
        compiler_params=pltpu.CompilerParams(
            dimension_semantics=("parallel", "parallel")),
    )(S2_g, P2_g, X1_nl, P1_f, w_s2, w_dp, w_pt, bias, w_fs)

    S1 = s1_pad[:, :, :N]                                # (B, C_out, N), lane-dense output
    return P1, S1


# ---------------------------------------------------------------------------
# Pure-JAX reference (module semantics, f32) for correctness checking
# ---------------------------------------------------------------------------
def point_gru_cell_ref(P1, X1, P2, S2, params, *, radius, nsamples):
    B, N, _ = P1.shape
    C_in = X1.shape[1]
    K = nsamples
    hi = jax.lax.Precision.HIGHEST

    idx = ball_query(radius, nsamples, P2, P1)
    X1_nl = jnp.transpose(X1, (0, 2, 1))
    S2_nl = jnp.transpose(S2, (0, 2, 1))
    P2_g = group(P2, idx)                               # (B, N, K, 3)
    S2_g = group(S2_nl, idx)                            # (B, N, K, C_out)
    disp = P2_g - P1[:, :, None, :]
    X1_rep = jnp.broadcast_to(X1_nl[:, :, None, :], (B, N, K, C_in))
    corr_full = jnp.concatenate([S2_g, X1_rep, disp], axis=-1)
    corr_old = jnp.concatenate([S2_g, disp], axis=-1)

    def corr_gate(corr, w, b):
        s = jnp.einsum("bnkc,co->bnko", corr, w, precision=hi) + b.reshape(1, 1, 1, -1)
        return jnp.max(s, axis=2)                       # (B, N, C_out)

    Z = jax.nn.sigmoid(corr_gate(corr_full, params["w_z"], params["b_z"]))
    R = jax.nn.sigmoid(corr_gate(corr_full, params["w_r"], params["b_r"]))
    S_old = corr_gate(corr_old, params["w_s"], params["b_s"])
    fc_in = jnp.concatenate([X1_nl, R * S_old], axis=-1)            # (B, N, C_in+C_out)
    S_new = jnp.tanh(jnp.einsum("bnc,co->bno", fc_in, params["w_fc"], precision=hi)
                     + params["b_fc"].reshape(1, 1, -1))
    S1 = Z * S_old + (1.0 - Z) * S_new
    return P1, jnp.transpose(S1, (0, 2, 1))


# ---------------------------------------------------------------------------
if __name__ == "__main__":
    B, N, C_in, C_out, K = 2, 512, 16, 32, 4
    radius = 0.35

    key = jax.random.PRNGKey(0)
    keys = jax.random.split(key, 12)

    P1 = jax.random.uniform(keys[0], (B, N, 3), jnp.float32)
    P2 = jax.random.uniform(keys[1], (B, N, 3), jnp.float32)
    X1 = jax.random.normal(keys[2], (B, C_in, N), jnp.float32)
    S2 = 0.5 * jax.random.normal(keys[3], (B, C_out, N), jnp.float32)

    c_full = C_out + C_in + 3       # z/r correlation feature size
    c_old = C_out + 3               # s_old correlation feature size (in_channels = 0)

    def w_init(k, shape, scale=0.1):
        return scale * jax.random.normal(k, shape, jnp.float32)

    # Synthetic params (== transposed 1x1 conv weights + biases)
    params = {
        "w_z": w_init(keys[4], (c_full, C_out)),  "b_z": w_init(keys[5], (C_out,)),
        "w_r": w_init(keys[6], (c_full, C_out)),  "b_r": w_init(keys[7], (C_out,)),
        "w_s": w_init(keys[8], (c_old, C_out)),   "b_s": w_init(keys[9], (C_out,)),
        "w_fc": w_init(keys[10], (C_in + C_out, C_out)),
        "b_fc": w_init(keys[11], (C_out,)),
    }

    _, S1_ref = point_gru_cell_ref(P1, X1, P2, S2, params, radius=radius, nsamples=K)

    # f32 kernel path: tight structural check against the pure-JAX reference.
    _, S1_f32 = point_gru_cell(P1, X1, P2, S2, params, radius=radius, nsamples=K,
                               matmul_dtype=jnp.float32, out_dtype=jnp.float32)
    jax.block_until_ready(S1_f32)
    assert S1_f32.shape == (B, C_out, N)
    assert jnp.allclose(S1_f32, S1_ref, atol=1e-3, rtol=1e-3), "f32 kernel mismatch vs reference"

    # bf16 perf path (default): bf16 matmul operands + bf16 lane-dense output,
    # f32 accumulation / gate math inside the kernel.
    P1_out, S1 = point_gru_cell(P1, X1, P2, S2, params, radius=radius, nsamples=K,
                                matmul_dtype=jnp.bfloat16, out_dtype=jnp.bfloat16)
    jax.block_until_ready((P1_out, S1))
    assert S1.shape == (B, C_out, N)
    assert jnp.allclose(S1.astype(jnp.float32), S1_ref, atol=5e-2, rtol=5e-2), \
        "bf16 kernel mismatch vs reference"

    print("KERNEL_OK")
</pallas_src>

<mosaic_0001>
module attributes {stable_mosaic.version = 11 : i64} {
  func.func @point_gru_kernel(%arg0: i32, %arg1: i32, %arg2: memref<1x4x512x32xf32, #tpu.memory_space<vmem>>, %arg3: memref<1x4x512x3xf32, #tpu.memory_space<vmem>>, %arg4: memref<1x512x16xf32, #tpu.memory_space<vmem>>, %arg5: memref<1x512x3xf32, #tpu.memory_space<vmem>>, %arg6: memref<32x128xf32, #tpu.memory_space<vmem>>, %arg7: memref<3x128xf32, #tpu.memory_space<vmem>>, %arg8: memref<16x128xf32, #tpu.memory_space<vmem>>, %arg9: memref<1x128xf32, #tpu.memory_space<vmem>>, %arg10: memref<32x32xf32, #tpu.memory_space<vmem>>, %arg11: memref<1x32x512xf32, #tpu.memory_space<vmem>>) attributes {dimension_semantics = [#tpu.dimension_semantics<parallel>, #tpu.dimension_semantics<parallel>], iteration_bounds = array<i64: 2, 1>, scalar_prefetch = 0 : i64, scratch_operands = 0 : i64, tpu.core_type = #tpu.core_type<tc>, window_params = [{transform_indices = @transform_0, window_bounds = array<i64: 1, 4, 512, 32>}, {transform_indices = @transform_1, window_bounds = array<i64: 1, 4, 512, 3>}, {transform_indices = @transform_2, window_bounds = array<i64: 1, 512, 16>}, {transform_indices = @transform_3, window_bounds = array<i64: 1, 512, 3>}, {pipeline_mode = #tpu.pipeline_mode<synchronous>, transform_indices = @transform_4, window_bounds = array<i64: 32, 128>}, {pipeline_mode = #tpu.pipeline_mode<synchronous>, transform_indices = @transform_5, window_bounds = array<i64: 3, 128>}, {pipeline_mode = #tpu.pipeline_mode<synchronous>, transform_indices = @transform_6, window_bounds = array<i64: 16, 128>}, {pipeline_mode = #tpu.pipeline_mode<synchronous>, transform_indices = @transform_7, window_bounds = array<i64: 1, 128>}, {pipeline_mode = #tpu.pipeline_mode<synchronous>, transform_indices = @transform_8, window_bounds = array<i64: 32, 32>}, {transform_indices = @transform_9, window_bounds = array<i64: 1, 32, 512>}]} {
    %c0 = arith.constant 0 : index
    %c0_0 = arith.constant 0 : index
    %c0_1 = arith.constant 0 : index
    %c0_2 = arith.constant 0 : index
    %0 = vector.load %arg2[%c0, %c0_0, %c0_1, %c0_2] : memref<1x4x512x32xf32, #tpu.memory_space<vmem>>, vector<1x1x512x32xf32>
    %1 = vector.shape_cast %0 : vector<1x1x512x32xf32> to vector<512x32xf32>
    %c0_3 = arith.constant 0 : index
    %c0_4 = arith.constant 0 : index
    %2 = vector.load %arg6[%c0_3, %c0_4] : memref<32x128xf32, #tpu.memory_space<vmem>>, vector<32x128xf32>
    %cst = arith.constant dense<0.000000e+00> : vector<512x128xf32>
    %3 = tpu.matmul %1, %2, %cst {dimension_numbers = #tpu.dot_dimension_numbers<[1], [0], [0], [1], [0, 0, 1, 1], [], []>} : vector<512x32xf32>, vector<32x128xf32>, vector<512x128xf32> -> vector<512x128xf32>
    %c0_5 = arith.constant 0 : index
    %c0_6 = arith.constant 0 : index
    %c0_7 = arith.constant 0 : index
    %c0_8 = arith.constant 0 : index
    %4 = vector.load %arg3[%c0_5, %c0_6, %c0_7, %c0_8] : memref<1x4x512x3xf32, #tpu.memory_space<vmem>>, vector<1x1x512x3xf32>
    %5 = vector.shape_cast %4 : vector<1x1x512x3xf32> to vector<512x3xf32>
    %c0_9 = arith.constant 0 : index
    %c0_10 = arith.constant 0 : index
    %6 = vector.load %arg7[%c0_9, %c0_10] : memref<3x128xf32, #tpu.memory_space<vmem>>, vector<3x128xf32>
    %cst_11 = arith.constant dense<0.000000e+00> : vector<512x128xf32>
    %7 = tpu.matmul %5, %6, %cst_11 {dimension_numbers = #tpu.dot_dimension_numbers<[1], [0], [0], [1], [0, 0, 1, 1], [], []>} : vector<512x3xf32>, vector<3x128xf32>, vector<512x128xf32> -> vector<512x128xf32>
    %8 = arith.addf %3, %7 : vector<512x128xf32>
    %c0_12 = arith.constant 0 : index
    %c1 = arith.constant 1 : index
    %c0_13 = arith.constant 0 : index
    %c0_14 = arith.constant 0 : index
    %9 = vector.load %arg2[%c0_12, %c1, %c0_13, %c0_14] : memref<1x4x512x32xf32, #tpu.memory_space<vmem>>, vector<1x1x512x32xf32>
    %10 = vector.shape_cast %9 : vector<1x1x512x32xf32> to vector<512x32xf32>
    %c0_15 = arith.constant 0 : index
    %c0_16 = arith.constant 0 : index
    %11 = vector.load %arg6[%c0_15, %c0_16] : memref<32x128xf32, #tpu.memory_space<vmem>>, vector<32x128xf32>
    %cst_17 = arith.constant dense<0.000000e+00> : vector<512x128xf32>
    %12 = tpu.matmul %10, %11, %cst_17 {dimension_numbers = #tpu.dot_dimension_numbers<[1], [0], [0], [1], [0, 0, 1, 1], [], []>} : vector<512x32xf32>, vector<32x128xf32>, vector<512x128xf32> -> vector<512x128xf32>
    %c0_18 = arith.constant 0 : index
    %c1_19 = arith.constant 1 : index
    %c0_20 = arith.constant 0 : index
    %c0_21 = arith.constant 0 : index
    %13 = vector.load %arg3[%c0_18, %c1_19, %c0_20, %c0_21] : memref<1x4x512x3xf32, #tpu.memory_space<vmem>>, vector<1x1x512x3xf32>
    %14 = vector.shape_cast %13 : vector<1x1x512x3xf32> to vector<512x3xf32>
    %c0_22 = arith.constant 0 : index
    %c0_23 = arith.constant 0 : index
    %15 = vector.load %arg7[%c0_22, %c0_23] : memref<3x128xf32, #tpu.memory_space<vmem>>, vector<3x128xf32>
    %cst_24 = arith.constant dense<0.000000e+00> : vector<512x128xf32>
    %16 = tpu.matmul %14, %15, %cst_24 {dimension_numbers = #tpu.dot_dimension_numbers<[1], [0], [0], [1], [0, 0, 1, 1], [], []>} : vector<512x3xf32>, vector<3x128xf32>, vector<512x128xf32> -> vector<512x128xf32>
    %17 = arith.addf %12, %16 : vector<512x128xf32>
    %18 = arith.maximumf %8, %17 : vector<512x128xf32>
    %c0_25 = arith.constant 0 : index
    %c2 = arith.constant 2 : index
    %c0_26 = arith.constant 0 : index
    %c0_27 = arith.constant 0 : index
    %19 = vector.load %arg2[%c0_25, %c2, %c0_26, %c0_27] : memref<1x4x512x32xf32, #tpu.memory_space<vmem>>, vector<1x1x512x32xf32>
    %20 = vector.shape_cast %19 : vector<1x1x512x32xf32> to vector<512x32xf32>
    %c0_28 = arith.constant 0 : index
    %c0_29 = arith.constant 0 : index
    %21 = vector.load %arg6[%c0_28, %c0_29] : memref<32x128xf32, #tpu.memory_space<vmem>>, vector<32x128xf32>
    %cst_30 = arith.constant dense<0.000000e+00> : vector<512x128xf32>
    %22 = tpu.matmul %20, %21, %cst_30 {dimension_numbers = #tpu.dot_dimension_numbers<[1], [0], [0], [1], [0, 0, 1, 1], [], []>} : vector<512x32xf32>, vector<32x128xf32>, vector<512x128xf32> -> vector<512x128xf32>
    %c0_31 = arith.constant 0 : index
    %c2_32 = arith.constant 2 : index
    %c0_33 = arith.constant 0 : index
    %c0_34 = arith.constant 0 : index
    %23 = vector.load %arg3[%c0_31, %c2_32, %c0_33, %c0_34] : memref<1x4x512x3xf32, #tpu.memory_space<vmem>>, vector<1x1x512x3xf32>
    %24 = vector.shape_cast %23 : vector<1x1x512x3xf32> to vector<512x3xf32>
    %c0_35 = arith.constant 0 : index
    %c0_36 = arith.constant 0 : index
    %25 = vector.load %arg7[%c0_35, %c0_36] : memref<3x128xf32, #tpu.memory_space<vmem>>, vector<3x128xf32>
    %cst_37 = arith.constant dense<0.000000e+00> : vector<512x128xf32>
    %26 = tpu.matmul %24, %25, %cst_37 {dimension_numbers = #tpu.dot_dimension_numbers<[1], [0], [0], [1], [0, 0, 1, 1], [], []>} : vector<512x3xf32>, vector<3x128xf32>, vector<512x128xf32> -> vector<512x128xf32>
    %27 = arith.addf %22, %26 : vector<512x128xf32>
    %28 = arith.maximumf %18, %27 : vector<512x128xf32>
    %c0_38 = arith.constant 0 : index
    %c3 = arith.constant 3 : index
    %c0_39 = arith.constant 0 : index
    %c0_40 = arith.constant 0 : index
    %29 = vector.load %arg2[%c0_38, %c3, %c0_39, %c0_40] : memref<1x4x512x32xf32, #tpu.memory_space<vmem>>, vector<1x1x512x32xf32>
    %30 = vector.shape_cast %29 : vector<1x1x512x32xf32> to vector<512x32xf32>
    %c0_41 = arith.constant 0 : index
    %c0_42 = arith.constant 0 : index
    %31 = vector.load %arg6[%c0_41, %c0_42] : memref<32x128xf32, #tpu.memory_space<vmem>>, vector<32x128xf32>
    %cst_43 = arith.constant dense<0.000000e+00> : vector<512x128xf32>
    %32 = tpu.matmul %30, %31, %cst_43 {dimension_numbers = #tpu.dot_dimension_numbers<[1], [0], [0], [1], [0, 0, 1, 1], [], []>} : vector<512x32xf32>, vector<32x128xf32>, vector<512x128xf32> -> vector<512x128xf32>
    %c0_44 = arith.constant 0 : index
    %c3_45 = arith.constant 3 : index
    %c0_46 = arith.constant 0 : index
    %c0_47 = arith.constant 0 : index
    %33 = vector.load %arg3[%c0_44, %c3_45, %c0_46, %c0_47] : memref<1x4x512x3xf32, #tpu.memory_space<vmem>>, vector<1x1x512x3xf32>
    %34 = vector.shape_cast %33 : vector<1x1x512x3xf32> to vector<512x3xf32>
    %c0_48 = arith.constant 0 : index
    %c0_49 = arith.constant 0 : index
    %35 = vector.load %arg7[%c0_48, %c0_49] : memref<3x128xf32, #tpu.memory_space<vmem>>, vector<3x128xf32>
    %cst_50 = arith.constant dense<0.000000e+00> : vector<512x128xf32>
    %36 = tpu.matmul %34, %35, %cst_50 {dimension_numbers = #tpu.dot_dimension_numbers<[1], [0], [0], [1], [0, 0, 1, 1], [], []>} : vector<512x3xf32>, vector<3x128xf32>, vector<512x128xf32> -> vector<512x128xf32>
    %37 = arith.addf %32, %36 : vector<512x128xf32>
    %38 = arith.maximumf %28, %37 : vector<512x128xf32>
    %c0_51 = arith.constant 0 : index
    %c0_52 = arith.constant 0 : index
    %c0_53 = arith.constant 0 : index
    %39 = vector.load %arg4[%c0_51, %c0_52, %c0_53] : memref<1x512x16xf32, #tpu.memory_space<vmem>>, vector<1x512x16xf32>
    %40 = vector.shape_cast %39 : vector<1x512x16xf32> to vector<512x16xf32>
    %c0_54 = arith.constant 0 : index
    %c0_55 = arith.constant 0 : index
    %41 = vector.load %arg8[%c0_54, %c0_55] : memref<16x128xf32, #tpu.memory_space<vmem>>, vector<16x128xf32>
    %cst_56 = arith.constant dense<0.000000e+00> : vector<512x128xf32>
    %42 = tpu.matmul %40, %41, %cst_56 {dimension_numbers = #tpu.dot_dimension_numbers<[1], [0], [0], [1], [0, 0, 1, 1], [], []>} : vector<512x16xf32>, vector<16x128xf32>, vector<512x128xf32> -> vector<512x128xf32>
    %c0_57 = arith.constant 0 : index
    %c0_58 = arith.constant 0 : index
    %c0_59 = arith.constant 0 : index
    %43 = vector.load %arg5[%c0_57, %c0_58, %c0_59] : memref<1x512x3xf32, #tpu.memory_space<vmem>>, vector<1x512x3xf32>
    %44 = vector.shape_cast %43 : vector<1x512x3xf32> to vector<512x3xf32>
    %c0_60 = arith.constant 0 : index
    %c0_61 = arith.constant 0 : index
    %45 = vector.load %arg7[%c0_60, %c0_61] : memref<3x128xf32, #tpu.memory_space<vmem>>, vector<3x128xf32>
    %cst_62 = arith.constant dense<0.000000e+00> : vector<512x128xf32>
    %46 = tpu.matmul %44, %45, %cst_62 {dimension_numbers = #tpu.dot_dimension_numbers<[1], [0], [0], [1], [0, 0, 1, 1], [], []>} : vector<512x3xf32>, vector<3x128xf32>, vector<512x128xf32> -> vector<512x128xf32>
    %47 = arith.addf %38, %42 : vector<512x128xf32>
    %48 = arith.subf %47, %46 : vector<512x128xf32>
    %c0_63 = arith.constant 0 : index
    %c0_64 = arith.constant 0 : index
    %49 = vector.load %arg9[%c0_63, %c0_64] : memref<1x128xf32, #tpu.memory_space<vmem>>, vector<1x128xf32>
    %50 = vector.broadcast %49 : vector<1x128xf32> to vector<512x128xf32>
    %51 = arith.addf %48, %50 : vector<512x128xf32>
    %52 = vector.extract_strided_slice %51 {offsets = [0, 0], sizes = [512, 32], strides = [1, 1]} : vector<512x128xf32> to vector<512x32xf32>
    %53 = arith.negf %52 : vector<512x32xf32>
    %54 = math.exp %53 : vector<512x32xf32>
    %cst_65 = arith.constant 1.000000e+00 : f32
    %55 = vector.broadcast %cst_65 : f32 to vector<512x32xf32>
    %56 = arith.addf %55, %54 : vector<512x32xf32>
    %57 = arith.divf %55, %56 : vector<512x32xf32>
    %58 = vector.extract_strided_slice %51 {offsets = [0, 32], sizes = [512, 32], strides = [1, 1]} : vector<512x128xf32> to vector<512x32xf32>
    %59 = arith.negf %58 : vector<512x32xf32>
    %60 = math.exp %59 : vector<512x32xf32>
    %cst_66 = arith.constant 1.000000e+00 : f32
    %61 = vector.broadcast %cst_66 : f32 to vector<512x32xf32>
    %62 = arith.addf %61, %60 : vector<512x32xf32>
    %63 = arith.divf %61, %62 : vector<512x32xf32>
    %64 = vector.extract_strided_slice %51 {offsets = [0, 64], sizes = [512, 32], strides = [1, 1]} : vector<512x128xf32> to vector<512x32xf32>
    %65 = vector.extract_strided_slice %51 {offsets = [0, 96], sizes = [512, 32], strides = [1, 1]} : vector<512x128xf32> to vector<512x32xf32>
    %66 = arith.mulf %63, %64 : vector<512x32xf32>
    %c0_67 = arith.constant 0 : index
    %c0_68 = arith.constant 0 : index
    %67 = vector.load %arg10[%c0_67, %c0_68] : memref<32x32xf32, #tpu.memory_space<vmem>>, vector<32x32xf32>
    %cst_69 = arith.constant dense<0.000000e+00> : vector<512x32xf32>
    %68 = tpu.matmul %66, %67, %cst_69 {dimension_numbers = #tpu.dot_dimension_numbers<[1], [0], [0], [1], [0, 0, 1, 1], [], []>} : vector<512x32xf32>, vector<32x32xf32>, vector<512x32xf32> -> vector<512x32xf32>
    %69 = arith.addf %65, %68 : vector<512x32xf32>
    %70 = math.tanh %69 : vector<512x32xf32>
    %71 = arith.mulf %57, %64 : vector<512x32xf32>
    %cst_70 = arith.constant 1.000000e+00 : f32
    %72 = vector.broadcast %cst_70 : f32 to vector<512x32xf32>
    %73 = arith.subf %72, %57 : vector<512x32xf32>
    %74 = arith.mulf %73, %70 : vector<512x32xf32>
    %75 = arith.addf %71, %74 : vector<512x32xf32>
    %76 = tpu.transpose %75, [1, 0] : vector<512x32xf32> -> vector<32x512xf32>
    %c0_71 = arith.constant 0 : index
    %c0_72 = arith.constant 0 : index
    %c0_73 = arith.constant 0 : index
    %77 = vector.load %arg11[%c0_71, %c0_72, %c0_73] : memref<1x32x512xf32, #tpu.memory_space<vmem>>, vector<1x32x512xf32>
    %78 = vector.shape_cast %77 : vector<1x32x512xf32> to vector<32x512xf32>
    %79 = vector.shape_cast %76 : vector<32x512xf32> to vector<1x32x512xf32>
    tpu.vector_store %arg11[%c0_71, %c0_72, %c0_73], %79 {strides = array<i32>} : memref<1x32x512xf32, #tpu.memory_space<vmem>>, vector<1x32x512xf32>,
    return
  }
  func.func @transform_0(%arg0: i32, %arg1: i32) -> (i32, i32, i32, i32) {
    %c0_i32 = arith.constant 0 : i32
    %c0_i32_0 = arith.constant 0 : i32
    %c0_i32_1 = arith.constant 0 : i32
    return %arg0, %c0_i32, %arg1, %c0_i32_0 : i32, i32, i32, i32
  }
  func.func @transform_1(%arg0: i32, %arg1: i32) -> (i32, i32, i32, i32) {
    %c0_i32 = arith.constant 0 : i32
    %c0_i32_0 = arith.constant 0 : i32
    %c0_i32_1 = arith.constant 0 : i32
    return %arg0, %c0_i32, %arg1, %c0_i32_0 : i32, i32, i32, i32
  }
  func.func @transform_2(%arg0: i32, %arg1: i32) -> (i32, i32, i32) {
    %c0_i32 = arith.constant 0 : i32
    %c0_i32_0 = arith.constant 0 : i32
    return %arg0, %arg1, %c0_i32 : i32, i32, i32
  }
  func.func @transform_3(%arg0: i32, %arg1: i32) -> (i32, i32, i32) {
    %c0_i32 = arith.constant 0 : i32
    %c0_i32_0 = arith.constant 0 : i32
    return %arg0, %arg1, %c0_i32 : i32, i32, i32
  }
  func.func @transform_4(%arg0: i32, %arg1: i32) -> (i32, i32) {
    %c0_i32 = arith.constant 0 : i32
    %c0_i32_0 = arith.constant 0 : i32
    %c0_i32_1 = arith.constant 0 : i32
    return %c0_i32, %c0_i32_0 : i32, i32
  }
  func.func @transform_5(%arg0: i32, %arg1: i32) -> (i32, i32) {
    %c0_i32 = arith.constant 0 : i32
    %c0_i32_0 = arith.constant 0 : i32
    %c0_i32_1 = arith.constant 0 : i32
    return %c0_i32, %c0_i32_0 : i32, i32
  }
  func.func @transform_6(%arg0: i32, %arg1: i32) -> (i32, i32) {
    %c0_i32 = arith.constant 0 : i32
    %c0_i32_0 = arith.constant 0 : i32
    %c0_i32_1 = arith.constant 0 : i32
    return %c0_i32, %c0_i32_0 : i32, i32
  }
  func.func @transform_7(%arg0: i32, %arg1: i32) -> (i32, i32) {
    %c0_i32 = arith.constant 0 : i32
    %c0_i32_0 = arith.constant 0 : i32
    %c0_i32_1 = arith.constant 0 : i32
    return %c0_i32, %c0_i32_0 : i32, i32
  }
  func.func @transform_8(%arg0: i32, %arg1: i32) -> (i32, i32) {
    %c0_i32 = arith.constant 0 : i32
    %c0_i32_0 = arith.constant 0 : i32
    %c0_i32_1 = arith.constant 0 : i32
    return %c0_i32, %c0_i32_0 : i32, i32
  }
  func.func @transform_9(%arg0: i32, %arg1: i32) -> (i32, i32, i32) {
    %c0_i32 = arith.constant 0 : i32
    %c0_i32_0 = arith.constant 0 : i32
    return %arg0, %c0_i32, %arg1 : i32, i32, i32
  }
}

</mosaic_0001>

<llo_original>
// kernel: tpu_custom_call.1
$region0: #{tpu_custom_call.1}
  #allocation0 [shape = 'u32[]', space=smem, size = 0x4, offset = 0x4, fixed_abs, tag = 'smem constant byte address 0x4 - core index']
  #allocation1 [shape = 'u32[144,128]{1,0:T(1,128)}', space=vmem, size = 0x12000, scoped, tag = 'internal scratch']
  %s0 = inlined_call_operand.vmem [shape: f32[2,4,512,32], index: 0, kind: input, shape index: {}]
  %s1 = inlined_call_operand.vmem [shape: f32[2,4,512,3], index: 1, kind: input, shape index: {}]
  %s2 = inlined_call_operand.vmem [shape: f32[2,512,16], index: 2, kind: input, shape index: {}]
  %s3 = inlined_call_operand.vmem [shape: f32[2,512,3], index: 3, kind: input, shape index: {}]
  %s4 = inlined_call_operand.vmem [shape: f32[32,128], index: 4, kind: input, shape index: {}]
  %s5 = inlined_call_operand.vmem [shape: f32[3,128], index: 5, kind: input, shape index: {}]
  %s6 = inlined_call_operand.vmem [shape: f32[16,128], index: 6, kind: input, shape index: {}]
  %s7 = inlined_call_operand.vmem [shape: f32[1,128], index: 7, kind: input, shape index: {}]
  %s8 = inlined_call_operand.vmem [shape: f32[32,32], index: 8, kind: input, shape index: {}]
  %s9 = inlined_call_operand.hbm [shape: f32[2,32,512], index: 9, kind: output, shape index: {}]
  %s10 = sld [smem:[#allocation0]]
  $region69: #{tpu_custom_call.1} parent=0
    _
  %s12 = ssub.s32 1, %s10
  %s13 = scalar_select 0, %s12, %s10
  $region1: #{tpu_custom_call.1} parent=0
    #allocation2 [shape = 'u8[131072]{0}', space=vmem, size = 0x20000, scoped, tag = 'output window, operand 0']
    #allocation3 [shape = 's32[2]{0}', space=sflag, size = 0x8, scoped, tag = 'scoped memory for tpu_custom_call.1']
    %14 = vsyncpa [#allocation3], 0
    %s15 = scalar_lea.sflag [#allocation3], 1
    %16 = vsyncpa %s15, 0
    loop: start=0, step=1, limit=4
    $region2: #{tpu_custom_call.1} parent=1 // loop_pre_header
      _
    $region3: #{tpu_custom_call.1} parent=1 // loop_header
      %s18 = sphi 0, %s22
      %p19 = scmp.ge.s32.totalorder %s18, 4
      %s25 = sphi 0, %s37
      %s26 = sphi 0, %s33
      %s27 = sphi 0, %s25
      %s28 = sphi 0, %s26
      %s29 = sphi 0, %s27
      %s30 = sphi 0, %s28
      %s42 = sphi 0, %s44
      %s45 = sphi 0, %s42
      %s46 = sphi 0, %s45
      %s62 = sphi 0, %s46
      %s70 = sphi 0, %s72
      %s73 = sphi 0, %s70
      %s74 = sphi 0, %s73
      %s90 = sphi 0, %s74
      %s98 = sphi 0, %s100
      %s101 = sphi 0, %s98
      %s102 = sphi 0, %s101
      %s118 = sphi 0, %s102
      %s126 = sphi 0, %s128
      %s129 = sphi 0, %s126
      %s130 = sphi 0, %s129
      %s146 = sphi 0, %s130
      %s150 = sphi 0, %s150
      %s152 = sphi 0, %s150
      %s153 = sphi 0, %s152
      %s167 = sphi 0, %s153
      %s171 = sphi 0, %s171
      %s173 = sphi 0, %s171
      %s174 = sphi 0, %s173
      %s188 = sphi 0, %s174
      %s192 = sphi 0, %s192
      %s194 = sphi 0, %s192
      %s195 = sphi 0, %s194
      %s209 = sphi 0, %s195
      %s213 = sphi 0, %s213
      %s215 = sphi 0, %s213
      %s216 = sphi 0, %s215
      %s230 = sphi 0, %s216
      %s234 = sphi 0, %s234
      %s236 = sphi 0, %s234
      %s237 = sphi 0, %s236
      %s251 = sphi 0, %s237
      %s259 = sphi 0, %s261
      %s262 = sphi 0, %s259
      %s263 = sphi 0, %s262
      %s279 = sphi 0, %s263
    $region4: #{tpu_custom_call.1} parent=1 // loop_header_branch
      %21 = sbr.rel (%p19) target = $region8
    $region5: #{tpu_custom_call.1} parent=1 // loop_body
      %s23 = ssub.s32 %s18, 1
      %s24 = ssub.s32 %s18, 2
      %s31 = sadd.s32 1, %s26
      %p32 = scmp.ge.s32.totalorder %s31, 1
      %s33 = scalar_select %p32, 0, %s31
      %s34 = sadd.s32 1, %s25
      %s35 = scalar_select %p32, %s34, %s25
      %p36 = scmp.ge.s32.totalorder %s35, 2
      %s37 = scalar_select %p36, 0, %s35
      %s38 = ssub.s32 %s25, %s37
      %s39 = ssub.s32 %s26, %s33
      %s40 = sor.u32 %s38, %s39
      %p41 = scmp.eq.s32.totalorder %s40, 0
      %s43 = sadd.s32 %s42, 1
      %s44 = scalar_select %p41, %s42, %s43
      %p47 = pneg %p41
      %p48 = scmp.eq.s32.totalorder %s18, 1
      %p49 = por %p47, %p48
      %p50 = scmp.ne.s32.totalorder %s42, %s45
      %p51 = scmp.eq.s32.totalorder %s18, 0
      %p52 = por %p50, %p51
      %p53 = scmp.ne.s32.totalorder %s42, %s45
      %p54 = scmp.eq.s32.totalorder %s23, 1
      %p55 = por %p53, %p54
      %p56 = scmp.ne.s32.totalorder %s45, %s46
      %p57 = scmp.eq.s32.totalorder %s23, 0
      %p58 = por %p56, %p57
      %p59 = scmp.ne.s32.totalorder %s45, %s46
      %p60 = scmp.eq.s32.totalorder %s24, 1
      %p61 = por %p59, %p60
      %p63 = scmp.ne.s32.totalorder %s46, %s62
      %p64 = scmp.eq.s32.totalorder %s24, 0
      %p65 = por %p63, %p64
      %s66 = ssub.s32 %s25, %s37
      %s67 = ssub.s32 %s26, %s33
      %s68 = sor.u32 %s66, %s67
      %p69 = scmp.eq.s32.totalorder %s68, 0
      %s71 = sadd.s32 %s70, 1
      %s72 = scalar_select %p69, %s70, %s71
      %p75 = pneg %p69
      %p76 = scmp.eq.s32.totalorder %s18, 1
      %p77 = por %p75, %p76
      %p78 = scmp.ne.s32.totalorder %s70, %s73
      %p79 = scmp.eq.s32.totalorder %s18, 0
      %p80 = por %p78, %p79
      %p81 = scmp.ne.s32.totalorder %s70, %s73
      %p82 = scmp.eq.s32.totalorder %s23, 1
      %p83 = por %p81, %p82
      %p84 = scmp.ne.s32.totalorder %s73, %s74
      %p85 = scmp.eq.s32.totalorder %s23, 0
      %p86 = por %p84, %p85
      %p87 = scmp.ne.s32.totalorder %s73, %s74
      %p88 = scmp.eq.s32.totalorder %s24, 1
      %p89 = por %p87, %p88
      %p91 = scmp.ne.s32.totalorder %s74, %s90
      %p92 = scmp.eq.s32.totalorder %s24, 0
      %p93 = por %p91, %p92
      %s94 = ssub.s32 %s25, %s37
      %s95 = ssub.s32 %s26, %s33
      %s96 = sor.u32 %s94, %s95
      %p97 = scmp.eq.s32.totalorder %s96, 0
      %s99 = sadd.s32 %s98, 1
      %s100 = scalar_select %p97, %s98, %s99
      %p103 = pneg %p97
      %p104 = scmp.eq.s32.totalorder %s18, 1
      %p105 = por %p103, %p104
      %p106 = scmp.ne.s32.totalorder %s98, %s101
      %p107 = scmp.eq.s32.totalorder %s18, 0
      %p108 = por %p106, %p107
      %p109 = scmp.ne.s32.totalorder %s98, %s101
      %p110 = scmp.eq.s32.totalorder %s23, 1
      %p111 = por %p109, %p110
      %p112 = scmp.ne.s32.totalorder %s101, %s102
      %p113 = scmp.eq.s32.totalorder %s23, 0
      %p114 = por %p112, %p113
      %p115 = scmp.ne.s32.totalorder %s101, %s102
      %p116 = scmp.eq.s32.totalorder %s24, 1
      %p117 = por %p115, %p116
      %p119 = scmp.ne.s32.totalorder %s102, %s118
      %p120 = scmp.eq.s32.totalorder %s24, 0
      %p121 = por %p119, %p120
      %s122 = ssub.s32 %s25, %s37
      %s123 = ssub.s32 %s26, %s33
      %s124 = sor.u32 %s122, %s123
      %p125 = scmp.eq.s32.totalorder %s124, 0
      %s127 = sadd.s32 %s126, 1
      %s128 = scalar_select %p125, %s126, %s127
      %p131 = pneg %p125
      %p132 = scmp.eq.s32.totalorder %s18, 1
      %p133 = por %p131, %p132
      %p134 = scmp.ne.s32.totalorder %s126, %s129
      %p135 = scmp.eq.s32.totalorder %s18, 0
      %p136 = por %p134, %p135
      %p137 = scmp.ne.s32.totalorder %s126, %s129
      %p138 = scmp.eq.s32.totalorder %s23, 1
      %p139 = por %p137, %p138
      %p140 = scmp.ne.s32.totalorder %s129, %s130
      %p141 = scmp.eq.s32.totalorder %s23, 0
      %p142 = por %p140, %p141
      %p143 = scmp.ne.s32.totalorder %s129, %s130
      %p144 = scmp.eq.s32.totalorder %s24, 1
      %p145 = por %p143, %p144
      %p147 = scmp.ne.s32.totalorder %s130, %s146
      %p148 = scmp.eq.s32.totalorder %s24, 0
      %p149 = por %p147, %p148
      %s151 = sadd.s32 %s150, 1
      %p154 = scmp.eq.s32.totalorder %s18, 1
      %p155 = scmp.ne.s32.totalorder %s150, %s152
      %p156 = scmp.eq.s32.totalorder %s18, 0
      %p157 = por %p155, %p156
      %p158 = scmp.ne.s32.totalorder %s150, %s152
      %p159 = scmp.eq.s32.totalorder %s23, 1
      %p160 = por %p158, %p159
      %p161 = scmp.ne.s32.totalorder %s152, %s153
      %p162 = scmp.eq.s32.totalorder %s23, 0
      %p163 = por %p161, %p162
      %p164 = scmp.ne.s32.totalorder %s152, %s153
      %p165 = scmp.eq.s32.totalorder %s24, 1
      %p166 = por %p164, %p165
      %p168 = scmp.ne.s32.totalorder %s153, %s167
      %p169 = scmp.eq.s32.totalorder %s24, 0
      %p170 = por %p168, %p169
      %s172 = sadd.s32 %s171, 1
      %p175 = scmp.eq.s32.totalorder %s18, 1
      %p176 = scmp.ne.s32.totalorder %s171, %s173
      %p177 = scmp.eq.s32.totalorder %s18, 0
      %p178 = por %p176, %p177
      %p179 = scmp.ne.s32.totalorder %s171, %s173
      %p180 = scmp.eq.s32.totalorder %s23, 1
      %p181 = por %p179, %p180
      %p182 = scmp.ne.s32.totalorder %s173, %s174
      %p183 = scmp.eq.s32.totalorder %s23, 0
      %p184 = por %p182, %p183
      %p185 = scmp.ne.s32.totalorder %s173, %s174
      %p186 = scmp.eq.s32.totalorder %s24, 1
      %p187 = por %p185, %p186
      %p189 = scmp.ne.s32.totalorder %s174, %s188
      %p190 = scmp.eq.s32.totalorder %s24, 0
      %p191 = por %p189, %p190
      %s193 = sadd.s32 %s192, 1
      %p196 = scmp.eq.s32.totalorder %s18, 1
      %p197 = scmp.ne.s32.totalorder %s192, %s194
      %p198 = scmp.eq.s32.totalorder %s18, 0
      %p199 = por %p197, %p198
      %p200 = scmp.ne.s32.totalorder %s192, %s194
      %p201 = scmp.eq.s32.totalorder %s23, 1
      %p202 = por %p200, %p201
      %p203 = scmp.ne.s32.totalorder %s194, %s195
      %p204 = scmp.eq.s32.totalorder %s23, 0
      %p205 = por %p203, %p204
      %p206 = scmp.ne.s32.totalorder %s194, %s195
      %p207 = scmp.eq.s32.totalorder %s24, 1
      %p208 = por %p206, %p207
      %p210 = scmp.ne.s32.totalorder %s195, %s209
      %p211 = scmp.eq.s32.totalorder %s24, 0
      %p212 = por %p210, %p211
      %s214 = sadd.s32 %s213, 1
      %p217 = scmp.eq.s32.totalorder %s18, 1
      %p218 = scmp.ne.s32.totalorder %s213, %s215
      %p219 = scmp.eq.s32.totalorder %s18, 0
      %p220 = por %p218, %p219
      %p221 = scmp.ne.s32.totalorder %s213, %s215
      %p222 = scmp.eq.s32.totalorder %s23, 1
      %p223 = por %p221, %p222
      %p224 = scmp.ne.s32.totalorder %s215, %s216
      %p225 = scmp.eq.s32.totalorder %s23, 0
      %p226 = por %p224, %p225
      %p227 = scmp.ne.s32.totalorder %s215, %s216
      %p228 = scmp.eq.s32.totalorder %s24, 1
      %p229 = por %p227, %p228
      %p231 = scmp.ne.s32.totalorder %s216, %s230
      %p232 = scmp.eq.s32.totalorder %s24, 0
      %p233 = por %p231, %p232
      %s235 = sadd.s32 %s234, 1
      %p238 = scmp.eq.s32.totalorder %s18, 1
      %p239 = scmp.ne.s32.totalorder %s234, %s236
      %p240 = scmp.eq.s32.totalorder %s18, 0
      %p241 = por %p239, %p240
      %p242 = scmp.ne.s32.totalorder %s234, %s236
      %p243 = scmp.eq.s32.totalorder %s23, 1
      %p244 = por %p242, %p243
      %p245 = scmp.ne.s32.totalorder %s236, %s237
      %p246 = scmp.eq.s32.totalorder %s23, 0
      %p247 = por %p245, %p246
      %p248 = scmp.ne.s32.totalorder %s236, %s237
      %p249 = scmp.eq.s32.totalorder %s24, 1
      %p250 = por %p248, %p249
      %p252 = scmp.ne.s32.totalorder %s237, %s251
      %p253 = scmp.eq.s32.totalorder %s24, 0
      %p254 = por %p252, %p253
      %s255 = ssub.s32 %s25, %s37
      %s256 = ssub.s32 %s26, %s33
      %s257 = sor.u32 %s255, %s256
      %p258 = scmp.eq.s32.totalorder %s257, 0
      %s260 = sadd.s32 %s259, 1
      %s261 = scalar_select %p258, %s259, %s260
      %p264 = pneg %p258
      %p265 = scmp.eq.s32.totalorder %s18, 1
      %p266 = por %p264, %p265
      %p267 = scmp.ne.s32.totalorder %s259, %s262
      %p268 = scmp.eq.s32.totalorder %s18, 0
      %p269 = por %p267, %p268
      %p270 = scmp.ne.s32.totalorder %s259, %s262
      %p271 = scmp.eq.s32.totalorder %s23, 1
      %p272 = por %p270, %p271
      %p273 = scmp.ne.s32.totalorder %s262, %s263
      %p274 = scmp.eq.s32.totalorder %s23, 0
      %p275 = por %p273, %p274
      %p276 = scmp.ne.s32.totalorder %s262, %s263
      %p277 = scmp.eq.s32.totalorder %s24, 1
      %p278 = por %p276, %p277
      %p280 = scmp.ne.s32.totalorder %s263, %s279
      %p281 = scmp.eq.s32.totalorder %s24, 0
      %p282 = por %p280, %p281
      %p283 = scmp.le.s32.totalorder 1, %s18
      %p284 = scmp.lt.s32.totalorder %s18, 3
      %p285 = pnand %p283, %p284
      %p286 = pneg %p285
      // Predicated region
      $region9: #{tpu_custom_call.1} parent=5 // pred_check
        _
      $region10: #{tpu_custom_call.1} parent=5 // pred_check_branch
        %288 = sbr.rel (%p285) target = $region12
      $region11: #{tpu_custom_call.1} parent=5 // pred_region
        %s289 = ssub.s32 %s18, 1
        // Predicated region
        $region13: #{tpu_custom_call.1} parent=11 // pred_check
          %p290 = pneg %p163
        $region14: #{tpu_custom_call.1} parent=11 // pred_check_branch
          %292 = sbr.rel (%p290) target = $region16
        $region15: #{tpu_custom_call.1} parent=11 // pred_region
          _
        $region16: #{tpu_custom_call.1} parent=11 // pred_fallthru
          _
        // Predicated region
        $region17: #{tpu_custom_call.1} parent=11 // pred_check
          %p293 = pneg %p184
        $region18: #{tpu_custom_call.1} parent=11 // pred_check_branch
          %295 = sbr.rel (%p293) target = $region20
        $region19: #{tpu_custom_call.1} parent=11 // pred_region
          _
        $region20: #{tpu_custom_call.1} parent=11 // pred_fallthru
          _
        // Predicated region
        $region21: #{tpu_custom_call.1} parent=11 // pred_check
          %p296 = pneg %p205
        $region22: #{tpu_custom_call.1} parent=11 // pred_check_branch
          %298 = sbr.rel (%p296) target = $region24
        $region23: #{tpu_custom_call.1} parent=11 // pred_region
          _
        $region24: #{tpu_custom_call.1} parent=11 // pred_fallthru
          _
        // Predicated region
        $region25: #{tpu_custom_call.1} parent=11 // pred_check
          %p299 = pneg %p226
        $region26: #{tpu_custom_call.1} parent=11 // pred_check_branch
          %301 = sbr.rel (%p299) target = $region28
        $region27: #{tpu_custom_call.1} parent=11 // pred_region
          _
        $region28: #{tpu_custom_call.1} parent=11 // pred_fallthru
          _
        // Predicated region
        $region29: #{tpu_custom_call.1} parent=11 // pred_check
          %p302 = pneg %p247
        $region30: #{tpu_custom_call.1} parent=11 // pred_check_branch
          %304 = sbr.rel (%p302) target = $region32
        $region31: #{tpu_custom_call.1} parent=11 // pred_region
          _
        $region32: #{tpu_custom_call.1} parent=11 // pred_fallthru
          _
      $region12: #{tpu_custom_call.1} parent=5 // pred_fallthru
        _
      %p305 = scmp.lt.s32.totalorder %s18, 2
      // Predicated region
      $region33: #{tpu_custom_call.1} parent=5 // pred_check
        %p306 = pneg %p305
      $region34: #{tpu_custom_call.1} parent=5 // pred_check_branch
        %308 = sbr.rel (%p306) target = $region36
      $region35: #{tpu_custom_call.1} parent=5 // pred_region
        // Predicated region
        $region37: #{tpu_custom_call.1} parent=35 // pred_check
          %p309 = pneg %p52
        $region38: #{tpu_custom_call.1} parent=35 // pred_check_branch
          %311 = sbr.rel (%p309) target = $region40
        $region39: #{tpu_custom_call.1} parent=35 // pred_region
          %s312 = smul.u32 64, %s26
          %p313 = scmp.lt.s32.totalorder %s25, 1
          %s314 = scalar_select %p313, %s25, 1
          %p315 = scmp.lt.s32.totalorder %s312, 63
          %s316 = scalar_select %p315, %s312, 63
          %s317 = smul.addr %s314, 256
          %s318 = sadd.s32 %s316, %s317
          %s319 = smul.addr %s318, 8
          %s320 = scalar_lea.vmem %s0, %s319
          %s321 = smul.u32 64, %s26
        $region40: #{tpu_custom_call.1} parent=35 // pred_fallthru
          _
        // Predicated region
        $region41: #{tpu_custom_call.1} parent=35 // pred_check
          %p322 = pneg %p80
        $region42: #{tpu_custom_call.1} parent=35 // pred_check_branch
          %324 = sbr.rel (%p322) target = $region44
        $region43: #{tpu_custom_call.1} parent=35 // pred_region
          %s325 = smul.u32 64, %s26
          %p326 = scmp.lt.s32.totalorder %s25, 1
          %s327 = scalar_select %p326, %s25, 1
          %p328 = scmp.lt.s32.totalorder %s325, 63
          %s329 = scalar_select %p328, %s325, 63
          %s330 = smul.addr %s327, 256
          %s331 = sadd.s32 %s329, %s330
          %s332 = smul.addr %s331, 8
          %s333 = scalar_lea.vmem %s1, %s332
          %s334 = smul.u32 64, %s26
        $region44: #{tpu_custom_call.1} parent=35 // pred_fallthru
          _
        // Predicated region
        $region45: #{tpu_custom_call.1} parent=35 // pred_check
          %p335 = pneg %p108
        $region46: #{tpu_custom_call.1} parent=35 // pred_check_branch
          %337 = sbr.rel (%p335) target = $region48
        $region47: #{tpu_custom_call.1} parent=35 // pred_region
          %s338 = smul.u32 64, %s26
          %p339 = scmp.lt.s32.totalorder %s25, 1
          %s340 = scalar_select %p339, %s25, 1
          %p341 = scmp.lt.s32.totalorder %s338, 63
          %s342 = scalar_select %p341, %s338, 63
          %s343 = smul.addr %s340, 64
          %s344 = sadd.s32 %s342, %s343
          %s345 = smul.addr %s344, 8
          %s346 = scalar_lea.vmem %s2, %s345
          %s347 = smul.u32 64, %s26
        $region48: #{tpu_custom_call.1} parent=35 // pred_fallthru
          _
        // Predicated region
        $region49: #{tpu_custom_call.1} parent=35 // pred_check
          %p348 = pneg %p136
        $region50: #{tpu_custom_call.1} parent=35 // pred_check_branch
          %350 = sbr.rel (%p348) target = $region52
        $region51: #{tpu_custom_call.1} parent=35 // pred_region
          %s351 = smul.u32 64, %s26
          %p352 = scmp.lt.s32.totalorder %s25, 1
          %s353 = scalar_select %p352, %s25, 1
          %p354 = scmp.lt.s32.totalorder %s351, 63
          %s355 = scalar_select %p354, %s351, 63
          %s356 = smul.addr %s353, 64
          %s357 = sadd.s32 %s355, %s356
          %s358 = smul.addr %s357, 8
          %s359 = scalar_lea.vmem %s3, %s358
          %s360 = smul.u32 64, %s26
        $region52: #{tpu_custom_call.1} parent=35 // pred_fallthru
          _
      $region36: #{tpu_custom_call.1} parent=5 // pred_fallthru
        _
      %p361 = scmp.le.s32.totalorder 1, %s18
      %p362 = scmp.lt.s32.totalorder %s18, 3
      %p363 = pnand %p361, %p362
      %p364 = pneg %p363
      // Predicated region
      $region53: #{tpu_custom_call.1} parent=5 // pred_check
        _
      $region54: #{tpu_custom_call.1} parent=5 // pred_check_branch
        %366 = sbr.rel (%p363) target = $region56
      $region55: #{tpu_custom_call.1} parent=5 // pred_region
        %s367 = ssub.s32 %s18, 1
        %s368 = smul.u32 64, %s28
        %p369 = scmp.lt.s32.totalorder %s27, 1
        %s370 = scalar_select %p369, %s27, 1
        %p371 = scmp.lt.s32.totalorder %s368, 63
        %s372 = scalar_select %p371, %s368, 63
        %s373 = smul.addr %s370, 256
        %s374 = sadd.s32 %s372, %s373
        %s375 = smul.addr %s374, 8
        %s376 = scalar_lea.vmem %s0, %s375
        %p377 = pneg %p58
        %p378 = pneg %p55
        %s379 = smul.u32 64, %s28
        %p380 = scmp.lt.s32.totalorder %s27, 1
        %s381 = scalar_select %p380, %s27, 1
        %p382 = scmp.lt.s32.totalorder %s379, 63
        %s383 = scalar_select %p382, %s379, 63
        %s384 = smul.addr %s381, 256
        %s385 = sadd.s32 %s383, %s384
        %s386 = smul.addr %s385, 8
        %s387 = scalar_lea.vmem %s1, %s386
        %p388 = pneg %p86
        %p389 = pneg %p83
        %s390 = smul.u32 64, %s28
        %p391 = scmp.lt.s32.totalorder %s27, 1
        %s392 = scalar_select %p391, %s27, 1
        %p393 = scmp.lt.s32.totalorder %s390, 63
        %s394 = scalar_select %p393, %s390, 63
        %s395 = smul.addr %s392, 64
        %s396 = sadd.s32 %s394, %s395
        %s397 = smul.addr %s396, 8
        %s398 = scalar_lea.vmem %s2, %s397
        %p399 = pneg %p114
        %p400 = pneg %p111
        %s401 = smul.u32 64, %s28
        %p402 = scmp.lt.s32.totalorder %s27, 1
        %s403 = scalar_select %p402, %s27, 1
        %p404 = scmp.lt.s32.totalorder %s401, 63
        %s405 = scalar_select %p404, %s401, 63
        %s406 = smul.addr %s403, 64
        %s407 = sadd.s32 %s405, %s406
        %s408 = smul.addr %s407, 8
        %s409 = scalar_lea.vmem %s3, %s408
        %p410 = pneg %p142
        %p411 = pneg %p139
        %p412 = pneg %p163
        %p413 = pneg %p160
        %p414 = pneg %p184
        %p415 = pneg %p181
        %p416 = pneg %p205
        %p417 = pneg %p202
        %p418 = pneg %p226
        %p419 = pneg %p223
        %p420 = pneg %p247
        %p421 = pneg %p244
        %p422 = pneg %p275
        %p423 = pneg %p272
        %s424 = sand.u32 %s262, 1
        %s425 = scalar_lea.sflag [#allocation3], %s424
        %s426 = sand.u32 %s262, 1
        %s427 = smul.addr %s426, 128
        %s428 = scalar_lea.vmem [#allocation2], %s427
        %s429 = smul.u32 64, %s28
        %p430 = scmp.lt.s32.totalorder %s27, 1
        %s431 = scalar_select %p430, %s27, 1
        %p432 = scmp.lt.s32.totalorder %s429, 63
        %s433 = scalar_select %p432, %s429, 63
        %s434 = smul.addr %s431, 256
        %s435 = sadd.s32 %s433, %s434
        %s436 = smul.addr %s435, 8
        %s437 = scalar_lea.vmem %s0, %s436
        %s438 = smul.u32 64, %s28
        %s439 = smul.u32 64, %s28
        %p440 = scmp.lt.s32.totalorder %s27, 1
        %s441 = scalar_select %p440, %s27, 1
        %p442 = scmp.lt.s32.totalorder %s439, 63
        %s443 = scalar_select %p442, %s439, 63
        %s444 = smul.addr %s441, 256
        %s445 = sadd.s32 %s443, %s444
        %s446 = smul.addr %s445, 8
        %s447 = scalar_lea.vmem %s1, %s446
        %s448 = smul.u32 64, %s28
        %s449 = smul.u32 64, %s28
        %p450 = scmp.lt.s32.totalorder %s27, 1
        %s451 = scalar_select %p450, %s27, 1
        %p452 = scmp.lt.s32.totalorder %s449, 63
        %s453 = scalar_select %p452, %s449, 63
        %s454 = smul.addr %s451, 64
        %s455 = sadd.s32 %s453, %s454
        %s456 = smul.addr %s455, 8
        %s457 = scalar_lea.vmem %s2, %s456
        %s458 = smul.u32 64, %s28
        %s459 = smul.u32 64, %s28
        %p460 = scmp.lt.s32.totalorder %s27, 1
        %s461 = scalar_select %p460, %s27, 1
        %p462 = scmp.lt.s32.totalorder %s459, 63
        %s463 = scalar_select %p462, %s459, 63
        %s464 = smul.addr %s461, 64
        %s465 = sadd.s32 %s463, %s464
        %s466 = smul.addr %s465, 8
        %s467 = scalar_lea.vmem %s3, %s466
        %s468 = smul.u32 64, %s28
        %s469 = smul.u32 4, %s28
        %v470 = vld [vmem:[%s437] sm:$0xff]
        %v471 = vld [vmem:[%s437 + $0x8] sm:$0xff]
        %v472 = vld [vmem:[%s437 + $0x10] sm:$0xff]
        %v473 = vld [vmem:[%s437 + $0x18] sm:$0xff]
        %v474 = vld [vmem:[%s437 + $0x20] sm:$0xff]
        %v475 = vld [vmem:[%s437 + $0x28] sm:$0xff]
        %v476 = vld [vmem:[%s437 + $0x30] sm:$0xff]
        %v477 = vld [vmem:[%s437 + $0x38] sm:$0xff]
        %v478 = vld [vmem:[%s437 + $0x40] sm:$0xff]
        %v479 = vld [vmem:[%s437 + $0x48] sm:$0xff]
        %v480 = vld [vmem:[%s437 + $0x50] sm:$0xff]
        %v481 = vld [vmem:[%s437 + $0x58] sm:$0xff]
        %v482 = vld [vmem:[%s437 + $0x60] sm:$0xff]
        %v483 = vld [vmem:[%s437 + $0x68] sm:$0xff]
        %v484 = vld [vmem:[%s437 + $0x70] sm:$0xff]
        %v485 = vld [vmem:[%s437 + $0x78] sm:$0xff]
        %v486 = vld [vmem:[%s437 + $0x80] sm:$0xff]
        %v487 = vld [vmem:[%s437 + $0x88] sm:$0xff]
        %v488 = vld [vmem:[%s437 + $0x90] sm:$0xff]
        %v489 = vld [vmem:[%s437 + $0x98] sm:$0xff]
        %v490 = vld [vmem:[%s437 + $0xa0] sm:$0xff]
        %v491 = vld [vmem:[%s437 + $0xa8] sm:$0xff]
        %v492 = vld [vmem:[%s437 + $0xb0] sm:$0xff]
        %v493 = vld [vmem:[%s437 + $0xb8] sm:$0xff]
        %v494 = vld [vmem:[%s437 + $0xc0] sm:$0xff]
        %v495 = vld [vmem:[%s437 + $0xc8] sm:$0xff]
        %v496 = vld [vmem:[%s437 + $0xd0] sm:$0xff]
        %v497 = vld [vmem:[%s437 + $0xd8] sm:$0xff]
        %v498 = vld [vmem:[%s437 + $0xe0] sm:$0xff]
        %v499 = vld [vmem:[%s437 + $0xe8] sm:$0xff]
        %v500 = vld [vmem:[%s437 + $0xf0] sm:$0xff]
        %v501 = vld [vmem:[%s437 + $0xf8] sm:$0xff]
        %v502 = vld [vmem:[%s437 + $0x100] sm:$0xff]
        %v503 = vld [vmem:[%s437 + $0x108] sm:$0xff]
        %v504 = vld [vmem:[%s437 + $0x110] sm:$0xff]
        %v505 = vld [vmem:[%s437 + $0x118] sm:$0xff]
        %v506 = vld [vmem:[%s437 + $0x120] sm:$0xff]
        %v507 = vld [vmem:[%s437 + $0x128] sm:$0xff]
        %v508 = vld [vmem:[%s437 + $0x130] sm:$0xff]
        %v509 = vld [vmem:[%s437 + $0x138] sm:$0xff]
        %v510 = vld [vmem:[%s437 + $0x140] sm:$0xff]
        %v511 = vld [vmem:[%s437 + $0x148] sm:$0xff]
        %v512 = vld [vmem:[%s437 + $0x150] sm:$0xff]
        %v513 = vld [vmem:[%s437 + $0x158] sm:$0xff]
        %v514 = vld [vmem:[%s437 + $0x160] sm:$0xff]
        %v515 = vld [vmem:[%s437 + $0x168] sm:$0xff]
        %v516 = vld [vmem:[%s437 + $0x170] sm:$0xff]
        %v517 = vld [vmem:[%s437 + $0x178] sm:$0xff]
        %v518 = vld [vmem:[%s437 + $0x180] sm:$0xff]
        %v519 = vld [vmem:[%s437 + $0x188] sm:$0xff]
        %v520 = vld [vmem:[%s437 + $0x190] sm:$0xff]
        %v521 = vld [vmem:[%s437 + $0x198] sm:$0xff]
        %v522 = vld [vmem:[%s437 + $0x1a0] sm:$0xff]
        %v523 = vld [vmem:[%s437 + $0x1a8] sm:$0xff]
        %v524 = vld [vmem:[%s437 + $0x1b0] sm:$0xff]
        %v525 = vld [vmem:[%s437 + $0x1b8] sm:$0xff]
        %v526 = vld [vmem:[%s437 + $0x1c0] sm:$0xff]
        %v527 = vld [vmem:[%s437 + $0x1c8] sm:$0xff]
        %v528 = vld [vmem:[%s437 + $0x1d0] sm:$0xff]
        %v529 = vld [vmem:[%s437 + $0x1d8] sm:$0xff]
        %v530 = vld [vmem:[%s437 + $0x1e0] sm:$0xff]
        %v531 = vld [vmem:[%s437 + $0x1e8] sm:$0xff]
        %v532 = vld [vmem:[%s437 + $0x1f0] sm:$0xff]
        %v533 = vld [vmem:[%s437 + $0x1f8] sm:$0xff]
        %v534 = vld [vmem:[%s4] sm:$0xff]
        %v535 = vld [vmem:[%s4 + $0x8] sm:$0xff]
        %v536 = vld [vmem:[%s4 + $0x10] sm:$0xff]
        %v537 = vld [vmem:[%s4 + $0x18] sm:$0xff]
        %v538 = vld [vmem:[%s447] sm:$0xff]
        %v539 = vld [vmem:[%s447 + $0x8] sm:$0xff]
        %v540 = vld [vmem:[%s447 + $0x10] sm:$0xff]
        %v541 = vld [vmem:[%s447 + $0x18] sm:$0xff]
        %v542 = vld [vmem:[%s447 + $0x20] sm:$0xff]
        %v543 = vld [vmem:[%s447 + $0x28] sm:$0xff]
        %v544 = vld [vmem:[%s447 + $0x30] sm:$0xff]
        %v545 = vld [vmem:[%s447 + $0x38] sm:$0xff]
        %v546 = vld [vmem:[%s447 + $0x40] sm:$0xff]
        %v547 = vld [vmem:[%s447 + $0x48] sm:$0xff]
        %v548 = vld [vmem:[%s447 + $0x50] sm:$0xff]
        %v549 = vld [vmem:[%s447 + $0x58] sm:$0xff]
        %v550 = vld [vmem:[%s447 + $0x60] sm:$0xff]
        %v551 = vld [vmem:[%s447 + $0x68] sm:$0xff]
        %v552 = vld [vmem:[%s447 + $0x70] sm:$0xff]
        %v553 = vld [vmem:[%s447 + $0x78] sm:$0xff]
        %v554 = vld [vmem:[%s447 + $0x80] sm:$0xff]
        %v555 = vld [vmem:[%s447 + $0x88] sm:$0xff]
        %v556 = vld [vmem:[%s447 + $0x90] sm:$0xff]
        %v557 = vld [vmem:[%s447 + $0x98] sm:$0xff]
        %v558 = vld [vmem:[%s447 + $0xa0] sm:$0xff]
        %v559 = vld [vmem:[%s447 + $0xa8] sm:$0xff]
        %v560 = vld [vmem:[%s447 + $0xb0] sm:$0xff]
        %v561 = vld [vmem:[%s447 + $0xb8] sm:$0xff]
        %v562 = vld [vmem:[%s447 + $0xc0] sm:$0xff]
        %v563 = vld [vmem:[%s447 + $0xc8] sm:$0xff]
        %v564 = vld [vmem:[%s447 + $0xd0] sm:$0xff]
        %v565 = vld [vmem:[%s447 + $0xd8] sm:$0xff]
        %v566 = vld [vmem:[%s447 + $0xe0] sm:$0xff]
        %v567 = vld [vmem:[%s447 + $0xe8] sm:$0xff]
        %v568 = vld [vmem:[%s447 + $0xf0] sm:$0xff]
        %v569 = vld [vmem:[%s447 + $0xf8] sm:$0xff]
        %v570 = vld [vmem:[%s447 + $0x100] sm:$0xff]
        %v571 = vld [vmem:[%s447 + $0x108] sm:$0xff]
        %v572 = vld [vmem:[%s447 + $0x110] sm:$0xff]
        %v573 = vld [vmem:[%s447 + $0x118] sm:$0xff]
        %v574 = vld [vmem:[%s447 + $0x120] sm:$0xff]
        %v575 = vld [vmem:[%s447 + $0x128] sm:$0xff]
        %v576 = vld [vmem:[%s447 + $0x130] sm:$0xff]
        %v577 = vld [vmem:[%s447 + $0x138] sm:$0xff]
        %v578 = vld [vmem:[%s447 + $0x140] sm:$0xff]
        %v579 = vld [vmem:[%s447 + $0x148] sm:$0xff]
        %v580 = vld [vmem:[%s447 + $0x150] sm:$0xff]
        %v581 = vld [vmem:[%s447 + $0x158] sm:$0xff]
        %v582 = vld [vmem:[%s447 + $0x160] sm:$0xff]
        %v583 = vld [vmem:[%s447 + $0x168] sm:$0xff]
        %v584 = vld [vmem:[%s447 + $0x170] sm:$0xff]
        %v585 = vld [vmem:[%s447 + $0x178] sm:$0xff]
        %v586 = vld [vmem:[%s447 + $0x180] sm:$0xff]
        %v587 = vld [vmem:[%s447 + $0x188] sm:$0xff]
        %v588 = vld [vmem:[%s447 + $0x190] sm:$0xff]
        %v589 = vld [vmem:[%s447 + $0x198] sm:$0xff]
        %v590 = vld [vmem:[%s447 + $0x1a0] sm:$0xff]
        %v591 = vld [vmem:[%s447 + $0x1a8] sm:$0xff]
        %v592 = vld [vmem:[%s447 + $0x1b0] sm:$0xff]
        %v593 = vld [vmem:[%s447 + $0x1b8] sm:$0xff]
        %v594 = vld [vmem:[%s447 + $0x1c0] sm:$0xff]
        %v595 = vld [vmem:[%s447 + $0x1c8] sm:$0xff]
        %v596 = vld [vmem:[%s447 + $0x1d0] sm:$0xff]
        %v597 = vld [vmem:[%s447 + $0x1d8] sm:$0xff]
        %v598 = vld [vmem:[%s447 + $0x1e0] sm:$0xff]
        %v599 = vld [vmem:[%s447 + $0x1e8] sm:$0xff]
        %v600 = vld [vmem:[%s447 + $0x1f0] sm:$0xff]
        %v601 = vld [vmem:[%s447 + $0x1f8] sm:$0xff]
        %v602 = vld [vmem:[%s5] sm:$0x7]
        %vm603 = vcmask 23552
        %v605 = vsel %vm603, %v538, 0
        %v608 = vsel %vm603, %v539, 0
        %v611 = vsel %vm603, %v540, 0
        %v614 = vsel %vm603, %v541, 0
        %v617 = vsel %vm603, %v542, 0
        %v620 = vsel %vm603, %v543, 0
        %v623 = vsel %vm603, %v544, 0
        %v626 = vsel %vm603, %v545, 0
        %v629 = vsel %vm603, %v546, 0
        %v632 = vsel %vm603, %v547, 0
        %v635 = vsel %vm603, %v548, 0
        %v638 = vsel %vm603, %v549, 0
        %v641 = vsel %vm603, %v550, 0
        %v644 = vsel %vm603, %v551, 0
        %v647 = vsel %vm603, %v552, 0
        %v650 = vsel %vm603, %v553, 0
        %v653 = vsel %vm603, %v554, 0
        %v656 = vsel %vm603, %v555, 0
        %v659 = vsel %vm603, %v556, 0
        %v662 = vsel %vm603, %v557, 0
        %v665 = vsel %vm603, %v558, 0
        %v668 = vsel %vm603, %v559, 0
        %v671 = vsel %vm603, %v560, 0
        %v674 = vsel %vm603, %v561, 0
        %v677 = vsel %vm603, %v562, 0
        %v680 = vsel %vm603, %v563, 0
        %v683 = vsel %vm603, %v564, 0
        %v686 = vsel %vm603, %v565, 0
        %v689 = vsel %vm603, %v566, 0
        %v692 = vsel %vm603, %v567, 0
        %v695 = vsel %vm603, %v568, 0
        %v698 = vsel %vm603, %v569, 0
        %v701 = vsel %vm603, %v570, 0
        %v704 = vsel %vm603, %v571, 0
        %v707 = vsel %vm603, %v572, 0
        %v710 = vsel %vm603, %v573, 0
        %v713 = vsel %vm603, %v574, 0
        %v716 = vsel %vm603, %v575, 0
        %v719 = vsel %vm603, %v576, 0
        %v722 = vsel %vm603, %v577, 0
        %v725 = vsel %vm603, %v578, 0
        %v728 = vsel %vm603, %v579, 0
        %v731 = vsel %vm603, %v580, 0
        %v734 = vsel %vm603, %v581, 0
        %v737 = vsel %vm603, %v582, 0
        %v740 = vsel %vm603, %v583, 0
        %v743 = vsel %vm603, %v584, 0
        %v746 = vsel %vm603, %v585, 0
        %v749 = vsel %vm603, %v586, 0
        %v752 = vsel %vm603, %v587, 0
        %v755 = vsel %vm603, %v588, 0
        %v758 = vsel %vm603, %v589, 0
        %v761 = vsel %vm603, %v590, 0
        %v764 = vsel %vm603, %v591, 0
        %v767 = vsel %vm603, %v592, 0
        %v770 = vsel %vm603, %v593, 0
        %v773 = vsel %vm603, %v594, 0
        %v776 = vsel %vm603, %v595, 0
        %v779 = vsel %vm603, %v596, 0
        %v782 = vsel %vm603, %v597, 0
        %v785 = vsel %vm603, %v598, 0
        %v788 = vsel %vm603, %v599, 0
        %v791 = vsel %vm603, %v600, 0
        %v794 = vsel %vm603, %v601, 0
        %vm796 = vcmask 1042432
        %v798 = vsel %vm796, %v602, 0
        %800 = vmatprep.subr.mxu0 0.0
        %801 = vmatpush1.msra.mxu0 0.0
        %802 = vmatprep.subr.mxu0 0.0
        %803 = vmatpush1.msra.mxu0 0.0
        %804 = vmatprep.subr.mxu0 0.0
        %805 = vmatpush1.msra.mxu0 0.0
        %806 = vmatprep.subr.mxu0 0.0
        %807 = vmatpush1.msra.mxu0 0.0
        %808 = vmatprep.subr.mxu0 0.0
        %809 = vmatpush1.msra.mxu0 0.0
        %810 = vmatprep.subr.mxu0 0.0
        %811 = vmatpush1.msra.mxu0 0.0
        %812 = vmatprep.subr.mxu0 0.0
        %813 = vmatpush1.msra.mxu0 0.0
        %814 = vmatprep.subr.mxu0 0.0
        %815 = vmatpush1.msra.mxu0 0.0
        %816 = vmatprep.subr.mxu0 0.0
        %817 = vmatpush1.msra.mxu0 0.0
        %818 = vmatprep.subr.mxu0 0.0
        %819 = vmatpush1.msra.mxu0 0.0
        %820 = vmatprep.subr.mxu0 0.0
        %821 = vmatpush1.msra.mxu0 0.0
        %822 = vmatprep.subr.mxu0 0.0
        %823 = vmatpush1.msra.mxu0 0.0
        %824 = vmatprep.subr.mxu0 0.0
        %825 = vmatpush1.msra.mxu0 0.0
        %826 = vmatprep.subr.mxu0 0.0
        %827 = vmatpush1.msra.mxu0 0.0
        %828 = vmatprep.subr.mxu0 0.0
        %829 = vmatpush1.msra.mxu0 0.0
        %830 = vmatprep.subr.mxu0 0.0
        %831 = vmatpush1.msra.mxu0 %v798
        %832 = vmatprep.subr.mxu0 0.0
        %833 = vmatpush2.msra.mxu0 0.0
        %834 = vmatprep.subr.mxu0 0.0
        %835 = vmatpush2.msra.mxu0 0.0
        %836 = vmatprep.subr.mxu0 0.0
        %837 = vmatpush2.msra.mxu0 0.0
        %838 = vmatprep.subr.mxu0 0.0
        %839 = vmatpush2.msra.mxu0 0.0
        %840 = vmatprep.subr.mxu0 0.0
        %841 = vmatpush2.msra.mxu0 0.0
        %842 = vmatprep.subr.mxu0 0.0
        %843 = vmatpush2.msra.mxu0 0.0
        %844 = vmatprep.subr.mxu0 0.0
        %845 = vmatpush2.msra.mxu0 0.0
        %846 = vmatprep.subr.mxu0 0.0
        %847 = vmatpush2.msra.mxu0 0.0
        %848 = vmatprep.subr.mxu0 0.0
        %849 = vmatpush2.msra.mxu0 0.0
        %850 = vmatprep.subr.mxu0 0.0
        %851 = vmatpush2.msra.mxu0 0.0
        %852 = vmatprep.subr.mxu0 0.0
        %853 = vmatpush2.msra.mxu0 0.0
        %854 = vmatprep.subr.mxu0 0.0
        %855 = vmatpush2.msra.mxu0 0.0
        %856 = vmatprep.subr.mxu0 0.0
        %857 = vmatpush2.msra.mxu0 0.0
        %858 = vmatprep.subr.mxu0 0.0
        %859 = vmatpush2.msra.mxu0 0.0
        %860 = vmatprep.subr.mxu0 0.0
        %861 = vmatpush2.msra.mxu0 0.0
        %862 = vmatprep.subr.mxu0 0.0
        %863 = vmatpush2.msra.mxu0 0.0
        %864 = vmatprep.mubr.f32.mxu0 0.0
        %865 = vmatmul.mubr.f32.gmra.mxu0 %v605
        %v866 = vpop.f32.mrf.mxu0
        %v867 = vadd.f32 0.0, %v866
        %v868 = vpop.f32.mrf.mxu0
        %869 = vmatprep.mubr.f32.mxu0 0.0
        %870 = vmatmul.mubr.f32.gmra.mxu0 %v608
        %v871 = vpop.f32.mrf.mxu0
        %v872 = vadd.f32 0.0, %v871
        %v873 = vpop.f32.mrf.mxu0
        %874 = vmatprep.mubr.f32.mxu0 0.0
        %875 = vmatmul.mubr.f32.gmra.mxu0 %v611
        %v876 = vpop.f32.mrf.mxu0
        %v877 = vadd.f32 0.0, %v876
        %v878 = vpop.f32.mrf.mxu0
        %879 = vmatprep.mubr.f32.mxu0 0.0
        %880 = vmatmul.mubr.f32.gmra.mxu0 %v614
        %v881 = vpop.f32.mrf.mxu0
        %v882 = vadd.f32 0.0, %v881
        %v883 = vpop.f32.mrf.mxu0
        %884 = vmatprep.mubr.f32.mxu0 0.0
        %885 = vmatmul.mubr.f32.gmra.mxu0 %v617
        %v886 = vpop.f32.mrf.mxu0
        %v887 = vadd.f32 0.0, %v886
        %v888 = vpop.f32.mrf.mxu0
        %889 = vmatprep.mubr.f32.mxu0 0.0
        %890 = vmatmul.mubr.f32.gmra.mxu0 %v620
        %v891 = vpop.f32.mrf.mxu0
        %v892 = vadd.f32 0.0, %v891
        %v893 = vpop.f32.mrf.mxu0
        %894 = vmatprep.mubr.f32.mxu0 0.0
        %895 = vmatmul.mubr.f32.gmra.mxu0 %v623
        %v896 = vpop.f32.mrf.mxu0
        %v897 = vadd.f32 0.0, %v896
        %v898 = vpop.f32.mrf.mxu0
        %899 = vmatprep.mubr.f32.mxu0 0.0
        %900 = vmatmul.mubr.f32.gmra.mxu0 %v626
        %v901 = vpop.f32.mrf.mxu0
        %v902 = vadd.f32 0.0, %v901
        %v903 = vpop.f32.mrf.mxu0
        %904 = vmatprep.mubr.f32.mxu0 0.0
        %905 = vmatmul.mubr.f32.gmra.mxu0 %v629
        %v906 = vpop.f32.mrf.mxu0
        %v907 = vadd.f32 0.0, %v906
        %v908 = vpop.f32.mrf.mxu0
        %909 = vmatprep.mubr.f32.mxu0 0.0
        %910 = vmatmul.mubr.f32.gmra.mxu0 %v632
        %v911 = vpop.f32.mrf.mxu0
        %v912 = vadd.f32 0.0, %v911
        %v913 = vpop.f32.mrf.mxu0
        %914 = vmatprep.mubr.f32.mxu0 0.0
        %915 = vmatmul.mubr.f32.gmra.mxu0 %v635
        %v916 = vpop.f32.mrf.mxu0
        %v917 = vadd.f32 0.0, %v916
        %v918 = vpop.f32.mrf.mxu0
        %919 = vmatprep.mubr.f32.mxu0 0.0
        %920 = vmatmul.mubr.f32.gmra.mxu0 %v638
        %v921 = vpop.f32.mrf.mxu0
        %v922 = vadd.f32 0.0, %v921
        %v923 = vpop.f32.mrf.mxu0
        %924 = vmatprep.mubr.f32.mxu0 0.0
        %925 = vmatmul.mubr.f32.gmra.mxu0 %v641
        %v926 = vpop.f32.mrf.mxu0
        %v927 = vadd.f32 0.0, %v926
        %v928 = vpop.f32.mrf.mxu0
        %929 = vmatprep.mubr.f32.mxu0 0.0
        %930 = vmatmul.mubr.f32.gmra.mxu0 %v644
        %v931 = vpop.f32.mrf.mxu0
        %v932 = vadd.f32 0.0, %v931
        %v933 = vpop.f32.mrf.mxu0
        %934 = vmatprep.mubr.f32.mxu0 0.0
        %935 = vmatmul.mubr.f32.gmra.mxu0 %v647
        %v936 = vpop.f32.mrf.mxu0
        %v937 = vadd.f32 0.0, %v936
        %v938 = vpop.f32.mrf.mxu0
        %939 = vmatprep.mubr.f32.mxu0 0.0
        %940 = vmatmul.mubr.f32.gmra.mxu0 %v650
        %v941 = vpop.f32.mrf.mxu0
        %v942 = vadd.f32 0.0, %v941
        %v943 = vpop.f32.mrf.mxu0
        %944 = vmatprep.mubr.f32.mxu0 0.0
        %945 = vmatmul.mubr.f32.gmra.mxu0 %v653
        %v946 = vpop.f32.mrf.mxu0
        %v947 = vadd.f32 0.0, %v946
        %v948 = vpop.f32.mrf.mxu0
        %949 = vmatprep.mubr.f32.mxu0 0.0
        %950 = vmatmul.mubr.f32.gmra.mxu0 %v656
        %v951 = vpop.f32.mrf.mxu0
        %v952 = vadd.f32 0.0, %v951
        %v953 = vpop.f32.mrf.mxu0
        %954 = vmatprep.mubr.f32.mxu0 0.0
        %955 = vmatmul.mubr.f32.gmra.mxu0 %v659
        %v956 = vpop.f32.mrf.mxu0
        %v957 = vadd.f32 0.0, %v956
        %v958 = vpop.f32.mrf.mxu0
        %959 = vmatprep.mubr.f32.mxu0 0.0
        %960 = vmatmul.mubr.f32.gmra.mxu0 %v662
        %v961 = vpop.f32.mrf.mxu0
        %v962 = vadd.f32 0.0, %v961
        %v963 = vpop.f32.mrf.mxu0
        %964 = vmatprep.mubr.f32.mxu0 0.0
        %965 = vmatmul.mubr.f32.gmra.mxu0 %v665
        %v966 = vpop.f32.mrf.mxu0
        %v967 = vadd.f32 0.0, %v966
        %v968 = vpop.f32.mrf.mxu0
        %969 = vmatprep.mubr.f32.mxu0 0.0
        %970 = vmatmul.mubr.f32.gmra.mxu0 %v668
        %v971 = vpop.f32.mrf.mxu0
        %v972 = vadd.f32 0.0, %v971
        %v973 = vpop.f32.mrf.mxu0
        %974 = vmatprep.mubr.f32.mxu0 0.0
        %975 = vmatmul.mubr.f32.gmra.mxu0 %v671
        %v976 = vpop.f32.mrf.mxu0
        %v977 = vadd.f32 0.0, %v976
        %v978 = vpop.f32.mrf.mxu0
        %979 = vmatprep.mubr.f32.mxu0 0.0
        %980 = vmatmul.mubr.f32.gmra.mxu0 %v674
        %v981 = vpop.f32.mrf.mxu0
        %v982 = vadd.f32 0.0, %v981
        %v983 = vpop.f32.mrf.mxu0
        %984 = vmatprep.mubr.f32.mxu0 0.0
        %985 = vmatmul.mubr.f32.gmra.mxu0 %v677
        %v986 = vpop.f32.mrf.mxu0
        %v987 = vadd.f32 0.0, %v986
        %v988 = vpop.f32.mrf.mxu0
        %989 = vmatprep.mubr.f32.mxu0 0.0
        %990 = vmatmul.mubr.f32.gmra.mxu0 %v680
        %v991 = vpop.f32.mrf.mxu0
        %v992 = vadd.f32 0.0, %v991
        %v993 = vpop.f32.mrf.mxu0
        %994 = vmatprep.mubr.f32.mxu0 0.0
        %995 = vmatmul.mubr.f32.gmra.mxu0 %v683
        %v996 = vpop.f32.mrf.mxu0
        %v997 = vadd.f32 0.0, %v996
        %v998 = vpop.f32.mrf.mxu0
        %999 = vmatprep.mubr.f32.mxu0 0.0
        %1000 = vmatmul.mubr.f32.gmra.mxu0 %v686
        %v1001 = vpop.f32.mrf.mxu0
        %v1002 = vadd.f32 0.0, %v1001
        %v1003 = vpop.f32.mrf.mxu0
        %1004 = vmatprep.mubr.f32.mxu0 0.0
        %1005 = vmatmul.mubr.f32.gmra.mxu0 %v689
        %v1006 = vpop.f32.mrf.mxu0
        %v1007 = vadd.f32 0.0, %v1006
        %v1008 = vpop.f32.mrf.mxu0
        %1009 = vmatprep.mubr.f32.mxu0 0.0
        %1010 = vmatmul.mubr.f32.gmra.mxu0 %v692
        %v1011 = vpop.f32.mrf.mxu0
        %v1012 = vadd.f32 0.0, %v1011
        %v1013 = vpop.f32.mrf.mxu0
        %1014 = vmatprep.mubr.f32.mxu0 0.0
        %1015 = vmatmul.mubr.f32.gmra.mxu0 %v695
        %v1016 = vpop.f32.mrf.mxu0
        %v1017 = vadd.f32 0.0, %v1016
        %v1018 = vpop.f32.mrf.mxu0
        %1019 = vmatprep.mubr.f32.mxu0 0.0
        %1020 = vmatmul.mubr.f32.gmra.mxu0 %v698
        %v1021 = vpop.f32.mrf.mxu0
        %v1022 = vadd.f32 0.0, %v1021
        %v1023 = vpop.f32.mrf.mxu0
        %1024 = vmatprep.mubr.f32.mxu0 0.0
        %1025 = vmatmul.mubr.f32.gmra.mxu0 %v701
        %v1026 = vpop.f32.mrf.mxu0
        %v1027 = vadd.f32 0.0, %v1026
        %v1028 = vpop.f32.mrf.mxu0
        %1029 = vmatprep.mubr.f32.mxu0 0.0
        %1030 = vmatmul.mubr.f32.gmra.mxu0 %v704
        %v1031 = vpop.f32.mrf.mxu0
        %v1032 = vadd.f32 0.0, %v1031
        %v1033 = vpop.f32.mrf.mxu0
        %1034 = vmatprep.mubr.f32.mxu0 0.0
        %1035 = vmatmul.mubr.f32.gmra.mxu0 %v707
        %v1036 = vpop.f32.mrf.mxu0
        %v1037 = vadd.f32 0.0, %v1036
        %v1038 = vpop.f32.mrf.mxu0
        %1039 = vmatprep.mubr.f32.mxu0 0.0
        %1040 = vmatmul.mubr.f32.gmra.mxu0 %v710
        %v1041 = vpop.f32.mrf.mxu0
        %v1042 = vadd.f32 0.0, %v1041
        %v1043 = vpop.f32.mrf.mxu0
        %1044 = vmatprep.mubr.f32.mxu0 0.0
        %1045 = vmatmul.mubr.f32.gmra.mxu0 %v713
        %v1046 = vpop.f32.mrf.mxu0
        %v1047 = vadd.f32 0.0, %v1046
        %v1048 = vpop.f32.mrf.mxu0
        %1049 = vmatprep.mubr.f32.mxu0 0.0
        %1050 = vmatmul.mubr.f32.gmra.mxu0 %v716
        %v1051 = vpop.f32.mrf.mxu0
        %v1052 = vadd.f32 0.0, %v1051
        %v1053 = vpop.f32.mrf.mxu0
        %1054 = vmatprep.mubr.f32.mxu0 0.0
        %1055 = vmatmul.mubr.f32.gmra.mxu0 %v719
        %v1056 = vpop.f32.mrf.mxu0
        %v1057 = vadd.f32 0.0, %v1056
        %v1058 = vpop.f32.mrf.mxu0
        %1059 = vmatprep.mubr.f32.mxu0 0.0
        %1060 = vmatmul.mubr.f32.gmra.mxu0 %v722
        %v1061 = vpop.f32.mrf.mxu0
        %v1062 = vadd.f32 0.0, %v1061
        %v1063 = vpop.f32.mrf.mxu0
        %1064 = vmatprep.mubr.f32.mxu0 0.0
        %1065 = vmatmul.mubr.f32.gmra.mxu0 %v725
        %v1066 = vpop.f32.mrf.mxu0
        %v1067 = vadd.f32 0.0, %v1066
        %v1068 = vpop.f32.mrf.mxu0
        %1069 = vmatprep.mubr.f32.mxu0 0.0
        %1070 = vmatmul.mubr.f32.gmra.mxu0 %v728
        %v1071 = vpop.f32.mrf.mxu0
        %v1072 = vadd.f32 0.0, %v1071
        %v1073 = vpop.f32.mrf.mxu0
        %1074 = vmatprep.mubr.f32.mxu0 0.0
        %1075 = vmatmul.mubr.f32.gmra.mxu0 %v731
        %v1076 = vpop.f32.mrf.mxu0
        %v1077 = vadd.f32 0.0, %v1076
        %v1078 = vpop.f32.mrf.mxu0
        %1079 = vmatprep.mubr.f32.mxu0 0.0
        %1080 = vmatmul.mubr.f32.gmra.mxu0 %v734
        %v1081 = vpop.f32.mrf.mxu0
        %v1082 = vadd.f32 0.0, %v1081
        %v1083 = vpop.f32.mrf.mxu0
        %1084 = vmatprep.mubr.f32.mxu0 0.0
        %1085 = vmatmul.mubr.f32.gmra.mxu0 %v737
        %v1086 = vpop.f32.mrf.mxu0
        %v1087 = vadd.f32 0.0, %v1086
        %v1088 = vpop.f32.mrf.mxu0
        %1089 = vmatprep.mubr.f32.mxu0 0.0
        %1090 = vmatmul.mubr.f32.gmra.mxu0 %v740
        %v1091 = vpop.f32.mrf.mxu0
        %v1092 = vadd.f32 0.0, %v1091
        %v1093 = vpop.f32.mrf.mxu0
        %1094 = vmatprep.mubr.f32.mxu0 0.0
        %1095 = vmatmul.mubr.f32.gmra.mxu0 %v743
        %v1096 = vpop.f32.mrf.mxu0
        %v1097 = vadd.f32 0.0, %v1096
        %v1098 = vpop.f32.mrf.mxu0
        %1099 = vmatprep.mubr.f32.mxu0 0.0
        %1100 = vmatmul.mubr.f32.gmra.mxu0 %v746
        %v1101 = vpop.f32.mrf.mxu0
        %v1102 = vadd.f32 0.0, %v1101
        %v1103 = vpop.f32.mrf.mxu0
        %1104 = vmatprep.mubr.f32.mxu0 0.0
        %1105 = vmatmul.mubr.f32.gmra.mxu0 %v749
        %v1106 = vpop.f32.mrf.mxu0
        %v1107 = vadd.f32 0.0, %v1106
        %v1108 = vpop.f32.mrf.mxu0
        %1109 = vmatprep.mubr.f32.mxu0 0.0
        %1110 = vmatmul.mubr.f32.gmra.mxu0 %v752
        %v1111 = vpop.f32.mrf.mxu0
        %v1112 = vadd.f32 0.0, %v1111
        %v1113 = vpop.f32.mrf.mxu0
        %1114 = vmatprep.mubr.f32.mxu0 0.0
        %1115 = vmatmul.mubr.f32.gmra.mxu0 %v755
        %v1116 = vpop.f32.mrf.mxu0
        %v1117 = vadd.f32 0.0, %v1116
        %v1118 = vpop.f32.mrf.mxu0
        %1119 = vmatprep.mubr.f32.mxu0 0.0
        %1120 = vmatmul.mubr.f32.gmra.mxu0 %v758
        %v1121 = vpop.f32.mrf.mxu0
        %v1122 = vadd.f32 0.0, %v1121
        %v1123 = vpop.f32.mrf.mxu0
        %1124 = vmatprep.mubr.f32.mxu0 0.0
        %1125 = vmatmul.mubr.f32.gmra.mxu0 %v761
        %v1126 = vpop.f32.mrf.mxu0
        %v1127 = vadd.f32 0.0, %v1126
        %v1128 = vpop.f32.mrf.mxu0
        %1129 = vmatprep.mubr.f32.mxu0 0.0
        %1130 = vmatmul.mubr.f32.gmra.mxu0 %v764
        %v1131 = vpop.f32.mrf.mxu0
        %v1132 = vadd.f32 0.0, %v1131
        %v1133 = vpop.f32.mrf.mxu0
        %1134 = vmatprep.mubr.f32.mxu0 0.0
        %1135 = vmatmul.mubr.f32.gmra.mxu0 %v767
        %v1136 = vpop.f32.mrf.mxu0
        %v1137 = vadd.f32 0.0, %v1136
        %v1138 = vpop.f32.mrf.mxu0
        %1139 = vmatprep.mubr.f32.mxu0 0.0
        %1140 = vmatmul.mubr.f32.gmra.mxu0 %v770
        %v1141 = vpop.f32.mrf.mxu0
        %v1142 = vadd.f32 0.0, %v1141
        %v1143 = vpop.f32.mrf.mxu0
        %1144 = vmatprep.mubr.f32.mxu0 0.0
        %1145 = vmatmul.mubr.f32.gmra.mxu0 %v773
        %v1146 = vpop.f32.mrf.mxu0
        %v1147 = vadd.f32 0.0, %v1146
        %v1148 = vpop.f32.mrf.mxu0
        %1149 = vmatprep.mubr.f32.mxu0 0.0
        %1150 = vmatmul.mubr.f32.gmra.mxu0 %v776
        %v1151 = vpop.f32.mrf.mxu0
        %v1152 = vadd.f32 0.0, %v1151
        %v1153 = vpop.f32.mrf.mxu0
        %1154 = vmatprep.mubr.f32.mxu0 0.0
        %1155 = vmatmul.mubr.f32.gmra.mxu0 %v779
        %v1156 = vpop.f32.mrf.mxu0
        %v1157 = vadd.f32 0.0, %v1156
        %v1158 = vpop.f32.mrf.mxu0
        %1159 = vmatprep.mubr.f32.mxu0 0.0
        %1160 = vmatmul.mubr.f32.gmra.mxu0 %v782
        %v1161 = vpop.f32.mrf.mxu0
        %v1162 = vadd.f32 0.0, %v1161
        %v1163 = vpop.f32.mrf.mxu0
        %1164 = vmatprep.mubr.f32.mxu0 0.0
        %1165 = vmatmul.mubr.f32.gmra.mxu0 %v785
        %v1166 = vpop.f32.mrf.mxu0
        %v1167 = vadd.f32 0.0, %v1166
        %v1168 = vpop.f32.mrf.mxu0
        %1169 = vmatprep.mubr.f32.mxu0 0.0
        %1170 = vmatmul.mubr.f32.gmra.mxu0 %v788
        %v1171 = vpop.f32.mrf.mxu0
        %v1172 = vadd.f32 0.0, %v1171
        %v1173 = vpop.f32.mrf.mxu0
        %1174 = vmatprep.mubr.f32.mxu0 0.0
        %1175 = vmatmul.mubr.f32.gmra.mxu0 %v791
        %v1176 = vpop.f32.mrf.mxu0
        %v1177 = vadd.f32 0.0, %v1176
        %v1178 = vpop.f32.mrf.mxu0
        %1179 = vmatprep.mubr.f32.mxu0 0.0
        %1180 = vmatmul.mubr.f32.gmra.mxu0 %v794
        %v1181 = vpop.f32.mrf.mxu0
        %v1182 = vadd.f32 0.0, %v1181
        %v1183 = vpop.f32.mrf.mxu0
        %1184 = vdwg.mxu0
        %vm1185 = vcmask 261120
        %v1187 = vsel %vm1185, %v470, 0
        %v1190 = vsel %vm1185, %v471, 0
        %v1193 = vsel %vm1185, %v472, 0
        %v1196 = vsel %vm1185, %v473, 0
        %v1199 = vsel %vm1185, %v474, 0
        %v1202 = vsel %vm1185, %v475, 0
        %v1205 = vsel %vm1185, %v476, 0
        %v1208 = vsel %vm1185, %v477, 0
        %v1211 = vsel %vm1185, %v478, 0
        %v1214 = vsel %vm1185, %v479, 0
        %v1217 = vsel %vm1185, %v480, 0
        %v1220 = vsel %vm1185, %v481, 0
        %v1223 = vsel %vm1185, %v482, 0
        %v1226 = vsel %vm1185, %v483, 0
        %v1229 = vsel %vm1185, %v484, 0
        %v1232 = vsel %vm1185, %v485, 0
        %v1235 = vsel %vm1185, %v486, 0
        %v1238 = vsel %vm1185, %v487, 0
        %v1241 = vsel %vm1185, %v488, 0
        %v1244 = vsel %vm1185, %v489, 0
        %v1247 = vsel %vm1185, %v490, 0
        %v1250 = vsel %vm1185, %v491, 0
        %v1253 = vsel %vm1185, %v492, 0
        %v1256 = vsel %vm1185, %v493, 0
        %v1259 = vsel %vm1185, %v494, 0
        %v1262 = vsel %vm1185, %v495, 0
        %v1265 = vsel %vm1185, %v496, 0
        %v1268 = vsel %vm1185, %v497, 0
        %v1271 = vsel %vm1185, %v498, 0
        %v1274 = vsel %vm1185, %v499, 0
        %v1277 = vsel %vm1185, %v500, 0
        %v1280 = vsel %vm1185, %v501, 0
        %v1283 = vsel %vm1185, %v502, 0
        %v1286 = vsel %vm1185, %v503, 0
        %v1289 = vsel %vm1185, %v504, 0
        %v1292 = vsel %vm1185, %v505, 0
        %v1295 = vsel %vm1185, %v506, 0
        %v1298 = vsel %vm1185, %v507, 0
        %v1301 = vsel %vm1185, %v508, 0
        %v1304 = vsel %vm1185, %v509, 0
        %v1307 = vsel %vm1185, %v510, 0
        %v1310 = vsel %vm1185, %v511, 0
        %v1313 = vsel %vm1185, %v512, 0
        %v1316 = vsel %vm1185, %v513, 0
        %v1319 = vsel %vm1185, %v514, 0
        %v1322 = vsel %vm1185, %v515, 0
        %v1325 = vsel %vm1185, %v516, 0
        %v1328 = vsel %vm1185, %v517, 0
        %v1331 = vsel %vm1185, %v518, 0
        %v1334 = vsel %vm1185, %v519, 0
        %v1337 = vsel %vm1185, %v520, 0
        %v1340 = vsel %vm1185, %v521, 0
        %v1343 = vsel %vm1185, %v522, 0
        %v1346 = vsel %vm1185, %v523, 0
        %v1349 = vsel %vm1185, %v524, 0
        %v1352 = vsel %vm1185, %v525, 0
        %v1355 = vsel %vm1185, %v526, 0
        %v1358 = vsel %vm1185, %v527, 0
        %v1361 = vsel %vm1185, %v528, 0
        %v1364 = vsel %vm1185, %v529, 0
        %v1367 = vsel %vm1185, %v530, 0
        %v1370 = vsel %vm1185, %v531, 0
        %v1373 = vsel %vm1185, %v532, 0
        %v1376 = vsel %vm1185, %v533, 0
        %1378 = vmatprep.subr.mxu0 0.0
        %1379 = vmatpush1.msra.mxu0 0.0
        %1380 = vmatprep.subr.mxu0 0.0
        %1381 = vmatpush1.msra.mxu0 0.0
        %1382 = vmatprep.subr.mxu0 0.0
        %1383 = vmatpush1.msra.mxu0 0.0
        %1384 = vmatprep.subr.mxu0 0.0
        %1385 = vmatpush1.msra.mxu0 0.0
        %1386 = vmatprep.subr.mxu0 0.0
        %1387 = vmatpush1.msra.mxu0 0.0
        %1388 = vmatprep.subr.mxu0 0.0
        %1389 = vmatpush1.msra.mxu0 0.0
        %1390 = vmatprep.subr.mxu0 0.0
        %1391 = vmatpush1.msra.mxu0 0.0
        %1392 = vmatprep.subr.mxu0 0.0
        %1393 = vmatpush1.msra.mxu0 0.0
        %1394 = vmatprep.subr.mxu0 0.0
        %1395 = vmatpush1.msra.mxu0 0.0
        %1396 = vmatprep.subr.mxu0 0.0
        %1397 = vmatpush1.msra.mxu0 0.0
        %1398 = vmatprep.subr.mxu0 0.0
        %1399 = vmatpush1.msra.mxu0 0.0
        %1400 = vmatprep.subr.mxu0 0.0
        %1401 = vmatpush1.msra.mxu0 0.0
        %1402 = vmatprep.subr.mxu0 0.0
        %1403 = vmatpush1.msra.mxu0 %v537
        %1404 = vmatprep.subr.mxu0 0.0
        %1405 = vmatpush1.msra.mxu0 %v536
        %1406 = vmatprep.subr.mxu0 0.0
        %1407 = vmatpush1.msra.mxu0 %v535
        %1408 = vmatprep.subr.mxu0 0.0
        %1409 = vmatpush1.msra.mxu0 %v534
        %1410 = vmatprep.subr.mxu0 0.0
        %1411 = vmatpush2.msra.mxu0 0.0
        %1412 = vmatprep.subr.mxu0 0.0
        %1413 = vmatpush2.msra.mxu0 0.0
        %1414 = vmatprep.subr.mxu0 0.0
        %1415 = vmatpush2.msra.mxu0 0.0
        %1416 = vmatprep.subr.mxu0 0.0
        %1417 = vmatpush2.msra.mxu0 0.0
        %1418 = vmatprep.subr.mxu0 0.0
        %1419 = vmatpush2.msra.mxu0 0.0
        %1420 = vmatprep.subr.mxu0 0.0
        %1421 = vmatpush2.msra.mxu0 0.0
        %1422 = vmatprep.subr.mxu0 0.0
        %1423 = vmatpush2.msra.mxu0 0.0
        %1424 = vmatprep.subr.mxu0 0.0
        %1425 = vmatpush2.msra.mxu0 0.0
        %1426 = vmatprep.subr.mxu0 0.0
        %1427 = vmatpush2.msra.mxu0 0.0
        %1428 = vmatprep.subr.mxu0 0.0
        %1429 = vmatpush2.msra.mxu0 0.0
        %1430 = vmatprep.subr.mxu0 0.0
        %1431 = vmatpush2.msra.mxu0 0.0
        %1432 = vmatprep.subr.mxu0 0.0
        %1433 = vmatpush2.msra.mxu0 0.0
        %1434 = vmatprep.subr.mxu0 0.0
        %1435 = vmatpush2.msra.mxu0 0.0
        %1436 = vmatprep.subr.mxu0 0.0
        %1437 = vmatpush2.msra.mxu0 0.0
        %1438 = vmatprep.subr.mxu0 0.0
        %1439 = vmatpush2.msra.mxu0 0.0
        %1440 = vmatprep.subr.mxu0 0.0
        %1441 = vmatpush2.msra.mxu0 0.0
        %1442 = vmatprep.mubr.f32.mxu0 0.0
        %1443 = vmatmul.mubr.f32.gmra.mxu0 %v1187
        %v1444 = vpop.f32.mrf.mxu0
        %v1445 = vadd.f32 %v867, %v1444
        %v1446 = vpop.f32.mrf.mxu0
        %1447 = vmatprep.mubr.f32.mxu0 0.0
        %1448 = vmatmul.mubr.f32.gmra.mxu0 %v1190
        %v1449 = vpop.f32.mrf.mxu0
        %v1450 = vadd.f32 %v872, %v1449
        %v1451 = vpop.f32.mrf.mxu0
        %1452 = vmatprep.mubr.f32.mxu0 0.0
        %1453 = vmatmul.mubr.f32.gmra.mxu0 %v1193
        %v1454 = vpop.f32.mrf.mxu0
        %v1455 = vadd.f32 %v877, %v1454
        %v1456 = vpop.f32.mrf.mxu0
        %1457 = vmatprep.mubr.f32.mxu0 0.0
        %1458 = vmatmul.mubr.f32.gmra.mxu0 %v1196
        %v1459 = vpop.f32.mrf.mxu0
        %v1460 = vadd.f32 %v882, %v1459
        %v1461 = vpop.f32.mrf.mxu0
        %1462 = vmatprep.mubr.f32.mxu0 0.0
        %1463 = vmatmul.mubr.f32.gmra.mxu0 %v1199
        %v1464 = vpop.f32.mrf.mxu0
        %v1465 = vadd.f32 %v887, %v1464
        %v1466 = vpop.f32.mrf.mxu0
        %1467 = vmatprep.mubr.f32.mxu0 0.0
        %1468 = vmatmul.mubr.f32.gmra.mxu0 %v1202
        %v1469 = vpop.f32.mrf.mxu0
        %v1470 = vadd.f32 %v892, %v1469
        %v1471 = vpop.f32.mrf.mxu0
        %1472 = vmatprep.mubr.f32.mxu0 0.0
        %1473 = vmatmul.mubr.f32.gmra.mxu0 %v1205
        %v1474 = vpop.f32.mrf.mxu0
        %v1475 = vadd.f32 %v897, %v1474
        %v1476 = vpop.f32.mrf.mxu0
        %1477 = vmatprep.mubr.f32.mxu0 0.0
        %1478 = vmatmul.mubr.f32.gmra.mxu0 %v1208
        %v1479 = vpop.f32.mrf.mxu0
        %v1480 = vadd.f32 %v902, %v1479
        %v1481 = vpop.f32.mrf.mxu0
        %1482 = vmatprep.mubr.f32.mxu0 0.0
        %1483 = vmatmul.mubr.f32.gmra.mxu0 %v1211
        %v1484 = vpop.f32.mrf.mxu0
        %v1485 = vadd.f32 %v907, %v1484
        %v1486 = vpop.f32.mrf.mxu0
        %1487 = vmatprep.mubr.f32.mxu0 0.0
        %1488 = vmatmul.mubr.f32.gmra.mxu0 %v1214
        %v1489 = vpop.f32.mrf.mxu0
        %v1490 = vadd.f32 %v912, %v1489
        %v1491 = vpop.f32.mrf.mxu0
        %1492 = vmatprep.mubr.f32.mxu0 0.0
        %1493 = vmatmul.mubr.f32.gmra.mxu0 %v1217
        %v1494 = vpop.f32.mrf.mxu0
        %v1495 = vadd.f32 %v917, %v1494
        %v1496 = vpop.f32.mrf.mxu0
        %1497 = vmatprep.mubr.f32.mxu0 0.0
        %1498 = vmatmul.mubr.f32.gmra.mxu0 %v1220
        %v1499 = vpop.f32.mrf.mxu0
        %v1500 = vadd.f32 %v922, %v1499
        %v1501 = vpop.f32.mrf.mxu0
        %1502 = vmatprep.mubr.f32.mxu0 0.0
        %1503 = vmatmul.mubr.f32.gmra.mxu0 %v1223
        %v1504 = vpop.f32.mrf.mxu0
        %v1505 = vadd.f32 %v927, %v1504
        %v1506 = vpop.f32.mrf.mxu0
        %1507 = vmatprep.mubr.f32.mxu0 0.0
        %1508 = vmatmul.mubr.f32.gmra.mxu0 %v1226
        %v1509 = vpop.f32.mrf.mxu0
        %v1510 = vadd.f32 %v932, %v1509
        %v1511 = vpop.f32.mrf.mxu0
        %1512 = vmatprep.mubr.f32.mxu0 0.0
        %1513 = vmatmul.mubr.f32.gmra.mxu0 %v1229
        %v1514 = vpop.f32.mrf.mxu0
        %v1515 = vadd.f32 %v937, %v1514
        %v1516 = vpop.f32.mrf.mxu0
        %1517 = vmatprep.mubr.f32.mxu0 0.0
        %1518 = vmatmul.mubr.f32.gmra.mxu0 %v1232
        %v1519 = vpop.f32.mrf.mxu0
        %v1520 = vadd.f32 %v942, %v1519
        %v1521 = vpop.f32.mrf.mxu0
        %1522 = vmatprep.mubr.f32.mxu0 0.0
        %1523 = vmatmul.mubr.f32.gmra.mxu0 %v1235
        %v1524 = vpop.f32.mrf.mxu0
        %v1525 = vadd.f32 %v947, %v1524
        %v1526 = vpop.f32.mrf.mxu0
        %1527 = vmatprep.mubr.f32.mxu0 0.0
        %1528 = vmatmul.mubr.f32.gmra.mxu0 %v1238
        %v1529 = vpop.f32.mrf.mxu0
        %v1530 = vadd.f32 %v952, %v1529
        %v1531 = vpop.f32.mrf.mxu0
        %1532 = vmatprep.mubr.f32.mxu0 0.0
        %1533 = vmatmul.mubr.f32.gmra.mxu0 %v1241
        %v1534 = vpop.f32.mrf.mxu0
        %v1535 = vadd.f32 %v957, %v1534
        %v1536 = vpop.f32.mrf.mxu0
        %1537 = vmatprep.mubr.f32.mxu0 0.0
        %1538 = vmatmul.mubr.f32.gmra.mxu0 %v1244
        %v1539 = vpop.f32.mrf.mxu0
        %v1540 = vadd.f32 %v962, %v1539
        %v1541 = vpop.f32.mrf.mxu0
        %1542 = vmatprep.mubr.f32.mxu0 0.0
        %1543 = vmatmul.mubr.f32.gmra.mxu0 %v1247
        %v1544 = vpop.f32.mrf.mxu0
        %v1545 = vadd.f32 %v967, %v1544
        %v1546 = vpop.f32.mrf.mxu0
        %1547 = vmatprep.mubr.f32.mxu0 0.0
        %1548 = vmatmul.mubr.f32.gmra.mxu0 %v1250
        %v1549 = vpop.f32.mrf.mxu0
        %v1550 = vadd.f32 %v972, %v1549
        %v1551 = vpop.f32.mrf.mxu0
        %1552 = vmatprep.mubr.f32.mxu0 0.0
        %1553 = vmatmul.mubr.f32.gmra.mxu0 %v1253
        %v1554 = vpop.f32.mrf.mxu0
        %v1555 = vadd.f32 %v977, %v1554
        %v1556 = vpop.f32.mrf.mxu0
        %1557 = vmatprep.mubr.f32.mxu0 0.0
        %1558 = vmatmul.mubr.f32.gmra.mxu0 %v1256
        %v1559 = vpop.f32.mrf.mxu0
        %v1560 = vadd.f32 %v982, %v1559
        %v1561 = vpop.f32.mrf.mxu0
        %1562 = vmatprep.mubr.f32.mxu0 0.0
        %1563 = vmatmul.mubr.f32.gmra.mxu0 %v1259
        %v1564 = vpop.f32.mrf.mxu0
        %v1565 = vadd.f32 %v987, %v1564
        %v1566 = vpop.f32.mrf.mxu0
        %1567 = vmatprep.mubr.f32.mxu0 0.0
        %1568 = vmatmul.mubr.f32.gmra.mxu0 %v1262
        %v1569 = vpop.f32.mrf.mxu0
        %v1570 = vadd.f32 %v992, %v1569
        %v1571 = vpop.f32.mrf.mxu0
        %1572 = vmatprep.mubr.f32.mxu0 0.0
        %1573 = vmatmul.mubr.f32.gmra.mxu0 %v1265
        %v1574 = vpop.f32.mrf.mxu0
        %v1575 = vadd.f32 %v997, %v1574
        %v1576 = vpop.f32.mrf.mxu0
        %1577 = vmatprep.mubr.f32.mxu0 0.0
        %1578 = vmatmul.mubr.f32.gmra.mxu0 %v1268
        %v1579 = vpop.f32.mrf.mxu0
        %v1580 = vadd.f32 %v1002, %v1579
        %v1581 = vpop.f32.mrf.mxu0
        %1582 = vmatprep.mubr.f32.mxu0 0.0
        %1583 = vmatmul.mubr.f32.gmra.mxu0 %v1271
        %v1584 = vpop.f32.mrf.mxu0
        %v1585 = vadd.f32 %v1007, %v1584
        %v1586 = vpop.f32.mrf.mxu0
        %1587 = vmatprep.mubr.f32.mxu0 0.0
        %1588 = vmatmul.mubr.f32.gmra.mxu0 %v1274
        %v1589 = vpop.f32.mrf.mxu0
        %v1590 = vadd.f32 %v1012, %v1589
        %v1591 = vpop.f32.mrf.mxu0
        %1592 = vmatprep.mubr.f32.mxu0 0.0
        %1593 = vmatmul.mubr.f32.gmra.mxu0 %v1277
        %v1594 = vpop.f32.mrf.mxu0
        %v1595 = vadd.f32 %v1017, %v1594
        %v1596 = vpop.f32.mrf.mxu0
        %1597 = vmatprep.mubr.f32.mxu0 0.0
        %1598 = vmatmul.mubr.f32.gmra.mxu0 %v1280
        %v1599 = vpop.f32.mrf.mxu0
        %v1600 = vadd.f32 %v1022, %v1599
        %v1601 = vpop.f32.mrf.mxu0
        %1602 = vmatprep.mubr.f32.mxu0 0.0
        %1603 = vmatmul.mubr.f32.gmra.mxu0 %v1283
        %v1604 = vpop.f32.mrf.mxu0
        %v1605 = vadd.f32 %v1027, %v1604
        %v1606 = vpop.f32.mrf.mxu0
        %1607 = vmatprep.mubr.f32.mxu0 0.0
        %1608 = vmatmul.mubr.f32.gmra.mxu0 %v1286
        %v1609 = vpop.f32.mrf.mxu0
        %v1610 = vadd.f32 %v1032, %v1609
        %v1611 = vpop.f32.mrf.mxu0
        %1612 = vmatprep.mubr.f32.mxu0 0.0
        %1613 = vmatmul.mubr.f32.gmra.mxu0 %v1289
        %v1614 = vpop.f32.mrf.mxu0
        %v1615 = vadd.f32 %v1037, %v1614
        %v1616 = vpop.f32.mrf.mxu0
        %1617 = vmatprep.mubr.f32.mxu0 0.0
        %1618 = vmatmul.mubr.f32.gmra.mxu0 %v1292
        %v1619 = vpop.f32.mrf.mxu0
        %v1620 = vadd.f32 %v1042, %v1619
        %v1621 = vpop.f32.mrf.mxu0
        %1622 = vmatprep.mubr.f32.mxu0 0.0
        %1623 = vmatmul.mubr.f32.gmra.mxu0 %v1295
        %v1624 = vpop.f32.mrf.mxu0
        %v1625 = vadd.f32 %v1047, %v1624
        %v1626 = vpop.f32.mrf.mxu0
        %1627 = vmatprep.mubr.f32.mxu0 0.0
        %1628 = vmatmul.mubr.f32.gmra.mxu0 %v1298
        %v1629 = vpop.f32.mrf.mxu0
        %v1630 = vadd.f32 %v1052, %v1629
        %v1631 = vpop.f32.mrf.mxu0
        %1632 = vmatprep.mubr.f32.mxu0 0.0
        %1633 = vmatmul.mubr.f32.gmra.mxu0 %v1301
        %v1634 = vpop.f32.mrf.mxu0
        %v1635 = vadd.f32 %v1057, %v1634
        %v1636 = vpop.f32.mrf.mxu0
        %1637 = vmatprep.mubr.f32.mxu0 0.0
        %1638 = vmatmul.mubr.f32.gmra.mxu0 %v1304
        %v1639 = vpop.f32.mrf.mxu0
        %v1640 = vadd.f32 %v1062, %v1639
        %v1641 = vpop.f32.mrf.mxu0
        %1642 = vmatprep.mubr.f32.mxu0 0.0
        %1643 = vmatmul.mubr.f32.gmra.mxu0 %v1307
        %v1644 = vpop.f32.mrf.mxu0
        %v1645 = vadd.f32 %v1067, %v1644
        %v1646 = vpop.f32.mrf.mxu0
        %1647 = vmatprep.mubr.f32.mxu0 0.0
        %1648 = vmatmul.mubr.f32.gmra.mxu0 %v1310
        %v1649 = vpop.f32.mrf.mxu0
        %v1650 = vadd.f32 %v1072, %v1649
        %v1651 = vpop.f32.mrf.mxu0
        %1652 = vmatprep.mubr.f32.mxu0 0.0
        %1653 = vmatmul.mubr.f32.gmra.mxu0 %v1313
        %v1654 = vpop.f32.mrf.mxu0
        %v1655 = vadd.f32 %v1077, %v1654
        %v1656 = vpop.f32.mrf.mxu0
        %1657 = vmatprep.mubr.f32.mxu0 0.0
        %1658 = vmatmul.mubr.f32.gmra.mxu0 %v1316
        %v1659 = vpop.f32.mrf.mxu0
        %v1660 = vadd.f32 %v1082, %v1659
        %v1661 = vpop.f32.mrf.mxu0
        %1662 = vmatprep.mubr.f32.mxu0 0.0
        %1663 = vmatmul.mubr.f32.gmra.mxu0 %v1319
        %v1664 = vpop.f32.mrf.mxu0
        %v1665 = vadd.f32 %v1087, %v1664
        %v1666 = vpop.f32.mrf.mxu0
        %1667 = vmatprep.mubr.f32.mxu0 0.0
        %1668 = vmatmul.mubr.f32.gmra.mxu0 %v1322
        %v1669 = vpop.f32.mrf.mxu0
        %v1670 = vadd.f32 %v1092, %v1669
        %v1671 = vpop.f32.mrf.mxu0
        %1672 = vmatprep.mubr.f32.mxu0 0.0
        %1673 = vmatmul.mubr.f32.gmra.mxu0 %v1325
        %v1674 = vpop.f32.mrf.mxu0
        %v1675 = vadd.f32 %v1097, %v1674
        %v1676 = vpop.f32.mrf.mxu0
        %1677 = vmatprep.mubr.f32.mxu0 0.0
        %1678 = vmatmul.mubr.f32.gmra.mxu0 %v1328
        %v1679 = vpop.f32.mrf.mxu0
        %v1680 = vadd.f32 %v1102, %v1679
        %v1681 = vpop.f32.mrf.mxu0
        %1682 = vmatprep.mubr.f32.mxu0 0.0
        %1683 = vmatmul.mubr.f32.gmra.mxu0 %v1331
        %v1684 = vpop.f32.mrf.mxu0
        %v1685 = vadd.f32 %v1107, %v1684
        %v1686 = vpop.f32.mrf.mxu0
        %1687 = vmatprep.mubr.f32.mxu0 0.0
        %1688 = vmatmul.mubr.f32.gmra.mxu0 %v1334
        %v1689 = vpop.f32.mrf.mxu0
        %v1690 = vadd.f32 %v1112, %v1689
        %v1691 = vpop.f32.mrf.mxu0
        %1692 = vmatprep.mubr.f32.mxu0 0.0
        %1693 = vmatmul.mubr.f32.gmra.mxu0 %v1337
        %v1694 = vpop.f32.mrf.mxu0
        %v1695 = vadd.f32 %v1117, %v1694
        %v1696 = vpop.f32.mrf.mxu0
        %1697 = vmatprep.mubr.f32.mxu0 0.0
        %1698 = vmatmul.mubr.f32.gmra.mxu0 %v1340
        %v1699 = vpop.f32.mrf.mxu0
        %v1700 = vadd.f32 %v1122, %v1699
        %v1701 = vpop.f32.mrf.mxu0
        %1702 = vmatprep.mubr.f32.mxu0 0.0
        %1703 = vmatmul.mubr.f32.gmra.mxu0 %v1343
        %v1704 = vpop.f32.mrf.mxu0
        %v1705 = vadd.f32 %v1127, %v1704
        %v1706 = vpop.f32.mrf.mxu0
        %1707 = vmatprep.mubr.f32.mxu0 0.0
        %1708 = vmatmul.mubr.f32.gmra.mxu0 %v1346
        %v1709 = vpop.f32.mrf.mxu0
        %v1710 = vadd.f32 %v1132, %v1709
        %v1711 = vpop.f32.mrf.mxu0
        %1712 = vmatprep.mubr.f32.mxu0 0.0
        %1713 = vmatmul.mubr.f32.gmra.mxu0 %v1349
        %v1714 = vpop.f32.mrf.mxu0
        %v1715 = vadd.f32 %v1137, %v1714
        %v1716 = vpop.f32.mrf.mxu0
        %1717 = vmatprep.mubr.f32.mxu0 0.0
        %1718 = vmatmul.mubr.f32.gmra.mxu0 %v1352
        %v1719 = vpop.f32.mrf.mxu0
        %v1720 = vadd.f32 %v1142, %v1719
        %v1721 = vpop.f32.mrf.mxu0
        %1722 = vmatprep.mubr.f32.mxu0 0.0
        %1723 = vmatmul.mubr.f32.gmra.mxu0 %v1355
        %v1724 = vpop.f32.mrf.mxu0
        %v1725 = vadd.f32 %v1147, %v1724
        %v1726 = vpop.f32.mrf.mxu0
        %1727 = vmatprep.mubr.f32.mxu0 0.0
        %1728 = vmatmul.mubr.f32.gmra.mxu0 %v1358
        %v1729 = vpop.f32.mrf.mxu0
        %v1730 = vadd.f32 %v1152, %v1729
        %v1731 = vpop.f32.mrf.mxu0
        %1732 = vmatprep.mubr.f32.mxu0 0.0
        %1733 = vmatmul.mubr.f32.gmra.mxu0 %v1361
        %v1734 = vpop.f32.mrf.mxu0
        %v1735 = vadd.f32 %v1157, %v1734
        %v1736 = vpop.f32.mrf.mxu0
        %1737 = vmatprep.mubr.f32.mxu0 0.0
        %1738 = vmatmul.mubr.f32.gmra.mxu0 %v1364
        %v1739 = vpop.f32.mrf.mxu0
        %v1740 = vadd.f32 %v1162, %v1739
        %v1741 = vpop.f32.mrf.mxu0
        %1742 = vmatprep.mubr.f32.mxu0 0.0
        %1743 = vmatmul.mubr.f32.gmra.mxu0 %v1367
        %v1744 = vpop.f32.mrf.mxu0
        %v1745 = vadd.f32 %v1167, %v1744
        %v1746 = vpop.f32.mrf.mxu0
        %1747 = vmatprep.mubr.f32.mxu0 0.0
        %1748 = vmatmul.mubr.f32.gmra.mxu0 %v1370
        %v1749 = vpop.f32.mrf.mxu0
        %v1750 = vadd.f32 %v1172, %v1749
        %v1751 = vpop.f32.mrf.mxu0
        %1752 = vmatprep.mubr.f32.mxu0 0.0
        %1753 = vmatmul.mubr.f32.gmra.mxu0 %v1373
        %v1754 = vpop.f32.mrf.mxu0
        %v1755 = vadd.f32 %v1177, %v1754
        %v1756 = vpop.f32.mrf.mxu0
        %1757 = vmatprep.mubr.f32.mxu0 0.0
        %1758 = vmatmul.mubr.f32.gmra.mxu0 %v1376
        %v1759 = vpop.f32.mrf.mxu0
        %v1760 = vadd.f32 %v1182, %v1759
        %v1761 = vpop.f32.mrf.mxu0
        %1762 = vdwg.mxu0
        %s1763 = scalar_lea.vmem %s437, 512
        %v1764 = vld [vmem:[%s1763] sm:$0xff]
        %v1765 = vld [vmem:[%s1763 + $0x8] sm:$0xff]
        %v1766 = vld [vmem:[%s1763 + $0x10] sm:$0xff]
        %v1767 = vld [vmem:[%s1763 + $0x18] sm:$0xff]
        %v1768 = vld [vmem:[%s1763 + $0x20] sm:$0xff]
        %v1769 = vld [vmem:[%s1763 + $0x28] sm:$0xff]
        %v1770 = vld [vmem:[%s1763 + $0x30] sm:$0xff]
        %v1771 = vld [vmem:[%s1763 + $0x38] sm:$0xff]
        %v1772 = vld [vmem:[%s1763 + $0x40] sm:$0xff]
        %v1773 = vld [vmem:[%s1763 + $0x48] sm:$0xff]
        %v1774 = vld [vmem:[%s1763 + $0x50] sm:$0xff]
        %v1775 = vld [vmem:[%s1763 + $0x58] sm:$0xff]
        %v1776 = vld [vmem:[%s1763 + $0x60] sm:$0xff]
        %v1777 = vld [vmem:[%s1763 + $0x68] sm:$0xff]
        %v1778 = vld [vmem:[%s1763 + $0x70] sm:$0xff]
        %v1779 = vld [vmem:[%s1763 + $0x78] sm:$0xff]
        %v1780 = vld [vmem:[%s1763 + $0x80] sm:$0xff]
        %v1781 = vld [vmem:[%s1763 + $0x88] sm:$0xff]
        %v1782 = vld [vmem:[%s1763 + $0x90] sm:$0xff]
        %v1783 = vld [vmem:[%s1763 + $0x98] sm:$0xff]
        %v1784 = vld [vmem:[%s1763 + $0xa0] sm:$0xff]
        %v1785 = vld [vmem:[%s1763 + $0xa8] sm:$0xff]
        %v1786 = vld [vmem:[%s1763 + $0xb0] sm:$0xff]
        %v1787 = vld [vmem:[%s1763 + $0xb8] sm:$0xff]
        %v1788 = vld [vmem:[%s1763 + $0xc0] sm:$0xff]
        %v1789 = vld [vmem:[%s1763 + $0xc8] sm:$0xff]
        %v1790 = vld [vmem:[%s1763 + $0xd0] sm:$0xff]
        %v1791 = vld [vmem:[%s1763 + $0xd8] sm:$0xff]
        %v1792 = vld [vmem:[%s1763 + $0xe0] sm:$0xff]
        %v1793 = vld [vmem:[%s1763 + $0xe8] sm:$0xff]
        %v1794 = vld [vmem:[%s1763 + $0xf0] sm:$0xff]
        %v1795 = vld [vmem:[%s1763 + $0xf8] sm:$0xff]
        %v1796 = vld [vmem:[%s1763 + $0x100] sm:$0xff]
        %v1797 = vld [vmem:[%s1763 + $0x108] sm:$0xff]
        %v1798 = vld [vmem:[%s1763 + $0x110] sm:$0xff]
        %v1799 = vld [vmem:[%s1763 + $0x118] sm:$0xff]
        %v1800 = vld [vmem:[%s1763 + $0x120] sm:$0xff]
        %v1801 = vld [vmem:[%s1763 + $0x128] sm:$0xff]
        %v1802 = vld [vmem:[%s1763 + $0x130] sm:$0xff]
        %v1803 = vld [vmem:[%s1763 + $0x138] sm:$0xff]
        %v1804 = vld [vmem:[%s1763 + $0x140] sm:$0xff]
        %v1805 = vld [vmem:[%s1763 + $0x148] sm:$0xff]
        %v1806 = vld [vmem:[%s1763 + $0x150] sm:$0xff]
        %v1807 = vld [vmem:[%s1763 + $0x158] sm:$0xff]
        %v1808 = vld [vmem:[%s1763 + $0x160] sm:$0xff]
        %v1809 = vld [vmem:[%s1763 + $0x168] sm:$0xff]
        %v1810 = vld [vmem:[%s1763 + $0x170] sm:$0xff]
        %v1811 = vld [vmem:[%s1763 + $0x178] sm:$0xff]
        %v1812 = vld [vmem:[%s1763 + $0x180] sm:$0xff]
        %v1813 = vld [vmem:[%s1763 + $0x188] sm:$0xff]
        %v1814 = vld [vmem:[%s1763 + $0x190] sm:$0xff]
        %v1815 = vld [vmem:[%s1763 + $0x198] sm:$0xff]
        %v1816 = vld [vmem:[%s1763 + $0x1a0] sm:$0xff]
        %v1817 = vld [vmem:[%s1763 + $0x1a8] sm:$0xff]
        %v1818 = vld [vmem:[%s1763 + $0x1b0] sm:$0xff]
        %v1819 = vld [vmem:[%s1763 + $0x1b8] sm:$0xff]
        %v1820 = vld [vmem:[%s1763 + $0x1c0] sm:$0xff]
        %v1821 = vld [vmem:[%s1763 + $0x1c8] sm:$0xff]
        %v1822 = vld [vmem:[%s1763 + $0x1d0] sm:$0xff]
        %v1823 = vld [vmem:[%s1763 + $0x1d8] sm:$0xff]
        %v1824 = vld [vmem:[%s1763 + $0x1e0] sm:$0xff]
        %v1825 = vld [vmem:[%s1763 + $0x1e8] sm:$0xff]
        %v1826 = vld [vmem:[%s1763 + $0x1f0] sm:$0xff]
        %v1827 = vld [vmem:[%s1763 + $0x1f8] sm:$0xff]
        %s1828 = scalar_lea.vmem %s447, 512
        %v1829 = vld [vmem:[%s1828] sm:$0xff]
        %v1830 = vld [vmem:[%s1828 + $0x8] sm:$0xff]
        %v1831 = vld [vmem:[%s1828 + $0x10] sm:$0xff]
        %v1832 = vld [vmem:[%s1828 + $0x18] sm:$0xff]
        %v1833 = vld [vmem:[%s1828 + $0x20] sm:$0xff]
        %v1834 = vld [vmem:[%s1828 + $0x28] sm:$0xff]
        %v1835 = vld [vmem:[%s1828 + $0x30] sm:$0xff]
        %v1836 = vld [vmem:[%s1828 + $0x38] sm:$0xff]
        %v1837 = vld [vmem:[%s1828 + $0x40] sm:$0xff]
        %v1838 = vld [vmem:[%s1828 + $0x48] sm:$0xff]
        %v1839 = vld [vmem:[%s1828 + $0x50] sm:$0xff]
        %v1840 = vld [vmem:[%s1828 + $0x58] sm:$0xff]
        %v1841 = vld [vmem:[%s1828 + $0x60] sm:$0xff]
        %v1842 = vld [vmem:[%s1828 + $0x68] sm:$0xff]
        %v1843 = vld [vmem:[%s1828 + $0x70] sm:$0xff]
        %v1844 = vld [vmem:[%s1828 + $0x78] sm:$0xff]
        %v1845 = vld [vmem:[%s1828 + $0x80] sm:$0xff]
        %v1846 = vld [vmem:[%s1828 + $0x88] sm:$0xff]
        %v1847 = vld [vmem:[%s1828 + $0x90] sm:$0xff]
        %v1848 = vld [vmem:[%s1828 + $0x98] sm:$0xff]
        %v1849 = vld [vmem:[%s1828 + $0xa0] sm:$0xff]
        %v1850 = vld [vmem:[%s1828 + $0xa8] sm:$0xff]
        %v1851 = vld [vmem:[%s1828 + $0xb0] sm:$0xff]
        %v1852 = vld [vmem:[%s1828 + $0xb8] sm:$0xff]
        %v1853 = vld [vmem:[%s1828 + $0xc0] sm:$0xff]
        %v1854 = vld [vmem:[%s1828 + $0xc8] sm:$0xff]
        %v1855 = vld [vmem:[%s1828 + $0xd0] sm:$0xff]
        %v1856 = vld [vmem:[%s1828 + $0xd8] sm:$0xff]
        %v1857 = vld [vmem:[%s1828 + $0xe0] sm:$0xff]
        %v1858 = vld [vmem:[%s1828 + $0xe8] sm:$0xff]
        %v1859 = vld [vmem:[%s1828 + $0xf0] sm:$0xff]
        %v1860 = vld [vmem:[%s1828 + $0xf8] sm:$0xff]
        %v1861 = vld [vmem:[%s1828 + $0x100] sm:$0xff]
        %v1862 = vld [vmem:[%s1828 + $0x108] sm:$0xff]
        %v1863 = vld [vmem:[%s1828 + $0x110] sm:$0xff]
        %v1864 = vld [vmem:[%s1828 + $0x118] sm:$0xff]
        %v1865 = vld [vmem:[%s1828 + $0x120] sm:$0xff]
        %v1866 = vld [vmem:[%s1828 + $0x128] sm:$0xff]
        %v1867 = vld [vmem:[%s1828 + $0x130] sm:$0xff]
        %v1868 = vld [vmem:[%s1828 + $0x138] sm:$0xff]
        %v1869 = vld [vmem:[%s1828 + $0x140] sm:$0xff]
        %v1870 = vld [vmem:[%s1828 + $0x148] sm:$0xff]
        %v1871 = vld [vmem:[%s1828 + $0x150] sm:$0xff]
        %v1872 = vld [vmem:[%s1828 + $0x158] sm:$0xff]
        %v1873 = vld [vmem:[%s1828 + $0x160] sm:$0xff]
        %v1874 = vld [vmem:[%s1828 + $0x168] sm:$0xff]
        %v1875 = vld [vmem:[%s1828 + $0x170] sm:$0xff]
        %v1876 = vld [vmem:[%s1828 + $0x178] sm:$0xff]
        %v1877 = vld [vmem:[%s1828 + $0x180] sm:$0xff]
        %v1878 = vld [vmem:[%s1828 + $0x188] sm:$0xff]
        %v1879 = vld [vmem:[%s1828 + $0x190] sm:$0xff]
        %v1880 = vld [vmem:[%s1828 + $0x198] sm:$0xff]
        %v1881 = vld [vmem:[%s1828 + $0x1a0] sm:$0xff]
        %v1882 = vld [vmem:[%s1828 + $0x1a8] sm:$0xff]
        %v1883 = vld [vmem:[%s1828 + $0x1b0] sm:$0xff]
        %v1884 = vld [vmem:[%s1828 + $0x1b8] sm:$0xff]
        %v1885 = vld [vmem:[%s1828 + $0x1c0] sm:$0xff]
        %v1886 = vld [vmem:[%s1828 + $0x1c8] sm:$0xff]
        %v1887 = vld [vmem:[%s1828 + $0x1d0] sm:$0xff]
        %v1888 = vld [vmem:[%s1828 + $0x1d8] sm:$0xff]
        %v1889 = vld [vmem:[%s1828 + $0x1e0] sm:$0xff]
        %v1890 = vld [vmem:[%s1828 + $0x1e8] sm:$0xff]
        %v1891 = vld [vmem:[%s1828 + $0x1f0] sm:$0xff]
        %v1892 = vld [vmem:[%s1828 + $0x1f8] sm:$0xff]
        %v1894 = vsel %vm603, %v1829, 0
        %v1897 = vsel %vm603, %v1830, 0
        %v1900 = vsel %vm603, %v1831, 0
        %v1903 = vsel %vm603, %v1832, 0
        %v1906 = vsel %vm603, %v1833, 0
        %v1909 = vsel %vm603, %v1834, 0
        %v1912 = vsel %vm603, %v1835, 0
        %v1915 = vsel %vm603, %v1836, 0
        %v1918 = vsel %vm603, %v1837, 0
        %v1921 = vsel %vm603, %v1838, 0
        %v1924 = vsel %vm603, %v1839, 0
        %v1927 = vsel %vm603, %v1840, 0
        %v1930 = vsel %vm603, %v1841, 0
        %v1933 = vsel %vm603, %v1842, 0
        %v1936 = vsel %vm603, %v1843, 0
        %v1939 = vsel %vm603, %v1844, 0
        %v1942 = vsel %vm603, %v1845, 0
        %v1945 = vsel %vm603, %v1846, 0
        %v1948 = vsel %vm603, %v1847, 0
        %v1951 = vsel %vm603, %v1848, 0
        %v1954 = vsel %vm603, %v1849, 0
        %v1957 = vsel %vm603, %v1850, 0
        %v1960 = vsel %vm603, %v1851, 0
        %v1963 = vsel %vm603, %v1852, 0
        %v1966 = vsel %vm603, %v1853, 0
        %v1969 = vsel %vm603, %v1854, 0
        %v1972 = vsel %vm603, %v1855, 0
        %v1975 = vsel %vm603, %v1856, 0
        %v1978 = vsel %vm603, %v1857, 0
        %v1981 = vsel %vm603, %v1858, 0
        %v1984 = vsel %vm603, %v1859, 0
        %v1987 = vsel %vm603, %v1860, 0
        %v1990 = vsel %vm603, %v1861, 0
        %v1993 = vsel %vm603, %v1862, 0
        %v1996 = vsel %vm603, %v1863, 0
        %v1999 = vsel %vm603, %v1864, 0
        %v2002 = vsel %vm603, %v1865, 0
        %v2005 = vsel %vm603, %v1866, 0
        %v2008 = vsel %vm603, %v1867, 0
        %v2011 = vsel %vm603, %v1868, 0
        %v2014 = vsel %vm603, %v1869, 0
        %v2017 = vsel %vm603, %v1870, 0
        %v2020 = vsel %vm603, %v1871, 0
        %v2023 = vsel %vm603, %v1872, 0
        %v2026 = vsel %vm603, %v1873, 0
        %v2029 = vsel %vm603, %v1874, 0
        %v2032 = vsel %vm603, %v1875, 0
        %v2035 = vsel %vm603, %v1876, 0
        %v2038 = vsel %vm603, %v1877, 0
        %v2041 = vsel %vm603, %v1878, 0
        %v2044 = vsel %vm603, %v1879, 0
        %v2047 = vsel %vm603, %v1880, 0
        %v2050 = vsel %vm603, %v1881, 0
        %v2053 = vsel %vm603, %v1882, 0
        %v2056 = vsel %vm603, %v1883, 0
        %v2059 = vsel %vm603, %v1884, 0
        %v2062 = vsel %vm603, %v1885, 0
        %v2065 = vsel %vm603, %v1886, 0
        %v2068 = vsel %vm603, %v1887, 0
        %v2071 = vsel %vm603, %v1888, 0
        %v2074 = vsel %vm603, %v1889, 0
        %v2077 = vsel %vm603, %v1890, 0
        %v2080 = vsel %vm603, %v1891, 0
        %v2083 = vsel %vm603, %v1892, 0
        %2085 = vmatprep.subr.mxu0 0.0
        %2086 = vmatpush1.msra.mxu0 0.0
        %2087 = vmatprep.subr.mxu0 0.0
        %2088 = vmatpush1.msra.mxu0 0.0
        %2089 = vmatprep.subr.mxu0 0.0
        %2090 = vmatpush1.msra.mxu0 0.0
        %2091 = vmatprep.subr.mxu0 0.0
        %2092 = vmatpush1.msra.mxu0 0.0
        %2093 = vmatprep.subr.mxu0 0.0
        %2094 = vmatpush1.msra.mxu0 0.0
        %2095 = vmatprep.subr.mxu0 0.0
        %2096 = vmatpush1.msra.mxu0 0.0
        %2097 = vmatprep.subr.mxu0 0.0
        %2098 = vmatpush1.msra.mxu0 0.0
        %2099 = vmatprep.subr.mxu0 0.0
        %2100 = vmatpush1.msra.mxu0 0.0
        %2101 = vmatprep.subr.mxu0 0.0
        %2102 = vmatpush1.msra.mxu0 0.0
        %2103 = vmatprep.subr.mxu0 0.0
        %2104 = vmatpush1.msra.mxu0 0.0
        %2105 = vmatprep.subr.mxu0 0.0
        %2106 = vmatpush1.msra.mxu0 0.0
        %2107 = vmatprep.subr.mxu0 0.0
        %2108 = vmatpush1.msra.mxu0 0.0
        %2109 = vmatprep.subr.mxu0 0.0
        %2110 = vmatpush1.msra.mxu0 0.0
        %2111 = vmatprep.subr.mxu0 0.0
        %2112 = vmatpush1.msra.mxu0 0.0
        %2113 = vmatprep.subr.mxu0 0.0
        %2114 = vmatpush1.msra.mxu0 0.0
        %2115 = vmatprep.subr.mxu0 0.0
        %2116 = vmatpush1.msra.mxu0 %v798
        %2117 = vmatprep.subr.mxu0 0.0
        %2118 = vmatpush2.msra.mxu0 0.0
        %2119 = vmatprep.subr.mxu0 0.0
        %2120 = vmatpush2.msra.mxu0 0.0
        %2121 = vmatprep.subr.mxu0 0.0
        %2122 = vmatpush2.msra.mxu0 0.0
        %2123 = vmatprep.subr.mxu0 0.0
        %2124 = vmatpush2.msra.mxu0 0.0
        %2125 = vmatprep.subr.mxu0 0.0
        %2126 = vmatpush2.msra.mxu0 0.0
        %2127 = vmatprep.subr.mxu0 0.0
        %2128 = vmatpush2.msra.mxu0 0.0
        %2129 = vmatprep.subr.mxu0 0.0
        %2130 = vmatpush2.msra.mxu0 0.0
        %2131 = vmatprep.subr.mxu0 0.0
        %2132 = vmatpush2.msra.mxu0 0.0
        %2133 = vmatprep.subr.mxu0 0.0
        %2134 = vmatpush2.msra.mxu0 0.0
        %2135 = vmatprep.subr.mxu0 0.0
        %2136 = vmatpush2.msra.mxu0 0.0
        %2137 = vmatprep.subr.mxu0 0.0
        %2138 = vmatpush2.msra.mxu0 0.0
        %2139 = vmatprep.subr.mxu0 0.0
        %2140 = vmatpush2.msra.mxu0 0.0
        %2141 = vmatprep.subr.mxu0 0.0
        %2142 = vmatpush2.msra.mxu0 0.0
        %2143 = vmatprep.subr.mxu0 0.0
        %2144 = vmatpush2.msra.mxu0 0.0
        %2145 = vmatprep.subr.mxu0 0.0
        %2146 = vmatpush2.msra.mxu0 0.0
        %2147 = vmatprep.subr.mxu0 0.0
        %2148 = vmatpush2.msra.mxu0 0.0
        %2149 = vmatprep.mubr.f32.mxu0 0.0
        %2150 = vmatmul.mubr.f32.gmra.mxu0 %v1894
        %v2151 = vpop.f32.mrf.mxu0
        %v2152 = vadd.f32 0.0, %v2151
        %v2153 = vpop.f32.mrf.mxu0
        %2154 = vmatprep.mubr.f32.mxu0 0.0
        %2155 = vmatmul.mubr.f32.gmra.mxu0 %v1897
        %v2156 = vpop.f32.mrf.mxu0
        %v2157 = vadd.f32 0.0, %v2156
        %v2158 = vpop.f32.mrf.mxu0
        %2159 = vmatprep.mubr.f32.mxu0 0.0
        %2160 = vmatmul.mubr.f32.gmra.mxu0 %v1900
        %v2161 = vpop.f32.mrf.mxu0
        %v2162 = vadd.f32 0.0, %v2161
        %v2163 = vpop.f32.mrf.mxu0
        %2164 = vmatprep.mubr.f32.mxu0 0.0
        %2165 = vmatmul.mubr.f32.gmra.mxu0 %v1903
        %v2166 = vpop.f32.mrf.mxu0
        %v2167 = vadd.f32 0.0, %v2166
        %v2168 = vpop.f32.mrf.mxu0
        %2169 = vmatprep.mubr.f32.mxu0 0.0
        %2170 = vmatmul.mubr.f32.gmra.mxu0 %v1906
        %v2171 = vpop.f32.mrf.mxu0
        %v2172 = vadd.f32 0.0, %v2171
        %v2173 = vpop.f32.mrf.mxu0
        %2174 = vmatprep.mubr.f32.mxu0 0.0
        %2175 = vmatmul.mubr.f32.gmra.mxu0 %v1909
        %v2176 = vpop.f32.mrf.mxu0
        %v2177 = vadd.f32 0.0, %v2176
        %v2178 = vpop.f32.mrf.mxu0
        %2179 = vmatprep.mubr.f32.mxu0 0.0
        %2180 = vmatmul.mubr.f32.gmra.mxu0 %v1912
        %v2181 = vpop.f32.mrf.mxu0
        %v2182 = vadd.f32 0.0, %v2181
        %v2183 = vpop.f32.mrf.mxu0
        %2184 = vmatprep.mubr.f32.mxu0 0.0
        %2185 = vmatmul.mubr.f32.gmra.mxu0 %v1915
        %v2186 = vpop.f32.mrf.mxu0
        %v2187 = vadd.f32 0.0, %v2186
        %v2188 = vpop.f32.mrf.mxu0
        %2189 = vmatprep.mubr.f32.mxu0 0.0
        %2190 = vmatmul.mubr.f32.gmra.mxu0 %v1918
        %v2191 = vpop.f32.mrf.mxu0
        %v2192 = vadd.f32 0.0, %v2191
        %v2193 = vpop.f32.mrf.mxu0
        %2194 = vmatprep.mubr.f32.mxu0 0.0
        %2195 = vmatmul.mubr.f32.gmra.mxu0 %v1921
        %v2196 = vpop.f32.mrf.mxu0
        %v2197 = vadd.f32 0.0, %v2196
        %v2198 = vpop.f32.mrf.mxu0
        %2199 = vmatprep.mubr.f32.mxu0 0.0
        %2200 = vmatmul.mubr.f32.gmra.mxu0 %v1924
        %v2201 = vpop.f32.mrf.mxu0
        %v2202 = vadd.f32 0.0, %v2201
        %v2203 = vpop.f32.mrf.mxu0
        %2204 = vmatprep.mubr.f32.mxu0 0.0
        %2205 = vmatmul.mubr.f32.gmra.mxu0 %v1927
        %v2206 = vpop.f32.mrf.mxu0
        %v2207 = vadd.f32 0.0, %v2206
        %v2208 = vpop.f32.mrf.mxu0
        %2209 = vmatprep.mubr.f32.mxu0 0.0
        %2210 = vmatmul.mubr.f32.gmra.mxu0 %v1930
        %v2211 = vpop.f32.mrf.mxu0
        %v2212 = vadd.f32 0.0, %v2211
        %v2213 = vpop.f32.mrf.mxu0
        %2214 = vmatprep.mubr.f32.mxu0 0.0
        %2215 = vmatmul.mubr.f32.gmra.mxu0 %v1933
        %v2216 = vpop.f32.mrf.mxu0
        %v2217 = vadd.f32 0.0, %v2216
        %v2218 = vpop.f32.mrf.mxu0
        %2219 = vmatprep.mubr.f32.mxu0 0.0
        %2220 = vmatmul.mubr.f32.gmra.mxu0 %v1936
        %v2221 = vpop.f32.mrf.mxu0
        %v2222 = vadd.f32 0.0, %v2221
        %v2223 = vpop.f32.mrf.mxu0
        %2224 = vmatprep.mubr.f32.mxu0 0.0
        %2225 = vmatmul.mubr.f32.gmra.mxu0 %v1939
        %v2226 = vpop.f32.mrf.mxu0
        %v2227 = vadd.f32 0.0, %v2226
        %v2228 = vpop.f32.mrf.mxu0
        %2229 = vmatprep.mubr.f32.mxu0 0.0
        %2230 = vmatmul.mubr.f32.gmra.mxu0 %v1942
        %v2231 = vpop.f32.mrf.mxu0
        %v2232 = vadd.f32 0.0, %v2231
        %v2233 = vpop.f32.mrf.mxu0
        %2234 = vmatprep.mubr.f32.mxu0 0.0
        %2235 = vmatmul.mubr.f32.gmra.mxu0 %v1945
        %v2236 = vpop.f32.mrf.mxu0
        %v2237 = vadd.f32 0.0, %v2236
        %v2238 = vpop.f32.mrf.mxu0
        %2239 = vmatprep.mubr.f32.mxu0 0.0
        %2240 = vmatmul.mubr.f32.gmra.mxu0 %v1948
        %v2241 = vpop.f32.mrf.mxu0
        %v2242 = vadd.f32 0.0, %v2241
        %v2243 = vpop.f32.mrf.mxu0
        %2244 = vmatprep.mubr.f32.mxu0 0.0
        %2245 = vmatmul.mubr.f32.gmra.mxu0 %v1951
        %v2246 = vpop.f32.mrf.mxu0
        %v2247 = vadd.f32 0.0, %v2246
        %v2248 = vpop.f32.mrf.mxu0
        %2249 = vmatprep.mubr.f32.mxu0 0.0
        %2250 = vmatmul.mubr.f32.gmra.mxu0 %v1954
        %v2251 = vpop.f32.mrf.mxu0
        %v2252 = vadd.f32 0.0, %v2251
        %v2253 = vpop.f32.mrf.mxu0
        %2254 = vmatprep.mubr.f32.mxu0 0.0
        %2255 = vmatmul.mubr.f32.gmra.mxu0 %v1957
        %v2256 = vpop.f32.mrf.mxu0
        %v2257 = vadd.f32 0.0, %v2256
        %v2258 = vpop.f32.mrf.mxu0
        %2259 = vmatprep.mubr.f32.mxu0 0.0
        %2260 = vmatmul.mubr.f32.gmra.mxu0 %v1960
        %v2261 = vpop.f32.mrf.mxu0
        %v2262 = vadd.f32 0.0, %v2261
        %v2263 = vpop.f32.mrf.mxu0
        %2264 = vmatprep.mubr.f32.mxu0 0.0
        %2265 = vmatmul.mubr.f32.gmra.mxu0 %v1963
        %v2266 = vpop.f32.mrf.mxu0
        %v2267 = vadd.f32 0.0, %v2266
        %v2268 = vpop.f32.mrf.mxu0
        %2269 = vmatprep.mubr.f32.mxu0 0.0
        %2270 = vmatmul.mubr.f32.gmra.mxu0 %v1966
        %v2271 = vpop.f32.mrf.mxu0
        %v2272 = vadd.f32 0.0, %v2271
        %v2273 = vpop.f32.mrf.mxu0
        %2274 = vmatprep.mubr.f32.mxu0 0.0
        %2275 = vmatmul.mubr.f32.gmra.mxu0 %v1969
        %v2276 = vpop.f32.mrf.mxu0
        %v2277 = vadd.f32 0.0, %v2276
        %v2278 = vpop.f32.mrf.mxu0
        %2279 = vmatprep.mubr.f32.mxu0 0.0
        %2280 = vmatmul.mubr.f32.gmra.mxu0 %v1972
        %v2281 = vpop.f32.mrf.mxu0
        %v2282 = vadd.f32 0.0, %v2281
        %v2283 = vpop.f32.mrf.mxu0
        %2284 = vmatprep.mubr.f32.mxu0 0.0
        %2285 = vmatmul.mubr.f32.gmra.mxu0 %v1975
        %v2286 = vpop.f32.mrf.mxu0
        %v2287 = vadd.f32 0.0, %v2286
        %v2288 = vpop.f32.mrf.mxu0
        %2289 = vmatprep.mubr.f32.mxu0 0.0
        %2290 = vmatmul.mubr.f32.gmra.mxu0 %v1978
        %v2291 = vpop.f32.mrf.mxu0
        %v2292 = vadd.f32 0.0, %v2291
        %v2293 = vpop.f32.mrf.mxu0
        %2294 = vmatprep.mubr.f32.mxu0 0.0
        %2295 = vmatmul.mubr.f32.gmra.mxu0 %v1981
        %v2296 = vpop.f32.mrf.mxu0
        %v2297 = vadd.f32 0.0, %v2296
        %v2298 = vpop.f32.mrf.mxu0
        %2299 = vmatprep.mubr.f32.mxu0 0.0
        %2300 = vmatmul.mubr.f32.gmra.mxu0 %v1984
        %v2301 = vpop.f32.mrf.mxu0
        %v2302 = vadd.f32 0.0, %v2301
        %v2303 = vpop.f32.mrf.mxu0
        %2304 = vmatprep.mubr.f32.mxu0 0.0
        %2305 = vmatmul.mubr.f32.gmra.mxu0 %v1987
        %v2306 = vpop.f32.mrf.mxu0
        %v2307 = vadd.f32 0.0, %v2306
        %v2308 = vpop.f32.mrf.mxu0
        %2309 = vmatprep.mubr.f32.mxu0 0.0
        %2310 = vmatmul.mubr.f32.gmra.mxu0 %v1990
        %v2311 = vpop.f32.mrf.mxu0
        %v2312 = vadd.f32 0.0, %v2311
        %v2313 = vpop.f32.mrf.mxu0
        %2314 = vmatprep.mubr.f32.mxu0 0.0
        %2315 = vmatmul.mubr.f32.gmra.mxu0 %v1993
        %v2316 = vpop.f32.mrf.mxu0
        %v2317 = vadd.f32 0.0, %v2316
        %v2318 = vpop.f32.mrf.mxu0
        %2319 = vmatprep.mubr.f32.mxu0 0.0
        %2320 = vmatmul.mubr.f32.gmra.mxu0 %v1996
        %v2321 = vpop.f32.mrf.mxu0
        %v2322 = vadd.f32 0.0, %v2321
        %v2323 = vpop.f32.mrf.mxu0
        %2324 = vmatprep.mubr.f32.mxu0 0.0
        %2325 = vmatmul.mubr.f32.gmra.mxu0 %v1999
        %v2326 = vpop.f32.mrf.mxu0
        %v2327 = vadd.f32 0.0, %v2326
        %v2328 = vpop.f32.mrf.mxu0
        %2329 = vmatprep.mubr.f32.mxu0 0.0
        %2330 = vmatmul.mubr.f32.gmra.mxu0 %v2002
        %v2331 = vpop.f32.mrf.mxu0
        %v2332 = vadd.f32 0.0, %v2331
        %v2333 = vpop.f32.mrf.mxu0
        %2334 = vmatprep.mubr.f32.mxu0 0.0
        %2335 = vmatmul.mubr.f32.gmra.mxu0 %v2005
        %v2336 = vpop.f32.mrf.mxu0
        %v2337 = vadd.f32 0.0, %v2336
        %v2338 = vpop.f32.mrf.mxu0
        %2339 = vmatprep.mubr.f32.mxu0 0.0
        %2340 = vmatmul.mubr.f32.gmra.mxu0 %v2008
        %v2341 = vpop.f32.mrf.mxu0
        %v2342 = vadd.f32 0.0, %v2341
        %v2343 = vpop.f32.mrf.mxu0
        %2344 = vmatprep.mubr.f32.mxu0 0.0
        %2345 = vmatmul.mubr.f32.gmra.mxu0 %v2011
        %v2346 = vpop.f32.mrf.mxu0
        %v2347 = vadd.f32 0.0, %v2346
        %v2348 = vpop.f32.mrf.mxu0
        %2349 = vmatprep.mubr.f32.mxu0 0.0
        %2350 = vmatmul.mubr.f32.gmra.mxu0 %v2014
        %v2351 = vpop.f32.mrf.mxu0
        %v2352 = vadd.f32 0.0, %v2351
        %v2353 = vpop.f32.mrf.mxu0
        %2354 = vmatprep.mubr.f32.mxu0 0.0
        %2355 = vmatmul.mubr.f32.gmra.mxu0 %v2017
        %v2356 = vpop.f32.mrf.mxu0
        %v2357 = vadd.f32 0.0, %v2356
        %v2358 = vpop.f32.mrf.mxu0
        %2359 = vmatprep.mubr.f32.mxu0 0.0
        %2360 = vmatmul.mubr.f32.gmra.mxu0 %v2020
        %v2361 = vpop.f32.mrf.mxu0
        %v2362 = vadd.f32 0.0, %v2361
        %v2363 = vpop.f32.mrf.mxu0
        %2364 = vmatprep.mubr.f32.mxu0 0.0
        %2365 = vmatmul.mubr.f32.gmra.mxu0 %v2023
        %v2366 = vpop.f32.mrf.mxu0
        %v2367 = vadd.f32 0.0, %v2366
        %v2368 = vpop.f32.mrf.mxu0
        %2369 = vmatprep.mubr.f32.mxu0 0.0
        %2370 = vmatmul.mubr.f32.gmra.mxu0 %v2026
        %v2371 = vpop.f32.mrf.mxu0
        %v2372 = vadd.f32 0.0, %v2371
        %v2373 = vpop.f32.mrf.mxu0
        %2374 = vmatprep.mubr.f32.mxu0 0.0
        %2375 = vmatmul.mubr.f32.gmra.mxu0 %v2029
        %v2376 = vpop.f32.mrf.mxu0
        %v2377 = vadd.f32 0.0, %v2376
        %v2378 = vpop.f32.mrf.mxu0
        %2379 = vmatprep.mubr.f32.mxu0 0.0
        %2380 = vmatmul.mubr.f32.gmra.mxu0 %v2032
        %v2381 = vpop.f32.mrf.mxu0
        %v2382 = vadd.f32 0.0, %v2381
        %v2383 = vpop.f32.mrf.mxu0
        %2384 = vmatprep.mubr.f32.mxu0 0.0
        %2385 = vmatmul.mubr.f32.gmra.mxu0 %v2035
        %v2386 = vpop.f32.mrf.mxu0
        %v2387 = vadd.f32 0.0, %v2386
        %v2388 = vpop.f32.mrf.mxu0
        %2389 = vmatprep.mubr.f32.mxu0 0.0
        %2390 = vmatmul.mubr.f32.gmra.mxu0 %v2038
        %v2391 = vpop.f32.mrf.mxu0
        %v2392 = vadd.f32 0.0, %v2391
        %v2393 = vpop.f32.mrf.mxu0
        %2394 = vmatprep.mubr.f32.mxu0 0.0
        %2395 = vmatmul.mubr.f32.gmra.mxu0 %v2041
        %v2396 = vpop.f32.mrf.mxu0
        %v2397 = vadd.f32 0.0, %v2396
        %v2398 = vpop.f32.mrf.mxu0
        %2399 = vmatprep.mubr.f32.mxu0 0.0
        %2400 = vmatmul.mubr.f32.gmra.mxu0 %v2044
        %v2401 = vpop.f32.mrf.mxu0
        %v2402 = vadd.f32 0.0, %v2401
        %v2403 = vpop.f32.mrf.mxu0
        %2404 = vmatprep.mubr.f32.mxu0 0.0
        %2405 = vmatmul.mubr.f32.gmra.mxu0 %v2047
        %v2406 = vpop.f32.mrf.mxu0
        %v2407 = vadd.f32 0.0, %v2406
        %v2408 = vpop.f32.mrf.mxu0
        %2409 = vmatprep.mubr.f32.mxu0 0.0
        %2410 = vmatmul.mubr.f32.gmra.mxu0 %v2050
        %v2411 = vpop.f32.mrf.mxu0
        %v2412 = vadd.f32 0.0, %v2411
        %v2413 = vpop.f32.mrf.mxu0
        %2414 = vmatprep.mubr.f32.mxu0 0.0
        %2415 = vmatmul.mubr.f32.gmra.mxu0 %v2053
        %v2416 = vpop.f32.mrf.mxu0
        %v2417 = vadd.f32 0.0, %v2416
        %v2418 = vpop.f32.mrf.mxu0
        %2419 = vmatprep.mubr.f32.mxu0 0.0
        %2420 = vmatmul.mubr.f32.gmra.mxu0 %v2056
        %v2421 = vpop.f32.mrf.mxu0
        %v2422 = vadd.f32 0.0, %v2421
        %v2423 = vpop.f32.mrf.mxu0
        %2424 = vmatprep.mubr.f32.mxu0 0.0
        %2425 = vmatmul.mubr.f32.gmra.mxu0 %v2059
        %v2426 = vpop.f32.mrf.mxu0
        %v2427 = vadd.f32 0.0, %v2426
        %v2428 = vpop.f32.mrf.mxu0
        %2429 = vmatprep.mubr.f32.mxu0 0.0
        %2430 = vmatmul.mubr.f32.gmra.mxu0 %v2062
        %v2431 = vpop.f32.mrf.mxu0
        %v2432 = vadd.f32 0.0, %v2431
        %v2433 = vpop.f32.mrf.mxu0
        %2434 = vmatprep.mubr.f32.mxu0 0.0
        %2435 = vmatmul.mubr.f32.gmra.mxu0 %v2065
        %v2436 = vpop.f32.mrf.mxu0
        %v2437 = vadd.f32 0.0, %v2436
        %v2438 = vpop.f32.mrf.mxu0
        %2439 = vmatprep.mubr.f32.mxu0 0.0
        %2440 = vmatmul.mubr.f32.gmra.mxu0 %v2068
        %v2441 = vpop.f32.mrf.mxu0
        %v2442 = vadd.f32 0.0, %v2441
        %v2443 = vpop.f32.mrf.mxu0
        %2444 = vmatprep.mubr.f32.mxu0 0.0
        %2445 = vmatmul.mubr.f32.gmra.mxu0 %v2071
        %v2446 = vpop.f32.mrf.mxu0
        %v2447 = vadd.f32 0.0, %v2446
        %v2448 = vpop.f32.mrf.mxu0
        %2449 = vmatprep.mubr.f32.mxu0 0.0
        %2450 = vmatmul.mubr.f32.gmra.mxu0 %v2074
        %v2451 = vpop.f32.mrf.mxu0
        %v2452 = vadd.f32 0.0, %v2451
        %v2453 = vpop.f32.mrf.mxu0
        %2454 = vmatprep.mubr.f32.mxu0 0.0
        %2455 = vmatmul.mubr.f32.gmra.mxu0 %v2077
        %v2456 = vpop.f32.mrf.mxu0
        %v2457 = vadd.f32 0.0, %v2456
        %v2458 = vpop.f32.mrf.mxu0
        %2459 = vmatprep.mubr.f32.mxu0 0.0
        %2460 = vmatmul.mubr.f32.gmra.mxu0 %v2080
        %v2461 = vpop.f32.mrf.mxu0
        %v2462 = vadd.f32 0.0, %v2461
        %v2463 = vpop.f32.mrf.mxu0
        %2464 = vmatprep.mubr.f32.mxu0 0.0
        %2465 = vmatmul.mubr.f32.gmra.mxu0 %v2083
        %v2466 = vpop.f32.mrf.mxu0
        %v2467 = vadd.f32 0.0, %v2466
        %v2468 = vpop.f32.mrf.mxu0
        %2469 = vdwg.mxu0
        %v2471 = vsel %vm1185, %v1764, 0
        %v2474 = vsel %vm1185, %v1765, 0
        %v2477 = vsel %vm1185, %v1766, 0
        %v2480 = vsel %vm1185, %v1767, 0
        %v2483 = vsel %vm1185, %v1768, 0
        %v2486 = vsel %vm1185, %v1769, 0
        %v2489 = vsel %vm1185, %v1770, 0
        %v2492 = vsel %vm1185, %v1771, 0
        %v2495 = vsel %vm1185, %v1772, 0
        %v2498 = vsel %vm1185, %v1773, 0
        %v2501 = vsel %vm1185, %v1774, 0
        %v2504 = vsel %vm1185, %v1775, 0
        %v2507 = vsel %vm1185, %v1776, 0
        %v2510 = vsel %vm1185, %v1777, 0
        %v2513 = vsel %vm1185, %v1778, 0
        %v2516 = vsel %vm1185, %v1779, 0
        %v2519 = vsel %vm1185, %v1780, 0
        %v2522 = vsel %vm1185, %v1781, 0
        %v2525 = vsel %vm1185, %v1782, 0
        %v2528 = vsel %vm1185, %v1783, 0
        %v2531 = vsel %vm1185, %v1784, 0
        %v2534 = vsel %vm1185, %v1785, 0
        %v2537 = vsel %vm1185, %v1786, 0
        %v2540 = vsel %vm1185, %v1787, 0
        %v2543 = vsel %vm1185, %v1788, 0
        %v2546 = vsel %vm1185, %v1789, 0
        %v2549 = vsel %vm1185, %v1790, 0
        %v2552 = vsel %vm1185, %v1791, 0
        %v2555 = vsel %vm1185, %v1792, 0
        %v2558 = vsel %vm1185, %v1793, 0
        %v2561 = vsel %vm1185, %v1794, 0
        %v2564 = vsel %vm1185, %v1795, 0
        %v2567 = vsel %vm1185, %v1796, 0
        %v2570 = vsel %vm1185, %v1797, 0
        %v2573 = vsel %vm1185, %v1798, 0
        %v2576 = vsel %vm1185, %v1799, 0
        %v2579 = vsel %vm1185, %v1800, 0
        %v2582 = vsel %vm1185, %v1801, 0
        %v2585 = vsel %vm1185, %v1802, 0
        %v2588 = vsel %vm1185, %v1803, 0
        %v2591 = vsel %vm1185, %v1804, 0
        %v2594 = vsel %vm1185, %v1805, 0
        %v2597 = vsel %vm1185, %v1806, 0
        %v2600 = vsel %vm1185, %v1807, 0
        %v2603 = vsel %vm1185, %v1808, 0
        %v2606 = vsel %vm1185, %v1809, 0
        %v2609 = vsel %vm1185, %v1810, 0
        %v2612 = vsel %vm1185, %v1811, 0
        %v2615 = vsel %vm1185, %v1812, 0
        %v2618 = vsel %vm1185, %v1813, 0
        %v2621 = vsel %vm1185, %v1814, 0
        %v2624 = vsel %vm1185, %v1815, 0
        %v2627 = vsel %vm1185, %v1816, 0
        %v2630 = vsel %vm1185, %v1817, 0
        %v2633 = vsel %vm1185, %v1818, 0
        %v2636 = vsel %vm1185, %v1819, 0
        %v2639 = vsel %vm1185, %v1820, 0
        %v2642 = vsel %vm1185, %v1821, 0
        %v2645 = vsel %vm1185, %v1822, 0
        %v2648 = vsel %vm1185, %v1823, 0
        %v2651 = vsel %vm1185, %v1824, 0
        %v2654 = vsel %vm1185, %v1825, 0
        %v2657 = vsel %vm1185, %v1826, 0
        %v2660 = vsel %vm1185, %v1827, 0
        %2662 = vmatprep.subr.mxu0 0.0
        %2663 = vmatpush1.msra.mxu0 0.0
        %2664 = vmatprep.subr.mxu0 0.0
        %2665 = vmatpush1.msra.mxu0 0.0
        %2666 = vmatprep.subr.mxu0 0.0
        %2667 = vmatpush1.msra.mxu0 0.0
        %2668 = vmatprep.subr.mxu0 0.0
        %2669 = vmatpush1.msra.mxu0 0.0
        %2670 = vmatprep.subr.mxu0 0.0
        %2671 = vmatpush1.msra.mxu0 0.0
        %2672 = vmatprep.subr.mxu0 0.0
        %2673 = vmatpush1.msra.mxu0 0.0
        %2674 = vmatprep.subr.mxu0 0.0
        %2675 = vmatpush1.msra.mxu0 0.0
        %2676 = vmatprep.subr.mxu0 0.0
        %2677 = vmatpush1.msra.mxu0 0.0
        %2678 = vmatprep.subr.mxu0 0.0
        %2679 = vmatpush1.msra.mxu0 0.0
        %2680 = vmatprep.subr.mxu0 0.0
        %2681 = vmatpush1.msra.mxu0 0.0
        %2682 = vmatprep.subr.mxu0 0.0
        %2683 = vmatpush1.msra.mxu0 0.0
        %2684 = vmatprep.subr.mxu0 0.0
        %2685 = vmatpush1.msra.mxu0 0.0
        %2686 = vmatprep.subr.mxu0 0.0
        %2687 = vmatpush1.msra.mxu0 %v537
        %2688 = vmatprep.subr.mxu0 0.0
        %2689 = vmatpush1.msra.mxu0 %v536
        %2690 = vmatprep.subr.mxu0 0.0
        %2691 = vmatpush1.msra.mxu0 %v535
        %2692 = vmatprep.subr.mxu0 0.0
        %2693 = vmatpush1.msra.mxu0 %v534
        %2694 = vmatprep.subr.mxu0 0.0
        %2695 = vmatpush2.msra.mxu0 0.0
        %2696 = vmatprep.subr.mxu0 0.0
        %2697 = vmatpush2.msra.mxu0 0.0
        %2698 = vmatprep.subr.mxu0 0.0
        %2699 = vmatpush2.msra.mxu0 0.0
        %2700 = vmatprep.subr.mxu0 0.0
        %2701 = vmatpush2.msra.mxu0 0.0
        %2702 = vmatprep.subr.mxu0 0.0
        %2703 = vmatpush2.msra.mxu0 0.0
        %2704 = vmatprep.subr.mxu0 0.0
        %2705 = vmatpush2.msra.mxu0 0.0
        %2706 = vmatprep.subr.mxu0 0.0
        %2707 = vmatpush2.msra.mxu0 0.0
        %2708 = vmatprep.subr.mxu0 0.0
        %2709 = vmatpush2.msra.mxu0 0.0
        %2710 = vmatprep.subr.mxu0 0.0
        %2711 = vmatpush2.msra.mxu0 0.0
        %2712 = vmatprep.subr.mxu0 0.0
        %2713 = vmatpush2.msra.mxu0 0.0
        %2714 = vmatprep.subr.mxu0 0.0
        %2715 = vmatpush2.msra.mxu0 0.0
        %2716 = vmatprep.subr.mxu0 0.0
        %2717 = vmatpush2.msra.mxu0 0.0
        %2718 = vmatprep.subr.mxu0 0.0
        %2719 = vmatpush2.msra.mxu0 0.0
        %2720 = vmatprep.subr.mxu0 0.0
        %2721 = vmatpush2.msra.mxu0 0.0
        %2722 = vmatprep.subr.mxu0 0.0
        %2723 = vmatpush2.msra.mxu0 0.0
        %2724 = vmatprep.subr.mxu0 0.0
        %2725 = vmatpush2.msra.mxu0 0.0
        %2726 = vmatprep.mubr.f32.mxu0 0.0
        %2727 = vmatmul.mubr.f32.gmra.mxu0 %v2471
        %v2728 = vpop.f32.mrf.mxu0
        %v2729 = vadd.f32 %v2152, %v2728
        %v2730 = vpop.f32.mrf.mxu0
        %2731 = vmatprep.mubr.f32.mxu0 0.0
        %2732 = vmatmul.mubr.f32.gmra.mxu0 %v2474
        %v2733 = vpop.f32.mrf.mxu0
        %v2734 = vadd.f32 %v2157, %v2733
        %v2735 = vpop.f32.mrf.mxu0
        %2736 = vmatprep.mubr.f32.mxu0 0.0
        %2737 = vmatmul.mubr.f32.gmra.mxu0 %v2477
        %v2738 = vpop.f32.mrf.mxu0
        %v2739 = vadd.f32 %v2162, %v2738
        %v2740 = vpop.f32.mrf.mxu0
        %2741 = vmatprep.mubr.f32.mxu0 0.0
        %2742 = vmatmul.mubr.f32.gmra.mxu0 %v2480
        %v2743 = vpop.f32.mrf.mxu0
        %v2744 = vadd.f32 %v2167, %v2743
        %v2745 = vpop.f32.mrf.mxu0
        %2746 = vmatprep.mubr.f32.mxu0 0.0
        %2747 = vmatmul.mubr.f32.gmra.mxu0 %v2483
        %v2748 = vpop.f32.mrf.mxu0
        %v2749 = vadd.f32 %v2172, %v2748
        %v2750 = vpop.f32.mrf.mxu0
        %2751 = vmatprep.mubr.f32.mxu0 0.0
        %2752 = vmatmul.mubr.f32.gmra.mxu0 %v2486
        %v2753 = vpop.f32.mrf.mxu0
        %v2754 = vadd.f32 %v2177, %v2753
        %v2755 = vpop.f32.mrf.mxu0
        %2756 = vmatprep.mubr.f32.mxu0 0.0
        %2757 = vmatmul.mubr.f32.gmra.mxu0 %v2489
        %v2758 = vpop.f32.mrf.mxu0
        %v2759 = vadd.f32 %v2182, %v2758
        %v2760 = vpop.f32.mrf.mxu0
        %2761 = vmatprep.mubr.f32.mxu0 0.0
        %2762 = vmatmul.mubr.f32.gmra.mxu0 %v2492
        %v2763 = vpop.f32.mrf.mxu0
        %v2764 = vadd.f32 %v2187, %v2763
        %v2765 = vpop.f32.mrf.mxu0
        %2766 = vmatprep.mubr.f32.mxu0 0.0
        %2767 = vmatmul.mubr.f32.gmra.mxu0 %v2495
        %v2768 = vpop.f32.mrf.mxu0
        %v2769 = vadd.f32 %v2192, %v2768
        %v2770 = vpop.f32.mrf.mxu0
        %2771 = vmatprep.mubr.f32.mxu0 0.0
        %2772 = vmatmul.mubr.f32.gmra.mxu0 %v2498
        %v2773 = vpop.f32.mrf.mxu0
        %v2774 = vadd.f32 %v2197, %v2773
        %v2775 = vpop.f32.mrf.mxu0
        %2776 = vmatprep.mubr.f32.mxu0 0.0
        %2777 = vmatmul.mubr.f32.gmra.mxu0 %v2501
        %v2778 = vpop.f32.mrf.mxu0
        %v2779 = vadd.f32 %v2202, %v2778
        %v2780 = vpop.f32.mrf.mxu0
        %2781 = vmatprep.mubr.f32.mxu0 0.0
        %2782 = vmatmul.mubr.f32.gmra.mxu0 %v2504
        %v2783 = vpop.f32.mrf.mxu0
        %v2784 = vadd.f32 %v2207, %v2783
        %v2785 = vpop.f32.mrf.mxu0
        %2786 = vmatprep.mubr.f32.mxu0 0.0
        %2787 = vmatmul.mubr.f32.gmra.mxu0 %v2507
        %v2788 = vpop.f32.mrf.mxu0
        %v2789 = vadd.f32 %v2212, %v2788
        %v2790 = vpop.f32.mrf.mxu0
        %2791 = vmatprep.mubr.f32.mxu0 0.0
        %2792 = vmatmul.mubr.f32.gmra.mxu0 %v2510
        %v2793 = vpop.f32.mrf.mxu0
        %v2794 = vadd.f32 %v2217, %v2793
        %v2795 = vpop.f32.mrf.mxu0
        %2796 = vmatprep.mubr.f32.mxu0 0.0
        %2797 = vmatmul.mubr.f32.gmra.mxu0 %v2513
        %v2798 = vpop.f32.mrf.mxu0
        %v2799 = vadd.f32 %v2222, %v2798
        %v2800 = vpop.f32.mrf.mxu0
        %2801 = vmatprep.mubr.f32.mxu0 0.0
        %2802 = vmatmul.mubr.f32.gmra.mxu0 %v2516
        %v2803 = vpop.f32.mrf.mxu0
        %v2804 = vadd.f32 %v2227, %v2803
        %v2805 = vpop.f32.mrf.mxu0
        %2806 = vmatprep.mubr.f32.mxu0 0.0
        %2807 = vmatmul.mubr.f32.gmra.mxu0 %v2519
        %v2808 = vpop.f32.mrf.mxu0
        %v2809 = vadd.f32 %v2232, %v2808
        %v2810 = vpop.f32.mrf.mxu0
        %2811 = vmatprep.mubr.f32.mxu0 0.0
        %2812 = vmatmul.mubr.f32.gmra.mxu0 %v2522
        %v2813 = vpop.f32.mrf.mxu0
        %v2814 = vadd.f32 %v2237, %v2813
        %v2815 = vpop.f32.mrf.mxu0
        %2816 = vmatprep.mubr.f32.mxu0 0.0
        %2817 = vmatmul.mubr.f32.gmra.mxu0 %v2525
        %v2818 = vpop.f32.mrf.mxu0
        %v2819 = vadd.f32 %v2242, %v2818
        %v2820 = vpop.f32.mrf.mxu0
        %2821 = vmatprep.mubr.f32.mxu0 0.0
        %2822 = vmatmul.mubr.f32.gmra.mxu0 %v2528
        %v2823 = vpop.f32.mrf.mxu0
        %v2824 = vadd.f32 %v2247, %v2823
        %v2825 = vpop.f32.mrf.mxu0
        %2826 = vmatprep.mubr.f32.mxu0 0.0
        %2827 = vmatmul.mubr.f32.gmra.mxu0 %v2531
        %v2828 = vpop.f32.mrf.mxu0
        %v2829 = vadd.f32 %v2252, %v2828
        %v2830 = vpop.f32.mrf.mxu0
        %2831 = vmatprep.mubr.f32.mxu0 0.0
        %2832 = vmatmul.mubr.f32.gmra.mxu0 %v2534
        %v2833 = vpop.f32.mrf.mxu0
        %v2834 = vadd.f32 %v2257, %v2833
        %v2835 = vpop.f32.mrf.mxu0
        %2836 = vmatprep.mubr.f32.mxu0 0.0
        %2837 = vmatmul.mubr.f32.gmra.mxu0 %v2537
        %v2838 = vpop.f32.mrf.mxu0
        %v2839 = vadd.f32 %v2262, %v2838
        %v2840 = vpop.f32.mrf.mxu0
        %2841 = vmatprep.mubr.f32.mxu0 0.0
        %2842 = vmatmul.mubr.f32.gmra.mxu0 %v2540
        %v2843 = vpop.f32.mrf.mxu0
        %v2844 = vadd.f32 %v2267, %v2843
        %v2845 = vpop.f32.mrf.mxu0
        %2846 = vmatprep.mubr.f32.mxu0 0.0
        %2847 = vmatmul.mubr.f32.gmra.mxu0 %v2543
        %v2848 = vpop.f32.mrf.mxu0
        %v2849 = vadd.f32 %v2272, %v2848
        %v2850 = vpop.f32.mrf.mxu0
        %2851 = vmatprep.mubr.f32.mxu0 0.0
        %2852 = vmatmul.mubr.f32.gmra.mxu0 %v2546
        %v2853 = vpop.f32.mrf.mxu0
        %v2854 = vadd.f32 %v2277, %v2853
        %v2855 = vpop.f32.mrf.mxu0
        %2856 = vmatprep.mubr.f32.mxu0 0.0
        %2857 = vmatmul.mubr.f32.gmra.mxu0 %v2549
        %v2858 = vpop.f32.mrf.mxu0
        %v2859 = vadd.f32 %v2282, %v2858
        %v2860 = vpop.f32.mrf.mxu0
        %2861 = vmatprep.mubr.f32.mxu0 0.0
        %2862 = vmatmul.mubr.f32.gmra.mxu0 %v2552
        %v2863 = vpop.f32.mrf.mxu0
        %v2864 = vadd.f32 %v2287, %v2863
        %v2865 = vpop.f32.mrf.mxu0
        %2866 = vmatprep.mubr.f32.mxu0 0.0
        %2867 = vmatmul.mubr.f32.gmra.mxu0 %v2555
        %v2868 = vpop.f32.mrf.mxu0
        %v2869 = vadd.f32 %v2292, %v2868
        %v2870 = vpop.f32.mrf.mxu0
        %2871 = vmatprep.mubr.f32.mxu0 0.0
        %2872 = vmatmul.mubr.f32.gmra.mxu0 %v2558
        %v2873 = vpop.f32.mrf.mxu0
        %v2874 = vadd.f32 %v2297, %v2873
        %v2875 = vpop.f32.mrf.mxu0
        %2876 = vmatprep.mubr.f32.mxu0 0.0
        %2877 = vmatmul.mubr.f32.gmra.mxu0 %v2561
        %v2878 = vpop.f32.mrf.mxu0
        %v2879 = vadd.f32 %v2302, %v2878
        %v2880 = vpop.f32.mrf.mxu0
        %2881 = vmatprep.mubr.f32.mxu0 0.0
        %2882 = vmatmul.mubr.f32.gmra.mxu0 %v2564
        %v2883 = vpop.f32.mrf.mxu0
        %v2884 = vadd.f32 %v2307, %v2883
        %v2885 = vpop.f32.mrf.mxu0
        %2886 = vmatprep.mubr.f32.mxu0 0.0
        %2887 = vmatmul.mubr.f32.gmra.mxu0 %v2567
        %v2888 = vpop.f32.mrf.mxu0
        %v2889 = vadd.f32 %v2312, %v2888
        %v2890 = vpop.f32.mrf.mxu0
        %2891 = vmatprep.mubr.f32.mxu0 0.0
        %2892 = vmatmul.mubr.f32.gmra.mxu0 %v2570
        %v2893 = vpop.f32.mrf.mxu0
        %v2894 = vadd.f32 %v2317, %v2893
        %v2895 = vpop.f32.mrf.mxu0
        %2896 = vmatprep.mubr.f32.mxu0 0.0
        %2897 = vmatmul.mubr.f32.gmra.mxu0 %v2573
        %v2898 = vpop.f32.mrf.mxu0
        %v2899 = vadd.f32 %v2322, %v2898
        %v2900 = vpop.f32.mrf.mxu0
        %2901 = vmatprep.mubr.f32.mxu0 0.0
        %2902 = vmatmul.mubr.f32.gmra.mxu0 %v2576
        %v2903 = vpop.f32.mrf.mxu0
        %v2904 = vadd.f32 %v2327, %v2903
        %v2905 = vpop.f32.mrf.mxu0
        %2906 = vmatprep.mubr.f32.mxu0 0.0
        %2907 = vmatmul.mubr.f32.gmra.mxu0 %v2579
        %v2908 = vpop.f32.mrf.mxu0
        %v2909 = vadd.f32 %v2332, %v2908
        %v2910 = vpop.f32.mrf.mxu0
        %2911 = vmatprep.mubr.f32.mxu0 0.0
        %2912 = vmatmul.mubr.f32.gmra.mxu0 %v2582
        %v2913 = vpop.f32.mrf.mxu0
        %v2914 = vadd.f32 %v2337, %v2913
        %v2915 = vpop.f32.mrf.mxu0
        %2916 = vmatprep.mubr.f32.mxu0 0.0
        %2917 = vmatmul.mubr.f32.gmra.mxu0 %v2585
        %v2918 = vpop.f32.mrf.mxu0
        %v2919 = vadd.f32 %v2342, %v2918
        %v2920 = vpop.f32.mrf.mxu0
        %2921 = vmatprep.mubr.f32.mxu0 0.0
        %2922 = vmatmul.mubr.f32.gmra.mxu0 %v2588
        %v2923 = vpop.f32.mrf.mxu0
        %v2924 = vadd.f32 %v2347, %v2923
        %v2925 = vpop.f32.mrf.mxu0
        %2926 = vmatprep.mubr.f32.mxu0 0.0
        %2927 = vmatmul.mubr.f32.gmra.mxu0 %v2591
        %v2928 = vpop.f32.mrf.mxu0
        %v2929 = vadd.f32 %v2352, %v2928
        %v2930 = vpop.f32.mrf.mxu0
        %2931 = vmatprep.mubr.f32.mxu0 0.0
        %2932 = vmatmul.mubr.f32.gmra.mxu0 %v2594
        %v2933 = vpop.f32.mrf.mxu0
        %v2934 = vadd.f32 %v2357, %v2933
        %v2935 = vpop.f32.mrf.mxu0
        %2936 = vmatprep.mubr.f32.mxu0 0.0
        %2937 = vmatmul.mubr.f32.gmra.mxu0 %v2597
        %v2938 = vpop.f32.mrf.mxu0
        %v2939 = vadd.f32 %v2362, %v2938
        %v2940 = vpop.f32.mrf.mxu0
        %2941 = vmatprep.mubr.f32.mxu0 0.0
        %2942 = vmatmul.mubr.f32.gmra.mxu0 %v2600
        %v2943 = vpop.f32.mrf.mxu0
        %v2944 = vadd.f32 %v2367, %v2943
        %v2945 = vpop.f32.mrf.mxu0
        %2946 = vmatprep.mubr.f32.mxu0 0.0
        %2947 = vmatmul.mubr.f32.gmra.mxu0 %v2603
        %v2948 = vpop.f32.mrf.mxu0
        %v2949 = vadd.f32 %v2372, %v2948
        %v2950 = vpop.f32.mrf.mxu0
        %2951 = vmatprep.mubr.f32.mxu0 0.0
        %2952 = vmatmul.mubr.f32.gmra.mxu0 %v2606
        %v2953 = vpop.f32.mrf.mxu0
        %v2954 = vadd.f32 %v2377, %v2953
        %v2955 = vpop.f32.mrf.mxu0
        %2956 = vmatprep.mubr.f32.mxu0 0.0
        %2957 = vmatmul.mubr.f32.gmra.mxu0 %v2609
        %v2958 = vpop.f32.mrf.mxu0
        %v2959 = vadd.f32 %v2382, %v2958
        %v2960 = vpop.f32.mrf.mxu0
        %2961 = vmatprep.mubr.f32.mxu0 0.0
        %2962 = vmatmul.mubr.f32.gmra.mxu0 %v2612
        %v2963 = vpop.f32.mrf.mxu0
        %v2964 = vadd.f32 %v2387, %v2963
        %v2965 = vpop.f32.mrf.mxu0
        %2966 = vmatprep.mubr.f32.mxu0 0.0
        %2967 = vmatmul.mubr.f32.gmra.mxu0 %v2615
        %v2968 = vpop.f32.mrf.mxu0
        %v2969 = vadd.f32 %v2392, %v2968
        %v2970 = vpop.f32.mrf.mxu0
        %2971 = vmatprep.mubr.f32.mxu0 0.0
        %2972 = vmatmul.mubr.f32.gmra.mxu0 %v2618
        %v2973 = vpop.f32.mrf.mxu0
        %v2974 = vadd.f32 %v2397, %v2973
        %v2975 = vpop.f32.mrf.mxu0
        %2976 = vmatprep.mubr.f32.mxu0 0.0
        %2977 = vmatmul.mubr.f32.gmra.mxu0 %v2621
        %v2978 = vpop.f32.mrf.mxu0
        %v2979 = vadd.f32 %v2402, %v2978
        %v2980 = vpop.f32.mrf.mxu0
        %2981 = vmatprep.mubr.f32.mxu0 0.0
        %2982 = vmatmul.mubr.f32.gmra.mxu0 %v2624
        %v2983 = vpop.f32.mrf.mxu0
        %v2984 = vadd.f32 %v2407, %v2983
        %v2985 = vpop.f32.mrf.mxu0
        %2986 = vmatprep.mubr.f32.mxu0 0.0
        %2987 = vmatmul.mubr.f32.gmra.mxu0 %v2627
        %v2988 = vpop.f32.mrf.mxu0
        %v2989 = vadd.f32 %v2412, %v2988
        %v2990 = vpop.f32.mrf.mxu0
        %2991 = vmatprep.mubr.f32.mxu0 0.0
        %2992 = vmatmul.mubr.f32.gmra.mxu0 %v2630
        %v2993 = vpop.f32.mrf.mxu0
        %v2994 = vadd.f32 %v2417, %v2993
        %v2995 = vpop.f32.mrf.mxu0
        %2996 = vmatprep.mubr.f32.mxu0 0.0
        %2997 = vmatmul.mubr.f32.gmra.mxu0 %v2633
        %v2998 = vpop.f32.mrf.mxu0
        %v2999 = vadd.f32 %v2422, %v2998
        %v3000 = vpop.f32.mrf.mxu0
        %3001 = vmatprep.mubr.f32.mxu0 0.0
        %3002 = vmatmul.mubr.f32.gmra.mxu0 %v2636
        %v3003 = vpop.f32.mrf.mxu0
        %v3004 = vadd.f32 %v2427, %v3003
        %v3005 = vpop.f32.mrf.mxu0
        %3006 = vmatprep.mubr.f32.mxu0 0.0
        %3007 = vmatmul.mubr.f32.gmra.mxu0 %v2639
        %v3008 = vpop.f32.mrf.mxu0
        %v3009 = vadd.f32 %v2432, %v3008
        %v3010 = vpop.f32.mrf.mxu0
        %3011 = vmatprep.mubr.f32.mxu0 0.0
        %3012 = vmatmul.mubr.f32.gmra.mxu0 %v2642
        %v3013 = vpop.f32.mrf.mxu0
        %v3014 = vadd.f32 %v2437, %v3013
        %v3015 = vpop.f32.mrf.mxu0
        %3016 = vmatprep.mubr.f32.mxu0 0.0
        %3017 = vmatmul.mubr.f32.gmra.mxu0 %v2645
        %v3018 = vpop.f32.mrf.mxu0
        %v3019 = vadd.f32 %v2442, %v3018
        %v3020 = vpop.f32.mrf.mxu0
        %3021 = vmatprep.mubr.f32.mxu0 0.0
        %3022 = vmatmul.mubr.f32.gmra.mxu0 %v2648
        %v3023 = vpop.f32.mrf.mxu0
        %v3024 = vadd.f32 %v2447, %v3023
        %v3025 = vpop.f32.mrf.mxu0
        %3026 = vmatprep.mubr.f32.mxu0 0.0
        %3027 = vmatmul.mubr.f32.gmra.mxu0 %v2651
        %v3028 = vpop.f32.mrf.mxu0
        %v3029 = vadd.f32 %v2452, %v3028
        %v3030 = vpop.f32.mrf.mxu0
        %3031 = vmatprep.mubr.f32.mxu0 0.0
        %3032 = vmatmul.mubr.f32.gmra.mxu0 %v2654
        %v3033 = vpop.f32.mrf.mxu0
        %v3034 = vadd.f32 %v2457, %v3033
        %v3035 = vpop.f32.mrf.mxu0
        %3036 = vmatprep.mubr.f32.mxu0 0.0
        %3037 = vmatmul.mubr.f32.gmra.mxu0 %v2657
        %v3038 = vpop.f32.mrf.mxu0
        %v3039 = vadd.f32 %v2462, %v3038
        %v3040 = vpop.f32.mrf.mxu0
        %3041 = vmatprep.mubr.f32.mxu0 0.0
        %3042 = vmatmul.mubr.f32.gmra.mxu0 %v2660
        %v3043 = vpop.f32.mrf.mxu0
        %v3044 = vadd.f32 %v2467, %v3043
        %v3045 = vpop.f32.mrf.mxu0
        %3046 = vdwg.mxu0
        %v3047 = vmax.f32 %v1445, %v2729
        %v3048 = vmax.f32 %v1450, %v2734
        %v3049 = vmax.f32 %v1455, %v2739
        %v3050 = vmax.f32 %v1460, %v2744
        %v3051 = vmax.f32 %v1465, %v2749
        %v3052 = vmax.f32 %v1470, %v2754
        %v3053 = vmax.f32 %v1475, %v2759
        %v3054 = vmax.f32 %v1480, %v2764
        %v3055 = vmax.f32 %v1485, %v2769
        %v3056 = vmax.f32 %v1490, %v2774
        %v3057 = vmax.f32 %v1495, %v2779
        %v3058 = vmax.f32 %v1500, %v2784
        %v3059 = vmax.f32 %v1505, %v2789
        %v3060 = vmax.f32 %v1510, %v2794
        %v3061 = vmax.f32 %v1515, %v2799
        %v3062 = vmax.f32 %v1520, %v2804
        %v3063 = vmax.f32 %v1525, %v2809
        %v3064 = vmax.f32 %v1530, %v2814
        %v3065 = vmax.f32 %v1535, %v2819
        %v3066 = vmax.f32 %v1540, %v2824
        %v3067 = vmax.f32 %v1545, %v2829
        %v3068 = vmax.f32 %v1550, %v2834
        %v3069 = vmax.f32 %v1555, %v2839
        %v3070 = vmax.f32 %v1560, %v2844
        %v3071 = vmax.f32 %v1565, %v2849
        %v3072 = vmax.f32 %v1570, %v2854
        %v3073 = vmax.f32 %v1575, %v2859
        %v3074 = vmax.f32 %v1580, %v2864
        %v3075 = vmax.f32 %v1585, %v2869
        %v3076 = vmax.f32 %v1590, %v2874
        %v3077 = vmax.f32 %v1595, %v2879
        %v3078 = vmax.f32 %v1600, %v2884
        %v3079 = vmax.f32 %v1605, %v2889
        %v3080 = vmax.f32 %v1610, %v2894
        %v3081 = vmax.f32 %v1615, %v2899
        %v3082 = vmax.f32 %v1620, %v2904
        %v3083 = vmax.f32 %v1625, %v2909
        %v3084 = vmax.f32 %v1630, %v2914
        %v3085 = vmax.f32 %v1635, %v2919
        %v3086 = vmax.f32 %v1640, %v2924
        %v3087 = vmax.f32 %v1645, %v2929
        %v3088 = vmax.f32 %v1650, %v2934
        %v3089 = vmax.f32 %v1655, %v2939
        %v3090 = vmax.f32 %v1660, %v2944
        %v3091 = vmax.f32 %v1665, %v2949
        %v3092 = vmax.f32 %v1670, %v2954
        %v3093 = vmax.f32 %v1675, %v2959
        %v3094 = vmax.f32 %v1680, %v2964
        %v3095 = vmax.f32 %v1685, %v2969
        %v3096 = vmax.f32 %v1690, %v2974
        %v3097 = vmax.f32 %v1695, %v2979
        %v3098 = vmax.f32 %v1700, %v2984
        %v3099 = vmax.f32 %v1705, %v2989
        %v3100 = vmax.f32 %v1710, %v2994
        %v3101 = vmax.f32 %v1715, %v2999
        %v3102 = vmax.f32 %v1720, %v3004
        %v3103 = vmax.f32 %v1725, %v3009
        %v3104 = vmax.f32 %v1730, %v3014
        %v3105 = vmax.f32 %v1735, %v3019
        %v3106 = vmax.f32 %v1740, %v3024
        %v3107 = vmax.f32 %v1745, %v3029
        %v3108 = vmax.f32 %v1750, %v3034
        %v3109 = vmax.f32 %v1755, %v3039
        %v3110 = vmax.f32 %v1760, %v3044
        %s3111 = scalar_lea.vmem %s437, 1024
        %v3112 = vld [vmem:[%s3111] sm:$0xff]
        %v3113 = vld [vmem:[%s3111 + $0x8] sm:$0xff]
        %v3114 = vld [vmem:[%s3111 + $0x10] sm:$0xff]
        %v3115 = vld [vmem:[%s3111 + $0x18] sm:$0xff]
        %v3116 = vld [vmem:[%s3111 + $0x20] sm:$0xff]
        %v3117 = vld [vmem:[%s3111 + $0x28] sm:$0xff]
        %v3118 = vld [vmem:[%s3111 + $0x30] sm:$0xff]
        %v3119 = vld [vmem:[%s3111 + $0x38] sm:$0xff]
        %v3120 = vld [vmem:[%s3111 + $0x40] sm:$0xff]
        %v3121 = vld [vmem:[%s3111 + $0x48] sm:$0xff]
        %v3122 = vld [vmem:[%s3111 + $0x50] sm:$0xff]
        %v3123 = vld [vmem:[%s3111 + $0x58] sm:$0xff]
        %v3124 = vld [vmem:[%s3111 + $0x60] sm:$0xff]
        %v3125 = vld [vmem:[%s3111 + $0x68] sm:$0xff]
        %v3126 = vld [vmem:[%s3111 + $0x70] sm:$0xff]
        %v3127 = vld [vmem:[%s3111 + $0x78] sm:$0xff]
        %v3128 = vld [vmem:[%s3111 + $0x80] sm:$0xff]
        %v3129 = vld [vmem:[%s3111 + $0x88] sm:$0xff]
        %v3130 = vld [vmem:[%s3111 + $0x90] sm:$0xff]
        %v3131 = vld [vmem:[%s3111 + $0x98] sm:$0xff]
        %v3132 = vld [vmem:[%s3111 + $0xa0] sm:$0xff]
        %v3133 = vld [vmem:[%s3111 + $0xa8] sm:$0xff]
        %v3134 = vld [vmem:[%s3111 + $0xb0] sm:$0xff]
        %v3135 = vld [vmem:[%s3111 + $0xb8] sm:$0xff]
        %v3136 = vld [vmem:[%s3111 + $0xc0] sm:$0xff]
        %v3137 = vld [vmem:[%s3111 + $0xc8] sm:$0xff]
        %v3138 = vld [vmem:[%s3111 + $0xd0] sm:$0xff]
        %v3139 = vld [vmem:[%s3111 + $0xd8] sm:$0xff]
        %v3140 = vld [vmem:[%s3111 + $0xe0] sm:$0xff]
        %v3141 = vld [vmem:[%s3111 + $0xe8] sm:$0xff]
        %v3142 = vld [vmem:[%s3111 + $0xf0] sm:$0xff]
        %v3143 = vld [vmem:[%s3111 + $0xf8] sm:$0xff]
        %v3144 = vld [vmem:[%s3111 + $0x100] sm:$0xff]
        %v3145 = vld [vmem:[%s3111 + $0x108] sm:$0xff]
        %v3146 = vld [vmem:[%s3111 + $0x110] sm:$0xff]
        %v3147 = vld [vmem:[%s3111 + $0x118] sm:$0xff]
        %v3148 = vld [vmem:[%s3111 + $0x120] sm:$0xff]
        %v3149 = vld [vmem:[%s3111 + $0x128] sm:$0xff]
        %v3150 = vld [vmem:[%s3111 + $0x130] sm:$0xff]
        %v3151 = vld [vmem:[%s3111 + $0x138] sm:$0xff]
        %v3152 = vld [vmem:[%s3111 + $0x140] sm:$0xff]
        %v3153 = vld [vmem:[%s3111 + $0x148] sm:$0xff]
        %v3154 = vld [vmem:[%s3111 + $0x150] sm:$0xff]
        %v3155 = vld [vmem:[%s3111 + $0x158] sm:$0xff]
        %v3156 = vld [vmem:[%s3111 + $0x160] sm:$0xff]
        %v3157 = vld [vmem:[%s3111 + $0x168] sm:$0xff]
        %v3158 = vld [vmem:[%s3111 + $0x170] sm:$0xff]
        %v3159 = vld [vmem:[%s3111 + $0x178] sm:$0xff]
        %v3160 = vld [vmem:[%s3111 + $0x180] sm:$0xff]
        %v3161 = vld [vmem:[%s3111 + $0x188] sm:$0xff]
        %v3162 = vld [vmem:[%s3111 + $0x190] sm:$0xff]
        %v3163 = vld [vmem:[%s3111 + $0x198] sm:$0xff]
        %v3164 = vld [vmem:[%s3111 + $0x1a0] sm:$0xff]
        %v3165 = vld [vmem:[%s3111 + $0x1a8] sm:$0xff]
        %v3166 = vld [vmem:[%s3111 + $0x1b0] sm:$0xff]
        %v3167 = vld [vmem:[%s3111 + $0x1b8] sm:$0xff]
        %v3168 = vld [vmem:[%s3111 + $0x1c0] sm:$0xff]
        %v3169 = vld [vmem:[%s3111 + $0x1c8] sm:$0xff]
        %v3170 = vld [vmem:[%s3111 + $0x1d0] sm:$0xff]
        %v3171 = vld [vmem:[%s3111 + $0x1d8] sm:$0xff]
        %v3172 = vld [vmem:[%s3111 + $0x1e0] sm:$0xff]
        %v3173 = vld [vmem:[%s3111 + $0x1e8] sm:$0xff]
        %v3174 = vld [vmem:[%s3111 + $0x1f0] sm:$0xff]
        %v3175 = vld [vmem:[%s3111 + $0x1f8] sm:$0xff]
        %s3176 = scalar_lea.vmem %s447, 1024
        %v3177 = vld [vmem:[%s3176] sm:$0xff]
        %v3178 = vld [vmem:[%s3176 + $0x8] sm:$0xff]
        %v3179 = vld [vmem:[%s3176 + $0x10] sm:$0xff]
        %v3180 = vld [vmem:[%s3176 + $0x18] sm:$0xff]
        %v3181 = vld [vmem:[%s3176 + $0x20] sm:$0xff]
        %v3182 = vld [vmem:[%s3176 + $0x28] sm:$0xff]
        %v3183 = vld [vmem:[%s3176 + $0x30] sm:$0xff]
        %v3184 = vld [vmem:[%s3176 + $0x38] sm:$0xff]
        %v3185 = vld [vmem:[%s3176 + $0x40] sm:$0xff]
        %v3186 = vld [vmem:[%s3176 + $0x48] sm:$0xff]
        %v3187 = vld [vmem:[%s3176 + $0x50] sm:$0xff]
        %v3188 = vld [vmem:[%s3176 + $0x58] sm:$0xff]
        %v3189 = vld [vmem:[%s3176 + $0x60] sm:$0xff]
        %v3190 = vld [vmem:[%s3176 + $0x68] sm:$0xff]
        %v3191 = vld [vmem:[%s3176 + $0x70] sm:$0xff]
        %v3192 = vld [vmem:[%s3176 + $0x78] sm:$0xff]
        %v3193 = vld [vmem:[%s3176 + $0x80] sm:$0xff]
        %v3194 = vld [vmem:[%s3176 + $0x88] sm:$0xff]
        %v3195 = vld [vmem:[%s3176 + $0x90] sm:$0xff]
        %v3196 = vld [vmem:[%s3176 + $0x98] sm:$0xff]
        %v3197 = vld [vmem:[%s3176 + $0xa0] sm:$0xff]
        %v3198 = vld [vmem:[%s3176 + $0xa8] sm:$0xff]
        %v3199 = vld [vmem:[%s3176 + $0xb0] sm:$0xff]
        %v3200 = vld [vmem:[%s3176 + $0xb8] sm:$0xff]
        %v3201 = vld [vmem:[%s3176 + $0xc0] sm:$0xff]
        %v3202 = vld [vmem:[%s3176 + $0xc8] sm:$0xff]
        %v3203 = vld [vmem:[%s3176 + $0xd0] sm:$0xff]
        %v3204 = vld [vmem:[%s3176 + $0xd8] sm:$0xff]
        %v3205 = vld [vmem:[%s3176 + $0xe0] sm:$0xff]
        %v3206 = vld [vmem:[%s3176 + $0xe8] sm:$0xff]
        %v3207 = vld [vmem:[%s3176 + $0xf0] sm:$0xff]
        %v3208 = vld [vmem:[%s3176 + $0xf8] sm:$0xff]
        %v3209 = vld [vmem:[%s3176 + $0x100] sm:$0xff]
        %v3210 = vld [vmem:[%s3176 + $0x108] sm:$0xff]
        %v3211 = vld [vmem:[%s3176 + $0x110] sm:$0xff]
        %v3212 = vld [vmem:[%s3176 + $0x118] sm:$0xff]
        %v3213 = vld [vmem:[%s3176 + $0x120] sm:$0xff]
        %v3214 = vld [vmem:[%s3176 + $0x128] sm:$0xff]
        %v3215 = vld [vmem:[%s3176 + $0x130] sm:$0xff]
        %v3216 = vld [vmem:[%s3176 + $0x138] sm:$0xff]
        %v3217 = vld [vmem:[%s3176 + $0x140] sm:$0xff]
        %v3218 = vld [vmem:[%s3176 + $0x148] sm:$0xff]
        %v3219 = vld [vmem:[%s3176 + $0x150] sm:$0xff]
        %v3220 = vld [vmem:[%s3176 + $0x158] sm:$0xff]
        %v3221 = vld [vmem:[%s3176 + $0x160] sm:$0xff]
        %v3222 = vld [vmem:[%s3176 + $0x168] sm:$0xff]
        %v3223 = vld [vmem:[%s3176 + $0x170] sm:$0xff]
        %v3224 = vld [vmem:[%s3176 + $0x178] sm:$0xff]
        %v3225 = vld [vmem:[%s3176 + $0x180] sm:$0xff]
        %v3226 = vld [vmem:[%s3176 + $0x188] sm:$0xff]
        %v3227 = vld [vmem:[%s3176 + $0x190] sm:$0xff]
        %v3228 = vld [vmem:[%s3176 + $0x198] sm:$0xff]
        %v3229 = vld [vmem:[%s3176 + $0x1a0] sm:$0xff]
        %v3230 = vld [vmem:[%s3176 + $0x1a8] sm:$0xff]
        %v3231 = vld [vmem:[%s3176 + $0x1b0] sm:$0xff]
        %v3232 = vld [vmem:[%s3176 + $0x1b8] sm:$0xff]
        %v3233 = vld [vmem:[%s3176 + $0x1c0] sm:$0xff]
        %v3234 = vld [vmem:[%s3176 + $0x1c8] sm:$0xff]
        %v3235 = vld [vmem:[%s3176 + $0x1d0] sm:$0xff]
        %v3236 = vld [vmem:[%s3176 + $0x1d8] sm:$0xff]
        %v3237 = vld [vmem:[%s3176 + $0x1e0] sm:$0xff]
        %v3238 = vld [vmem:[%s3176 + $0x1e8] sm:$0xff]
        %v3239 = vld [vmem:[%s3176 + $0x1f0] sm:$0xff]
        %v3240 = vld [vmem:[%s3176 + $0x1f8] sm:$0xff]
        %v3242 = vsel %vm603, %v3177, 0
        %v3245 = vsel %vm603, %v3178, 0
        %v3248 = vsel %vm603, %v3179, 0
        %v3251 = vsel %vm603, %v3180, 0
        %v3254 = vsel %vm603, %v3181, 0
        %v3257 = vsel %vm603, %v3182, 0
        %v3260 = vsel %vm603, %v3183, 0
        %v3263 = vsel %vm603, %v3184, 0
        %v3266 = vsel %vm603, %v3185, 0
        %v3269 = vsel %vm603, %v3186, 0
        %v3272 = vsel %vm603, %v3187, 0
        %v3275 = vsel %vm603, %v3188, 0
        %v3278 = vsel %vm603, %v3189, 0
        %v3281 = vsel %vm603, %v3190, 0
        %v3284 = vsel %vm603, %v3191, 0
        %v3287 = vsel %vm603, %v3192, 0
        %v3290 = vsel %vm603, %v3193, 0
        %v3293 = vsel %vm603, %v3194, 0
        %v3296 = vsel %vm603, %v3195, 0
        %v3299 = vsel %vm603, %v3196, 0
        %v3302 = vsel %vm603, %v3197, 0
        %v3305 = vsel %vm603, %v3198, 0
        %v3308 = vsel %vm603, %v3199, 0
        %v3311 = vsel %vm603, %v3200, 0
        %v3314 = vsel %vm603, %v3201, 0
        %v3317 = vsel %vm603, %v3202, 0
        %v3320 = vsel %vm603, %v3203, 0
        %v3323 = vsel %vm603, %v3204, 0
        %v3326 = vsel %vm603, %v3205, 0
        %v3329 = vsel %vm603, %v3206, 0
        %v3332 = vsel %vm603, %v3207, 0
        %v3335 = vsel %vm603, %v3208, 0
        %v3338 = vsel %vm603, %v3209, 0
        %v3341 = vsel %vm603, %v3210, 0
        %v3344 = vsel %vm603, %v3211, 0
        %v3347 = vsel %vm603, %v3212, 0
        %v3350 = vsel %vm603, %v3213, 0
        %v3353 = vsel %vm603, %v3214, 0
        %v3356 = vsel %vm603, %v3215, 0
        %v3359 = vsel %vm603, %v3216, 0
        %v3362 = vsel %vm603, %v3217, 0
        %v3365 = vsel %vm603, %v3218, 0
        %v3368 = vsel %vm603, %v3219, 0
        %v3371 = vsel %vm603, %v3220, 0
        %v3374 = vsel %vm603, %v3221, 0
        %v3377 = vsel %vm603, %v3222, 0
        %v3380 = vsel %vm603, %v3223, 0
        %v3383 = vsel %vm603, %v3224, 0
        %v3386 = vsel %vm603, %v3225, 0
        %v3389 = vsel %vm603, %v3226, 0
        %v3392 = vsel %vm603, %v3227, 0
        %v3395 = vsel %vm603, %v3228, 0
        %v3398 = vsel %vm603, %v3229, 0
        %v3401 = vsel %vm603, %v3230, 0
        %v3404 = vsel %vm603, %v3231, 0
        %v3407 = vsel %vm603, %v3232, 0
        %v3410 = vsel %vm603, %v3233, 0
        %v3413 = vsel %vm603, %v3234, 0
        %v3416 = vsel %vm603, %v3235, 0
        %v3419 = vsel %vm603, %v3236, 0
        %v3422 = vsel %vm603, %v3237, 0
        %v3425 = vsel %vm603, %v3238, 0
        %v3428 = vsel %vm603, %v3239, 0
        %v3431 = vsel %vm603, %v3240, 0
        %3433 = vmatprep.subr.mxu0 0.0
        %3434 = vmatpush1.msra.mxu0 0.0
        %3435 = vmatprep.subr.mxu0 0.0
        %3436 = vmatpush1.msra.mxu0 0.0
        %3437 = vmatprep.subr.mxu0 0.0
        %3438 = vmatpush1.msra.mxu0 0.0
        %3439 = vmatprep.subr.mxu0 0.0
        %3440 = vmatpush1.msra.mxu0 0.0
        %3441 = vmatprep.subr.mxu0 0.0
        %3442 = vmatpush1.msra.mxu0 0.0
        %3443 = vmatprep.subr.mxu0 0.0
        %3444 = vmatpush1.msra.mxu0 0.0
        %3445 = vmatprep.subr.mxu0 0.0
        %3446 = vmatpush1.msra.mxu0 0.0
        %3447 = vmatprep.subr.mxu0 0.0
        %3448 = vmatpush1.msra.mxu0 0.0
        %3449 = vmatprep.subr.mxu0 0.0
        %3450 = vmatpush1.msra.mxu0 0.0
        %3451 = vmatprep.subr.mxu0 0.0
        %3452 = vmatpush1.msra.mxu0 0.0
        %3453 = vmatprep.subr.mxu0 0.0
        %3454 = vmatpush1.msra.mxu0 0.0
        %3455 = vmatprep.subr.mxu0 0.0
        %3456 = vmatpush1.msra.mxu0 0.0
        %3457 = vmatprep.subr.mxu0 0.0
        %3458 = vmatpush1.msra.mxu0 0.0
        %3459 = vmatprep.subr.mxu0 0.0
        %3460 = vmatpush1.msra.mxu0 0.0
        %3461 = vmatprep.subr.mxu0 0.0
        %3462 = vmatpush1.msra.mxu0 0.0
        %3463 = vmatprep.subr.mxu0 0.0
        %3464 = vmatpush1.msra.mxu0 %v798
        %3465 = vmatprep.subr.mxu0 0.0
        %3466 = vmatpush2.msra.mxu0 0.0
        %3467 = vmatprep.subr.mxu0 0.0
        %3468 = vmatpush2.msra.mxu0 0.0
        %3469 = vmatprep.subr.mxu0 0.0
        %3470 = vmatpush2.msra.mxu0 0.0
        %3471 = vmatprep.subr.mxu0 0.0
        %3472 = vmatpush2.msra.mxu0 0.0
        %3473 = vmatprep.subr.mxu0 0.0
        %3474 = vmatpush2.msra.mxu0 0.0
        %3475 = vmatprep.subr.mxu0 0.0
        %3476 = vmatpush2.msra.mxu0 0.0
        %3477 = vmatprep.subr.mxu0 0.0
        %3478 = vmatpush2.msra.mxu0 0.0
        %3479 = vmatprep.subr.mxu0 0.0
        %3480 = vmatpush2.msra.mxu0 0.0
        %3481 = vmatprep.subr.mxu0 0.0
        %3482 = vmatpush2.msra.mxu0 0.0
        %3483 = vmatprep.subr.mxu0 0.0
        %3484 = vmatpush2.msra.mxu0 0.0
        %3485 = vmatprep.subr.mxu0 0.0
        %3486 = vmatpush2.msra.mxu0 0.0
        %3487 = vmatprep.subr.mxu0 0.0
        %3488 = vmatpush2.msra.mxu0 0.0
        %3489 = vmatprep.subr.mxu0 0.0
        %3490 = vmatpush2.msra.mxu0 0.0
        %3491 = vmatprep.subr.mxu0 0.0
        %3492 = vmatpush2.msra.mxu0 0.0
        %3493 = vmatprep.subr.mxu0 0.0
        %3494 = vmatpush2.msra.mxu0 0.0
        %3495 = vmatprep.subr.mxu0 0.0
        %3496 = vmatpush2.msra.mxu0 0.0
        %3497 = vmatprep.mubr.f32.mxu0 0.0
        %3498 = vmatmul.mubr.f32.gmra.mxu0 %v3242
        %v3499 = vpop.f32.mrf.mxu0
        %v3500 = vadd.f32 0.0, %v3499
        %v3501 = vpop.f32.mrf.mxu0
        %3502 = vmatprep.mubr.f32.mxu0 0.0
        %3503 = vmatmul.mubr.f32.gmra.mxu0 %v3245
        %v3504 = vpop.f32.mrf.mxu0
        %v3505 = vadd.f32 0.0, %v3504
        %v3506 = vpop.f32.mrf.mxu0
        %3507 = vmatprep.mubr.f32.mxu0 0.0
        %3508 = vmatmul.mubr.f32.gmra.mxu0 %v3248
        %v3509 = vpop.f32.mrf.mxu0
        %v3510 = vadd.f32 0.0, %v3509
        %v3511 = vpop.f32.mrf.mxu0
        %3512 = vmatprep.mubr.f32.mxu0 0.0
        %3513 = vmatmul.mubr.f32.gmra.mxu0 %v3251
        %v3514 = vpop.f32.mrf.mxu0
        %v3515 = vadd.f32 0.0, %v3514
        %v3516 = vpop.f32.mrf.mxu0
        %3517 = vmatprep.mubr.f32.mxu0 0.0
        %3518 = vmatmul.mubr.f32.gmra.mxu0 %v3254
        %v3519 = vpop.f32.mrf.mxu0
        %v3520 = vadd.f32 0.0, %v3519
        %v3521 = vpop.f32.mrf.mxu0
        %3522 = vmatprep.mubr.f32.mxu0 0.0
        %3523 = vmatmul.mubr.f32.gmra.mxu0 %v3257
        %v3524 = vpop.f32.mrf.mxu0
        %v3525 = vadd.f32 0.0, %v3524
        %v3526 = vpop.f32.mrf.mxu0
        %3527 = vmatprep.mubr.f32.mxu0 0.0
        %3528 = vmatmul.mubr.f32.gmra.mxu0 %v3260
        %v3529 = vpop.f32.mrf.mxu0
        %v3530 = vadd.f32 0.0, %v3529
        %v3531 = vpop.f32.mrf.mxu0
        %3532 = vmatprep.mubr.f32.mxu0 0.0
        %3533 = vmatmul.mubr.f32.gmra.mxu0 %v3263
        %v3534 = vpop.f32.mrf.mxu0
        %v3535 = vadd.f32 0.0, %v3534
        %v3536 = vpop.f32.mrf.mxu0
        %3537 = vmatprep.mubr.f32.mxu0 0.0
        %3538 = vmatmul.mubr.f32.gmra.mxu0 %v3266
        %v3539 = vpop.f32.mrf.mxu0
        %v3540 = vadd.f32 0.0, %v3539
        %v3541 = vpop.f32.mrf.mxu0
        %3542 = vmatprep.mubr.f32.mxu0 0.0
        %3543 = vmatmul.mubr.f32.gmra.mxu0 %v3269
        %v3544 = vpop.f32.mrf.mxu0
        %v3545 = vadd.f32 0.0, %v3544
        %v3546 = vpop.f32.mrf.mxu0
        %3547 = vmatprep.mubr.f32.mxu0 0.0
        %3548 = vmatmul.mubr.f32.gmra.mxu0 %v3272
        %v3549 = vpop.f32.mrf.mxu0
        %v3550 = vadd.f32 0.0, %v3549
        %v3551 = vpop.f32.mrf.mxu0
        %3552 = vmatprep.mubr.f32.mxu0 0.0
        %3553 = vmatmul.mubr.f32.gmra.mxu0 %v3275
        %v3554 = vpop.f32.mrf.mxu0
        %v3555 = vadd.f32 0.0, %v3554
        %v3556 = vpop.f32.mrf.mxu0
        %3557 = vmatprep.mubr.f32.mxu0 0.0
        %3558 = vmatmul.mubr.f32.gmra.mxu0 %v3278
        %v3559 = vpop.f32.mrf.mxu0
        %v3560 = vadd.f32 0.0, %v3559
        %v3561 = vpop.f32.mrf.mxu0
        %3562 = vmatprep.mubr.f32.mxu0 0.0
        %3563 = vmatmul.mubr.f32.gmra.mxu0 %v3281
        %v3564 = vpop.f32.mrf.mxu0
        %v3565 = vadd.f32 0.0, %v3564
        %v3566 = vpop.f32.mrf.mxu0
        %3567 = vmatprep.mubr.f32.mxu0 0.0
        %3568 = vmatmul.mubr.f32.gmra.mxu0 %v3284
        %v3569 = vpop.f32.mrf.mxu0
        %v3570 = vadd.f32 0.0, %v3569
        %v3571 = vpop.f32.mrf.mxu0
        %3572 = vmatprep.mubr.f32.mxu0 0.0
        %3573 = vmatmul.mubr.f32.gmra.mxu0 %v3287
        %v3574 = vpop.f32.mrf.mxu0
        %v3575 = vadd.f32 0.0, %v3574
        %v3576 = vpop.f32.mrf.mxu0
        %3577 = vmatprep.mubr.f32.mxu0 0.0
        %3578 = vmatmul.mubr.f32.gmra.mxu0 %v3290
        %v3579 = vpop.f32.mrf.mxu0
        %v3580 = vadd.f32 0.0, %v3579
        %v3581 = vpop.f32.mrf.mxu0
        %3582 = vmatprep.mubr.f32.mxu0 0.0
        %3583 = vmatmul.mubr.f32.gmra.mxu0 %v3293
        %v3584 = vpop.f32.mrf.mxu0
        %v3585 = vadd.f32 0.0, %v3584
        %v3586 = vpop.f32.mrf.mxu0
        %3587 = vmatprep.mubr.f32.mxu0 0.0
        %3588 = vmatmul.mubr.f32.gmra.mxu0 %v3296
        %v3589 = vpop.f32.mrf.mxu0
        %v3590 = vadd.f32 0.0, %v3589
        %v3591 = vpop.f32.mrf.mxu0
        %3592 = vmatprep.mubr.f32.mxu0 0.0
        %3593 = vmatmul.mubr.f32.gmra.mxu0 %v3299
        %v3594 = vpop.f32.mrf.mxu0
        %v3595 = vadd.f32 0.0, %v3594
        %v3596 = vpop.f32.mrf.mxu0
        %3597 = vmatprep.mubr.f32.mxu0 0.0
        %3598 = vmatmul.mubr.f32.gmra.mxu0 %v3302
        %v3599 = vpop.f32.mrf.mxu0
        %v3600 = vadd.f32 0.0, %v3599
        %v3601 = vpop.f32.mrf.mxu0
        %3602 = vmatprep.mubr.f32.mxu0 0.0
        %3603 = vmatmul.mubr.f32.gmra.mxu0 %v3305
        %v3604 = vpop.f32.mrf.mxu0
        %v3605 = vadd.f32 0.0, %v3604
        %v3606 = vpop.f32.mrf.mxu0
        %3607 = vmatprep.mubr.f32.mxu0 0.0
        %3608 = vmatmul.mubr.f32.gmra.mxu0 %v3308
        %v3609 = vpop.f32.mrf.mxu0
        %v3610 = vadd.f32 0.0, %v3609
        %v3611 = vpop.f32.mrf.mxu0
        %3612 = vmatprep.mubr.f32.mxu0 0.0
        %3613 = vmatmul.mubr.f32.gmra.mxu0 %v3311
        %v3614 = vpop.f32.mrf.mxu0
        %v3615 = vadd.f32 0.0, %v3614
        %v3616 = vpop.f32.mrf.mxu0
        %3617 = vmatprep.mubr.f32.mxu0 0.0
        %3618 = vmatmul.mubr.f32.gmra.mxu0 %v3314
        %v3619 = vpop.f32.mrf.mxu0
        %v3620 = vadd.f32 0.0, %v3619
        %v3621 = vpop.f32.mrf.mxu0
        %3622 = vmatprep.mubr.f32.mxu0 0.0
        %3623 = vmatmul.mubr.f32.gmra.mxu0 %v3317
        %v3624 = vpop.f32.mrf.mxu0
        %v3625 = vadd.f32 0.0, %v3624
        %v3626 = vpop.f32.mrf.mxu0
        %3627 = vmatprep.mubr.f32.mxu0 0.0
        %3628 = vmatmul.mubr.f32.gmra.mxu0 %v3320
        %v3629 = vpop.f32.mrf.mxu0
        %v3630 = vadd.f32 0.0, %v3629
        %v3631 = vpop.f32.mrf.mxu0
        %3632 = vmatprep.mubr.f32.mxu0 0.0
        %3633 = vmatmul.mubr.f32.gmra.mxu0 %v3323
        %v3634 = vpop.f32.mrf.mxu0
        %v3635 = vadd.f32 0.0, %v3634
        %v3636 = vpop.f32.mrf.mxu0
        %3637 = vmatprep.mubr.f32.mxu0 0.0
        %3638 = vmatmul.mubr.f32.gmra.mxu0 %v3326
        %v3639 = vpop.f32.mrf.mxu0
        %v3640 = vadd.f32 0.0, %v3639
        %v3641 = vpop.f32.mrf.mxu0
        %3642 = vmatprep.mubr.f32.mxu0 0.0
        %3643 = vmatmul.mubr.f32.gmra.mxu0 %v3329
        %v3644 = vpop.f32.mrf.mxu0
        %v3645 = vadd.f32 0.0, %v3644
        %v3646 = vpop.f32.mrf.mxu0
        %3647 = vmatprep.mubr.f32.mxu0 0.0
        %3648 = vmatmul.mubr.f32.gmra.mxu0 %v3332
        %v3649 = vpop.f32.mrf.mxu0
        %v3650 = vadd.f32 0.0, %v3649
        %v3651 = vpop.f32.mrf.mxu0
        %3652 = vmatprep.mubr.f32.mxu0 0.0
        %3653 = vmatmul.mubr.f32.gmra.mxu0 %v3335
        %v3654 = vpop.f32.mrf.mxu0
        %v3655 = vadd.f32 0.0, %v3654
        %v3656 = vpop.f32.mrf.mxu0
        %3657 = vmatprep.mubr.f32.mxu0 0.0
        %3658 = vmatmul.mubr.f32.gmra.mxu0 %v3338
        %v3659 = vpop.f32.mrf.mxu0
        %v3660 = vadd.f32 0.0, %v3659
        %v3661 = vpop.f32.mrf.mxu0
        %3662 = vmatprep.mubr.f32.mxu0 0.0
        %3663 = vmatmul.mubr.f32.gmra.mxu0 %v3341
        %v3664 = vpop.f32.mrf.mxu0
        %v3665 = vadd.f32 0.0, %v3664
        %v3666 = vpop.f32.mrf.mxu0
        %3667 = vmatprep.mubr.f32.mxu0 0.0
        %3668 = vmatmul.mubr.f32.gmra.mxu0 %v3344
        %v3669 = vpop.f32.mrf.mxu0
        %v3670 = vadd.f32 0.0, %v3669
        %v3671 = vpop.f32.mrf.mxu0
        %3672 = vmatprep.mubr.f32.mxu0 0.0
        %3673 = vmatmul.mubr.f32.gmra.mxu0 %v3347
        %v3674 = vpop.f32.mrf.mxu0
        %v3675 = vadd.f32 0.0, %v3674
        %v3676 = vpop.f32.mrf.mxu0
        %3677 = vmatprep.mubr.f32.mxu0 0.0
        %3678 = vmatmul.mubr.f32.gmra.mxu0 %v3350
        %v3679 = vpop.f32.mrf.mxu0
        %v3680 = vadd.f32 0.0, %v3679
        %v3681 = vpop.f32.mrf.mxu0
        %3682 = vmatprep.mubr.f32.mxu0 0.0
        %3683 = vmatmul.mubr.f32.gmra.mxu0 %v3353
        %v3684 = vpop.f32.mrf.mxu0
        %v3685 = vadd.f32 0.0, %v3684
        %v3686 = vpop.f32.mrf.mxu0
        %3687 = vmatprep.mubr.f32.mxu0 0.0
        %3688 = vmatmul.mubr.f32.gmra.mxu0 %v3356
        %v3689 = vpop.f32.mrf.mxu0
        %v3690 = vadd.f32 0.0, %v3689
        %v3691 = vpop.f32.mrf.mxu0
        %3692 = vmatprep.mubr.f32.mxu0 0.0
        %3693 = vmatmul.mubr.f32.gmra.mxu0 %v3359
        %v3694 = vpop.f32.mrf.mxu0
        %v3695 = vadd.f32 0.0, %v3694
        %v3696 = vpop.f32.mrf.mxu0
        %3697 = vmatprep.mubr.f32.mxu0 0.0
        %3698 = vmatmul.mubr.f32.gmra.mxu0 %v3362
        %v3699 = vpop.f32.mrf.mxu0
        %v3700 = vadd.f32 0.0, %v3699
        %v3701 = vpop.f32.mrf.mxu0
        %3702 = vmatprep.mubr.f32.mxu0 0.0
        %3703 = vmatmul.mubr.f32.gmra.mxu0 %v3365
        %v3704 = vpop.f32.mrf.mxu0
        %v3705 = vadd.f32 0.0, %v3704
        %v3706 = vpop.f32.mrf.mxu0
        %3707 = vmatprep.mubr.f32.mxu0 0.0
        %3708 = vmatmul.mubr.f32.gmra.mxu0 %v3368
        %v3709 = vpop.f32.mrf.mxu0
        %v3710 = vadd.f32 0.0, %v3709
        %v3711 = vpop.f32.mrf.mxu0
        %3712 = vmatprep.mubr.f32.mxu0 0.0
        %3713 = vmatmul.mubr.f32.gmra.mxu0 %v3371
        %v3714 = vpop.f32.mrf.mxu0
        %v3715 = vadd.f32 0.0, %v3714
        %v3716 = vpop.f32.mrf.mxu0
        %3717 = vmatprep.mubr.f32.mxu0 0.0
        %3718 = vmatmul.mubr.f32.gmra.mxu0 %v3374
        %v3719 = vpop.f32.mrf.mxu0
        %v3720 = vadd.f32 0.0, %v3719
        %v3721 = vpop.f32.mrf.mxu0
        %3722 = vmatprep.mubr.f32.mxu0 0.0
        %3723 = vmatmul.mubr.f32.gmra.mxu0 %v3377
        %v3724 = vpop.f32.mrf.mxu0
        %v3725 = vadd.f32 0.0, %v3724
        %v3726 = vpop.f32.mrf.mxu0
        %3727 = vmatprep.mubr.f32.mxu0 0.0
        %3728 = vmatmul.mubr.f32.gmra.mxu0 %v3380
        %v3729 = vpop.f32.mrf.mxu0
        %v3730 = vadd.f32 0.0, %v3729
        %v3731 = vpop.f32.mrf.mxu0
        %3732 = vmatprep.mubr.f32.mxu0 0.0
        %3733 = vmatmul.mubr.f32.gmra.mxu0 %v3383
        %v3734 = vpop.f32.mrf.mxu0
        %v3735 = vadd.f32 0.0, %v3734
        %v3736 = vpop.f32.mrf.mxu0
        %3737 = vmatprep.mubr.f32.mxu0 0.0
        %3738 = vmatmul.mubr.f32.gmra.mxu0 %v3386
        %v3739 = vpop.f32.mrf.mxu0
        %v3740 = vadd.f32 0.0, %v3739
        %v3741 = vpop.f32.mrf.mxu0
        %3742 = vmatprep.mubr.f32.mxu0 0.0
        %3743 = vmatmul.mubr.f32.gmra.mxu0 %v3389
        %v3744 = vpop.f32.mrf.mxu0
        %v3745 = vadd.f32 0.0, %v3744
        %v3746 = vpop.f32.mrf.mxu0
        %3747 = vmatprep.mubr.f32.mxu0 0.0
        %3748 = vmatmul.mubr.f32.gmra.mxu0 %v3392
        %v3749 = vpop.f32.mrf.mxu0
        %v3750 = vadd.f32 0.0, %v3749
        %v3751 = vpop.f32.mrf.mxu0
        %3752 = vmatprep.mubr.f32.mxu0 0.0
        %3753 = vmatmul.mubr.f32.gmra.mxu0 %v3395
        %v3754 = vpop.f32.mrf.mxu0
        %v3755 = vadd.f32 0.0, %v3754
        %v3756 = vpop.f32.mrf.mxu0
        %3757 = vmatprep.mubr.f32.mxu0 0.0
        %3758 = vmatmul.mubr.f32.gmra.mxu0 %v3398
        %v3759 = vpop.f32.mrf.mxu0
        %v3760 = vadd.f32 0.0, %v3759
        %v3761 = vpop.f32.mrf.mxu0
        %3762 = vmatprep.mubr.f32.mxu0 0.0
        %3763 = vmatmul.mubr.f32.gmra.mxu0 %v3401
        %v3764 = vpop.f32.mrf.mxu0
        %v3765 = vadd.f32 0.0, %v3764
        %v3766 = vpop.f32.mrf.mxu0
        %3767 = vmatprep.mubr.f32.mxu0 0.0
        %3768 = vmatmul.mubr.f32.gmra.mxu0 %v3404
        %v3769 = vpop.f32.mrf.mxu0
        %v3770 = vadd.f32 0.0, %v3769
        %v3771 = vpop.f32.mrf.mxu0
        %3772 = vmatprep.mubr.f32.mxu0 0.0
        %3773 = vmatmul.mubr.f32.gmra.mxu0 %v3407
        %v3774 = vpop.f32.mrf.mxu0
        %v3775 = vadd.f32 0.0, %v3774
        %v3776 = vpop.f32.mrf.mxu0
        %3777 = vmatprep.mubr.f32.mxu0 0.0
        %3778 = vmatmul.mubr.f32.gmra.mxu0 %v3410
        %v3779 = vpop.f32.mrf.mxu0
        %v3780 = vadd.f32 0.0, %v3779
        %v3781 = vpop.f32.mrf.mxu0
        %3782 = vmatprep.mubr.f32.mxu0 0.0
        %3783 = vmatmul.mubr.f32.gmra.mxu0 %v3413
        %v3784 = vpop.f32.mrf.mxu0
        %v3785 = vadd.f32 0.0, %v3784
        %v3786 = vpop.f32.mrf.mxu0
        %3787 = vmatprep.mubr.f32.mxu0 0.0
        %3788 = vmatmul.mubr.f32.gmra.mxu0 %v3416
        %v3789 = vpop.f32.mrf.mxu0
        %v3790 = vadd.f32 0.0, %v3789
        %v3791 = vpop.f32.mrf.mxu0
        %3792 = vmatprep.mubr.f32.mxu0 0.0
        %3793 = vmatmul.mubr.f32.gmra.mxu0 %v3419
        %v3794 = vpop.f32.mrf.mxu0
        %v3795 = vadd.f32 0.0, %v3794
        %v3796 = vpop.f32.mrf.mxu0
        %3797 = vmatprep.mubr.f32.mxu0 0.0
        %3798 = vmatmul.mubr.f32.gmra.mxu0 %v3422
        %v3799 = vpop.f32.mrf.mxu0
        %v3800 = vadd.f32 0.0, %v3799
        %v3801 = vpop.f32.mrf.mxu0
        %3802 = vmatprep.mubr.f32.mxu0 0.0
        %3803 = vmatmul.mubr.f32.gmra.mxu0 %v3425
        %v3804 = vpop.f32.mrf.mxu0
        %v3805 = vadd.f32 0.0, %v3804
        %v3806 = vpop.f32.mrf.mxu0
        %3807 = vmatprep.mubr.f32.mxu0 0.0
        %3808 = vmatmul.mubr.f32.gmra.mxu0 %v3428
        %v3809 = vpop.f32.mrf.mxu0
        %v3810 = vadd.f32 0.0, %v3809
        %v3811 = vpop.f32.mrf.mxu0
        %3812 = vmatprep.mubr.f32.mxu0 0.0
        %3813 = vmatmul.mubr.f32.gmra.mxu0 %v3431
        %v3814 = vpop.f32.mrf.mxu0
        %v3815 = vadd.f32 0.0, %v3814
        %v3816 = vpop.f32.mrf.mxu0
        %3817 = vdwg.mxu0
        %v3819 = vsel %vm1185, %v3112, 0
        %v3822 = vsel %vm1185, %v3113, 0
        %v3825 = vsel %vm1185, %v3114, 0
        %v3828 = vsel %vm1185, %v3115, 0
        %v3831 = vsel %vm1185, %v3116, 0
        %v3834 = vsel %vm1185, %v3117, 0
        %v3837 = vsel %vm1185, %v3118, 0
        %v3840 = vsel %vm1185, %v3119, 0
        %v3843 = vsel %vm1185, %v3120, 0
        %v3846 = vsel %vm1185, %v3121, 0
        %v3849 = vsel %vm1185, %v3122, 0
        %v3852 = vsel %vm1185, %v3123, 0
        %v3855 = vsel %vm1185, %v3124, 0
        %v3858 = vsel %vm1185, %v3125, 0
        %v3861 = vsel %vm1185, %v3126, 0
        %v3864 = vsel %vm1185, %v3127, 0
        %v3867 = vsel %vm1185, %v3128, 0
        %v3870 = vsel %vm1185, %v3129, 0
        %v3873 = vsel %vm1185, %v3130, 0
        %v3876 = vsel %vm1185, %v3131, 0
        %v3879 = vsel %vm1185, %v3132, 0
        %v3882 = vsel %vm1185, %v3133, 0
        %v3885 = vsel %vm1185, %v3134, 0
        %v3888 = vsel %vm1185, %v3135, 0
        %v3891 = vsel %vm1185, %v3136, 0
        %v3894 = vsel %vm1185, %v3137, 0
        %v3897 = vsel %vm1185, %v3138, 0
        %v3900 = vsel %vm1185, %v3139, 0
        %v3903 = vsel %vm1185, %v3140, 0
        %v3906 = vsel %vm1185, %v3141, 0
        %v3909 = vsel %vm1185, %v3142, 0
        %v3912 = vsel %vm1185, %v3143, 0
        %v3915 = vsel %vm1185, %v3144, 0
        %v3918 = vsel %vm1185, %v3145, 0
        %v3921 = vsel %vm1185, %v3146, 0
        %v3924 = vsel %vm1185, %v3147, 0
        %v3927 = vsel %vm1185, %v3148, 0
        %v3930 = vsel %vm1185, %v3149, 0
        %v3933 = vsel %vm1185, %v3150, 0
        %v3936 = vsel %vm1185, %v3151, 0
        %v3939 = vsel %vm1185, %v3152, 0
        %v3942 = vsel %vm1185, %v3153, 0
        %v3945 = vsel %vm1185, %v3154, 0
        %v3948 = vsel %vm1185, %v3155, 0
        %v3951 = vsel %vm1185, %v3156, 0
        %v3954 = vsel %vm1185, %v3157, 0
        %v3957 = vsel %vm1185, %v3158, 0
        %v3960 = vsel %vm1185, %v3159, 0
        %v3963 = vsel %vm1185, %v3160, 0
        %v3966 = vsel %vm1185, %v3161, 0
        %v3969 = vsel %vm1185, %v3162, 0
        %v3972 = vsel %vm1185, %v3163, 0
        %v3975 = vsel %vm1185, %v3164, 0
        %v3978 = vsel %vm1185, %v3165, 0
        %v3981 = vsel %vm1185, %v3166, 0
        %v3984 = vsel %vm1185, %v3167, 0
        %v3987 = vsel %vm1185, %v3168, 0
        %v3990 = vsel %vm1185, %v3169, 0
        %v3993 = vsel %vm1185, %v3170, 0
        %v3996 = vsel %vm1185, %v3171, 0
        %v3999 = vsel %vm1185, %v3172, 0
        %v4002 = vsel %vm1185, %v3173, 0
        %v4005 = vsel %vm1185, %v3174, 0
        %v4008 = vsel %vm1185, %v3175, 0
        %4010 = vmatprep.subr.mxu0 0.0
        %4011 = vmatpush1.msra.mxu0 0.0
        %4012 = vmatprep.subr.mxu0 0.0
        %4013 = vmatpush1.msra.mxu0 0.0
        %4014 = vmatprep.subr.mxu0 0.0
        %4015 = vmatpush1.msra.mxu0 0.0
        %4016 = vmatprep.subr.mxu0 0.0
        %4017 = vmatpush1.msra.mxu0 0.0
        %4018 = vmatprep.subr.mxu0 0.0
        %4019 = vmatpush1.msra.mxu0 0.0
        %4020 = vmatprep.subr.mxu0 0.0
        %4021 = vmatpush1.msra.mxu0 0.0
        %4022 = vmatprep.subr.mxu0 0.0
        %4023 = vmatpush1.msra.mxu0 0.0
        %4024 = vmatprep.subr.mxu0 0.0
        %4025 = vmatpush1.msra.mxu0 0.0
        %4026 = vmatprep.subr.mxu0 0.0
        %4027 = vmatpush1.msra.mxu0 0.0
        %4028 = vmatprep.subr.mxu0 0.0
        %4029 = vmatpush1.msra.mxu0 0.0
        %4030 = vmatprep.subr.mxu0 0.0
        %4031 = vmatpush1.msra.mxu0 0.0
        %4032 = vmatprep.subr.mxu0 0.0
        %4033 = vmatpush1.msra.mxu0 0.0
        %4034 = vmatprep.subr.mxu0 0.0
        %4035 = vmatpush1.msra.mxu0 %v537
        %4036 = vmatprep.subr.mxu0 0.0
        %4037 = vmatpush1.msra.mxu0 %v536
        %4038 = vmatprep.subr.mxu0 0.0
        %4039 = vmatpush1.msra.mxu0 %v535
        %4040 = vmatprep.subr.mxu0 0.0
        %4041 = vmatpush1.msra.mxu0 %v534
        %4042 = vmatprep.subr.mxu0 0.0
        %4043 = vmatpush2.msra.mxu0 0.0
        %4044 = vmatprep.subr.mxu0 0.0
        %4045 = vmatpush2.msra.mxu0 0.0
        %4046 = vmatprep.subr.mxu0 0.0
        %4047 = vmatpush2.msra.mxu0 0.0
        %4048 = vmatprep.subr.mxu0 0.0
        %4049 = vmatpush2.msra.mxu0 0.0
        %4050 = vmatprep.subr.mxu0 0.0
        %4051 = vmatpush2.msra.mxu0 0.0
        %4052 = vmatprep.subr.mxu0 0.0
        %4053 = vmatpush2.msra.mxu0 0.0
        %4054 = vmatprep.subr.mxu0 0.0
        %4055 = vmatpush2.msra.mxu0 0.0
        %4056 = vmatprep.subr.mxu0 0.0
        %4057 = vmatpush2.msra.mxu0 0.0
        %4058 = vmatprep.subr.mxu0 0.0
        %4059 = vmatpush2.msra.mxu0 0.0
        %4060 = vmatprep.subr.mxu0 0.0
        %4061 = vmatpush2.msra.mxu0 0.0
        %4062 = vmatprep.subr.mxu0 0.0
        %4063 = vmatpush2.msra.mxu0 0.0
        %4064 = vmatprep.subr.mxu0 0.0
        %4065 = vmatpush2.msra.mxu0 0.0
        %4066 = vmatprep.subr.mxu0 0.0
        %4067 = vmatpush2.msra.mxu0 0.0
        %4068 = vmatprep.subr.mxu0 0.0
        %4069 = vmatpush2.msra.mxu0 0.0
        %4070 = vmatprep.subr.mxu0 0.0
        %4071 = vmatpush2.msra.mxu0 0.0
        %4072 = vmatprep.subr.mxu0 0.0
        %4073 = vmatpush2.msra.mxu0 0.0
        %4074 = vmatprep.mubr.f32.mxu0 0.0
        %4075 = vmatmul.mubr.f32.gmra.mxu0 %v3819
        %v4076 = vpop.f32.mrf.mxu0
        %v4077 = vadd.f32 %v3500, %v4076
        %v4078 = vpop.f32.mrf.mxu0
        %4079 = vmatprep.mubr.f32.mxu0 0.0
        %4080 = vmatmul.mubr.f32.gmra.mxu0 %v3822
        %v4081 = vpop.f32.mrf.mxu0
        %v4082 = vadd.f32 %v3505, %v4081
        %v4083 = vpop.f32.mrf.mxu0
        %4084 = vmatprep.mubr.f32.mxu0 0.0
        %4085 = vmatmul.mubr.f32.gmra.mxu0 %v3825
        %v4086 = vpop.f32.mrf.mxu0
        %v4087 = vadd.f32 %v3510, %v4086
        %v4088 = vpop.f32.mrf.mxu0
        %4089 = vmatprep.mubr.f32.mxu0 0.0
        %4090 = vmatmul.mubr.f32.gmra.mxu0 %v3828
        %v4091 = vpop.f32.mrf.mxu0
        %v4092 = vadd.f32 %v3515, %v4091
        %v4093 = vpop.f32.mrf.mxu0
        %4094 = vmatprep.mubr.f32.mxu0 0.0
        %4095 = vmatmul.mubr.f32.gmra.mxu0 %v3831
        %v4096 = vpop.f32.mrf.mxu0
        %v4097 = vadd.f32 %v3520, %v4096
        %v4098 = vpop.f32.mrf.mxu0
        %4099 = vmatprep.mubr.f32.mxu0 0.0
        %4100 = vmatmul.mubr.f32.gmra.mxu0 %v3834
        %v4101 = vpop.f32.mrf.mxu0
        %v4102 = vadd.f32 %v3525, %v4101
        %v4103 = vpop.f32.mrf.mxu0
        %4104 = vmatprep.mubr.f32.mxu0 0.0
        %4105 = vmatmul.mubr.f32.gmra.mxu0 %v3837
        %v4106 = vpop.f32.mrf.mxu0
        %v4107 = vadd.f32 %v3530, %v4106
        %v4108 = vpop.f32.mrf.mxu0
        %4109 = vmatprep.mubr.f32.mxu0 0.0
        %4110 = vmatmul.mubr.f32.gmra.mxu0 %v3840
        %v4111 = vpop.f32.mrf.mxu0
        %v4112 = vadd.f32 %v3535, %v4111
        %v4113 = vpop.f32.mrf.mxu0
        %4114 = vmatprep.mubr.f32.mxu0 0.0
        %4115 = vmatmul.mubr.f32.gmra.mxu0 %v3843
        %v4116 = vpop.f32.mrf.mxu0
        %v4117 = vadd.f32 %v3540, %v4116
        %v4118 = vpop.f32.mrf.mxu0
        %4119 = vmatprep.mubr.f32.mxu0 0.0
        %4120 = vmatmul.mubr.f32.gmra.mxu0 %v3846
        %v4121 = vpop.f32.mrf.mxu0
        %v4122 = vadd.f32 %v3545, %v4121
        %v4123 = vpop.f32.mrf.mxu0
        %4124 = vmatprep.mubr.f32.mxu0 0.0
        %4125 = vmatmul.mubr.f32.gmra.mxu0 %v3849
        %v4126 = vpop.f32.mrf.mxu0
        %v4127 = vadd.f32 %v3550, %v4126
        %v4128 = vpop.f32.mrf.mxu0
        %4129 = vmatprep.mubr.f32.mxu0 0.0
        %4130 = vmatmul.mubr.f32.gmra.mxu0 %v3852
        %v4131 = vpop.f32.mrf.mxu0
        %v4132 = vadd.f32 %v3555, %v4131
        %v4133 = vpop.f32.mrf.mxu0
        %4134 = vmatprep.mubr.f32.mxu0 0.0
        %4135 = vmatmul.mubr.f32.gmra.mxu0 %v3855
        %v4136 = vpop.f32.mrf.mxu0
        %v4137 = vadd.f32 %v3560, %v4136
        %v4138 = vpop.f32.mrf.mxu0
        %4139 = vmatprep.mubr.f32.mxu0 0.0
        %4140 = vmatmul.mubr.f32.gmra.mxu0 %v3858
        %v4141 = vpop.f32.mrf.mxu0
        %v4142 = vadd.f32 %v3565, %v4141
        %v4143 = vpop.f32.mrf.mxu0
        %4144 = vmatprep.mubr.f32.mxu0 0.0
        %4145 = vmatmul.mubr.f32.gmra.mxu0 %v3861
        %v4146 = vpop.f32.mrf.mxu0
        %v4147 = vadd.f32 %v3570, %v4146
        %v4148 = vpop.f32.mrf.mxu0
        %4149 = vmatprep.mubr.f32.mxu0 0.0
        %4150 = vmatmul.mubr.f32.gmra.mxu0 %v3864
        %v4151 = vpop.f32.mrf.mxu0
        %v4152 = vadd.f32 %v3575, %v4151
        %v4153 = vpop.f32.mrf.mxu0
        %4154 = vmatprep.mubr.f32.mxu0 0.0
        %4155 = vmatmul.mubr.f32.gmra.mxu0 %v3867
        %v4156 = vpop.f32.mrf.mxu0
        %v4157 = vadd.f32 %v3580, %v4156
        %v4158 = vpop.f32.mrf.mxu0
        %4159 = vmatprep.mubr.f32.mxu0 0.0
        %4160 = vmatmul.mubr.f32.gmra.mxu0 %v3870
        %v4161 = vpop.f32.mrf.mxu0
        %v4162 = vadd.f32 %v3585, %v4161
        %v4163 = vpop.f32.mrf.mxu0
        %4164 = vmatprep.mubr.f32.mxu0 0.0
        %4165 = vmatmul.mubr.f32.gmra.mxu0 %v3873
        %v4166 = vpop.f32.mrf.mxu0
        %v4167 = vadd.f32 %v3590, %v4166
        %v4168 = vpop.f32.mrf.mxu0
        %4169 = vmatprep.mubr.f32.mxu0 0.0
        %4170 = vmatmul.mubr.f32.gmra.mxu0 %v3876
        %v4171 = vpop.f32.mrf.mxu0
        %v4172 = vadd.f32 %v3595, %v4171
        %v4173 = vpop.f32.mrf.mxu0
        %4174 = vmatprep.mubr.f32.mxu0 0.0
        %4175 = vmatmul.mubr.f32.gmra.mxu0 %v3879
        %v4176 = vpop.f32.mrf.mxu0
        %v4177 = vadd.f32 %v3600, %v4176
        %v4178 = vpop.f32.mrf.mxu0
        %4179 = vmatprep.mubr.f32.mxu0 0.0
        %4180 = vmatmul.mubr.f32.gmra.mxu0 %v3882
        %v4181 = vpop.f32.mrf.mxu0
        %v4182 = vadd.f32 %v3605, %v4181
        %v4183 = vpop.f32.mrf.mxu0
        %4184 = vmatprep.mubr.f32.mxu0 0.0
        %4185 = vmatmul.mubr.f32.gmra.mxu0 %v3885
        %v4186 = vpop.f32.mrf.mxu0
        %v4187 = vadd.f32 %v3610, %v4186
        %v4188 = vpop.f32.mrf.mxu0
        %4189 = vmatprep.mubr.f32.mxu0 0.0
        %4190 = vmatmul.mubr.f32.gmra.mxu0 %v3888
        %v4191 = vpop.f32.mrf.mxu0
        %v4192 = vadd.f32 %v3615, %v4191
        %v4193 = vpop.f32.mrf.mxu0
        %4194 = vmatprep.mubr.f32.mxu0 0.0
        %4195 = vmatmul.mubr.f32.gmra.mxu0 %v3891
        %v4196 = vpop.f32.mrf.mxu0
        %v4197 = vadd.f32 %v3620, %v4196
        %v4198 = vpop.f32.mrf.mxu0
        %4199 = vmatprep.mubr.f32.mxu0 0.0
        %4200 = vmatmul.mubr.f32.gmra.mxu0 %v3894
        %v4201 = vpop.f32.mrf.mxu0
        %v4202 = vadd.f32 %v3625, %v4201
        %v4203 = vpop.f32.mrf.mxu0
        %4204 = vmatprep.mubr.f32.mxu0 0.0
        %4205 = vmatmul.mubr.f32.gmra.mxu0 %v3897
        %v4206 = vpop.f32.mrf.mxu0
        %v4207 = vadd.f32 %v3630, %v4206
        %v4208 = vpop.f32.mrf.mxu0
        %4209 = vmatprep.mubr.f32.mxu0 0.0
        %4210 = vmatmul.mubr.f32.gmra.mxu0 %v3900
        %v4211 = vpop.f32.mrf.mxu0
        %v4212 = vadd.f32 %v3635, %v4211
        %v4213 = vpop.f32.mrf.mxu0
        %4214 = vmatprep.mubr.f32.mxu0 0.0
        %4215 = vmatmul.mubr.f32.gmra.mxu0 %v3903
        %v4216 = vpop.f32.mrf.mxu0
        %v4217 = vadd.f32 %v3640, %v4216
        %v4218 = vpop.f32.mrf.mxu0
        %4219 = vmatprep.mubr.f32.mxu0 0.0
        %4220 = vmatmul.mubr.f32.gmra.mxu0 %v3906
        %v4221 = vpop.f32.mrf.mxu0
        %v4222 = vadd.f32 %v3645, %v4221
        %v4223 = vpop.f32.mrf.mxu0
        %4224 = vmatprep.mubr.f32.mxu0 0.0
        %4225 = vmatmul.mubr.f32.gmra.mxu0 %v3909
        %v4226 = vpop.f32.mrf.mxu0
        %v4227 = vadd.f32 %v3650, %v4226
        %v4228 = vpop.f32.mrf.mxu0
        %4229 = vmatprep.mubr.f32.mxu0 0.0
        %4230 = vmatmul.mubr.f32.gmra.mxu0 %v3912
        %v4231 = vpop.f32.mrf.mxu0
        %v4232 = vadd.f32 %v3655, %v4231
        %v4233 = vpop.f32.mrf.mxu0
        %4234 = vmatprep.mubr.f32.mxu0 0.0
        %4235 = vmatmul.mubr.f32.gmra.mxu0 %v3915
        %v4236 = vpop.f32.mrf.mxu0
        %v4237 = vadd.f32 %v3660, %v4236
        %v4238 = vpop.f32.mrf.mxu0
        %4239 = vmatprep.mubr.f32.mxu0 0.0
        %4240 = vmatmul.mubr.f32.gmra.mxu0 %v3918
        %v4241 = vpop.f32.mrf.mxu0
        %v4242 = vadd.f32 %v3665, %v4241
        %v4243 = vpop.f32.mrf.mxu0
        %4244 = vmatprep.mubr.f32.mxu0 0.0
        %4245 = vmatmul.mubr.f32.gmra.mxu0 %v3921
        %v4246 = vpop.f32.mrf.mxu0
        %v4247 = vadd.f32 %v3670, %v4246
        %v4248 = vpop.f32.mrf.mxu0
        %4249 = vmatprep.mubr.f32.mxu0 0.0
        %4250 = vmatmul.mubr.f32.gmra.mxu0 %v3924
        %v4251 = vpop.f32.mrf.mxu0
        %v4252 = vadd.f32 %v3675, %v4251
        %v4253 = vpop.f32.mrf.mxu0
        %4254 = vmatprep.mubr.f32.mxu0 0.0
        %4255 = vmatmul.mubr.f32.gmra.mxu0 %v3927
        %v4256 = vpop.f32.mrf.mxu0
        %v4257 = vadd.f32 %v3680, %v4256
        %v4258 = vpop.f32.mrf.mxu0
        %4259 = vmatprep.mubr.f32.mxu0 0.0
        %4260 = vmatmul.mubr.f32.gmra.mxu0 %v3930
        %v4261 = vpop.f32.mrf.mxu0
        %v4262 = vadd.f32 %v3685, %v4261
        %v4263 = vpop.f32.mrf.mxu0
        %4264 = vmatprep.mubr.f32.mxu0 0.0
        %4265 = vmatmul.mubr.f32.gmra.mxu0 %v3933
        %v4266 = vpop.f32.mrf.mxu0
        %v4267 = vadd.f32 %v3690, %v4266
        %v4268 = vpop.f32.mrf.mxu0
        %4269 = vmatprep.mubr.f32.mxu0 0.0
        %4270 = vmatmul.mubr.f32.gmra.mxu0 %v3936
        %v4271 = vpop.f32.mrf.mxu0
        %v4272 = vadd.f32 %v3695, %v4271
        %v4273 = vpop.f32.mrf.mxu0
        %4274 = vmatprep.mubr.f32.mxu0 0.0
        %4275 = vmatmul.mubr.f32.gmra.mxu0 %v3939
        %v4276 = vpop.f32.mrf.mxu0
        %v4277 = vadd.f32 %v3700, %v4276
        %v4278 = vpop.f32.mrf.mxu0
        %4279 = vmatprep.mubr.f32.mxu0 0.0
        %4280 = vmatmul.mubr.f32.gmra.mxu0 %v3942
        %v4281 = vpop.f32.mrf.mxu0
        %v4282 = vadd.f32 %v3705, %v4281
        %v4283 = vpop.f32.mrf.mxu0
        %4284 = vmatprep.mubr.f32.mxu0 0.0
        %4285 = vmatmul.mubr.f32.gmra.mxu0 %v3945
        %v4286 = vpop.f32.mrf.mxu0
        %v4287 = vadd.f32 %v3710, %v4286
        %v4288 = vpop.f32.mrf.mxu0
        %4289 = vmatprep.mubr.f32.mxu0 0.0
        %4290 = vmatmul.mubr.f32.gmra.mxu0 %v3948
        %v4291 = vpop.f32.mrf.mxu0
        %v4292 = vadd.f32 %v3715, %v4291
        %v4293 = vpop.f32.mrf.mxu0
        %4294 = vmatprep.mubr.f32.mxu0 0.0
        %4295 = vmatmul.mubr.f32.gmra.mxu0 %v3951
        %v4296 = vpop.f32.mrf.mxu0
        %v4297 = vadd.f32 %v3720, %v4296
        %v4298 = vpop.f32.mrf.mxu0
        %4299 = vmatprep.mubr.f32.mxu0 0.0
        %4300 = vmatmul.mubr.f32.gmra.mxu0 %v3954
        %v4301 = vpop.f32.mrf.mxu0
        %v4302 = vadd.f32 %v3725, %v4301
        %v4303 = vpop.f32.mrf.mxu0
        %4304 = vmatprep.mubr.f32.mxu0 0.0
        %4305 = vmatmul.mubr.f32.gmra.mxu0 %v3957
        %v4306 = vpop.f32.mrf.mxu0
        %v4307 = vadd.f32 %v3730, %v4306
        %v4308 = vpop.f32.mrf.mxu0
        %4309 = vmatprep.mubr.f32.mxu0 0.0
        %4310 = vmatmul.mubr.f32.gmra.mxu0 %v3960
        %v4311 = vpop.f32.mrf.mxu0
        %v4312 = vadd.f32 %v3735, %v4311
        %v4313 = vpop.f32.mrf.mxu0
        %4314 = vmatprep.mubr.f32.mxu0 0.0
        %4315 = vmatmul.mubr.f32.gmra.mxu0 %v3963
        %v4316 = vpop.f32.mrf.mxu0
        %v4317 = vadd.f32 %v3740, %v4316
        %v4318 = vpop.f32.mrf.mxu0
        %4319 = vmatprep.mubr.f32.mxu0 0.0
        %4320 = vmatmul.mubr.f32.gmra.mxu0 %v3966
        %v4321 = vpop.f32.mrf.mxu0
        %v4322 = vadd.f32 %v3745, %v4321
        %v4323 = vpop.f32.mrf.mxu0
        %4324 = vmatprep.mubr.f32.mxu0 0.0
        %4325 = vmatmul.mubr.f32.gmra.mxu0 %v3969
        %v4326 = vpop.f32.mrf.mxu0
        %v4327 = vadd.f32 %v3750, %v4326
        %v4328 = vpop.f32.mrf.mxu0
        %4329 = vmatprep.mubr.f32.mxu0 0.0
        %4330 = vmatmul.mubr.f32.gmra.mxu0 %v3972
        %v4331 = vpop.f32.mrf.mxu0
        %v4332 = vadd.f32 %v3755, %v4331
        %v4333 = vpop.f32.mrf.mxu0
        %4334 = vmatprep.mubr.f32.mxu0 0.0
        %4335 = vmatmul.mubr.f32.gmra.mxu0 %v3975
        %v4336 = vpop.f32.mrf.mxu0
        %v4337 = vadd.f32 %v3760, %v4336
        %v4338 = vpop.f32.mrf.mxu0
        %4339 = vmatprep.mubr.f32.mxu0 0.0
        %4340 = vmatmul.mubr.f32.gmra.mxu0 %v3978
        %v4341 = vpop.f32.mrf.mxu0
        %v4342 = vadd.f32 %v3765, %v4341
        %v4343 = vpop.f32.mrf.mxu0
        %4344 = vmatprep.mubr.f32.mxu0 0.0
        %4345 = vmatmul.mubr.f32.gmra.mxu0 %v3981
        %v4346 = vpop.f32.mrf.mxu0
        %v4347 = vadd.f32 %v3770, %v4346
        %v4348 = vpop.f32.mrf.mxu0
        %4349 = vmatprep.mubr.f32.mxu0 0.0
        %4350 = vmatmul.mubr.f32.gmra.mxu0 %v3984
        %v4351 = vpop.f32.mrf.mxu0
        %v4352 = vadd.f32 %v3775, %v4351
        %v4353 = vpop.f32.mrf.mxu0
        %4354 = vmatprep.mubr.f32.mxu0 0.0
        %4355 = vmatmul.mubr.f32.gmra.mxu0 %v3987
        %v4356 = vpop.f32.mrf.mxu0
        %v4357 = vadd.f32 %v3780, %v4356
        %v4358 = vpop.f32.mrf.mxu0
        %4359 = vmatprep.mubr.f32.mxu0 0.0
        %4360 = vmatmul.mubr.f32.gmra.mxu0 %v3990
        %v4361 = vpop.f32.mrf.mxu0
        %v4362 = vadd.f32 %v3785, %v4361
        %v4363 = vpop.f32.mrf.mxu0
        %4364 = vmatprep.mubr.f32.mxu0 0.0
        %4365 = vmatmul.mubr.f32.gmra.mxu0 %v3993
        %v4366 = vpop.f32.mrf.mxu0
        %v4367 = vadd.f32 %v3790, %v4366
        %v4368 = vpop.f32.mrf.mxu0
        %4369 = vmatprep.mubr.f32.mxu0 0.0
        %4370 = vmatmul.mubr.f32.gmra.mxu0 %v3996
        %v4371 = vpop.f32.mrf.mxu0
        %v4372 = vadd.f32 %v3795, %v4371
        %v4373 = vpop.f32.mrf.mxu0
        %4374 = vmatprep.mubr.f32.mxu0 0.0
        %4375 = vmatmul.mubr.f32.gmra.mxu0 %v3999
        %v4376 = vpop.f32.mrf.mxu0
        %v4377 = vadd.f32 %v3800, %v4376
        %v4378 = vpop.f32.mrf.mxu0
        %4379 = vmatprep.mubr.f32.mxu0 0.0
        %4380 = vmatmul.mubr.f32.gmra.mxu0 %v4002
        %v4381 = vpop.f32.mrf.mxu0
        %v4382 = vadd.f32 %v3805, %v4381
        %v4383 = vpop.f32.mrf.mxu0
        %4384 = vmatprep.mubr.f32.mxu0 0.0
        %4385 = vmatmul.mubr.f32.gmra.mxu0 %v4005
        %v4386 = vpop.f32.mrf.mxu0
        %v4387 = vadd.f32 %v3810, %v4386
        %v4388 = vpop.f32.mrf.mxu0
        %4389 = vmatprep.mubr.f32.mxu0 0.0
        %4390 = vmatmul.mubr.f32.gmra.mxu0 %v4008
        %v4391 = vpop.f32.mrf.mxu0
        %v4392 = vadd.f32 %v3815, %v4391
        %v4393 = vpop.f32.mrf.mxu0
        %4394 = vdwg.mxu0
        %v4395 = vmax.f32 %v3047, %v4077
        %v4396 = vmax.f32 %v3048, %v4082
        %v4397 = vmax.f32 %v3049, %v4087
        %v4398 = vmax.f32 %v3050, %v4092
        %v4399 = vmax.f32 %v3051, %v4097
        %v4400 = vmax.f32 %v3052, %v4102
        %v4401 = vmax.f32 %v3053, %v4107
        %v4402 = vmax.f32 %v3054, %v4112
        %v4403 = vmax.f32 %v3055, %v4117
        %v4404 = vmax.f32 %v3056, %v4122
        %v4405 = vmax.f32 %v3057, %v4127
        %v4406 = vmax.f32 %v3058, %v4132
        %v4407 = vmax.f32 %v3059, %v4137
        %v4408 = vmax.f32 %v3060, %v4142
        %v4409 = vmax.f32 %v3061, %v4147
        %v4410 = vmax.f32 %v3062, %v4152
        %v4411 = vmax.f32 %v3063, %v4157
        %v4412 = vmax.f32 %v3064, %v4162
        %v4413 = vmax.f32 %v3065, %v4167
        %v4414 = vmax.f32 %v3066, %v4172
        %v4415 = vmax.f32 %v3067, %v4177
        %v4416 = vmax.f32 %v3068, %v4182
        %v4417 = vmax.f32 %v3069, %v4187
        %v4418 = vmax.f32 %v3070, %v4192
        %v4419 = vmax.f32 %v3071, %v4197
        %v4420 = vmax.f32 %v3072, %v4202
        %v4421 = vmax.f32 %v3073, %v4207
        %v4422 = vmax.f32 %v3074, %v4212
        %v4423 = vmax.f32 %v3075, %v4217
        %v4424 = vmax.f32 %v3076, %v4222
        %v4425 = vmax.f32 %v3077, %v4227
        %v4426 = vmax.f32 %v3078, %v4232
        %v4427 = vmax.f32 %v3079, %v4237
        %v4428 = vmax.f32 %v3080, %v4242
        %v4429 = vmax.f32 %v3081, %v4247
        %v4430 = vmax.f32 %v3082, %v4252
        %v4431 = vmax.f32 %v3083, %v4257
        %v4432 = vmax.f32 %v3084, %v4262
        %v4433 = vmax.f32 %v3085, %v4267
        %v4434 = vmax.f32 %v3086, %v4272
        %v4435 = vmax.f32 %v3087, %v4277
        %v4436 = vmax.f32 %v3088, %v4282
        %v4437 = vmax.f32 %v3089, %v4287
        %v4438 = vmax.f32 %v3090, %v4292
        %v4439 = vmax.f32 %v3091, %v4297
        %v4440 = vmax.f32 %v3092, %v4302
        %v4441 = vmax.f32 %v3093, %v4307
        %v4442 = vmax.f32 %v3094, %v4312
        %v4443 = vmax.f32 %v3095, %v4317
        %v4444 = vmax.f32 %v3096, %v4322
        %v4445 = vmax.f32 %v3097, %v4327
        %v4446 = vmax.f32 %v3098, %v4332
        %v4447 = vmax.f32 %v3099, %v4337
        %v4448 = vmax.f32 %v3100, %v4342
        %v4449 = vmax.f32 %v3101, %v4347
        %v4450 = vmax.f32 %v3102, %v4352
        %v4451 = vmax.f32 %v3103, %v4357
        %v4452 = vmax.f32 %v3104, %v4362
        %v4453 = vmax.f32 %v3105, %v4367
        %v4454 = vmax.f32 %v3106, %v4372
        %v4455 = vmax.f32 %v3107, %v4377
        %v4456 = vmax.f32 %v3108, %v4382
        %v4457 = vmax.f32 %v3109, %v4387
        %v4458 = vmax.f32 %v3110, %v4392
        %s4459 = scalar_lea.vmem %s437, 1536
        %v4460 = vld [vmem:[%s4459] sm:$0xff]
        %v4461 = vld [vmem:[%s4459 + $0x8] sm:$0xff]
        %v4462 = vld [vmem:[%s4459 + $0x10] sm:$0xff]
        %v4463 = vld [vmem:[%s4459 + $0x18] sm:$0xff]
        %v4464 = vld [vmem:[%s4459 + $0x20] sm:$0xff]
        %v4465 = vld [vmem:[%s4459 + $0x28] sm:$0xff]
        %v4466 = vld [vmem:[%s4459 + $0x30] sm:$0xff]
        %v4467 = vld [vmem:[%s4459 + $0x38] sm:$0xff]
        %v4468 = vld [vmem:[%s4459 + $0x40] sm:$0xff]
        %v4469 = vld [vmem:[%s4459 + $0x48] sm:$0xff]
        %v4470 = vld [vmem:[%s4459 + $0x50] sm:$0xff]
        %v4471 = vld [vmem:[%s4459 + $0x58] sm:$0xff]
        %v4472 = vld [vmem:[%s4459 + $0x60] sm:$0xff]
        %v4473 = vld [vmem:[%s4459 + $0x68] sm:$0xff]
        %v4474 = vld [vmem:[%s4459 + $0x70] sm:$0xff]
        %v4475 = vld [vmem:[%s4459 + $0x78] sm:$0xff]
        %v4476 = vld [vmem:[%s4459 + $0x80] sm:$0xff]
        %v4477 = vld [vmem:[%s4459 + $0x88] sm:$0xff]
        %v4478 = vld [vmem:[%s4459 + $0x90] sm:$0xff]
        %v4479 = vld [vmem:[%s4459 + $0x98] sm:$0xff]
        %v4480 = vld [vmem:[%s4459 + $0xa0] sm:$0xff]
        %v4481 = vld [vmem:[%s4459 + $0xa8] sm:$0xff]
        %v4482 = vld [vmem:[%s4459 + $0xb0] sm:$0xff]
        %v4483 = vld [vmem:[%s4459 + $0xb8] sm:$0xff]
        %v4484 = vld [vmem:[%s4459 + $0xc0] sm:$0xff]
        %v4485 = vld [vmem:[%s4459 + $0xc8] sm:$0xff]
        %v4486 = vld [vmem:[%s4459 + $0xd0] sm:$0xff]
        %v4487 = vld [vmem:[%s4459 + $0xd8] sm:$0xff]
        %v4488 = vld [vmem:[%s4459 + $0xe0] sm:$0xff]
        %v4489 = vld [vmem:[%s4459 + $0xe8] sm:$0xff]
        %v4490 = vld [vmem:[%s4459 + $0xf0] sm:$0xff]
        %v4491 = vld [vmem:[%s4459 + $0xf8] sm:$0xff]
        %v4492 = vld [vmem:[%s4459 + $0x100] sm:$0xff]
        %v4493 = vld [vmem:[%s4459 + $0x108] sm:$0xff]
        %v4494 = vld [vmem:[%s4459 + $0x110] sm:$0xff]
        %v4495 = vld [vmem:[%s4459 + $0x118] sm:$0xff]
        %v4496 = vld [vmem:[%s4459 + $0x120] sm:$0xff]
        %v4497 = vld [vmem:[%s4459 + $0x128] sm:$0xff]
        %v4498 = vld [vmem:[%s4459 + $0x130] sm:$0xff]
        %v4499 = vld [vmem:[%s4459 + $0x138] sm:$0xff]
        %v4500 = vld [vmem:[%s4459 + $0x140] sm:$0xff]
        %v4501 = vld [vmem:[%s4459 + $0x148] sm:$0xff]
        %v4502 = vld [vmem:[%s4459 + $0x150] sm:$0xff]
        %v4503 = vld [vmem:[%s4459 + $0x158] sm:$0xff]
        %v4504 = vld [vmem:[%s4459 + $0x160] sm:$0xff]
        %v4505 = vld [vmem:[%s4459 + $0x168] sm:$0xff]
        %v4506 = vld [vmem:[%s4459 + $0x170] sm:$0xff]
        %v4507 = vld [vmem:[%s4459 + $0x178] sm:$0xff]
        %v4508 = vld [vmem:[%s4459 + $0x180] sm:$0xff]
        %v4509 = vld [vmem:[%s4459 + $0x188] sm:$0xff]
        %v4510 = vld [vmem:[%s4459 + $0x190] sm:$0xff]
        %v4511 = vld [vmem:[%s4459 + $0x198] sm:$0xff]
        %v4512 = vld [vmem:[%s4459 + $0x1a0] sm:$0xff]
        %v4513 = vld [vmem:[%s4459 + $0x1a8] sm:$0xff]
        %v4514 = vld [vmem:[%s4459 + $0x1b0] sm:$0xff]
        %v4515 = vld [vmem:[%s4459 + $0x1b8] sm:$0xff]
        %v4516 = vld [vmem:[%s4459 + $0x1c0] sm:$0xff]
        %v4517 = vld [vmem:[%s4459 + $0x1c8] sm:$0xff]
        %v4518 = vld [vmem:[%s4459 + $0x1d0] sm:$0xff]
        %v4519 = vld [vmem:[%s4459 + $0x1d8] sm:$0xff]
        %v4520 = vld [vmem:[%s4459 + $0x1e0] sm:$0xff]
        %v4521 = vld [vmem:[%s4459 + $0x1e8] sm:$0xff]
        %v4522 = vld [vmem:[%s4459 + $0x1f0] sm:$0xff]
        %v4523 = vld [vmem:[%s4459 + $0x1f8] sm:$0xff]
        %s4524 = scalar_lea.vmem %s447, 1536
        %v4525 = vld [vmem:[%s4524] sm:$0xff]
        %v4526 = vld [vmem:[%s4524 + $0x8] sm:$0xff]
        %v4527 = vld [vmem:[%s4524 + $0x10] sm:$0xff]
        %v4528 = vld [vmem:[%s4524 + $0x18] sm:$0xff]
        %v4529 = vld [vmem:[%s4524 + $0x20] sm:$0xff]
        %v4530 = vld [vmem:[%s4524 + $0x28] sm:$0xff]
        %v4531 = vld [vmem:[%s4524 + $0x30] sm:$0xff]
        %v4532 = vld [vmem:[%s4524 + $0x38] sm:$0xff]
        %v4533 = vld [vmem:[%s4524 + $0x40] sm:$0xff]
        %v4534 = vld [vmem:[%s4524 + $0x48] sm:$0xff]
        %v4535 = vld [vmem:[%s4524 + $0x50] sm:$0xff]
        %v4536 = vld [vmem:[%s4524 + $0x58] sm:$0xff]
        %v4537 = vld [vmem:[%s4524 + $0x60] sm:$0xff]
        %v4538 = vld [vmem:[%s4524 + $0x68] sm:$0xff]
        %v4539 = vld [vmem:[%s4524 + $0x70] sm:$0xff]
        %v4540 = vld [vmem:[%s4524 + $0x78] sm:$0xff]
        %v4541 = vld [vmem:[%s4524 + $0x80] sm:$0xff]
        %v4542 = vld [vmem:[%s4524 + $0x88] sm:$0xff]
        %v4543 = vld [vmem:[%s4524 + $0x90] sm:$0xff]
        %v4544 = vld [vmem:[%s4524 + $0x98] sm:$0xff]
        %v4545 = vld [vmem:[%s4524 + $0xa0] sm:$0xff]
        %v4546 = vld [vmem:[%s4524 + $0xa8] sm:$0xff]
        %v4547 = vld [vmem:[%s4524 + $0xb0] sm:$0xff]
        %v4548 = vld [vmem:[%s4524 + $0xb8] sm:$0xff]
        %v4549 = vld [vmem:[%s4524 + $0xc0] sm:$0xff]
        %v4550 = vld [vmem:[%s4524 + $0xc8] sm:$0xff]
        %v4551 = vld [vmem:[%s4524 + $0xd0] sm:$0xff]
        %v4552 = vld [vmem:[%s4524 + $0xd8] sm:$0xff]
        %v4553 = vld [vmem:[%s4524 + $0xe0] sm:$0xff]
        %v4554 = vld [vmem:[%s4524 + $0xe8] sm:$0xff]
        %v4555 = vld [vmem:[%s4524 + $0xf0] sm:$0xff]
        %v4556 = vld [vmem:[%s4524 + $0xf8] sm:$0xff]
        %v4557 = vld [vmem:[%s4524 + $0x100] sm:$0xff]
        %v4558 = vld [vmem:[%s4524 + $0x108] sm:$0xff]
        %v4559 = vld [vmem:[%s4524 + $0x110] sm:$0xff]
        %v4560 = vld [vmem:[%s4524 + $0x118] sm:$0xff]
        %v4561 = vld [vmem:[%s4524 + $0x120] sm:$0xff]
        %v4562 = vld [vmem:[%s4524 + $0x128] sm:$0xff]
        %v4563 = vld [vmem:[%s4524 + $0x130] sm:$0xff]
        %v4564 = vld [vmem:[%s4524 + $0x138] sm:$0xff]
        %v4565 = vld [vmem:[%s4524 + $0x140] sm:$0xff]
        %v4566 = vld [vmem:[%s4524 + $0x148] sm:$0xff]
        %v4567 = vld [vmem:[%s4524 + $0x150] sm:$0xff]
        %v4568 = vld [vmem:[%s4524 + $0x158] sm:$0xff]
        %v4569 = vld [vmem:[%s4524 + $0x160] sm:$0xff]
        %v4570 = vld [vmem:[%s4524 + $0x168] sm:$0xff]
        %v4571 = vld [vmem:[%s4524 + $0x170] sm:$0xff]
        %v4572 = vld [vmem:[%s4524 + $0x178] sm:$0xff]
        %v4573 = vld [vmem:[%s4524 + $0x180] sm:$0xff]
        %v4574 = vld [vmem:[%s4524 + $0x188] sm:$0xff]
        %v4575 = vld [vmem:[%s4524 + $0x190] sm:$0xff]
        %v4576 = vld [vmem:[%s4524 + $0x198] sm:$0xff]
        %v4577 = vld [vmem:[%s4524 + $0x1a0] sm:$0xff]
        %v4578 = vld [vmem:[%s4524 + $0x1a8] sm:$0xff]
        %v4579 = vld [vmem:[%s4524 + $0x1b0] sm:$0xff]
        %v4580 = vld [vmem:[%s4524 + $0x1b8] sm:$0xff]
        %v4581 = vld [vmem:[%s4524 + $0x1c0] sm:$0xff]
        %v4582 = vld [vmem:[%s4524 + $0x1c8] sm:$0xff]
        %v4583 = vld [vmem:[%s4524 + $0x1d0] sm:$0xff]
        %v4584 = vld [vmem:[%s4524 + $0x1d8] sm:$0xff]
        %v4585 = vld [vmem:[%s4524 + $0x1e0] sm:$0xff]
        %v4586 = vld [vmem:[%s4524 + $0x1e8] sm:$0xff]
        %v4587 = vld [vmem:[%s4524 + $0x1f0] sm:$0xff]
        %v4588 = vld [vmem:[%s4524 + $0x1f8] sm:$0xff]
        %v4590 = vsel %vm603, %v4525, 0
        %v4593 = vsel %vm603, %v4526, 0
        %v4596 = vsel %vm603, %v4527, 0
        %v4599 = vsel %vm603, %v4528, 0
        %v4602 = vsel %vm603, %v4529, 0
        %v4605 = vsel %vm603, %v4530, 0
        %v4608 = vsel %vm603, %v4531, 0
        %v4611 = vsel %vm603, %v4532, 0
        %v4614 = vsel %vm603, %v4533, 0
        %v4617 = vsel %vm603, %v4534, 0
        %v4620 = vsel %vm603, %v4535, 0
        %v4623 = vsel %vm603, %v4536, 0
        %v4626 = vsel %vm603, %v4537, 0
        %v4629 = vsel %vm603, %v4538, 0
        %v4632 = vsel %vm603, %v4539, 0
        %v4635 = vsel %vm603, %v4540, 0
        %v4638 = vsel %vm603, %v4541, 0
        %v4641 = vsel %vm603, %v4542, 0
        %v4644 = vsel %vm603, %v4543, 0
        %v4647 = vsel %vm603, %v4544, 0
        %v4650 = vsel %vm603, %v4545, 0
        %v4653 = vsel %vm603, %v4546, 0
        %v4656 = vsel %vm603, %v4547, 0
        %v4659 = vsel %vm603, %v4548, 0
        %v4662 = vsel %vm603, %v4549, 0
        %v4665 = vsel %vm603, %v4550, 0
        %v4668 = vsel %vm603, %v4551, 0
        %v4671 = vsel %vm603, %v4552, 0
        %v4674 = vsel %vm603, %v4553, 0
        %v4677 = vsel %vm603, %v4554, 0
        %v4680 = vsel %vm603, %v4555, 0
        %v4683 = vsel %vm603, %v4556, 0
        %v4686 = vsel %vm603, %v4557, 0
        %v4689 = vsel %vm603, %v4558, 0
        %v4692 = vsel %vm603, %v4559, 0
        %v4695 = vsel %vm603, %v4560, 0
        %v4698 = vsel %vm603, %v4561, 0
        %v4701 = vsel %vm603, %v4562, 0
        %v4704 = vsel %vm603, %v4563, 0
        %v4707 = vsel %vm603, %v4564, 0
        %v4710 = vsel %vm603, %v4565, 0
        %v4713 = vsel %vm603, %v4566, 0
        %v4716 = vsel %vm603, %v4567, 0
        %v4719 = vsel %vm603, %v4568, 0
        %v4722 = vsel %vm603, %v4569, 0
        %v4725 = vsel %vm603, %v4570, 0
        %v4728 = vsel %vm603, %v4571, 0
        %v4731 = vsel %vm603, %v4572, 0
        %v4734 = vsel %vm603, %v4573, 0
        %v4737 = vsel %vm603, %v4574, 0
        %v4740 = vsel %vm603, %v4575, 0
        %v4743 = vsel %vm603, %v4576, 0
        %v4746 = vsel %vm603, %v4577, 0
        %v4749 = vsel %vm603, %v4578, 0
        %v4752 = vsel %vm603, %v4579, 0
        %v4755 = vsel %vm603, %v4580, 0
        %v4758 = vsel %vm603, %v4581, 0
        %v4761 = vsel %vm603, %v4582, 0
        %v4764 = vsel %vm603, %v4583, 0
        %v4767 = vsel %vm603, %v4584, 0
        %v4770 = vsel %vm603, %v4585, 0
        %v4773 = vsel %vm603, %v4586, 0
        %v4776 = vsel %vm603, %v4587, 0
        %v4779 = vsel %vm603, %v4588, 0
        %4781 = vmatprep.subr.mxu0 0.0
        %4782 = vmatpush1.msra.mxu0 0.0
        %4783 = vmatprep.subr.mxu0 0.0
        %4784 = vmatpush1.msra.mxu0 0.0
        %4785 = vmatprep.subr.mxu0 0.0
        %4786 = vmatpush1.msra.mxu0 0.0
        %4787 = vmatprep.subr.mxu0 0.0
        %4788 = vmatpush1.msra.mxu0 0.0
        %4789 = vmatprep.subr.mxu0 0.0
        %4790 = vmatpush1.msra.mxu0 0.0
        %4791 = vmatprep.subr.mxu0 0.0
        %4792 = vmatpush1.msra.mxu0 0.0
        %4793 = vmatprep.subr.mxu0 0.0
        %4794 = vmatpush1.msra.mxu0 0.0
        %4795 = vmatprep.subr.mxu0 0.0
        %4796 = vmatpush1.msra.mxu0 0.0
        %4797 = vmatprep.subr.mxu0 0.0
        %4798 = vmatpush1.msra.mxu0 0.0
        %4799 = vmatprep.subr.mxu0 0.0
        %4800 = vmatpush1.msra.mxu0 0.0
        %4801 = vmatprep.subr.mxu0 0.0
        %4802 = vmatpush1.msra.mxu0 0.0
        %4803 = vmatprep.subr.mxu0 0.0
        %4804 = vmatpush1.msra.mxu0 0.0
        %4805 = vmatprep.subr.mxu0 0.0
        %4806 = vmatpush1.msra.mxu0 0.0
        %4807 = vmatprep.subr.mxu0 0.0
        %4808 = vmatpush1.msra.mxu0 0.0
        %4809 = vmatprep.subr.mxu0 0.0
        %4810 = vmatpush1.msra.mxu0 0.0
        %4811 = vmatprep.subr.mxu0 0.0
        %4812 = vmatpush1.msra.mxu0 %v798
        %4813 = vmatprep.subr.mxu0 0.0
        %4814 = vmatpush2.msra.mxu0 0.0
        %4815 = vmatprep.subr.mxu0 0.0
        %4816 = vmatpush2.msra.mxu0 0.0
        %4817 = vmatprep.subr.mxu0 0.0
        %4818 = vmatpush2.msra.mxu0 0.0
        %4819 = vmatprep.subr.mxu0 0.0
        %4820 = vmatpush2.msra.mxu0 0.0
        %4821 = vmatprep.subr.mxu0 0.0
        %4822 = vmatpush2.msra.mxu0 0.0
        %4823 = vmatprep.subr.mxu0 0.0
        %4824 = vmatpush2.msra.mxu0 0.0
        %4825 = vmatprep.subr.mxu0 0.0
        %4826 = vmatpush2.msra.mxu0 0.0
        %4827 = vmatprep.subr.mxu0 0.0
        %4828 = vmatpush2.msra.mxu0 0.0
        %4829 = vmatprep.subr.mxu0 0.0
        %4830 = vmatpush2.msra.mxu0 0.0
        %4831 = vmatprep.subr.mxu0 0.0
        %4832 = vmatpush2.msra.mxu0 0.0
        %4833 = vmatprep.subr.mxu0 0.0
        %4834 = vmatpush2.msra.mxu0 0.0
        %4835 = vmatprep.subr.mxu0 0.0
        %4836 = vmatpush2.msra.mxu0 0.0
        %4837 = vmatprep.subr.mxu0 0.0
        %4838 = vmatpush2.msra.mxu0 0.0
        %4839 = vmatprep.subr.mxu0 0.0
        %4840 = vmatpush2.msra.mxu0 0.0
        %4841 = vmatprep.subr.mxu0 0.0
        %4842 = vmatpush2.msra.mxu0 0.0
        %4843 = vmatprep.subr.mxu0 0.0
        %4844 = vmatpush2.msra.mxu0 0.0
        %4845 = vmatprep.mubr.f32.mxu0 0.0
        %4846 = vmatmul.mubr.f32.gmra.mxu0 %v4590
        %v4847 = vpop.f32.mrf.mxu0
        %v4848 = vadd.f32 0.0, %v4847
        %v4849 = vpop.f32.mrf.mxu0
        %4850 = vmatprep.mubr.f32.mxu0 0.0
        %4851 = vmatmul.mubr.f32.gmra.mxu0 %v4593
        %v4852 = vpop.f32.mrf.mxu0
        %v4853 = vadd.f32 0.0, %v4852
        %v4854 = vpop.f32.mrf.mxu0
        %4855 = vmatprep.mubr.f32.mxu0 0.0
        %4856 = vmatmul.mubr.f32.gmra.mxu0 %v4596
        %v4857 = vpop.f32.mrf.mxu0
        %v4858 = vadd.f32 0.0, %v4857
        %v4859 = vpop.f32.mrf.mxu0
        %4860 = vmatprep.mubr.f32.mxu0 0.0
        %4861 = vmatmul.mubr.f32.gmra.mxu0 %v4599
        %v4862 = vpop.f32.mrf.mxu0
        %v4863 = vadd.f32 0.0, %v4862
        %v4864 = vpop.f32.mrf.mxu0
        %4865 = vmatprep.mubr.f32.mxu0 0.0
        %4866 = vmatmul.mubr.f32.gmra.mxu0 %v4602
        %v4867 = vpop.f32.mrf.mxu0
        %v4868 = vadd.f32 0.0, %v4867
        %v4869 = vpop.f32.mrf.mxu0
        %4870 = vmatprep.mubr.f32.mxu0 0.0
        %4871 = vmatmul.mubr.f32.gmra.mxu0 %v4605
        %v4872 = vpop.f32.mrf.mxu0
        %v4873 = vadd.f32 0.0, %v4872
        %v4874 = vpop.f32.mrf.mxu0
        %4875 = vmatprep.mubr.f32.mxu0 0.0
        %4876 = vmatmul.mubr.f32.gmra.mxu0 %v4608
        %v4877 = vpop.f32.mrf.mxu0
        %v4878 = vadd.f32 0.0, %v4877
        %v4879 = vpop.f32.mrf.mxu0
        %4880 = vmatprep.mubr.f32.mxu0 0.0
        %4881 = vmatmul.mubr.f32.gmra.mxu0 %v4611
        %v4882 = vpop.f32.mrf.mxu0
        %v4883 = vadd.f32 0.0, %v4882
        %v4884 = vpop.f32.mrf.mxu0
        %4885 = vmatprep.mubr.f32.mxu0 0.0
        %4886 = vmatmul.mubr.f32.gmra.mxu0 %v4614
        %v4887 = vpop.f32.mrf.mxu0
        %v4888 = vadd.f32 0.0, %v4887
        %v4889 = vpop.f32.mrf.mxu0
        %4890 = vmatprep.mubr.f32.mxu0 0.0
        %4891 = vmatmul.mubr.f32.gmra.mxu0 %v4617
        %v4892 = vpop.f32.mrf.mxu0
        %v4893 = vadd.f32 0.0, %v4892
        %v4894 = vpop.f32.mrf.mxu0
        %4895 = vmatprep.mubr.f32.mxu0 0.0
        %4896 = vmatmul.mubr.f32.gmra.mxu0 %v4620
        %v4897 = vpop.f32.mrf.mxu0
        %v4898 = vadd.f32 0.0, %v4897
        %v4899 = vpop.f32.mrf.mxu0
        %4900 = vmatprep.mubr.f32.mxu0 0.0
        %4901 = vmatmul.mubr.f32.gmra.mxu0 %v4623
        %v4902 = vpop.f32.mrf.mxu0
        %v4903 = vadd.f32 0.0, %v4902
        %v4904 = vpop.f32.mrf.mxu0
        %4905 = vmatprep.mubr.f32.mxu0 0.0
        %4906 = vmatmul.mubr.f32.gmra.mxu0 %v4626
        %v4907 = vpop.f32.mrf.mxu0
        %v4908 = vadd.f32 0.0, %v4907
        %v4909 = vpop.f32.mrf.mxu0
        %4910 = vmatprep.mubr.f32.mxu0 0.0
        %4911 = vmatmul.mubr.f32.gmra.mxu0 %v4629
        %v4912 = vpop.f32.mrf.mxu0
        %v4913 = vadd.f32 0.0, %v4912
        %v4914 = vpop.f32.mrf.mxu0
        %4915 = vmatprep.mubr.f32.mxu0 0.0
        %4916 = vmatmul.mubr.f32.gmra.mxu0 %v4632
        %v4917 = vpop.f32.mrf.mxu0
        %v4918 = vadd.f32 0.0, %v4917
        %v4919 = vpop.f32.mrf.mxu0
        %4920 = vmatprep.mubr.f32.mxu0 0.0
        %4921 = vmatmul.mubr.f32.gmra.mxu0 %v4635
        %v4922 = vpop.f32.mrf.mxu0
        %v4923 = vadd.f32 0.0, %v4922
        %v4924 = vpop.f32.mrf.mxu0
        %4925 = vmatprep.mubr.f32.mxu0 0.0
        %4926 = vmatmul.mubr.f32.gmra.mxu0 %v4638
        %v4927 = vpop.f32.mrf.mxu0
        %v4928 = vadd.f32 0.0, %v4927
        %v4929 = vpop.f32.mrf.mxu0
        %4930 = vmatprep.mubr.f32.mxu0 0.0
        %4931 = vmatmul.mubr.f32.gmra.mxu0 %v4641
        %v4932 = vpop.f32.mrf.mxu0
        %v4933 = vadd.f32 0.0, %v4932
        %v4934 = vpop.f32.mrf.mxu0
        %4935 = vmatprep.mubr.f32.mxu0 0.0
        %4936 = vmatmul.mubr.f32.gmra.mxu0 %v4644
        %v4937 = vpop.f32.mrf.mxu0
        %v4938 = vadd.f32 0.0, %v4937
        %v4939 = vpop.f32.mrf.mxu0
        %4940 = vmatprep.mubr.f32.mxu0 0.0
        %4941 = vmatmul.mubr.f32.gmra.mxu0 %v4647
        %v4942 = vpop.f32.mrf.mxu0
        %v4943 = vadd.f32 0.0, %v4942
        %v4944 = vpop.f32.mrf.mxu0
        %4945 = vmatprep.mubr.f32.mxu0 0.0
        %4946 = vmatmul.mubr.f32.gmra.mxu0 %v4650
        %v4947 = vpop.f32.mrf.mxu0
        %v4948 = vadd.f32 0.0, %v4947
        %v4949 = vpop.f32.mrf.mxu0
        %4950 = vmatprep.mubr.f32.mxu0 0.0
        %4951 = vmatmul.mubr.f32.gmra.mxu0 %v4653
        %v4952 = vpop.f32.mrf.mxu0
        %v4953 = vadd.f32 0.0, %v4952
        %v4954 = vpop.f32.mrf.mxu0
        %4955 = vmatprep.mubr.f32.mxu0 0.0
        %4956 = vmatmul.mubr.f32.gmra.mxu0 %v4656
        %v4957 = vpop.f32.mrf.mxu0
        %v4958 = vadd.f32 0.0, %v4957
        %v4959 = vpop.f32.mrf.mxu0
        %4960 = vmatprep.mubr.f32.mxu0 0.0
        %4961 = vmatmul.mubr.f32.gmra.mxu0 %v4659
        %v4962 = vpop.f32.mrf.mxu0
        %v4963 = vadd.f32 0.0, %v4962
        %v4964 = vpop.f32.mrf.mxu0
        %4965 = vmatprep.mubr.f32.mxu0 0.0
        %4966 = vmatmul.mubr.f32.gmra.mxu0 %v4662
        %v4967 = vpop.f32.mrf.mxu0
        %v4968 = vadd.f32 0.0, %v4967
        %v4969 = vpop.f32.mrf.mxu0
        %4970 = vmatprep.mubr.f32.mxu0 0.0
        %4971 = vmatmul.mubr.f32.gmra.mxu0 %v4665
        %v4972 = vpop.f32.mrf.mxu0
        %v4973 = vadd.f32 0.0, %v4972
        %v4974 = vpop.f32.mrf.mxu0
        %4975 = vmatprep.mubr.f32.mxu0 0.0
        %4976 = vmatmul.mubr.f32.gmra.mxu0 %v4668
        %v4977 = vpop.f32.mrf.mxu0
        %v4978 = vadd.f32 0.0, %v4977
        %v4979 = vpop.f32.mrf.mxu0
        %4980 = vmatprep.mubr.f32.mxu0 0.0
        %4981 = vmatmul.mubr.f32.gmra.mxu0 %v4671
        %v4982 = vpop.f32.mrf.mxu0
        %v4983 = vadd.f32 0.0, %v4982
        %v4984 = vpop.f32.mrf.mxu0
        %4985 = vmatprep.mubr.f32.mxu0 0.0
        %4986 = vmatmul.mubr.f32.gmra.mxu0 %v4674
        %v4987 = vpop.f32.mrf.mxu0
        %v4988 = vadd.f32 0.0, %v4987
        %v4989 = vpop.f32.mrf.mxu0
        %4990 = vmatprep.mubr.f32.mxu0 0.0
        %4991 = vmatmul.mubr.f32.gmra.mxu0 %v4677
        %v4992 = vpop.f32.mrf.mxu0
        %v4993 = vadd.f32 0.0, %v4992
        %v4994 = vpop.f32.mrf.mxu0
        %4995 = vmatprep.mubr.f32.mxu0 0.0
        %4996 = vmatmul.mubr.f32.gmra.mxu0 %v4680
        %v4997 = vpop.f32.mrf.mxu0
        %v4998 = vadd.f32 0.0, %v4997
        %v4999 = vpop.f32.mrf.mxu0
        %5000 = vmatprep.mubr.f32.mxu0 0.0
        %5001 = vmatmul.mubr.f32.gmra.mxu0 %v4683
        %v5002 = vpop.f32.mrf.mxu0
        %v5003 = vadd.f32 0.0, %v5002
        %v5004 = vpop.f32.mrf.mxu0
        %5005 = vmatprep.mubr.f32.mxu0 0.0
        %5006 = vmatmul.mubr.f32.gmra.mxu0 %v4686
        %v5007 = vpop.f32.mrf.mxu0
        %v5008 = vadd.f32 0.0, %v5007
        %v5009 = vpop.f32.mrf.mxu0
        %5010 = vmatprep.mubr.f32.mxu0 0.0
        %5011 = vmatmul.mubr.f32.gmra.mxu0 %v4689
        %v5012 = vpop.f32.mrf.mxu0
        %v5013 = vadd.f32 0.0, %v5012
        %v5014 = vpop.f32.mrf.mxu0
        %5015 = vmatprep.mubr.f32.mxu0 0.0
        %5016 = vmatmul.mubr.f32.gmra.mxu0 %v4692
        %v5017 = vpop.f32.mrf.mxu0
        %v5018 = vadd.f32 0.0, %v5017
        %v5019 = vpop.f32.mrf.mxu0
        %5020 = vmatprep.mubr.f32.mxu0 0.0
        %5021 = vmatmul.mubr.f32.gmra.mxu0 %v4695
        %v5022 = vpop.f32.mrf.mxu0
        %v5023 = vadd.f32 0.0, %v5022
        %v5024 = vpop.f32.mrf.mxu0
        %5025 = vmatprep.mubr.f32.mxu0 0.0
        %5026 = vmatmul.mubr.f32.gmra.mxu0 %v4698
        %v5027 = vpop.f32.mrf.mxu0
        %v5028 = vadd.f32 0.0, %v5027
        %v5029 = vpop.f32.mrf.mxu0
        %5030 = vmatprep.mubr.f32.mxu0 0.0
        %5031 = vmatmul.mubr.f32.gmra.mxu0 %v4701
        %v5032 = vpop.f32.mrf.mxu0
        %v5033 = vadd.f32 0.0, %v5032
        %v5034 = vpop.f32.mrf.mxu0
        %5035 = vmatprep.mubr.f32.mxu0 0.0
        %5036 = vmatmul.mubr.f32.gmra.mxu0 %v4704
        %v5037 = vpop.f32.mrf.mxu0
        %v5038 = vadd.f32 0.0, %v5037
        %v5039 = vpop.f32.mrf.mxu0
        %5040 = vmatprep.mubr.f32.mxu0 0.0
        %5041 = vmatmul.mubr.f32.gmra.mxu0 %v4707
        %v5042 = vpop.f32.mrf.mxu0
        %v5043 = vadd.f32 0.0, %v5042
        %v5044 = vpop.f32.mrf.mxu0
        %5045 = vmatprep.mubr.f32.mxu0 0.0
        %5046 = vmatmul.mubr.f32.gmra.mxu0 %v4710
        %v5047 = vpop.f32.mrf.mxu0
        %v5048 = vadd.f32 0.0, %v5047
        %v5049 = vpop.f32.mrf.mxu0
        %5050 = vmatprep.mubr.f32.mxu0 0.0
        %5051 = vmatmul.mubr.f32.gmra.mxu0 %v4713
        %v5052 = vpop.f32.mrf.mxu0
        %v5053 = vadd.f32 0.0, %v5052
        %v5054 = vpop.f32.mrf.mxu0
        %5055 = vmatprep.mubr.f32.mxu0 0.0
        %5056 = vmatmul.mubr.f32.gmra.mxu0 %v4716
        %v5057 = vpop.f32.mrf.mxu0
        %v5058 = vadd.f32 0.0, %v5057
        %v5059 = vpop.f32.mrf.mxu0
        %5060 = vmatprep.mubr.f32.mxu0 0.0
        %5061 = vmatmul.mubr.f32.gmra.mxu0 %v4719
        %v5062 = vpop.f32.mrf.mxu0
        %v5063 = vadd.f32 0.0, %v5062
        %v5064 = vpop.f32.mrf.mxu0
        %5065 = vmatprep.mubr.f32.mxu0 0.0
        %5066 = vmatmul.mubr.f32.gmra.mxu0 %v4722
        %v5067 = vpop.f32.mrf.mxu0
        %v5068 = vadd.f32 0.0, %v5067
        %v5069 = vpop.f32.mrf.mxu0
        %5070 = vmatprep.mubr.f32.mxu0 0.0
        %5071 = vmatmul.mubr.f32.gmra.mxu0 %v4725
        %v5072 = vpop.f32.mrf.mxu0
        %v5073 = vadd.f32 0.0, %v5072
        %v5074 = vpop.f32.mrf.mxu0
        %5075 = vmatprep.mubr.f32.mxu0 0.0
        %5076 = vmatmul.mubr.f32.gmra.mxu0 %v4728
        %v5077 = vpop.f32.mrf.mxu0
        %v5078 = vadd.f32 0.0, %v5077
        %v5079 = vpop.f32.mrf.mxu0
        %5080 = vmatprep.mubr.f32.mxu0 0.0
        %5081 = vmatmul.mubr.f32.gmra.mxu0 %v4731
        %v5082 = vpop.f32.mrf.mxu0
        %v5083 = vadd.f32 0.0, %v5082
        %v5084 = vpop.f32.mrf.mxu0
        %5085 = vmatprep.mubr.f32.mxu0 0.0
        %5086 = vmatmul.mubr.f32.gmra.mxu0 %v4734
        %v5087 = vpop.f32.mrf.mxu0
        %v5088 = vadd.f32 0.0, %v5087
        %v5089 = vpop.f32.mrf.mxu0
        %5090 = vmatprep.mubr.f32.mxu0 0.0
        %5091 = vmatmul.mubr.f32.gmra.mxu0 %v4737
        %v5092 = vpop.f32.mrf.mxu0
        %v5093 = vadd.f32 0.0, %v5092
        %v5094 = vpop.f32.mrf.mxu0
        %5095 = vmatprep.mubr.f32.mxu0 0.0
        %5096 = vmatmul.mubr.f32.gmra.mxu0 %v4740
        %v5097 = vpop.f32.mrf.mxu0
        %v5098 = vadd.f32 0.0, %v5097
        %v5099 = vpop.f32.mrf.mxu0
        %5100 = vmatprep.mubr.f32.mxu0 0.0
        %5101 = vmatmul.mubr.f32.gmra.mxu0 %v4743
        %v5102 = vpop.f32.mrf.mxu0
        %v5103 = vadd.f32 0.0, %v5102
        %v5104 = vpop.f32.mrf.mxu0
        %5105 = vmatprep.mubr.f32.mxu0 0.0
        %5106 = vmatmul.mubr.f32.gmra.mxu0 %v4746
        %v5107 = vpop.f32.mrf.mxu0
        %v5108 = vadd.f32 0.0, %v5107
        %v5109 = vpop.f32.mrf.mxu0
        %5110 = vmatprep.mubr.f32.mxu0 0.0
        %5111 = vmatmul.mubr.f32.gmra.mxu0 %v4749
        %v5112 = vpop.f32.mrf.mxu0
        %v5113 = vadd.f32 0.0, %v5112
        %v5114 = vpop.f32.mrf.mxu0
        %5115 = vmatprep.mubr.f32.mxu0 0.0
        %5116 = vmatmul.mubr.f32.gmra.mxu0 %v4752
        %v5117 = vpop.f32.mrf.mxu0
        %v5118 = vadd.f32 0.0, %v5117
        %v5119 = vpop.f32.mrf.mxu0
        %5120 = vmatprep.mubr.f32.mxu0 0.0
        %5121 = vmatmul.mubr.f32.gmra.mxu0 %v4755
        %v5122 = vpop.f32.mrf.mxu0
        %v5123 = vadd.f32 0.0, %v5122
        %v5124 = vpop.f32.mrf.mxu0
        %5125 = vmatprep.mubr.f32.mxu0 0.0
        %5126 = vmatmul.mubr.f32.gmra.mxu0 %v4758
        %v5127 = vpop.f32.mrf.mxu0
        %v5128 = vadd.f32 0.0, %v5127
        %v5129 = vpop.f32.mrf.mxu0
        %5130 = vmatprep.mubr.f32.mxu0 0.0
        %5131 = vmatmul.mubr.f32.gmra.mxu0 %v4761
        %v5132 = vpop.f32.mrf.mxu0
        %v5133 = vadd.f32 0.0, %v5132
        %v5134 = vpop.f32.mrf.mxu0
        %5135 = vmatprep.mubr.f32.mxu0 0.0
        %5136 = vmatmul.mubr.f32.gmra.mxu0 %v4764
        %v5137 = vpop.f32.mrf.mxu0
        %v5138 = vadd.f32 0.0, %v5137
        %v5139 = vpop.f32.mrf.mxu0
        %5140 = vmatprep.mubr.f32.mxu0 0.0
        %5141 = vmatmul.mubr.f32.gmra.mxu0 %v4767
        %v5142 = vpop.f32.mrf.mxu0
        %v5143 = vadd.f32 0.0, %v5142
        %v5144 = vpop.f32.mrf.mxu0
        %5145 = vmatprep.mubr.f32.mxu0 0.0
        %5146 = vmatmul.mubr.f32.gmra.mxu0 %v4770
        %v5147 = vpop.f32.mrf.mxu0
        %v5148 = vadd.f32 0.0, %v5147
        %v5149 = vpop.f32.mrf.mxu0
        %5150 = vmatprep.mubr.f32.mxu0 0.0
        %5151 = vmatmul.mubr.f32.gmra.mxu0 %v4773
        %v5152 = vpop.f32.mrf.mxu0
        %v5153 = vadd.f32 0.0, %v5152
        %v5154 = vpop.f32.mrf.mxu0
        %5155 = vmatprep.mubr.f32.mxu0 0.0
        %5156 = vmatmul.mubr.f32.gmra.mxu0 %v4776
        %v5157 = vpop.f32.mrf.mxu0
        %v5158 = vadd.f32 0.0, %v5157
        %v5159 = vpop.f32.mrf.mxu0
        %5160 = vmatprep.mubr.f32.mxu0 0.0
        %5161 = vmatmul.mubr.f32.gmra.mxu0 %v4779
        %v5162 = vpop.f32.mrf.mxu0
        %v5163 = vadd.f32 0.0, %v5162
        %v5164 = vpop.f32.mrf.mxu0
        %5165 = vdwg.mxu0
        %v5167 = vsel %vm1185, %v4460, 0
        %v5170 = vsel %vm1185, %v4461, 0
        %v5173 = vsel %vm1185, %v4462, 0
        %v5176 = vsel %vm1185, %v4463, 0
        %v5179 = vsel %vm1185, %v4464, 0
        %v5182 = vsel %vm1185, %v4465, 0
        %v5185 = vsel %vm1185, %v4466, 0
        %v5188 = vsel %vm1185, %v4467, 0
        %v5191 = vsel %vm1185, %v4468, 0
        %v5194 = vsel %vm1185, %v4469, 0
        %v5197 = vsel %vm1185, %v4470, 0
        %v5200 = vsel %vm1185, %v4471, 0
        %v5203 = vsel %vm1185, %v4472, 0
        %v5206 = vsel %vm1185, %v4473, 0
        %v5209 = vsel %vm1185, %v4474, 0
        %v5212 = vsel %vm1185, %v4475, 0
        %v5215 = vsel %vm1185, %v4476, 0
        %v5218 = vsel %vm1185, %v4477, 0
        %v5221 = vsel %vm1185, %v4478, 0
        %v5224 = vsel %vm1185, %v4479, 0
        %v5227 = vsel %vm1185, %v4480, 0
        %v5230 = vsel %vm1185, %v4481, 0
        %v5233 = vsel %vm1185, %v4482, 0
        %v5236 = vsel %vm1185, %v4483, 0
        %v5239 = vsel %vm1185, %v4484, 0
        %v5242 = vsel %vm1185, %v4485, 0
        %v5245 = vsel %vm1185, %v4486, 0
        %v5248 = vsel %vm1185, %v4487, 0
        %v5251 = vsel %vm1185, %v4488, 0
        %v5254 = vsel %vm1185, %v4489, 0
        %v5257 = vsel %vm1185, %v4490, 0
        %v5260 = vsel %vm1185, %v4491, 0
        %v5263 = vsel %vm1185, %v4492, 0
        %v5266 = vsel %vm1185, %v4493, 0
        %v5269 = vsel %vm1185, %v4494, 0
        %v5272 = vsel %vm1185, %v4495, 0
        %v5275 = vsel %vm1185, %v4496, 0
        %v5278 = vsel %vm1185, %v4497, 0
        %v5281 = vsel %vm1185, %v4498, 0
        %v5284 = vsel %vm1185, %v4499, 0
        %v5287 = vsel %vm1185, %v4500, 0
        %v5290 = vsel %vm1185, %v4501, 0
        %v5293 = vsel %vm1185, %v4502, 0
        %v5296 = vsel %vm1185, %v4503, 0
        %v5299 = vsel %vm1185, %v4504, 0
        %v5302 = vsel %vm1185, %v4505, 0
        %v5305 = vsel %vm1185, %v4506, 0
        %v5308 = vsel %vm1185, %v4507, 0
        %v5311 = vsel %vm1185, %v4508, 0
        %v5314 = vsel %vm1185, %v4509, 0
        %v5317 = vsel %vm1185, %v4510, 0
        %v5320 = vsel %vm1185, %v4511, 0
        %v5323 = vsel %vm1185, %v4512, 0
        %v5326 = vsel %vm1185, %v4513, 0
        %v5329 = vsel %vm1185, %v4514, 0
        %v5332 = vsel %vm1185, %v4515, 0
        %v5335 = vsel %vm1185, %v4516, 0
        %v5338 = vsel %vm1185, %v4517, 0
        %v5341 = vsel %vm1185, %v4518, 0
        %v5344 = vsel %vm1185, %v4519, 0
        %v5347 = vsel %vm1185, %v4520, 0
        %v5350 = vsel %vm1185, %v4521, 0
        %v5353 = vsel %vm1185, %v4522, 0
        %v5356 = vsel %vm1185, %v4523, 0
        %5358 = vmatprep.subr.mxu0 0.0
        %5359 = vmatpush1.msra.mxu0 0.0
        %5360 = vmatprep.subr.mxu0 0.0
        %5361 = vmatpush1.msra.mxu0 0.0
        %5362 = vmatprep.subr.mxu0 0.0
        %5363 = vmatpush1.msra.mxu0 0.0
        %5364 = vmatprep.subr.mxu0 0.0
        %5365 = vmatpush1.msra.mxu0 0.0
        %5366 = vmatprep.subr.mxu0 0.0
        %5367 = vmatpush1.msra.mxu0 0.0
        %5368 = vmatprep.subr.mxu0 0.0
        %5369 = vmatpush1.msra.mxu0 0.0
        %5370 = vmatprep.subr.mxu0 0.0
        %5371 = vmatpush1.msra.mxu0 0.0
        %5372 = vmatprep.subr.mxu0 0.0
        %5373 = vmatpush1.msra.mxu0 0.0
        %5374 = vmatprep.subr.mxu0 0.0
        %5375 = vmatpush1.msra.mxu0 0.0
        %5376 = vmatprep.subr.mxu0 0.0
        %5377 = vmatpush1.msra.mxu0 0.0
        %5378 = vmatprep.subr.mxu0 0.0
        %5379 = vmatpush1.msra.mxu0 0.0
        %5380 = vmatprep.subr.mxu0 0.0
        %5381 = vmatpush1.msra.mxu0 0.0
        %5382 = vmatprep.subr.mxu0 0.0
        %5383 = vmatpush1.msra.mxu0 %v537
        %5384 = vmatprep.subr.mxu0 0.0
        %5385 = vmatpush1.msra.mxu0 %v536
        %5386 = vmatprep.subr.mxu0 0.0
        %5387 = vmatpush1.msra.mxu0 %v535
        %5388 = vmatprep.subr.mxu0 0.0
        %5389 = vmatpush1.msra.mxu0 %v534
        %5390 = vmatprep.subr.mxu0 0.0
        %5391 = vmatpush2.msra.mxu0 0.0
        %5392 = vmatprep.subr.mxu0 0.0
        %5393 = vmatpush2.msra.mxu0 0.0
        %5394 = vmatprep.subr.mxu0 0.0
        %5395 = vmatpush2.msra.mxu0 0.0
        %5396 = vmatprep.subr.mxu0 0.0
        %5397 = vmatpush2.msra.mxu0 0.0
        %5398 = vmatprep.subr.mxu0 0.0
        %5399 = vmatpush2.msra.mxu0 0.0
        %5400 = vmatprep.subr.mxu0 0.0
        %5401 = vmatpush2.msra.mxu0 0.0
        %5402 = vmatprep.subr.mxu0 0.0
        %5403 = vmatpush2.msra.mxu0 0.0
        %5404 = vmatprep.subr.mxu0 0.0
        %5405 = vmatpush2.msra.mxu0 0.0
        %5406 = vmatprep.subr.mxu0 0.0
        %5407 = vmatpush2.msra.mxu0 0.0
        %5408 = vmatprep.subr.mxu0 0.0
        %5409 = vmatpush2.msra.mxu0 0.0
        %5410 = vmatprep.subr.mxu0 0.0
        %5411 = vmatpush2.msra.mxu0 0.0
        %5412 = vmatprep.subr.mxu0 0.0
        %5413 = vmatpush2.msra.mxu0 0.0
        %5414 = vmatprep.subr.mxu0 0.0
        %5415 = vmatpush2.msra.mxu0 0.0
        %5416 = vmatprep.subr.mxu0 0.0
        %5417 = vmatpush2.msra.mxu0 0.0
        %5418 = vmatprep.subr.mxu0 0.0
        %5419 = vmatpush2.msra.mxu0 0.0
        %5420 = vmatprep.subr.mxu0 0.0
        %5421 = vmatpush2.msra.mxu0 0.0
        %5422 = vmatprep.mubr.f32.mxu0 0.0
        %5423 = vmatmul.mubr.f32.gmra.mxu0 %v5167
        %v5424 = vpop.f32.mrf.mxu0
        %v5425 = vadd.f32 %v4848, %v5424
        %v5426 = vpop.f32.mrf.mxu0
        %5427 = vmatprep.mubr.f32.mxu0 0.0
        %5428 = vmatmul.mubr.f32.gmra.mxu0 %v5170
        %v5429 = vpop.f32.mrf.mxu0
        %v5430 = vadd.f32 %v4853, %v5429
        %v5431 = vpop.f32.mrf.mxu0
        %5432 = vmatprep.mubr.f32.mxu0 0.0
        %5433 = vmatmul.mubr.f32.gmra.mxu0 %v5173
        %v5434 = vpop.f32.mrf.mxu0
        %v5435 = vadd.f32 %v4858, %v5434
        %v5436 = vpop.f32.mrf.mxu0
        %5437 = vmatprep.mubr.f32.mxu0 0.0
        %5438 = vmatmul.mubr.f32.gmra.mxu0 %v5176
        %v5439 = vpop.f32.mrf.mxu0
        %v5440 = vadd.f32 %v4863, %v5439
        %v5441 = vpop.f32.mrf.mxu0
        %5442 = vmatprep.mubr.f32.mxu0 0.0
        %5443 = vmatmul.mubr.f32.gmra.mxu0 %v5179
        %v5444 = vpop.f32.mrf.mxu0
        %v5445 = vadd.f32 %v4868, %v5444
        %v5446 = vpop.f32.mrf.mxu0
        %5447 = vmatprep.mubr.f32.mxu0 0.0
        %5448 = vmatmul.mubr.f32.gmra.mxu0 %v5182
        %v5449 = vpop.f32.mrf.mxu0
        %v5450 = vadd.f32 %v4873, %v5449
        %v5451 = vpop.f32.mrf.mxu0
        %5452 = vmatprep.mubr.f32.mxu0 0.0
        %5453 = vmatmul.mubr.f32.gmra.mxu0 %v5185
        %v5454 = vpop.f32.mrf.mxu0
        %v5455 = vadd.f32 %v4878, %v5454
        %v5456 = vpop.f32.mrf.mxu0
        %5457 = vmatprep.mubr.f32.mxu0 0.0
        %5458 = vmatmul.mubr.f32.gmra.mxu0 %v5188
        %v5459 = vpop.f32.mrf.mxu0
        %v5460 = vadd.f32 %v4883, %v5459
        %v5461 = vpop.f32.mrf.mxu0
        %5462 = vmatprep.mubr.f32.mxu0 0.0
        %5463 = vmatmul.mubr.f32.gmra.mxu0 %v5191
        %v5464 = vpop.f32.mrf.mxu0
        %v5465 = vadd.f32 %v4888, %v5464
        %v5466 = vpop.f32.mrf.mxu0
        %5467 = vmatprep.mubr.f32.mxu0 0.0
        %5468 = vmatmul.mubr.f32.gmra.mxu0 %v5194
        %v5469 = vpop.f32.mrf.mxu0
        %v5470 = vadd.f32 %v4893, %v5469
        %v5471 = vpop.f32.mrf.mxu0
        %5472 = vmatprep.mubr.f32.mxu0 0.0
        %5473 = vmatmul.mubr.f32.gmra.mxu0 %v5197
        %v5474 = vpop.f32.mrf.mxu0
        %v5475 = vadd.f32 %v4898, %v5474
        %v5476 = vpop.f32.mrf.mxu0
        %5477 = vmatprep.mubr.f32.mxu0 0.0
        %5478 = vmatmul.mubr.f32.gmra.mxu0 %v5200
        %v5479 = vpop.f32.mrf.mxu0
        %v5480 = vadd.f32 %v4903, %v5479
        %v5481 = vpop.f32.mrf.mxu0
        %5482 = vmatprep.mubr.f32.mxu0 0.0
        %5483 = vmatmul.mubr.f32.gmra.mxu0 %v5203
        %v5484 = vpop.f32.mrf.mxu0
        %v5485 = vadd.f32 %v4908, %v5484
        %v5486 = vpop.f32.mrf.mxu0
        %5487 = vmatprep.mubr.f32.mxu0 0.0
        %5488 = vmatmul.mubr.f32.gmra.mxu0 %v5206
        %v5489 = vpop.f32.mrf.mxu0
        %v5490 = vadd.f32 %v4913, %v5489
        %v5491 = vpop.f32.mrf.mxu0
        %5492 = vmatprep.mubr.f32.mxu0 0.0
        %5493 = vmatmul.mubr.f32.gmra.mxu0 %v5209
        %v5494 = vpop.f32.mrf.mxu0
        %v5495 = vadd.f32 %v4918, %v5494
        %v5496 = vpop.f32.mrf.mxu0
        %5497 = vmatprep.mubr.f32.mxu0 0.0
        %5498 = vmatmul.mubr.f32.gmra.mxu0 %v5212
        %v5499 = vpop.f32.mrf.mxu0
        %v5500 = vadd.f32 %v4923, %v5499
        %v5501 = vpop.f32.mrf.mxu0
        %5502 = vmatprep.mubr.f32.mxu0 0.0
        %5503 = vmatmul.mubr.f32.gmra.mxu0 %v5215
        %v5504 = vpop.f32.mrf.mxu0
        %v5505 = vadd.f32 %v4928, %v5504
        %v5506 = vpop.f32.mrf.mxu0
        %5507 = vmatprep.mubr.f32.mxu0 0.0
        %5508 = vmatmul.mubr.f32.gmra.mxu0 %v5218
        %v5509 = vpop.f32.mrf.mxu0
        %v5510 = vadd.f32 %v4933, %v5509
        %v5511 = vpop.f32.mrf.mxu0
        %5512 = vmatprep.mubr.f32.mxu0 0.0
        %5513 = vmatmul.mubr.f32.gmra.mxu0 %v5221
        %v5514 = vpop.f32.mrf.mxu0
        %v5515 = vadd.f32 %v4938, %v5514
        %v5516 = vpop.f32.mrf.mxu0
        %5517 = vmatprep.mubr.f32.mxu0 0.0
        %5518 = vmatmul.mubr.f32.gmra.mxu0 %v5224
        %v5519 = vpop.f32.mrf.mxu0
        %v5520 = vadd.f32 %v4943, %v5519
        %v5521 = vpop.f32.mrf.mxu0
        %5522 = vmatprep.mubr.f32.mxu0 0.0
        %5523 = vmatmul.mubr.f32.gmra.mxu0 %v5227
        %v5524 = vpop.f32.mrf.mxu0
        %v5525 = vadd.f32 %v4948, %v5524
        %v5526 = vpop.f32.mrf.mxu0
        %5527 = vmatprep.mubr.f32.mxu0 0.0
        %5528 = vmatmul.mubr.f32.gmra.mxu0 %v5230
        %v5529 = vpop.f32.mrf.mxu0
        %v5530 = vadd.f32 %v4953, %v5529
        %v5531 = vpop.f32.mrf.mxu0
        %5532 = vmatprep.mubr.f32.mxu0 0.0
        %5533 = vmatmul.mubr.f32.gmra.mxu0 %v5233
        %v5534 = vpop.f32.mrf.mxu0
        %v5535 = vadd.f32 %v4958, %v5534
        %v5536 = vpop.f32.mrf.mxu0
        %5537 = vmatprep.mubr.f32.mxu0 0.0
        %5538 = vmatmul.mubr.f32.gmra.mxu0 %v5236
        %v5539 = vpop.f32.mrf.mxu0
        %v5540 = vadd.f32 %v4963, %v5539
        %v5541 = vpop.f32.mrf.mxu0
        %5542 = vmatprep.mubr.f32.mxu0 0.0
        %5543 = vmatmul.mubr.f32.gmra.mxu0 %v5239
        %v5544 = vpop.f32.mrf.mxu0
        %v5545 = vadd.f32 %v4968, %v5544
        %v5546 = vpop.f32.mrf.mxu0
        %5547 = vmatprep.mubr.f32.mxu0 0.0
        %5548 = vmatmul.mubr.f32.gmra.mxu0 %v5242
        %v5549 = vpop.f32.mrf.mxu0
        %v5550 = vadd.f32 %v4973, %v5549
        %v5551 = vpop.f32.mrf.mxu0
        %5552 = vmatprep.mubr.f32.mxu0 0.0
        %5553 = vmatmul.mubr.f32.gmra.mxu0 %v5245
        %v5554 = vpop.f32.mrf.mxu0
        %v5555 = vadd.f32 %v4978, %v5554
        %v5556 = vpop.f32.mrf.mxu0
        %5557 = vmatprep.mubr.f32.mxu0 0.0
        %5558 = vmatmul.mubr.f32.gmra.mxu0 %v5248
        %v5559 = vpop.f32.mrf.mxu0
        %v5560 = vadd.f32 %v4983, %v5559
        %v5561 = vpop.f32.mrf.mxu0
        %5562 = vmatprep.mubr.f32.mxu0 0.0
        %5563 = vmatmul.mubr.f32.gmra.mxu0 %v5251
        %v5564 = vpop.f32.mrf.mxu0
        %v5565 = vadd.f32 %v4988, %v5564
        %v5566 = vpop.f32.mrf.mxu0
        %5567 = vmatprep.mubr.f32.mxu0 0.0
        %5568 = vmatmul.mubr.f32.gmra.mxu0 %v5254
        %v5569 = vpop.f32.mrf.mxu0
        %v5570 = vadd.f32 %v4993, %v5569
        %v5571 = vpop.f32.mrf.mxu0
        %5572 = vmatprep.mubr.f32.mxu0 0.0
        %5573 = vmatmul.mubr.f32.gmra.mxu0 %v5257
        %v5574 = vpop.f32.mrf.mxu0
        %v5575 = vadd.f32 %v4998, %v5574
        %v5576 = vpop.f32.mrf.mxu0
        %5577 = vmatprep.mubr.f32.mxu0 0.0
        %5578 = vmatmul.mubr.f32.gmra.mxu0 %v5260
        %v5579 = vpop.f32.mrf.mxu0
        %v5580 = vadd.f32 %v5003, %v5579
        %v5581 = vpop.f32.mrf.mxu0
        %5582 = vmatprep.mubr.f32.mxu0 0.0
        %5583 = vmatmul.mubr.f32.gmra.mxu0 %v5263
        %v5584 = vpop.f32.mrf.mxu0
        %v5585 = vadd.f32 %v5008, %v5584
        %v5586 = vpop.f32.mrf.mxu0
        %5587 = vmatprep.mubr.f32.mxu0 0.0
        %5588 = vmatmul.mubr.f32.gmra.mxu0 %v5266
        %v5589 = vpop.f32.mrf.mxu0
        %v5590 = vadd.f32 %v5013, %v5589
        %v5591 = vpop.f32.mrf.mxu0
        %5592 = vmatprep.mubr.f32.mxu0 0.0
        %5593 = vmatmul.mubr.f32.gmra.mxu0 %v5269
        %v5594 = vpop.f32.mrf.mxu0
        %v5595 = vadd.f32 %v5018, %v5594
        %v5596 = vpop.f32.mrf.mxu0
        %5597 = vmatprep.mubr.f32.mxu0 0.0
        %5598 = vmatmul.mubr.f32.gmra.mxu0 %v5272
        %v5599 = vpop.f32.mrf.mxu0
        %v5600 = vadd.f32 %v5023, %v5599
        %v5601 = vpop.f32.mrf.mxu0
        %5602 = vmatprep.mubr.f32.mxu0 0.0
        %5603 = vmatmul.mubr.f32.gmra.mxu0 %v5275
        %v5604 = vpop.f32.mrf.mxu0
        %v5605 = vadd.f32 %v5028, %v5604
        %v5606 = vpop.f32.mrf.mxu0
        %5607 = vmatprep.mubr.f32.mxu0 0.0
        %5608 = vmatmul.mubr.f32.gmra.mxu0 %v5278
        %v5609 = vpop.f32.mrf.mxu0
        %v5610 = vadd.f32 %v5033, %v5609
        %v5611 = vpop.f32.mrf.mxu0
        %5612 = vmatprep.mubr.f32.mxu0 0.0
        %5613 = vmatmul.mubr.f32.gmra.mxu0 %v5281
        %v5614 = vpop.f32.mrf.mxu0
        %v5615 = vadd.f32 %v5038, %v5614
        %v5616 = vpop.f32.mrf.mxu0
        %5617 = vmatprep.mubr.f32.mxu0 0.0
        %5618 = vmatmul.mubr.f32.gmra.mxu0 %v5284
        %v5619 = vpop.f32.mrf.mxu0
        %v5620 = vadd.f32 %v5043, %v5619
        %v5621 = vpop.f32.mrf.mxu0
        %5622 = vmatprep.mubr.f32.mxu0 0.0
        %5623 = vmatmul.mubr.f32.gmra.mxu0 %v5287
        %v5624 = vpop.f32.mrf.mxu0
        %v5625 = vadd.f32 %v5048, %v5624
        %v5626 = vpop.f32.mrf.mxu0
        %5627 = vmatprep.mubr.f32.mxu0 0.0
        %5628 = vmatmul.mubr.f32.gmra.mxu0 %v5290
        %v5629 = vpop.f32.mrf.mxu0
        %v5630 = vadd.f32 %v5053, %v5629
        %v5631 = vpop.f32.mrf.mxu0
        %5632 = vmatprep.mubr.f32.mxu0 0.0
        %5633 = vmatmul.mubr.f32.gmra.mxu0 %v5293
        %v5634 = vpop.f32.mrf.mxu0
        %v5635 = vadd.f32 %v5058, %v5634
        %v5636 = vpop.f32.mrf.mxu0
        %5637 = vmatprep.mubr.f32.mxu0 0.0
        %5638 = vmatmul.mubr.f32.gmra.mxu0 %v5296
        %v5639 = vpop.f32.mrf.mxu0
        %v5640 = vadd.f32 %v5063, %v5639
        %v5641 = vpop.f32.mrf.mxu0
        %5642 = vmatprep.mubr.f32.mxu0 0.0
        %5643 = vmatmul.mubr.f32.gmra.mxu0 %v5299
        %v5644 = vpop.f32.mrf.mxu0
        %v5645 = vadd.f32 %v5068, %v5644
        %v5646 = vpop.f32.mrf.mxu0
        %5647 = vmatprep.mubr.f32.mxu0 0.0
        %5648 = vmatmul.mubr.f32.gmra.mxu0 %v5302
        %v5649 = vpop.f32.mrf.mxu0
        %v5650 = vadd.f32 %v5073, %v5649
        %v5651 = vpop.f32.mrf.mxu0
        %5652 = vmatprep.mubr.f32.mxu0 0.0
        %5653 = vmatmul.mubr.f32.gmra.mxu0 %v5305
        %v5654 = vpop.f32.mrf.mxu0
        %v5655 = vadd.f32 %v5078, %v5654
        %v5656 = vpop.f32.mrf.mxu0
        %5657 = vmatprep.mubr.f32.mxu0 0.0
        %5658 = vmatmul.mubr.f32.gmra.mxu0 %v5308
        %v5659 = vpop.f32.mrf.mxu0
        %v5660 = vadd.f32 %v5083, %v5659
        %v5661 = vpop.f32.mrf.mxu0
        %5662 = vmatprep.mubr.f32.mxu0 0.0
        %5663 = vmatmul.mubr.f32.gmra.mxu0 %v5311
        %v5664 = vpop.f32.mrf.mxu0
        %v5665 = vadd.f32 %v5088, %v5664
        %v5666 = vpop.f32.mrf.mxu0
        %5667 = vmatprep.mubr.f32.mxu0 0.0
        %5668 = vmatmul.mubr.f32.gmra.mxu0 %v5314
        %v5669 = vpop.f32.mrf.mxu0
        %v5670 = vadd.f32 %v5093, %v5669
        %v5671 = vpop.f32.mrf.mxu0
        %5672 = vmatprep.mubr.f32.mxu0 0.0
        %5673 = vmatmul.mubr.f32.gmra.mxu0 %v5317
        %v5674 = vpop.f32.mrf.mxu0
        %v5675 = vadd.f32 %v5098, %v5674
        %v5676 = vpop.f32.mrf.mxu0
        %5677 = vmatprep.mubr.f32.mxu0 0.0
        %5678 = vmatmul.mubr.f32.gmra.mxu0 %v5320
        %v5679 = vpop.f32.mrf.mxu0
        %v5680 = vadd.f32 %v5103, %v5679
        %v5681 = vpop.f32.mrf.mxu0
        %5682 = vmatprep.mubr.f32.mxu0 0.0
        %5683 = vmatmul.mubr.f32.gmra.mxu0 %v5323
        %v5684 = vpop.f32.mrf.mxu0
        %v5685 = vadd.f32 %v5108, %v5684
        %v5686 = vpop.f32.mrf.mxu0
        %5687 = vmatprep.mubr.f32.mxu0 0.0
        %5688 = vmatmul.mubr.f32.gmra.mxu0 %v5326
        %v5689 = vpop.f32.mrf.mxu0
        %v5690 = vadd.f32 %v5113, %v5689
        %v5691 = vpop.f32.mrf.mxu0
        %5692 = vmatprep.mubr.f32.mxu0 0.0
        %5693 = vmatmul.mubr.f32.gmra.mxu0 %v5329
        %v5694 = vpop.f32.mrf.mxu0
        %v5695 = vadd.f32 %v5118, %v5694
        %v5696 = vpop.f32.mrf.mxu0
        %5697 = vmatprep.mubr.f32.mxu0 0.0
        %5698 = vmatmul.mubr.f32.gmra.mxu0 %v5332
        %v5699 = vpop.f32.mrf.mxu0
        %v5700 = vadd.f32 %v5123, %v5699
        %v5701 = vpop.f32.mrf.mxu0
        %5702 = vmatprep.mubr.f32.mxu0 0.0
        %5703 = vmatmul.mubr.f32.gmra.mxu0 %v5335
        %v5704 = vpop.f32.mrf.mxu0
        %v5705 = vadd.f32 %v5128, %v5704
        %v5706 = vpop.f32.mrf.mxu0
        %5707 = vmatprep.mubr.f32.mxu0 0.0
        %5708 = vmatmul.mubr.f32.gmra.mxu0 %v5338
        %v5709 = vpop.f32.mrf.mxu0
        %v5710 = vadd.f32 %v5133, %v5709
        %v5711 = vpop.f32.mrf.mxu0
        %5712 = vmatprep.mubr.f32.mxu0 0.0
        %5713 = vmatmul.mubr.f32.gmra.mxu0 %v5341
        %v5714 = vpop.f32.mrf.mxu0
        %v5715 = vadd.f32 %v5138, %v5714
        %v5716 = vpop.f32.mrf.mxu0
        %5717 = vmatprep.mubr.f32.mxu0 0.0
        %5718 = vmatmul.mubr.f32.gmra.mxu0 %v5344
        %v5719 = vpop.f32.mrf.mxu0
        %v5720 = vadd.f32 %v5143, %v5719
        %v5721 = vpop.f32.mrf.mxu0
        %5722 = vmatprep.mubr.f32.mxu0 0.0
        %5723 = vmatmul.mubr.f32.gmra.mxu0 %v5347
        %v5724 = vpop.f32.mrf.mxu0
        %v5725 = vadd.f32 %v5148, %v5724
        %v5726 = vpop.f32.mrf.mxu0
        %5727 = vmatprep.mubr.f32.mxu0 0.0
        %5728 = vmatmul.mubr.f32.gmra.mxu0 %v5350
        %v5729 = vpop.f32.mrf.mxu0
        %v5730 = vadd.f32 %v5153, %v5729
        %v5731 = vpop.f32.mrf.mxu0
        %5732 = vmatprep.mubr.f32.mxu0 0.0
        %5733 = vmatmul.mubr.f32.gmra.mxu0 %v5353
        %v5734 = vpop.f32.mrf.mxu0
        %v5735 = vadd.f32 %v5158, %v5734
        %v5736 = vpop.f32.mrf.mxu0
        %5737 = vmatprep.mubr.f32.mxu0 0.0
        %5738 = vmatmul.mubr.f32.gmra.mxu0 %v5356
        %v5739 = vpop.f32.mrf.mxu0
        %v5740 = vadd.f32 %v5163, %v5739
        %v5741 = vpop.f32.mrf.mxu0
        %5742 = vdwg.mxu0
        %v5743 = vmax.f32 %v4395, %v5425
        %v5744 = vmax.f32 %v4396, %v5430
        %v5745 = vmax.f32 %v4397, %v5435
        %v5746 = vmax.f32 %v4398, %v5440
        %v5747 = vmax.f32 %v4399, %v5445
        %v5748 = vmax.f32 %v4400, %v5450
        %v5749 = vmax.f32 %v4401, %v5455
        %v5750 = vmax.f32 %v4402, %v5460
        %v5751 = vmax.f32 %v4403, %v5465
        %v5752 = vmax.f32 %v4404, %v5470
        %v5753 = vmax.f32 %v4405, %v5475
        %v5754 = vmax.f32 %v4406, %v5480
        %v5755 = vmax.f32 %v4407, %v5485
        %v5756 = vmax.f32 %v4408, %v5490
        %v5757 = vmax.f32 %v4409, %v5495
        %v5758 = vmax.f32 %v4410, %v5500
        %v5759 = vmax.f32 %v4411, %v5505
        %v5760 = vmax.f32 %v4412, %v5510
        %v5761 = vmax.f32 %v4413, %v5515
        %v5762 = vmax.f32 %v4414, %v5520
        %v5763 = vmax.f32 %v4415, %v5525
        %v5764 = vmax.f32 %v4416, %v5530
        %v5765 = vmax.f32 %v4417, %v5535
        %v5766 = vmax.f32 %v4418, %v5540
        %v5767 = vmax.f32 %v4419, %v5545
        %v5768 = vmax.f32 %v4420, %v5550
        %v5769 = vmax.f32 %v4421, %v5555
        %v5770 = vmax.f32 %v4422, %v5560
        %v5771 = vmax.f32 %v4423, %v5565
        %v5772 = vmax.f32 %v4424, %v5570
        %v5773 = vmax.f32 %v4425, %v5575
        %v5774 = vmax.f32 %v4426, %v5580
        %v5775 = vmax.f32 %v4427, %v5585
        %v5776 = vmax.f32 %v4428, %v5590
        %v5777 = vmax.f32 %v4429, %v5595
        %v5778 = vmax.f32 %v4430, %v5600
        %v5779 = vmax.f32 %v4431, %v5605
        %v5780 = vmax.f32 %v4432, %v5610
        %v5781 = vmax.f32 %v4433, %v5615
        %v5782 = vmax.f32 %v4434, %v5620
        %v5783 = vmax.f32 %v4435, %v5625
        %v5784 = vmax.f32 %v4436, %v5630
        %v5785 = vmax.f32 %v4437, %v5635
        %v5786 = vmax.f32 %v4438, %v5640
        %v5787 = vmax.f32 %v4439, %v5645
        %v5788 = vmax.f32 %v4440, %v5650
        %v5789 = vmax.f32 %v4441, %v5655
        %v5790 = vmax.f32 %v4442, %v5660
        %v5791 = vmax.f32 %v4443, %v5665
        %v5792 = vmax.f32 %v4444, %v5670
        %v5793 = vmax.f32 %v4445, %v5675
        %v5794 = vmax.f32 %v4446, %v5680
        %v5795 = vmax.f32 %v4447, %v5685
        %v5796 = vmax.f32 %v4448, %v5690
        %v5797 = vmax.f32 %v4449, %v5695
        %v5798 = vmax.f32 %v4450, %v5700
        %v5799 = vmax.f32 %v4451, %v5705
        %v5800 = vmax.f32 %v4452, %v5710
        %v5801 = vmax.f32 %v4453, %v5715
        %v5802 = vmax.f32 %v4454, %v5720
        %v5803 = vmax.f32 %v4455, %v5725
        %v5804 = vmax.f32 %v4456, %v5730
        %v5805 = vmax.f32 %v4457, %v5735
        %v5806 = vmax.f32 %v4458, %v5740
        %v5807 = vld [vmem:[%s457] sm:$0xff]
        %v5808 = vld [vmem:[%s457 + $0x8] sm:$0xff]
        %v5809 = vld [vmem:[%s457 + $0x10] sm:$0xff]
        %v5810 = vld [vmem:[%s457 + $0x18] sm:$0xff]
        %v5811 = vld [vmem:[%s457 + $0x20] sm:$0xff]
        %v5812 = vld [vmem:[%s457 + $0x28] sm:$0xff]
        %v5813 = vld [vmem:[%s457 + $0x30] sm:$0xff]
        %v5814 = vld [vmem:[%s457 + $0x38] sm:$0xff]
        %v5815 = vld [vmem:[%s457 + $0x40] sm:$0xff]
        %v5816 = vld [vmem:[%s457 + $0x48] sm:$0xff]
        %v5817 = vld [vmem:[%s457 + $0x50] sm:$0xff]
        %v5818 = vld [vmem:[%s457 + $0x58] sm:$0xff]
        %v5819 = vld [vmem:[%s457 + $0x60] sm:$0xff]
        %v5820 = vld [vmem:[%s457 + $0x68] sm:$0xff]
        %v5821 = vld [vmem:[%s457 + $0x70] sm:$0xff]
        %v5822 = vld [vmem:[%s457 + $0x78] sm:$0xff]
        %v5823 = vld [vmem:[%s457 + $0x80] sm:$0xff]
        %v5824 = vld [vmem:[%s457 + $0x88] sm:$0xff]
        %v5825 = vld [vmem:[%s457 + $0x90] sm:$0xff]
        %v5826 = vld [vmem:[%s457 + $0x98] sm:$0xff]
        %v5827 = vld [vmem:[%s457 + $0xa0] sm:$0xff]
        %v5828 = vld [vmem:[%s457 + $0xa8] sm:$0xff]
        %v5829 = vld [vmem:[%s457 + $0xb0] sm:$0xff]
        %v5830 = vld [vmem:[%s457 + $0xb8] sm:$0xff]
        %v5831 = vld [vmem:[%s457 + $0xc0] sm:$0xff]
        %v5832 = vld [vmem:[%s457 + $0xc8] sm:$0xff]
        %v5833 = vld [vmem:[%s457 + $0xd0] sm:$0xff]
        %v5834 = vld [vmem:[%s457 + $0xd8] sm:$0xff]
        %v5835 = vld [vmem:[%s457 + $0xe0] sm:$0xff]
        %v5836 = vld [vmem:[%s457 + $0xe8] sm:$0xff]
        %v5837 = vld [vmem:[%s457 + $0xf0] sm:$0xff]
        %v5838 = vld [vmem:[%s457 + $0xf8] sm:$0xff]
        %v5839 = vld [vmem:[%s457 + $0x100] sm:$0xff]
        %v5840 = vld [vmem:[%s457 + $0x108] sm:$0xff]
        %v5841 = vld [vmem:[%s457 + $0x110] sm:$0xff]
        %v5842 = vld [vmem:[%s457 + $0x118] sm:$0xff]
        %v5843 = vld [vmem:[%s457 + $0x120] sm:$0xff]
        %v5844 = vld [vmem:[%s457 + $0x128] sm:$0xff]
        %v5845 = vld [vmem:[%s457 + $0x130] sm:$0xff]
        %v5846 = vld [vmem:[%s457 + $0x138] sm:$0xff]
        %v5847 = vld [vmem:[%s457 + $0x140] sm:$0xff]
        %v5848 = vld [vmem:[%s457 + $0x148] sm:$0xff]
        %v5849 = vld [vmem:[%s457 + $0x150] sm:$0xff]
        %v5850 = vld [vmem:[%s457 + $0x158] sm:$0xff]
        %v5851 = vld [vmem:[%s457 + $0x160] sm:$0xff]
        %v5852 = vld [vmem:[%s457 + $0x168] sm:$0xff]
        %v5853 = vld [vmem:[%s457 + $0x170] sm:$0xff]
        %v5854 = vld [vmem:[%s457 + $0x178] sm:$0xff]
        %v5855 = vld [vmem:[%s457 + $0x180] sm:$0xff]
        %v5856 = vld [vmem:[%s457 + $0x188] sm:$0xff]
        %v5857 = vld [vmem:[%s457 + $0x190] sm:$0xff]
        %v5858 = vld [vmem:[%s457 + $0x198] sm:$0xff]
        %v5859 = vld [vmem:[%s457 + $0x1a0] sm:$0xff]
        %v5860 = vld [vmem:[%s457 + $0x1a8] sm:$0xff]
        %v5861 = vld [vmem:[%s457 + $0x1b0] sm:$0xff]
        %v5862 = vld [vmem:[%s457 + $0x1b8] sm:$0xff]
        %v5863 = vld [vmem:[%s457 + $0x1c0] sm:$0xff]
        %v5864 = vld [vmem:[%s457 + $0x1c8] sm:$0xff]
        %v5865 = vld [vmem:[%s457 + $0x1d0] sm:$0xff]
        %v5866 = vld [vmem:[%s457 + $0x1d8] sm:$0xff]
        %v5867 = vld [vmem:[%s457 + $0x1e0] sm:$0xff]
        %v5868 = vld [vmem:[%s457 + $0x1e8] sm:$0xff]
        %v5869 = vld [vmem:[%s457 + $0x1f0] sm:$0xff]
        %v5870 = vld [vmem:[%s457 + $0x1f8] sm:$0xff]
        %v5871 = vld [vmem:[%s6] sm:$0xff]
        %v5872 = vld [vmem:[%s6 + $0x8] sm:$0xff]
        %vm5873 = vcmask 130048
        %v5875 = vsel %vm5873, %v5807, 0
        %v5878 = vsel %vm5873, %v5808, 0
        %v5881 = vsel %vm5873, %v5809, 0
        %v5884 = vsel %vm5873, %v5810, 0
        %v5887 = vsel %vm5873, %v5811, 0
        %v5890 = vsel %vm5873, %v5812, 0
        %v5893 = vsel %vm5873, %v5813, 0
        %v5896 = vsel %vm5873, %v5814, 0
        %v5899 = vsel %vm5873, %v5815, 0
        %v5902 = vsel %vm5873, %v5816, 0
        %v5905 = vsel %vm5873, %v5817, 0
        %v5908 = vsel %vm5873, %v5818, 0
        %v5911 = vsel %vm5873, %v5819, 0
        %v5914 = vsel %vm5873, %v5820, 0
        %v5917 = vsel %vm5873, %v5821, 0
        %v5920 = vsel %vm5873, %v5822, 0
        %v5923 = vsel %vm5873, %v5823, 0
        %v5926 = vsel %vm5873, %v5824, 0
        %v5929 = vsel %vm5873, %v5825, 0
        %v5932 = vsel %vm5873, %v5826, 0
        %v5935 = vsel %vm5873, %v5827, 0
        %v5938 = vsel %vm5873, %v5828, 0
        %v5941 = vsel %vm5873, %v5829, 0
        %v5944 = vsel %vm5873, %v5830, 0
        %v5947 = vsel %vm5873, %v5831, 0
        %v5950 = vsel %vm5873, %v5832, 0
        %v5953 = vsel %vm5873, %v5833, 0
        %v5956 = vsel %vm5873, %v5834, 0
        %v5959 = vsel %vm5873, %v5835, 0
        %v5962 = vsel %vm5873, %v5836, 0
        %v5965 = vsel %vm5873, %v5837, 0
        %v5968 = vsel %vm5873, %v5838, 0
        %v5971 = vsel %vm5873, %v5839, 0
        %v5974 = vsel %vm5873, %v5840, 0
        %v5977 = vsel %vm5873, %v5841, 0
        %v5980 = vsel %vm5873, %v5842, 0
        %v5983 = vsel %vm5873, %v5843, 0
        %v5986 = vsel %vm5873, %v5844, 0
        %v5989 = vsel %vm5873, %v5845, 0
        %v5992 = vsel %vm5873, %v5846, 0
        %v5995 = vsel %vm5873, %v5847, 0
        %v5998 = vsel %vm5873, %v5848, 0
        %v6001 = vsel %vm5873, %v5849, 0
        %v6004 = vsel %vm5873, %v5850, 0
        %v6007 = vsel %vm5873, %v5851, 0
        %v6010 = vsel %vm5873, %v5852, 0
        %v6013 = vsel %vm5873, %v5853, 0
        %v6016 = vsel %vm5873, %v5854, 0
        %v6019 = vsel %vm5873, %v5855, 0
        %v6022 = vsel %vm5873, %v5856, 0
        %v6025 = vsel %vm5873, %v5857, 0
        %v6028 = vsel %vm5873, %v5858, 0
        %v6031 = vsel %vm5873, %v5859, 0
        %v6034 = vsel %vm5873, %v5860, 0
        %v6037 = vsel %vm5873, %v5861, 0
        %v6040 = vsel %vm5873, %v5862, 0
        %v6043 = vsel %vm5873, %v5863, 0
        %v6046 = vsel %vm5873, %v5864, 0
        %v6049 = vsel %vm5873, %v5865, 0
        %v6052 = vsel %vm5873, %v5866, 0
        %v6055 = vsel %vm5873, %v5867, 0
        %v6058 = vsel %vm5873, %v5868, 0
        %v6061 = vsel %vm5873, %v5869, 0
        %v6064 = vsel %vm5873, %v5870, 0
        %6066 = vmatprep.subr.mxu0 0.0
        %6067 = vmatpush1.msra.mxu0 0.0
        %6068 = vmatprep.subr.mxu0 0.0
        %6069 = vmatpush1.msra.mxu0 0.0
        %6070 = vmatprep.subr.mxu0 0.0
        %6071 = vmatpush1.msra.mxu0 0.0
        %6072 = vmatprep.subr.mxu0 0.0
        %6073 = vmatpush1.msra.mxu0 0.0
        %6074 = vmatprep.subr.mxu0 0.0
        %6075 = vmatpush1.msra.mxu0 0.0
        %6076 = vmatprep.subr.mxu0 0.0
        %6077 = vmatpush1.msra.mxu0 0.0
        %6078 = vmatprep.subr.mxu0 0.0
        %6079 = vmatpush1.msra.mxu0 0.0
        %6080 = vmatprep.subr.mxu0 0.0
        %6081 = vmatpush1.msra.mxu0 0.0
        %6082 = vmatprep.subr.mxu0 0.0
        %6083 = vmatpush1.msra.mxu0 0.0
        %6084 = vmatprep.subr.mxu0 0.0
        %6085 = vmatpush1.msra.mxu0 0.0
        %6086 = vmatprep.subr.mxu0 0.0
        %6087 = vmatpush1.msra.mxu0 0.0
        %6088 = vmatprep.subr.mxu0 0.0
        %6089 = vmatpush1.msra.mxu0 0.0
        %6090 = vmatprep.subr.mxu0 0.0
        %6091 = vmatpush1.msra.mxu0 0.0
        %6092 = vmatprep.subr.mxu0 0.0
        %6093 = vmatpush1.msra.mxu0 0.0
        %6094 = vmatprep.subr.mxu0 0.0
        %6095 = vmatpush1.msra.mxu0 %v5872
        %6096 = vmatprep.subr.mxu0 0.0
        %6097 = vmatpush1.msra.mxu0 %v5871
        %6098 = vmatprep.subr.mxu0 0.0
        %6099 = vmatpush2.msra.mxu0 0.0
        %6100 = vmatprep.subr.mxu0 0.0
        %6101 = vmatpush2.msra.mxu0 0.0
        %6102 = vmatprep.subr.mxu0 0.0
        %6103 = vmatpush2.msra.mxu0 0.0
        %6104 = vmatprep.subr.mxu0 0.0
        %6105 = vmatpush2.msra.mxu0 0.0
        %6106 = vmatprep.subr.mxu0 0.0
        %6107 = vmatpush2.msra.mxu0 0.0
        %6108 = vmatprep.subr.mxu0 0.0
        %6109 = vmatpush2.msra.mxu0 0.0
        %6110 = vmatprep.subr.mxu0 0.0
        %6111 = vmatpush2.msra.mxu0 0.0
        %6112 = vmatprep.subr.mxu0 0.0
        %6113 = vmatpush2.msra.mxu0 0.0
        %6114 = vmatprep.subr.mxu0 0.0
        %6115 = vmatpush2.msra.mxu0 0.0
        %6116 = vmatprep.subr.mxu0 0.0
        %6117 = vmatpush2.msra.mxu0 0.0
        %6118 = vmatprep.subr.mxu0 0.0
        %6119 = vmatpush2.msra.mxu0 0.0
        %6120 = vmatprep.subr.mxu0 0.0
        %6121 = vmatpush2.msra.mxu0 0.0
        %6122 = vmatprep.subr.mxu0 0.0
        %6123 = vmatpush2.msra.mxu0 0.0
        %6124 = vmatprep.subr.mxu0 0.0
        %6125 = vmatpush2.msra.mxu0 0.0
        %6126 = vmatprep.subr.mxu0 0.0
        %6127 = vmatpush2.msra.mxu0 0.0
        %6128 = vmatprep.subr.mxu0 0.0
        %6129 = vmatpush2.msra.mxu0 0.0
        %6130 = vmatprep.mubr.f32.mxu0 0.0
        %6131 = vmatmul.mubr.f32.gmra.mxu0 %v5875
        %v6132 = vpop.f32.mrf.mxu0
        %v6133 = vadd.f32 0.0, %v6132
        %v6134 = vpop.f32.mrf.mxu0
        %6135 = vmatprep.mubr.f32.mxu0 0.0
        %6136 = vmatmul.mubr.f32.gmra.mxu0 %v5878
        %v6137 = vpop.f32.mrf.mxu0
        %v6138 = vadd.f32 0.0, %v6137
        %v6139 = vpop.f32.mrf.mxu0
        %6140 = vmatprep.mubr.f32.mxu0 0.0
        %6141 = vmatmul.mubr.f32.gmra.mxu0 %v5881
        %v6142 = vpop.f32.mrf.mxu0
        %v6143 = vadd.f32 0.0, %v6142
        %v6144 = vpop.f32.mrf.mxu0
        %6145 = vmatprep.mubr.f32.mxu0 0.0
        %6146 = vmatmul.mubr.f32.gmra.mxu0 %v5884
        %v6147 = vpop.f32.mrf.mxu0
        %v6148 = vadd.f32 0.0, %v6147
        %v6149 = vpop.f32.mrf.mxu0
        %6150 = vmatprep.mubr.f32.mxu0 0.0
        %6151 = vmatmul.mubr.f32.gmra.mxu0 %v5887
        %v6152 = vpop.f32.mrf.mxu0
        %v6153 = vadd.f32 0.0, %v6152
        %v6154 = vpop.f32.mrf.mxu0
        %6155 = vmatprep.mubr.f32.mxu0 0.0
        %6156 = vmatmul.mubr.f32.gmra.mxu0 %v5890
        %v6157 = vpop.f32.mrf.mxu0
        %v6158 = vadd.f32 0.0, %v6157
        %v6159 = vpop.f32.mrf.mxu0
        %6160 = vmatprep.mubr.f32.mxu0 0.0
        %6161 = vmatmul.mubr.f32.gmra.mxu0 %v5893
        %v6162 = vpop.f32.mrf.mxu0
        %v6163 = vadd.f32 0.0, %v6162
        %v6164 = vpop.f32.mrf.mxu0
        %6165 = vmatprep.mubr.f32.mxu0 0.0
        %6166 = vmatmul.mubr.f32.gmra.mxu0 %v5896
        %v6167 = vpop.f32.mrf.mxu0
        %v6168 = vadd.f32 0.0, %v6167
        %v6169 = vpop.f32.mrf.mxu0
        %6170 = vmatprep.mubr.f32.mxu0 0.0
        %6171 = vmatmul.mubr.f32.gmra.mxu0 %v5899
        %v6172 = vpop.f32.mrf.mxu0
        %v6173 = vadd.f32 0.0, %v6172
        %v6174 = vpop.f32.mrf.mxu0
        %6175 = vmatprep.mubr.f32.mxu0 0.0
        %6176 = vmatmul.mubr.f32.gmra.mxu0 %v5902
        %v6177 = vpop.f32.mrf.mxu0
        %v6178 = vadd.f32 0.0, %v6177
        %v6179 = vpop.f32.mrf.mxu0
        %6180 = vmatprep.mubr.f32.mxu0 0.0
        %6181 = vmatmul.mubr.f32.gmra.mxu0 %v5905
        %v6182 = vpop.f32.mrf.mxu0
        %v6183 = vadd.f32 0.0, %v6182
        %v6184 = vpop.f32.mrf.mxu0
        %6185 = vmatprep.mubr.f32.mxu0 0.0
        %6186 = vmatmul.mubr.f32.gmra.mxu0 %v5908
        %v6187 = vpop.f32.mrf.mxu0
        %v6188 = vadd.f32 0.0, %v6187
        %v6189 = vpop.f32.mrf.mxu0
        %6190 = vmatprep.mubr.f32.mxu0 0.0
        %6191 = vmatmul.mubr.f32.gmra.mxu0 %v5911
        %v6192 = vpop.f32.mrf.mxu0
        %v6193 = vadd.f32 0.0, %v6192
        %v6194 = vpop.f32.mrf.mxu0
        %6195 = vmatprep.mubr.f32.mxu0 0.0
        %6196 = vmatmul.mubr.f32.gmra.mxu0 %v5914
        %v6197 = vpop.f32.mrf.mxu0
        %v6198 = vadd.f32 0.0, %v6197
        %v6199 = vpop.f32.mrf.mxu0
        %6200 = vmatprep.mubr.f32.mxu0 0.0
        %6201 = vmatmul.mubr.f32.gmra.mxu0 %v5917
        %v6202 = vpop.f32.mrf.mxu0
        %v6203 = vadd.f32 0.0, %v6202
        %v6204 = vpop.f32.mrf.mxu0
        %6205 = vmatprep.mubr.f32.mxu0 0.0
        %6206 = vmatmul.mubr.f32.gmra.mxu0 %v5920
        %v6207 = vpop.f32.mrf.mxu0
        %v6208 = vadd.f32 0.0, %v6207
        %v6209 = vpop.f32.mrf.mxu0
        %6210 = vmatprep.mubr.f32.mxu0 0.0
        %6211 = vmatmul.mubr.f32.gmra.mxu0 %v5923
        %v6212 = vpop.f32.mrf.mxu0
        %v6213 = vadd.f32 0.0, %v6212
        %v6214 = vpop.f32.mrf.mxu0
        %6215 = vmatprep.mubr.f32.mxu0 0.0
        %6216 = vmatmul.mubr.f32.gmra.mxu0 %v5926
        %v6217 = vpop.f32.mrf.mxu0
        %v6218 = vadd.f32 0.0, %v6217
        %v6219 = vpop.f32.mrf.mxu0
        %6220 = vmatprep.mubr.f32.mxu0 0.0
        %6221 = vmatmul.mubr.f32.gmra.mxu0 %v5929
        %v6222 = vpop.f32.mrf.mxu0
        %v6223 = vadd.f32 0.0, %v6222
        %v6224 = vpop.f32.mrf.mxu0
        %6225 = vmatprep.mubr.f32.mxu0 0.0
        %6226 = vmatmul.mubr.f32.gmra.mxu0 %v5932
        %v6227 = vpop.f32.mrf.mxu0
        %v6228 = vadd.f32 0.0, %v6227
        %v6229 = vpop.f32.mrf.mxu0
        %6230 = vmatprep.mubr.f32.mxu0 0.0
        %6231 = vmatmul.mubr.f32.gmra.mxu0 %v5935
        %v6232 = vpop.f32.mrf.mxu0
        %v6233 = vadd.f32 0.0, %v6232
        %v6234 = vpop.f32.mrf.mxu0
        %6235 = vmatprep.mubr.f32.mxu0 0.0
        %6236 = vmatmul.mubr.f32.gmra.mxu0 %v5938
        %v6237 = vpop.f32.mrf.mxu0
        %v6238 = vadd.f32 0.0, %v6237
        %v6239 = vpop.f32.mrf.mxu0
        %6240 = vmatprep.mubr.f32.mxu0 0.0
        %6241 = vmatmul.mubr.f32.gmra.mxu0 %v5941
        %v6242 = vpop.f32.mrf.mxu0
        %v6243 = vadd.f32 0.0, %v6242
        %v6244 = vpop.f32.mrf.mxu0
        %6245 = vmatprep.mubr.f32.mxu0 0.0
        %6246 = vmatmul.mubr.f32.gmra.mxu0 %v5944
        %v6247 = vpop.f32.mrf.mxu0
        %v6248 = vadd.f32 0.0, %v6247
        %v6249 = vpop.f32.mrf.mxu0
        %6250 = vmatprep.mubr.f32.mxu0 0.0
        %6251 = vmatmul.mubr.f32.gmra.mxu0 %v5947
        %v6252 = vpop.f32.mrf.mxu0
        %v6253 = vadd.f32 0.0, %v6252
        %v6254 = vpop.f32.mrf.mxu0
        %6255 = vmatprep.mubr.f32.mxu0 0.0
        %6256 = vmatmul.mubr.f32.gmra.mxu0 %v5950
        %v6257 = vpop.f32.mrf.mxu0
        %v6258 = vadd.f32 0.0, %v6257
        %v6259 = vpop.f32.mrf.mxu0
        %6260 = vmatprep.mubr.f32.mxu0 0.0
        %6261 = vmatmul.mubr.f32.gmra.mxu0 %v5953
        %v6262 = vpop.f32.mrf.mxu0
        %v6263 = vadd.f32 0.0, %v6262
        %v6264 = vpop.f32.mrf.mxu0
        %6265 = vmatprep.mubr.f32.mxu0 0.0
        %6266 = vmatmul.mubr.f32.gmra.mxu0 %v5956
        %v6267 = vpop.f32.mrf.mxu0
        %v6268 = vadd.f32 0.0, %v6267
        %v6269 = vpop.f32.mrf.mxu0
        %6270 = vmatprep.mubr.f32.mxu0 0.0
        %6271 = vmatmul.mubr.f32.gmra.mxu0 %v5959
        %v6272 = vpop.f32.mrf.mxu0
        %v6273 = vadd.f32 0.0, %v6272
        %v6274 = vpop.f32.mrf.mxu0
        %6275 = vmatprep.mubr.f32.mxu0 0.0
        %6276 = vmatmul.mubr.f32.gmra.mxu0 %v5962
        %v6277 = vpop.f32.mrf.mxu0
        %v6278 = vadd.f32 0.0, %v6277
        %v6279 = vpop.f32.mrf.mxu0
        %6280 = vmatprep.mubr.f32.mxu0 0.0
        %6281 = vmatmul.mubr.f32.gmra.mxu0 %v5965
        %v6282 = vpop.f32.mrf.mxu0
        %v6283 = vadd.f32 0.0, %v6282
        %v6284 = vpop.f32.mrf.mxu0
        %6285 = vmatprep.mubr.f32.mxu0 0.0
        %6286 = vmatmul.mubr.f32.gmra.mxu0 %v5968
        %v6287 = vpop.f32.mrf.mxu0
        %v6288 = vadd.f32 0.0, %v6287
        %v6289 = vpop.f32.mrf.mxu0
        %6290 = vmatprep.mubr.f32.mxu0 0.0
        %6291 = vmatmul.mubr.f32.gmra.mxu0 %v5971
        %v6292 = vpop.f32.mrf.mxu0
        %v6293 = vadd.f32 0.0, %v6292
        %v6294 = vpop.f32.mrf.mxu0
        %6295 = vmatprep.mubr.f32.mxu0 0.0
        %6296 = vmatmul.mubr.f32.gmra.mxu0 %v5974
        %v6297 = vpop.f32.mrf.mxu0
        %v6298 = vadd.f32 0.0, %v6297
        %v6299 = vpop.f32.mrf.mxu0
        %6300 = vmatprep.mubr.f32.mxu0 0.0
        %6301 = vmatmul.mubr.f32.gmra.mxu0 %v5977
        %v6302 = vpop.f32.mrf.mxu0
        %v6303 = vadd.f32 0.0, %v6302
        %v6304 = vpop.f32.mrf.mxu0
        %6305 = vmatprep.mubr.f32.mxu0 0.0
        %6306 = vmatmul.mubr.f32.gmra.mxu0 %v5980
        %v6307 = vpop.f32.mrf.mxu0
        %v6308 = vadd.f32 0.0, %v6307
        %v6309 = vpop.f32.mrf.mxu0
        %6310 = vmatprep.mubr.f32.mxu0 0.0
        %6311 = vmatmul.mubr.f32.gmra.mxu0 %v5983
        %v6312 = vpop.f32.mrf.mxu0
        %v6313 = vadd.f32 0.0, %v6312
        %v6314 = vpop.f32.mrf.mxu0
        %6315 = vmatprep.mubr.f32.mxu0 0.0
        %6316 = vmatmul.mubr.f32.gmra.mxu0 %v5986
        %v6317 = vpop.f32.mrf.mxu0
        %v6318 = vadd.f32 0.0, %v6317
        %v6319 = vpop.f32.mrf.mxu0
        %6320 = vmatprep.mubr.f32.mxu0 0.0
        %6321 = vmatmul.mubr.f32.gmra.mxu0 %v5989
        %v6322 = vpop.f32.mrf.mxu0
        %v6323 = vadd.f32 0.0, %v6322
        %v6324 = vpop.f32.mrf.mxu0
        %6325 = vmatprep.mubr.f32.mxu0 0.0
        %6326 = vmatmul.mubr.f32.gmra.mxu0 %v5992
        %v6327 = vpop.f32.mrf.mxu0
        %v6328 = vadd.f32 0.0, %v6327
        %v6329 = vpop.f32.mrf.mxu0
        %6330 = vmatprep.mubr.f32.mxu0 0.0
        %6331 = vmatmul.mubr.f32.gmra.mxu0 %v5995
        %v6332 = vpop.f32.mrf.mxu0
        %v6333 = vadd.f32 0.0, %v6332
        %v6334 = vpop.f32.mrf.mxu0
        %6335 = vmatprep.mubr.f32.mxu0 0.0
        %6336 = vmatmul.mubr.f32.gmra.mxu0 %v5998
        %v6337 = vpop.f32.mrf.mxu0
        %v6338 = vadd.f32 0.0, %v6337
        %v6339 = vpop.f32.mrf.mxu0
        %6340 = vmatprep.mubr.f32.mxu0 0.0
        %6341 = vmatmul.mubr.f32.gmra.mxu0 %v6001
        %v6342 = vpop.f32.mrf.mxu0
        %v6343 = vadd.f32 0.0, %v6342
        %v6344 = vpop.f32.mrf.mxu0
        %6345 = vmatprep.mubr.f32.mxu0 0.0
        %6346 = vmatmul.mubr.f32.gmra.mxu0 %v6004
        %v6347 = vpop.f32.mrf.mxu0
        %v6348 = vadd.f32 0.0, %v6347
        %v6349 = vpop.f32.mrf.mxu0
        %6350 = vmatprep.mubr.f32.mxu0 0.0
        %6351 = vmatmul.mubr.f32.gmra.mxu0 %v6007
        %v6352 = vpop.f32.mrf.mxu0
        %v6353 = vadd.f32 0.0, %v6352
        %v6354 = vpop.f32.mrf.mxu0
        %6355 = vmatprep.mubr.f32.mxu0 0.0
        %6356 = vmatmul.mubr.f32.gmra.mxu0 %v6010
        %v6357 = vpop.f32.mrf.mxu0
        %v6358 = vadd.f32 0.0, %v6357
        %v6359 = vpop.f32.mrf.mxu0
        %6360 = vmatprep.mubr.f32.mxu0 0.0
        %6361 = vmatmul.mubr.f32.gmra.mxu0 %v6013
        %v6362 = vpop.f32.mrf.mxu0
        %v6363 = vadd.f32 0.0, %v6362
        %v6364 = vpop.f32.mrf.mxu0
        %6365 = vmatprep.mubr.f32.mxu0 0.0
        %6366 = vmatmul.mubr.f32.gmra.mxu0 %v6016
        %v6367 = vpop.f32.mrf.mxu0
        %v6368 = vadd.f32 0.0, %v6367
        %v6369 = vpop.f32.mrf.mxu0
        %6370 = vmatprep.mubr.f32.mxu0 0.0
        %6371 = vmatmul.mubr.f32.gmra.mxu0 %v6019
        %v6372 = vpop.f32.mrf.mxu0
        %v6373 = vadd.f32 0.0, %v6372
        %v6374 = vpop.f32.mrf.mxu0
        %6375 = vmatprep.mubr.f32.mxu0 0.0
        %6376 = vmatmul.mubr.f32.gmra.mxu0 %v6022
        %v6377 = vpop.f32.mrf.mxu0
        %v6378 = vadd.f32 0.0, %v6377
        %v6379 = vpop.f32.mrf.mxu0
        %6380 = vmatprep.mubr.f32.mxu0 0.0
        %6381 = vmatmul.mubr.f32.gmra.mxu0 %v6025
        %v6382 = vpop.f32.mrf.mxu0
        %v6383 = vadd.f32 0.0, %v6382
        %v6384 = vpop.f32.mrf.mxu0
        %6385 = vmatprep.mubr.f32.mxu0 0.0
        %6386 = vmatmul.mubr.f32.gmra.mxu0 %v6028
        %v6387 = vpop.f32.mrf.mxu0
        %v6388 = vadd.f32 0.0, %v6387
        %v6389 = vpop.f32.mrf.mxu0
        %6390 = vmatprep.mubr.f32.mxu0 0.0
        %6391 = vmatmul.mubr.f32.gmra.mxu0 %v6031
        %v6392 = vpop.f32.mrf.mxu0
        %v6393 = vadd.f32 0.0, %v6392
        %v6394 = vpop.f32.mrf.mxu0
        %6395 = vmatprep.mubr.f32.mxu0 0.0
        %6396 = vmatmul.mubr.f32.gmra.mxu0 %v6034
        %v6397 = vpop.f32.mrf.mxu0
        %v6398 = vadd.f32 0.0, %v6397
        %v6399 = vpop.f32.mrf.mxu0
        %6400 = vmatprep.mubr.f32.mxu0 0.0
        %6401 = vmatmul.mubr.f32.gmra.mxu0 %v6037
        %v6402 = vpop.f32.mrf.mxu0
        %v6403 = vadd.f32 0.0, %v6402
        %v6404 = vpop.f32.mrf.mxu0
        %6405 = vmatprep.mubr.f32.mxu0 0.0
        %6406 = vmatmul.mubr.f32.gmra.mxu0 %v6040
        %v6407 = vpop.f32.mrf.mxu0
        %v6408 = vadd.f32 0.0, %v6407
        %v6409 = vpop.f32.mrf.mxu0
        %6410 = vmatprep.mubr.f32.mxu0 0.0
        %6411 = vmatmul.mubr.f32.gmra.mxu0 %v6043
        %v6412 = vpop.f32.mrf.mxu0
        %v6413 = vadd.f32 0.0, %v6412
        %v6414 = vpop.f32.mrf.mxu0
        %6415 = vmatprep.mubr.f32.mxu0 0.0
        %6416 = vmatmul.mubr.f32.gmra.mxu0 %v6046
        %v6417 = vpop.f32.mrf.mxu0
        %v6418 = vadd.f32 0.0, %v6417
        %v6419 = vpop.f32.mrf.mxu0
        %6420 = vmatprep.mubr.f32.mxu0 0.0
        %6421 = vmatmul.mubr.f32.gmra.mxu0 %v6049
        %v6422 = vpop.f32.mrf.mxu0
        %v6423 = vadd.f32 0.0, %v6422
        %v6424 = vpop.f32.mrf.mxu0
        %6425 = vmatprep.mubr.f32.mxu0 0.0
        %6426 = vmatmul.mubr.f32.gmra.mxu0 %v6052
        %v6427 = vpop.f32.mrf.mxu0
        %v6428 = vadd.f32 0.0, %v6427
        %v6429 = vpop.f32.mrf.mxu0
        %6430 = vmatprep.mubr.f32.mxu0 0.0
        %6431 = vmatmul.mubr.f32.gmra.mxu0 %v6055
        %v6432 = vpop.f32.mrf.mxu0
        %v6433 = vadd.f32 0.0, %v6432
        %v6434 = vpop.f32.mrf.mxu0
        %6435 = vmatprep.mubr.f32.mxu0 0.0
        %6436 = vmatmul.mubr.f32.gmra.mxu0 %v6058
        %v6437 = vpop.f32.mrf.mxu0
        %v6438 = vadd.f32 0.0, %v6437
        %v6439 = vpop.f32.mrf.mxu0
        %6440 = vmatprep.mubr.f32.mxu0 0.0
        %6441 = vmatmul.mubr.f32.gmra.mxu0 %v6061
        %v6442 = vpop.f32.mrf.mxu0
        %v6443 = vadd.f32 0.0, %v6442
        %v6444 = vpop.f32.mrf.mxu0
        %6445 = vmatprep.mubr.f32.mxu0 0.0
        %6446 = vmatmul.mubr.f32.gmra.mxu0 %v6064
        %v6447 = vpop.f32.mrf.mxu0
        %v6448 = vadd.f32 0.0, %v6447
        %v6449 = vpop.f32.mrf.mxu0
        %6450 = vdwg.mxu0
        %v6451 = vld [vmem:[%s467] sm:$0xff]
        %v6452 = vld [vmem:[%s467 + $0x8] sm:$0xff]
        %v6453 = vld [vmem:[%s467 + $0x10] sm:$0xff]
        %v6454 = vld [vmem:[%s467 + $0x18] sm:$0xff]
        %v6455 = vld [vmem:[%s467 + $0x20] sm:$0xff]
        %v6456 = vld [vmem:[%s467 + $0x28] sm:$0xff]
        %v6457 = vld [vmem:[%s467 + $0x30] sm:$0xff]
        %v6458 = vld [vmem:[%s467 + $0x38] sm:$0xff]
        %v6459 = vld [vmem:[%s467 + $0x40] sm:$0xff]
        %v6460 = vld [vmem:[%s467 + $0x48] sm:$0xff]
        %v6461 = vld [vmem:[%s467 + $0x50] sm:$0xff]
        %v6462 = vld [vmem:[%s467 + $0x58] sm:$0xff]
        %v6463 = vld [vmem:[%s467 + $0x60] sm:$0xff]
        %v6464 = vld [vmem:[%s467 + $0x68] sm:$0xff]
        %v6465 = vld [vmem:[%s467 + $0x70] sm:$0xff]
        %v6466 = vld [vmem:[%s467 + $0x78] sm:$0xff]
        %v6467 = vld [vmem:[%s467 + $0x80] sm:$0xff]
        %v6468 = vld [vmem:[%s467 + $0x88] sm:$0xff]
        %v6469 = vld [vmem:[%s467 + $0x90] sm:$0xff]
        %v6470 = vld [vmem:[%s467 + $0x98] sm:$0xff]
        %v6471 = vld [vmem:[%s467 + $0xa0] sm:$0xff]
        %v6472 = vld [vmem:[%s467 + $0xa8] sm:$0xff]
        %v6473 = vld [vmem:[%s467 + $0xb0] sm:$0xff]
        %v6474 = vld [vmem:[%s467 + $0xb8] sm:$0xff]
        %v6475 = vld [vmem:[%s467 + $0xc0] sm:$0xff]
        %v6476 = vld [vmem:[%s467 + $0xc8] sm:$0xff]
        %v6477 = vld [vmem:[%s467 + $0xd0] sm:$0xff]
        %v6478 = vld [vmem:[%s467 + $0xd8] sm:$0xff]
        %v6479 = vld [vmem:[%s467 + $0xe0] sm:$0xff]
        %v6480 = vld [vmem:[%s467 + $0xe8] sm:$0xff]
        %v6481 = vld [vmem:[%s467 + $0xf0] sm:$0xff]
        %v6482 = vld [vmem:[%s467 + $0xf8] sm:$0xff]
        %v6483 = vld [vmem:[%s467 + $0x100] sm:$0xff]
        %v6484 = vld [vmem:[%s467 + $0x108] sm:$0xff]
        %v6485 = vld [vmem:[%s467 + $0x110] sm:$0xff]
        %v6486 = vld [vmem:[%s467 + $0x118] sm:$0xff]
        %v6487 = vld [vmem:[%s467 + $0x120] sm:$0xff]
        %v6488 = vld [vmem:[%s467 + $0x128] sm:$0xff]
        %v6489 = vld [vmem:[%s467 + $0x130] sm:$0xff]
        %v6490 = vld [vmem:[%s467 + $0x138] sm:$0xff]
        %v6491 = vld [vmem:[%s467 + $0x140] sm:$0xff]
        %v6492 = vld [vmem:[%s467 + $0x148] sm:$0xff]
        %v6493 = vld [vmem:[%s467 + $0x150] sm:$0xff]
        %v6494 = vld [vmem:[%s467 + $0x158] sm:$0xff]
        %v6495 = vld [vmem:[%s467 + $0x160] sm:$0xff]
        %v6496 = vld [vmem:[%s467 + $0x168] sm:$0xff]
        %v6497 = vld [vmem:[%s467 + $0x170] sm:$0xff]
        %v6498 = vld [vmem:[%s467 + $0x178] sm:$0xff]
        %v6499 = vld [vmem:[%s467 + $0x180] sm:$0xff]
        %v6500 = vld [vmem:[%s467 + $0x188] sm:$0xff]
        %v6501 = vld [vmem:[%s467 + $0x190] sm:$0xff]
        %v6502 = vld [vmem:[%s467 + $0x198] sm:$0xff]
        %v6503 = vld [vmem:[%s467 + $0x1a0] sm:$0xff]
        %v6504 = vld [vmem:[%s467 + $0x1a8] sm:$0xff]
        %v6505 = vld [vmem:[%s467 + $0x1b0] sm:$0xff]
        %v6506 = vld [vmem:[%s467 + $0x1b8] sm:$0xff]
        %v6507 = vld [vmem:[%s467 + $0x1c0] sm:$0xff]
        %v6508 = vld [vmem:[%s467 + $0x1c8] sm:$0xff]
        %v6509 = vld [vmem:[%s467 + $0x1d0] sm:$0xff]
        %v6510 = vld [vmem:[%s467 + $0x1d8] sm:$0xff]
        %v6511 = vld [vmem:[%s467 + $0x1e0] sm:$0xff]
        %v6512 = vld [vmem:[%s467 + $0x1e8] sm:$0xff]
        %v6513 = vld [vmem:[%s467 + $0x1f0] sm:$0xff]
        %v6514 = vld [vmem:[%s467 + $0x1f8] sm:$0xff]
        %v6516 = vsel %vm603, %v6451, 0
        %v6519 = vsel %vm603, %v6452, 0
        %v6522 = vsel %vm603, %v6453, 0
        %v6525 = vsel %vm603, %v6454, 0
        %v6528 = vsel %vm603, %v6455, 0
        %v6531 = vsel %vm603, %v6456, 0
        %v6534 = vsel %vm603, %v6457, 0
        %v6537 = vsel %vm603, %v6458, 0
        %v6540 = vsel %vm603, %v6459, 0
        %v6543 = vsel %vm603, %v6460, 0
        %v6546 = vsel %vm603, %v6461, 0
        %v6549 = vsel %vm603, %v6462, 0
        %v6552 = vsel %vm603, %v6463, 0
        %v6555 = vsel %vm603, %v6464, 0
        %v6558 = vsel %vm603, %v6465, 0
        %v6561 = vsel %vm603, %v6466, 0
        %v6564 = vsel %vm603, %v6467, 0
        %v6567 = vsel %vm603, %v6468, 0
        %v6570 = vsel %vm603, %v6469, 0
        %v6573 = vsel %vm603, %v6470, 0
        %v6576 = vsel %vm603, %v6471, 0
        %v6579 = vsel %vm603, %v6472, 0
        %v6582 = vsel %vm603, %v6473, 0
        %v6585 = vsel %vm603, %v6474, 0
        %v6588 = vsel %vm603, %v6475, 0
        %v6591 = vsel %vm603, %v6476, 0
        %v6594 = vsel %vm603, %v6477, 0
        %v6597 = vsel %vm603, %v6478, 0
        %v6600 = vsel %vm603, %v6479, 0
        %v6603 = vsel %vm603, %v6480, 0
        %v6606 = vsel %vm603, %v6481, 0
        %v6609 = vsel %vm603, %v6482, 0
        %v6612 = vsel %vm603, %v6483, 0
        %v6615 = vsel %vm603, %v6484, 0
        %v6618 = vsel %vm603, %v6485, 0
        %v6621 = vsel %vm603, %v6486, 0
        %v6624 = vsel %vm603, %v6487, 0
        %v6627 = vsel %vm603, %v6488, 0
        %v6630 = vsel %vm603, %v6489, 0
        %v6633 = vsel %vm603, %v6490, 0
        %v6636 = vsel %vm603, %v6491, 0
        %v6639 = vsel %vm603, %v6492, 0
        %v6642 = vsel %vm603, %v6493, 0
        %v6645 = vsel %vm603, %v6494, 0
        %v6648 = vsel %vm603, %v6495, 0
        %v6651 = vsel %vm603, %v6496, 0
        %v6654 = vsel %vm603, %v6497, 0
        %v6657 = vsel %vm603, %v6498, 0
        %v6660 = vsel %vm603, %v6499, 0
        %v6663 = vsel %vm603, %v6500, 0
        %v6666 = vsel %vm603, %v6501, 0
        %v6669 = vsel %vm603, %v6502, 0
        %v6672 = vsel %vm603, %v6503, 0
        %v6675 = vsel %vm603, %v6504, 0
        %v6678 = vsel %vm603, %v6505, 0
        %v6681 = vsel %vm603, %v6506, 0
        %v6684 = vsel %vm603, %v6507, 0
        %v6687 = vsel %vm603, %v6508, 0
        %v6690 = vsel %vm603, %v6509, 0
        %v6693 = vsel %vm603, %v6510, 0
        %v6696 = vsel %vm603, %v6511, 0
        %v6699 = vsel %vm603, %v6512, 0
        %v6702 = vsel %vm603, %v6513, 0
        %v6705 = vsel %vm603, %v6514, 0
        %6707 = vmatprep.subr.mxu0 0.0
        %6708 = vmatpush1.msra.mxu0 0.0
        %6709 = vmatprep.subr.mxu0 0.0
        %6710 = vmatpush1.msra.mxu0 0.0
        %6711 = vmatprep.subr.mxu0 0.0
        %6712 = vmatpush1.msra.mxu0 0.0
        %6713 = vmatprep.subr.mxu0 0.0
        %6714 = vmatpush1.msra.mxu0 0.0
        %6715 = vmatprep.subr.mxu0 0.0
        %6716 = vmatpush1.msra.mxu0 0.0
        %6717 = vmatprep.subr.mxu0 0.0
        %6718 = vmatpush1.msra.mxu0 0.0
        %6719 = vmatprep.subr.mxu0 0.0
        %6720 = vmatpush1.msra.mxu0 0.0
        %6721 = vmatprep.subr.mxu0 0.0
        %6722 = vmatpush1.msra.mxu0 0.0
        %6723 = vmatprep.subr.mxu0 0.0
        %6724 = vmatpush1.msra.mxu0 0.0
        %6725 = vmatprep.subr.mxu0 0.0
        %6726 = vmatpush1.msra.mxu0 0.0
        %6727 = vmatprep.subr.mxu0 0.0
        %6728 = vmatpush1.msra.mxu0 0.0
        %6729 = vmatprep.subr.mxu0 0.0
        %6730 = vmatpush1.msra.mxu0 0.0
        %6731 = vmatprep.subr.mxu0 0.0
        %6732 = vmatpush1.msra.mxu0 0.0
        %6733 = vmatprep.subr.mxu0 0.0
        %6734 = vmatpush1.msra.mxu0 0.0
        %6735 = vmatprep.subr.mxu0 0.0
        %6736 = vmatpush1.msra.mxu0 0.0
        %6737 = vmatprep.subr.mxu0 0.0
        %6738 = vmatpush1.msra.mxu0 %v798
        %6739 = vmatprep.subr.mxu0 0.0
        %6740 = vmatpush2.msra.mxu0 0.0
        %6741 = vmatprep.subr.mxu0 0.0
        %6742 = vmatpush2.msra.mxu0 0.0
        %6743 = vmatprep.subr.mxu0 0.0
        %6744 = vmatpush2.msra.mxu0 0.0
        %6745 = vmatprep.subr.mxu0 0.0
        %6746 = vmatpush2.msra.mxu0 0.0
        %6747 = vmatprep.subr.mxu0 0.0
        %6748 = vmatpush2.msra.mxu0 0.0
        %6749 = vmatprep.subr.mxu0 0.0
        %6750 = vmatpush2.msra.mxu0 0.0
        %6751 = vmatprep.subr.mxu0 0.0
        %6752 = vmatpush2.msra.mxu0 0.0
        %6753 = vmatprep.subr.mxu0 0.0
        %6754 = vmatpush2.msra.mxu0 0.0
        %6755 = vmatprep.subr.mxu0 0.0
        %6756 = vmatpush2.msra.mxu0 0.0
        %6757 = vmatprep.subr.mxu0 0.0
        %6758 = vmatpush2.msra.mxu0 0.0
        %6759 = vmatprep.subr.mxu0 0.0
        %6760 = vmatpush2.msra.mxu0 0.0
        %6761 = vmatprep.subr.mxu0 0.0
        %6762 = vmatpush2.msra.mxu0 0.0
        %6763 = vmatprep.subr.mxu0 0.0
        %6764 = vmatpush2.msra.mxu0 0.0
        %6765 = vmatprep.subr.mxu0 0.0
        %6766 = vmatpush2.msra.mxu0 0.0
        %6767 = vmatprep.subr.mxu0 0.0
        %6768 = vmatpush2.msra.mxu0 0.0
        %6769 = vmatprep.subr.mxu0 0.0
        %6770 = vmatpush2.msra.mxu0 0.0
        %6771 = vmatprep.mubr.f32.mxu0 0.0
        %6772 = vmatmul.mubr.f32.gmra.mxu0 %v6516
        %v6773 = vpop.f32.mrf.mxu0
        %v6774 = vadd.f32 0.0, %v6773
        %v6775 = vpop.f32.mrf.mxu0
        %6776 = vmatprep.mubr.f32.mxu0 0.0
        %6777 = vmatmul.mubr.f32.gmra.mxu0 %v6519
        %v6778 = vpop.f32.mrf.mxu0
        %v6779 = vadd.f32 0.0, %v6778
        %v6780 = vpop.f32.mrf.mxu0
        %6781 = vmatprep.mubr.f32.mxu0 0.0
        %6782 = vmatmul.mubr.f32.gmra.mxu0 %v6522
        %v6783 = vpop.f32.mrf.mxu0
        %v6784 = vadd.f32 0.0, %v6783
        %v6785 = vpop.f32.mrf.mxu0
        %6786 = vmatprep.mubr.f32.mxu0 0.0
        %6787 = vmatmul.mubr.f32.gmra.mxu0 %v6525
        %v6788 = vpop.f32.mrf.mxu0
        %v6789 = vadd.f32 0.0, %v6788
        %v6790 = vpop.f32.mrf.mxu0
        %6791 = vmatprep.mubr.f32.mxu0 0.0
        %6792 = vmatmul.mubr.f32.gmra.mxu0 %v6528
        %v6793 = vpop.f32.mrf.mxu0
        %v6794 = vadd.f32 0.0, %v6793
        %v6795 = vpop.f32.mrf.mxu0
        %6796 = vmatprep.mubr.f32.mxu0 0.0
        %6797 = vmatmul.mubr.f32.gmra.mxu0 %v6531
        %v6798 = vpop.f32.mrf.mxu0
        %v6799 = vadd.f32 0.0, %v6798
        %v6800 = vpop.f32.mrf.mxu0
        %6801 = vmatprep.mubr.f32.mxu0 0.0
        %6802 = vmatmul.mubr.f32.gmra.mxu0 %v6534
        %v6803 = vpop.f32.mrf.mxu0
        %v6804 = vadd.f32 0.0, %v6803
        %v6805 = vpop.f32.mrf.mxu0
        %6806 = vmatprep.mubr.f32.mxu0 0.0
        %6807 = vmatmul.mubr.f32.gmra.mxu0 %v6537
        %v6808 = vpop.f32.mrf.mxu0
        %v6809 = vadd.f32 0.0, %v6808
        %v6810 = vpop.f32.mrf.mxu0
        %6811 = vmatprep.mubr.f32.mxu0 0.0
        %6812 = vmatmul.mubr.f32.gmra.mxu0 %v6540
        %v6813 = vpop.f32.mrf.mxu0
        %v6814 = vadd.f32 0.0, %v6813
        %v6815 = vpop.f32.mrf.mxu0
        %6816 = vmatprep.mubr.f32.mxu0 0.0
        %6817 = vmatmul.mubr.f32.gmra.mxu0 %v6543
        %v6818 = vpop.f32.mrf.mxu0
        %v6819 = vadd.f32 0.0, %v6818
        %v6820 = vpop.f32.mrf.mxu0
        %6821 = vmatprep.mubr.f32.mxu0 0.0
        %6822 = vmatmul.mubr.f32.gmra.mxu0 %v6546
        %v6823 = vpop.f32.mrf.mxu0
        %v6824 = vadd.f32 0.0, %v6823
        %v6825 = vpop.f32.mrf.mxu0
        %6826 = vmatprep.mubr.f32.mxu0 0.0
        %6827 = vmatmul.mubr.f32.gmra.mxu0 %v6549
        %v6828 = vpop.f32.mrf.mxu0
        %v6829 = vadd.f32 0.0, %v6828
        %v6830 = vpop.f32.mrf.mxu0
        %6831 = vmatprep.mubr.f32.mxu0 0.0
        %6832 = vmatmul.mubr.f32.gmra.mxu0 %v6552
        %v6833 = vpop.f32.mrf.mxu0
        %v6834 = vadd.f32 0.0, %v6833
        %v6835 = vpop.f32.mrf.mxu0
        %6836 = vmatprep.mubr.f32.mxu0 0.0
        %6837 = vmatmul.mubr.f32.gmra.mxu0 %v6555
        %v6838 = vpop.f32.mrf.mxu0
        %v6839 = vadd.f32 0.0, %v6838
        %v6840 = vpop.f32.mrf.mxu0
        %6841 = vmatprep.mubr.f32.mxu0 0.0
        %6842 = vmatmul.mubr.f32.gmra.mxu0 %v6558
        %v6843 = vpop.f32.mrf.mxu0
        %v6844 = vadd.f32 0.0, %v6843
        %v6845 = vpop.f32.mrf.mxu0
        %6846 = vmatprep.mubr.f32.mxu0 0.0
        %6847 = vmatmul.mubr.f32.gmra.mxu0 %v6561
        %v6848 = vpop.f32.mrf.mxu0
        %v6849 = vadd.f32 0.0, %v6848
        %v6850 = vpop.f32.mrf.mxu0
        %6851 = vmatprep.mubr.f32.mxu0 0.0
        %6852 = vmatmul.mubr.f32.gmra.mxu0 %v6564
        %v6853 = vpop.f32.mrf.mxu0
        %v6854 = vadd.f32 0.0, %v6853
        %v6855 = vpop.f32.mrf.mxu0
        %6856 = vmatprep.mubr.f32.mxu0 0.0
        %6857 = vmatmul.mubr.f32.gmra.mxu0 %v6567
        %v6858 = vpop.f32.mrf.mxu0
        %v6859 = vadd.f32 0.0, %v6858
        %v6860 = vpop.f32.mrf.mxu0
        %6861 = vmatprep.mubr.f32.mxu0 0.0
        %6862 = vmatmul.mubr.f32.gmra.mxu0 %v6570
        %v6863 = vpop.f32.mrf.mxu0
        %v6864 = vadd.f32 0.0, %v6863
        %v6865 = vpop.f32.mrf.mxu0
        %6866 = vmatprep.mubr.f32.mxu0 0.0
        %6867 = vmatmul.mubr.f32.gmra.mxu0 %v6573
        %v6868 = vpop.f32.mrf.mxu0
        %v6869 = vadd.f32 0.0, %v6868
        %v6870 = vpop.f32.mrf.mxu0
        %6871 = vmatprep.mubr.f32.mxu0 0.0
        %6872 = vmatmul.mubr.f32.gmra.mxu0 %v6576
        %v6873 = vpop.f32.mrf.mxu0
        %v6874 = vadd.f32 0.0, %v6873
        %v6875 = vpop.f32.mrf.mxu0
        %6876 = vmatprep.mubr.f32.mxu0 0.0
        %6877 = vmatmul.mubr.f32.gmra.mxu0 %v6579
        %v6878 = vpop.f32.mrf.mxu0
        %v6879 = vadd.f32 0.0, %v6878
        %v6880 = vpop.f32.mrf.mxu0
        %6881 = vmatprep.mubr.f32.mxu0 0.0
        %6882 = vmatmul.mubr.f32.gmra.mxu0 %v6582
        %v6883 = vpop.f32.mrf.mxu0
        %v6884 = vadd.f32 0.0, %v6883
        %v6885 = vpop.f32.mrf.mxu0
        %6886 = vmatprep.mubr.f32.mxu0 0.0
        %6887 = vmatmul.mubr.f32.gmra.mxu0 %v6585
        %v6888 = vpop.f32.mrf.mxu0
        %v6889 = vadd.f32 0.0, %v6888
        %v6890 = vpop.f32.mrf.mxu0
        %6891 = vmatprep.mubr.f32.mxu0 0.0
        %6892 = vmatmul.mubr.f32.gmra.mxu0 %v6588
        %v6893 = vpop.f32.mrf.mxu0
        %v6894 = vadd.f32 0.0, %v6893
        %v6895 = vpop.f32.mrf.mxu0
        %6896 = vmatprep.mubr.f32.mxu0 0.0
        %6897 = vmatmul.mubr.f32.gmra.mxu0 %v6591
        %v6898 = vpop.f32.mrf.mxu0
        %v6899 = vadd.f32 0.0, %v6898
        %v6900 = vpop.f32.mrf.mxu0
        %6901 = vmatprep.mubr.f32.mxu0 0.0
        %6902 = vmatmul.mubr.f32.gmra.mxu0 %v6594
        %v6903 = vpop.f32.mrf.mxu0
        %v6904 = vadd.f32 0.0, %v6903
        %v6905 = vpop.f32.mrf.mxu0
        %6906 = vmatprep.mubr.f32.mxu0 0.0
        %6907 = vmatmul.mubr.f32.gmra.mxu0 %v6597
        %v6908 = vpop.f32.mrf.mxu0
        %v6909 = vadd.f32 0.0, %v6908
        %v6910 = vpop.f32.mrf.mxu0
        %6911 = vmatprep.mubr.f32.mxu0 0.0
        %6912 = vmatmul.mubr.f32.gmra.mxu0 %v6600
        %v6913 = vpop.f32.mrf.mxu0
        %v6914 = vadd.f32 0.0, %v6913
        %v6915 = vpop.f32.mrf.mxu0
        %6916 = vmatprep.mubr.f32.mxu0 0.0
        %6917 = vmatmul.mubr.f32.gmra.mxu0 %v6603
        %v6918 = vpop.f32.mrf.mxu0
        %v6919 = vadd.f32 0.0, %v6918
        %v6920 = vpop.f32.mrf.mxu0
        %6921 = vmatprep.mubr.f32.mxu0 0.0
        %6922 = vmatmul.mubr.f32.gmra.mxu0 %v6606
        %v6923 = vpop.f32.mrf.mxu0
        %v6924 = vadd.f32 0.0, %v6923
        %v6925 = vpop.f32.mrf.mxu0
        %6926 = vmatprep.mubr.f32.mxu0 0.0
        %6927 = vmatmul.mubr.f32.gmra.mxu0 %v6609
        %v6928 = vpop.f32.mrf.mxu0
        %v6929 = vadd.f32 0.0, %v6928
        %v6930 = vpop.f32.mrf.mxu0
        %6931 = vmatprep.mubr.f32.mxu0 0.0
        %6932 = vmatmul.mubr.f32.gmra.mxu0 %v6612
        %v6933 = vpop.f32.mrf.mxu0
        %v6934 = vadd.f32 0.0, %v6933
        %v6935 = vpop.f32.mrf.mxu0
        %6936 = vmatprep.mubr.f32.mxu0 0.0
        %6937 = vmatmul.mubr.f32.gmra.mxu0 %v6615
        %v6938 = vpop.f32.mrf.mxu0
        %v6939 = vadd.f32 0.0, %v6938
        %v6940 = vpop.f32.mrf.mxu0
        %6941 = vmatprep.mubr.f32.mxu0 0.0
        %6942 = vmatmul.mubr.f32.gmra.mxu0 %v6618
        %v6943 = vpop.f32.mrf.mxu0
        %v6944 = vadd.f32 0.0, %v6943
        %v6945 = vpop.f32.mrf.mxu0
        %6946 = vmatprep.mubr.f32.mxu0 0.0
        %6947 = vmatmul.mubr.f32.gmra.mxu0 %v6621
        %v6948 = vpop.f32.mrf.mxu0
        %v6949 = vadd.f32 0.0, %v6948
        %v6950 = vpop.f32.mrf.mxu0
        %6951 = vmatprep.mubr.f32.mxu0 0.0
        %6952 = vmatmul.mubr.f32.gmra.mxu0 %v6624
        %v6953 = vpop.f32.mrf.mxu0
        %v6954 = vadd.f32 0.0, %v6953
        %v6955 = vpop.f32.mrf.mxu0
        %6956 = vmatprep.mubr.f32.mxu0 0.0
        %6957 = vmatmul.mubr.f32.gmra.mxu0 %v6627
        %v6958 = vpop.f32.mrf.mxu0
        %v6959 = vadd.f32 0.0, %v6958
        %v6960 = vpop.f32.mrf.mxu0
        %6961 = vmatprep.mubr.f32.mxu0 0.0
        %6962 = vmatmul.mubr.f32.gmra.mxu0 %v6630
        %v6963 = vpop.f32.mrf.mxu0
        %v6964 = vadd.f32 0.0, %v6963
        %v6965 = vpop.f32.mrf.mxu0
        %6966 = vmatprep.mubr.f32.mxu0 0.0
        %6967 = vmatmul.mubr.f32.gmra.mxu0 %v6633
        %v6968 = vpop.f32.mrf.mxu0
        %v6969 = vadd.f32 0.0, %v6968
        %v6970 = vpop.f32.mrf.mxu0
        %6971 = vmatprep.mubr.f32.mxu0 0.0
        %6972 = vmatmul.mubr.f32.gmra.mxu0 %v6636
        %v6973 = vpop.f32.mrf.mxu0
        %v6974 = vadd.f32 0.0, %v6973
        %v6975 = vpop.f32.mrf.mxu0
        %6976 = vmatprep.mubr.f32.mxu0 0.0
        %6977 = vmatmul.mubr.f32.gmra.mxu0 %v6639
        %v6978 = vpop.f32.mrf.mxu0
        %v6979 = vadd.f32 0.0, %v6978
        %v6980 = vpop.f32.mrf.mxu0
        %6981 = vmatprep.mubr.f32.mxu0 0.0
        %6982 = vmatmul.mubr.f32.gmra.mxu0 %v6642
        %v6983 = vpop.f32.mrf.mxu0
        %v6984 = vadd.f32 0.0, %v6983
        %v6985 = vpop.f32.mrf.mxu0
        %6986 = vmatprep.mubr.f32.mxu0 0.0
        %6987 = vmatmul.mubr.f32.gmra.mxu0 %v6645
        %v6988 = vpop.f32.mrf.mxu0
        %v6989 = vadd.f32 0.0, %v6988
        %v6990 = vpop.f32.mrf.mxu0
        %6991 = vmatprep.mubr.f32.mxu0 0.0
        %6992 = vmatmul.mubr.f32.gmra.mxu0 %v6648
        %v6993 = vpop.f32.mrf.mxu0
        %v6994 = vadd.f32 0.0, %v6993
        %v6995 = vpop.f32.mrf.mxu0
        %6996 = vmatprep.mubr.f32.mxu0 0.0
        %6997 = vmatmul.mubr.f32.gmra.mxu0 %v6651
        %v6998 = vpop.f32.mrf.mxu0
        %v6999 = vadd.f32 0.0, %v6998
        %v7000 = vpop.f32.mrf.mxu0
        %7001 = vmatprep.mubr.f32.mxu0 0.0
        %7002 = vmatmul.mubr.f32.gmra.mxu0 %v6654
        %v7003 = vpop.f32.mrf.mxu0
        %v7004 = vadd.f32 0.0, %v7003
        %v7005 = vpop.f32.mrf.mxu0
        %7006 = vmatprep.mubr.f32.mxu0 0.0
        %7007 = vmatmul.mubr.f32.gmra.mxu0 %v6657
        %v7008 = vpop.f32.mrf.mxu0
        %v7009 = vadd.f32 0.0, %v7008
        %v7010 = vpop.f32.mrf.mxu0
        %7011 = vmatprep.mubr.f32.mxu0 0.0
        %7012 = vmatmul.mubr.f32.gmra.mxu0 %v6660
        %v7013 = vpop.f32.mrf.mxu0
        %v7014 = vadd.f32 0.0, %v7013
        %v7015 = vpop.f32.mrf.mxu0
        %7016 = vmatprep.mubr.f32.mxu0 0.0
        %7017 = vmatmul.mubr.f32.gmra.mxu0 %v6663
        %v7018 = vpop.f32.mrf.mxu0
        %v7019 = vadd.f32 0.0, %v7018
        %v7020 = vpop.f32.mrf.mxu0
        %7021 = vmatprep.mubr.f32.mxu0 0.0
        %7022 = vmatmul.mubr.f32.gmra.mxu0 %v6666
        %v7023 = vpop.f32.mrf.mxu0
        %v7024 = vadd.f32 0.0, %v7023
        %v7025 = vpop.f32.mrf.mxu0
        %7026 = vmatprep.mubr.f32.mxu0 0.0
        %7027 = vmatmul.mubr.f32.gmra.mxu0 %v6669
        %v7028 = vpop.f32.mrf.mxu0
        %v7029 = vadd.f32 0.0, %v7028
        %v7030 = vpop.f32.mrf.mxu0
        %7031 = vmatprep.mubr.f32.mxu0 0.0
        %7032 = vmatmul.mubr.f32.gmra.mxu0 %v6672
        %v7033 = vpop.f32.mrf.mxu0
        %v7034 = vadd.f32 0.0, %v7033
        %v7035 = vpop.f32.mrf.mxu0
        %7036 = vmatprep.mubr.f32.mxu0 0.0
        %7037 = vmatmul.mubr.f32.gmra.mxu0 %v6675
        %v7038 = vpop.f32.mrf.mxu0
        %v7039 = vadd.f32 0.0, %v7038
        %v7040 = vpop.f32.mrf.mxu0
        %7041 = vmatprep.mubr.f32.mxu0 0.0
        %7042 = vmatmul.mubr.f32.gmra.mxu0 %v6678
        %v7043 = vpop.f32.mrf.mxu0
        %v7044 = vadd.f32 0.0, %v7043
        %v7045 = vpop.f32.mrf.mxu0
        %7046 = vmatprep.mubr.f32.mxu0 0.0
        %7047 = vmatmul.mubr.f32.gmra.mxu0 %v6681
        %v7048 = vpop.f32.mrf.mxu0
        %v7049 = vadd.f32 0.0, %v7048
        %v7050 = vpop.f32.mrf.mxu0
        %7051 = vmatprep.mubr.f32.mxu0 0.0
        %7052 = vmatmul.mubr.f32.gmra.mxu0 %v6684
        %v7053 = vpop.f32.mrf.mxu0
        %v7054 = vadd.f32 0.0, %v7053
        %v7055 = vpop.f32.mrf.mxu0
        %7056 = vmatprep.mubr.f32.mxu0 0.0
        %7057 = vmatmul.mubr.f32.gmra.mxu0 %v6687
        %v7058 = vpop.f32.mrf.mxu0
        %v7059 = vadd.f32 0.0, %v7058
        %v7060 = vpop.f32.mrf.mxu0
        %7061 = vmatprep.mubr.f32.mxu0 0.0
        %7062 = vmatmul.mubr.f32.gmra.mxu0 %v6690
        %v7063 = vpop.f32.mrf.mxu0
        %v7064 = vadd.f32 0.0, %v7063
        %v7065 = vpop.f32.mrf.mxu0
        %7066 = vmatprep.mubr.f32.mxu0 0.0
        %7067 = vmatmul.mubr.f32.gmra.mxu0 %v6693
        %v7068 = vpop.f32.mrf.mxu0
        %v7069 = vadd.f32 0.0, %v7068
        %v7070 = vpop.f32.mrf.mxu0
        %7071 = vmatprep.mubr.f32.mxu0 0.0
        %7072 = vmatmul.mubr.f32.gmra.mxu0 %v6696
        %v7073 = vpop.f32.mrf.mxu0
        %v7074 = vadd.f32 0.0, %v7073
        %v7075 = vpop.f32.mrf.mxu0
        %7076 = vmatprep.mubr.f32.mxu0 0.0
        %7077 = vmatmul.mubr.f32.gmra.mxu0 %v6699
        %v7078 = vpop.f32.mrf.mxu0
        %v7079 = vadd.f32 0.0, %v7078
        %v7080 = vpop.f32.mrf.mxu0
        %7081 = vmatprep.mubr.f32.mxu0 0.0
        %7082 = vmatmul.mubr.f32.gmra.mxu0 %v6702
        %v7083 = vpop.f32.mrf.mxu0
        %v7084 = vadd.f32 0.0, %v7083
        %v7085 = vpop.f32.mrf.mxu0
        %7086 = vmatprep.mubr.f32.mxu0 0.0
        %7087 = vmatmul.mubr.f32.gmra.mxu0 %v6705
        %v7088 = vpop.f32.mrf.mxu0
        %v7089 = vadd.f32 0.0, %v7088
        %v7090 = vpop.f32.mrf.mxu0
        %7091 = vdwg.mxu0
        %v7092 = vadd.f32 %v5743, %v6133
        %v7093 = vadd.f32 %v5744, %v6138
        %v7094 = vadd.f32 %v5745, %v6143
        %v7095 = vadd.f32 %v5746, %v6148
        %v7096 = vadd.f32 %v5747, %v6153
        %v7097 = vadd.f32 %v5748, %v6158
        %v7098 = vadd.f32 %v5749, %v6163
        %v7099 = vadd.f32 %v5750, %v6168
        %v7100 = vadd.f32 %v5751, %v6173
        %v7101 = vadd.f32 %v5752, %v6178
        %v7102 = vadd.f32 %v5753, %v6183
        %v7103 = vadd.f32 %v5754, %v6188
        %v7104 = vadd.f32 %v5755, %v6193
        %v7105 = vadd.f32 %v5756, %v6198
        %v7106 = vadd.f32 %v5757, %v6203
        %v7107 = vadd.f32 %v5758, %v6208
        %v7108 = vadd.f32 %v5759, %v6213
        %v7109 = vadd.f32 %v5760, %v6218
        %v7110 = vadd.f32 %v5761, %v6223
        %v7111 = vadd.f32 %v5762, %v6228
        %v7112 = vadd.f32 %v5763, %v6233
        %v7113 = vadd.f32 %v5764, %v6238
        %v7114 = vadd.f32 %v5765, %v6243
        %v7115 = vadd.f32 %v5766, %v6248
        %v7116 = vadd.f32 %v5767, %v6253
        %v7117 = vadd.f32 %v5768, %v6258
        %v7118 = vadd.f32 %v5769, %v6263
        %v7119 = vadd.f32 %v5770, %v6268
        %v7120 = vadd.f32 %v5771, %v6273
        %v7121 = vadd.f32 %v5772, %v6278
        %v7122 = vadd.f32 %v5773, %v6283
        %v7123 = vadd.f32 %v5774, %v6288
        %v7124 = vadd.f32 %v5775, %v6293
        %v7125 = vadd.f32 %v5776, %v6298
        %v7126 = vadd.f32 %v5777, %v6303
        %v7127 = vadd.f32 %v5778, %v6308
        %v7128 = vadd.f32 %v5779, %v6313
        %v7129 = vadd.f32 %v5780, %v6318
        %v7130 = vadd.f32 %v5781, %v6323
        %v7131 = vadd.f32 %v5782, %v6328
        %v7132 = vadd.f32 %v5783, %v6333
        %v7133 = vadd.f32 %v5784, %v6338
        %v7134 = vadd.f32 %v5785, %v6343
        %v7135 = vadd.f32 %v5786, %v6348
        %v7136 = vadd.f32 %v5787, %v6353
        %v7137 = vadd.f32 %v5788, %v6358
        %v7138 = vadd.f32 %v5789, %v6363
        %v7139 = vadd.f32 %v5790, %v6368
        %v7140 = vadd.f32 %v5791, %v6373
        %v7141 = vadd.f32 %v5792, %v6378
        %v7142 = vadd.f32 %v5793, %v6383
        %v7143 = vadd.f32 %v5794, %v6388
        %v7144 = vadd.f32 %v5795, %v6393
        %v7145 = vadd.f32 %v5796, %v6398
        %v7146 = vadd.f32 %v5797, %v6403
        %v7147 = vadd.f32 %v5798, %v6408
        %v7148 = vadd.f32 %v5799, %v6413
        %v7149 = vadd.f32 %v5800, %v6418
        %v7150 = vadd.f32 %v5801, %v6423
        %v7151 = vadd.f32 %v5802, %v6428
        %v7152 = vadd.f32 %v5803, %v6433
        %v7153 = vadd.f32 %v5804, %v6438
        %v7154 = vadd.f32 %v5805, %v6443
        %v7155 = vadd.f32 %v5806, %v6448
        %v7156 = vsub.f32 %v7092, %v6774
        %v7157 = vsub.f32 %v7093, %v6779
        %v7158 = vsub.f32 %v7094, %v6784
        %v7159 = vsub.f32 %v7095, %v6789
        %v7160 = vsub.f32 %v7096, %v6794
        %v7161 = vsub.f32 %v7097, %v6799
        %v7162 = vsub.f32 %v7098, %v6804
        %v7163 = vsub.f32 %v7099, %v6809
        %v7164 = vsub.f32 %v7100, %v6814
        %v7165 = vsub.f32 %v7101, %v6819
        %v7166 = vsub.f32 %v7102, %v6824
        %v7167 = vsub.f32 %v7103, %v6829
        %v7168 = vsub.f32 %v7104, %v6834
        %v7169 = vsub.f32 %v7105, %v6839
        %v7170 = vsub.f32 %v7106, %v6844
        %v7171 = vsub.f32 %v7107, %v6849
        %v7172 = vsub.f32 %v7108, %v6854
        %v7173 = vsub.f32 %v7109, %v6859
        %v7174 = vsub.f32 %v7110, %v6864
        %v7175 = vsub.f32 %v7111, %v6869
        %v7176 = vsub.f32 %v7112, %v6874
        %v7177 = vsub.f32 %v7113, %v6879
        %v7178 = vsub.f32 %v7114, %v6884
        %v7179 = vsub.f32 %v7115, %v6889
        %v7180 = vsub.f32 %v7116, %v6894
        %v7181 = vsub.f32 %v7117, %v6899
        %v7182 = vsub.f32 %v7118, %v6904
        %v7183 = vsub.f32 %v7119, %v6909
        %v7184 = vsub.f32 %v7120, %v6914
        %v7185 = vsub.f32 %v7121, %v6919
        %v7186 = vsub.f32 %v7122, %v6924
        %v7187 = vsub.f32 %v7123, %v6929
        %v7188 = vsub.f32 %v7124, %v6934
        %v7189 = vsub.f32 %v7125, %v6939
        %v7190 = vsub.f32 %v7126, %v6944
        %v7191 = vsub.f32 %v7127, %v6949
        %v7192 = vsub.f32 %v7128, %v6954
        %v7193 = vsub.f32 %v7129, %v6959
        %v7194 = vsub.f32 %v7130, %v6964
        %v7195 = vsub.f32 %v7131, %v6969
        %v7196 = vsub.f32 %v7132, %v6974
        %v7197 = vsub.f32 %v7133, %v6979
        %v7198 = vsub.f32 %v7134, %v6984
        %v7199 = vsub.f32 %v7135, %v6989
        %v7200 = vsub.f32 %v7136, %v6994
        %v7201 = vsub.f32 %v7137, %v6999
        %v7202 = vsub.f32 %v7138, %v7004
        %v7203 = vsub.f32 %v7139, %v7009
        %v7204 = vsub.f32 %v7140, %v7014
        %v7205 = vsub.f32 %v7141, %v7019
        %v7206 = vsub.f32 %v7142, %v7024
        %v7207 = vsub.f32 %v7143, %v7029
        %v7208 = vsub.f32 %v7144, %v7034
        %v7209 = vsub.f32 %v7145, %v7039
        %v7210 = vsub.f32 %v7146, %v7044
        %v7211 = vsub.f32 %v7147, %v7049
        %v7212 = vsub.f32 %v7148, %v7054
        %v7213 = vsub.f32 %v7149, %v7059
        %v7214 = vsub.f32 %v7150, %v7064
        %v7215 = vsub.f32 %v7151, %v7069
        %v7216 = vsub.f32 %v7152, %v7074
        %v7217 = vsub.f32 %v7153, %v7079
        %v7218 = vsub.f32 %v7154, %v7084
        %v7219 = vsub.f32 %v7155, %v7089
        %v7220 = vld [vmem:[%s7] sm:$0x1]
        %v7222 = vlaneseq
        %v7223 = vshrl.u32 %v7222, 7
        %v7224 = vsub.s32 0, %v7223
        %v7225 = vrot.slane %v7220, %v7224
        %v7227 = vadd.f32 %v7156, %v7225
        %v7228 = vadd.f32 %v7157, %v7225
        %v7229 = vadd.f32 %v7158, %v7225
        %v7230 = vadd.f32 %v7159, %v7225
        %v7231 = vadd.f32 %v7160, %v7225
        %v7232 = vadd.f32 %v7161, %v7225
        %v7233 = vadd.f32 %v7162, %v7225
        %v7234 = vadd.f32 %v7163, %v7225
        %v7235 = vadd.f32 %v7164, %v7225
        %v7236 = vadd.f32 %v7165, %v7225
        %v7237 = vadd.f32 %v7166, %v7225
        %v7238 = vadd.f32 %v7167, %v7225
        %v7239 = vadd.f32 %v7168, %v7225
        %v7240 = vadd.f32 %v7169, %v7225
        %v7241 = vadd.f32 %v7170, %v7225
        %v7242 = vadd.f32 %v7171, %v7225
        %v7243 = vadd.f32 %v7172, %v7225
        %v7244 = vadd.f32 %v7173, %v7225
        %v7245 = vadd.f32 %v7174, %v7225
        %v7246 = vadd.f32 %v7175, %v7225
        %v7247 = vadd.f32 %v7176, %v7225
        %v7248 = vadd.f32 %v7177, %v7225
        %v7249 = vadd.f32 %v7178, %v7225
        %v7250 = vadd.f32 %v7179, %v7225
        %v7251 = vadd.f32 %v7180, %v7225
        %v7252 = vadd.f32 %v7181, %v7225
        %v7253 = vadd.f32 %v7182, %v7225
        %v7254 = vadd.f32 %v7183, %v7225
        %v7255 = vadd.f32 %v7184, %v7225
        %v7256 = vadd.f32 %v7185, %v7225
        %v7257 = vadd.f32 %v7186, %v7225
        %v7258 = vadd.f32 %v7187, %v7225
        %v7259 = vadd.f32 %v7188, %v7225
        %v7260 = vadd.f32 %v7189, %v7225
        %v7261 = vadd.f32 %v7190, %v7225
        %v7262 = vadd.f32 %v7191, %v7225
        %v7263 = vadd.f32 %v7192, %v7225
        %v7264 = vadd.f32 %v7193, %v7225
        %v7265 = vadd.f32 %v7194, %v7225
        %v7266 = vadd.f32 %v7195, %v7225
        %v7267 = vadd.f32 %v7196, %v7225
        %v7268 = vadd.f32 %v7197, %v7225
        %v7269 = vadd.f32 %v7198, %v7225
        %v7270 = vadd.f32 %v7199, %v7225
        %v7271 = vadd.f32 %v7200, %v7225
        %v7272 = vadd.f32 %v7201, %v7225
        %v7273 = vadd.f32 %v7202, %v7225
        %v7274 = vadd.f32 %v7203, %v7225
        %v7275 = vadd.f32 %v7204, %v7225
        %v7276 = vadd.f32 %v7205, %v7225
        %v7277 = vadd.f32 %v7206, %v7225
        %v7278 = vadd.f32 %v7207, %v7225
        %v7279 = vadd.f32 %v7208, %v7225
        %v7280 = vadd.f32 %v7209, %v7225
        %v7281 = vadd.f32 %v7210, %v7225
        %v7282 = vadd.f32 %v7211, %v7225
        %v7283 = vadd.f32 %v7212, %v7225
        %v7284 = vadd.f32 %v7213, %v7225
        %v7285 = vadd.f32 %v7214, %v7225
        %v7286 = vadd.f32 %v7215, %v7225
        %v7287 = vadd.f32 %v7216, %v7225
        %v7288 = vadd.f32 %v7217, %v7225
        %v7289 = vadd.f32 %v7218, %v7225
        %v7290 = vadd.f32 %v7219, %v7225
        %v7291 = vxor.u32 %v7227, 2147483648
        %v7292 = vxor.u32 %v7228, 2147483648
        %v7293 = vxor.u32 %v7229, 2147483648
        %v7294 = vxor.u32 %v7230, 2147483648
        %v7295 = vxor.u32 %v7231, 2147483648
        %v7296 = vxor.u32 %v7232, 2147483648
        %v7297 = vxor.u32 %v7233, 2147483648
        %v7298 = vxor.u32 %v7234, 2147483648
        %v7299 = vxor.u32 %v7235, 2147483648
        %v7300 = vxor.u32 %v7236, 2147483648
        %v7301 = vxor.u32 %v7237, 2147483648
        %v7302 = vxor.u32 %v7238, 2147483648
        %v7303 = vxor.u32 %v7239, 2147483648
        %v7304 = vxor.u32 %v7240, 2147483648
        %v7305 = vxor.u32 %v7241, 2147483648
        %v7306 = vxor.u32 %v7242, 2147483648
        %v7307 = vxor.u32 %v7243, 2147483648
        %v7308 = vxor.u32 %v7244, 2147483648
        %v7309 = vxor.u32 %v7245, 2147483648
        %v7310 = vxor.u32 %v7246, 2147483648
        %v7311 = vxor.u32 %v7247, 2147483648
        %v7312 = vxor.u32 %v7248, 2147483648
        %v7313 = vxor.u32 %v7249, 2147483648
        %v7314 = vxor.u32 %v7250, 2147483648
        %v7315 = vxor.u32 %v7251, 2147483648
        %v7316 = vxor.u32 %v7252, 2147483648
        %v7317 = vxor.u32 %v7253, 2147483648
        %v7318 = vxor.u32 %v7254, 2147483648
        %v7319 = vxor.u32 %v7255, 2147483648
        %v7320 = vxor.u32 %v7256, 2147483648
        %v7321 = vxor.u32 %v7257, 2147483648
        %v7322 = vxor.u32 %v7258, 2147483648
        %v7323 = vxor.u32 %v7259, 2147483648
        %v7324 = vxor.u32 %v7260, 2147483648
        %v7325 = vxor.u32 %v7261, 2147483648
        %v7326 = vxor.u32 %v7262, 2147483648
        %v7327 = vxor.u32 %v7263, 2147483648
        %v7328 = vxor.u32 %v7264, 2147483648
        %v7329 = vxor.u32 %v7265, 2147483648
        %v7330 = vxor.u32 %v7266, 2147483648
        %v7331 = vxor.u32 %v7267, 2147483648
        %v7332 = vxor.u32 %v7268, 2147483648
        %v7333 = vxor.u32 %v7269, 2147483648
        %v7334 = vxor.u32 %v7270, 2147483648
        %v7335 = vxor.u32 %v7271, 2147483648
        %v7336 = vxor.u32 %v7272, 2147483648
        %v7337 = vxor.u32 %v7273, 2147483648
        %v7338 = vxor.u32 %v7274, 2147483648
        %v7339 = vxor.u32 %v7275, 2147483648
        %v7340 = vxor.u32 %v7276, 2147483648
        %v7341 = vxor.u32 %v7277, 2147483648
        %v7342 = vxor.u32 %v7278, 2147483648
        %v7343 = vxor.u32 %v7279, 2147483648
        %v7344 = vxor.u32 %v7280, 2147483648
        %v7345 = vxor.u32 %v7281, 2147483648
        %v7346 = vxor.u32 %v7282, 2147483648
        %v7347 = vxor.u32 %v7283, 2147483648
        %v7348 = vxor.u32 %v7284, 2147483648
        %v7349 = vxor.u32 %v7285, 2147483648
        %v7350 = vxor.u32 %v7286, 2147483648
        %v7351 = vxor.u32 %v7287, 2147483648
        %v7352 = vxor.u32 %v7288, 2147483648
        %v7353 = vxor.u32 %v7289, 2147483648
        %v7354 = vxor.u32 %v7290, 2147483648
        %v7355 = vmul.f32 %v7291, 1.442695
        %v7356 = vpow.pop %v7355
        %v7357 = vmul.f32 %v7292, 1.442695
        %v7358 = vpow.pop %v7357
        %v7359 = vmul.f32 %v7293, 1.442695
        %v7360 = vpow.pop %v7359
        %v7361 = vmul.f32 %v7294, 1.442695
        %v7362 = vpow.pop %v7361
        %v7363 = vmul.f32 %v7295, 1.442695
        %v7364 = vpow.pop %v7363
        %v7365 = vmul.f32 %v7296, 1.442695
        %v7366 = vpow.pop %v7365
        %v7367 = vmul.f32 %v7297, 1.442695
        %v7368 = vpow.pop %v7367
        %v7369 = vmul.f32 %v7298, 1.442695
        %v7370 = vpow.pop %v7369
        %v7371 = vmul.f32 %v7299, 1.442695
        %v7372 = vpow.pop %v7371
        %v7373 = vmul.f32 %v7300, 1.442695
        %v7374 = vpow.pop %v7373
        %v7375 = vmul.f32 %v7301, 1.442695
        %v7376 = vpow.pop %v7375
        %v7377 = vmul.f32 %v7302, 1.442695
        %v7378 = vpow.pop %v7377
        %v7379 = vmul.f32 %v7303, 1.442695
        %v7380 = vpow.pop %v7379
        %v7381 = vmul.f32 %v7304, 1.442695
        %v7382 = vpow.pop %v7381
        %v7383 = vmul.f32 %v7305, 1.442695
        %v7384 = vpow.pop %v7383
        %v7385 = vmul.f32 %v7306, 1.442695
        %v7386 = vpow.pop %v7385
        %v7387 = vmul.f32 %v7307, 1.442695
        %v7388 = vpow.pop %v7387
        %v7389 = vmul.f32 %v7308, 1.442695
        %v7390 = vpow.pop %v7389
        %v7391 = vmul.f32 %v7309, 1.442695
        %v7392 = vpow.pop %v7391
        %v7393 = vmul.f32 %v7310, 1.442695
        %v7394 = vpow.pop %v7393
        %v7395 = vmul.f32 %v7311, 1.442695
        %v7396 = vpow.pop %v7395
        %v7397 = vmul.f32 %v7312, 1.442695
        %v7398 = vpow.pop %v7397
        %v7399 = vmul.f32 %v7313, 1.442695
        %v7400 = vpow.pop %v7399
        %v7401 = vmul.f32 %v7314, 1.442695
        %v7402 = vpow.pop %v7401
        %v7403 = vmul.f32 %v7315, 1.442695
        %v7404 = vpow.pop %v7403
        %v7405 = vmul.f32 %v7316, 1.442695
        %v7406 = vpow.pop %v7405
        %v7407 = vmul.f32 %v7317, 1.442695
        %v7408 = vpow.pop %v7407
        %v7409 = vmul.f32 %v7318, 1.442695
        %v7410 = vpow.pop %v7409
        %v7411 = vmul.f32 %v7319, 1.442695
        %v7412 = vpow.pop %v7411
        %v7413 = vmul.f32 %v7320, 1.442695
        %v7414 = vpow.pop %v7413
        %v7415 = vmul.f32 %v7321, 1.442695
        %v7416 = vpow.pop %v7415
        %v7417 = vmul.f32 %v7322, 1.442695
        %v7418 = vpow.pop %v7417
        %v7419 = vmul.f32 %v7323, 1.442695
        %v7420 = vpow.pop %v7419
        %v7421 = vmul.f32 %v7324, 1.442695
        %v7422 = vpow.pop %v7421
        %v7423 = vmul.f32 %v7325, 1.442695
        %v7424 = vpow.pop %v7423
        %v7425 = vmul.f32 %v7326, 1.442695
        %v7426 = vpow.pop %v7425
        %v7427 = vmul.f32 %v7327, 1.442695
        %v7428 = vpow.pop %v7427
        %v7429 = vmul.f32 %v7328, 1.442695
        %v7430 = vpow.pop %v7429
        %v7431 = vmul.f32 %v7329, 1.442695
        %v7432 = vpow.pop %v7431
        %v7433 = vmul.f32 %v7330, 1.442695
        %v7434 = vpow.pop %v7433
        %v7435 = vmul.f32 %v7331, 1.442695
        %v7436 = vpow.pop %v7435
        %v7437 = vmul.f32 %v7332, 1.442695
        %v7438 = vpow.pop %v7437
        %v7439 = vmul.f32 %v7333, 1.442695
        %v7440 = vpow.pop %v7439
        %v7441 = vmul.f32 %v7334, 1.442695
        %v7442 = vpow.pop %v7441
        %v7443 = vmul.f32 %v7335, 1.442695
        %v7444 = vpow.pop %v7443
        %v7445 = vmul.f32 %v7336, 1.442695
        %v7446 = vpow.pop %v7445
        %v7447 = vmul.f32 %v7337, 1.442695
        %v7448 = vpow.pop %v7447
        %v7449 = vmul.f32 %v7338, 1.442695
        %v7450 = vpow.pop %v7449
        %v7451 = vmul.f32 %v7339, 1.442695
        %v7452 = vpow.pop %v7451
        %v7453 = vmul.f32 %v7340, 1.442695
        %v7454 = vpow.pop %v7453
        %v7455 = vmul.f32 %v7341, 1.442695
        %v7456 = vpow.pop %v7455
        %v7457 = vmul.f32 %v7342, 1.442695
        %v7458 = vpow.pop %v7457
        %v7459 = vmul.f32 %v7343, 1.442695
        %v7460 = vpow.pop %v7459
        %v7461 = vmul.f32 %v7344, 1.442695
        %v7462 = vpow.pop %v7461
        %v7463 = vmul.f32 %v7345, 1.442695
        %v7464 = vpow.pop %v7463
        %v7465 = vmul.f32 %v7346, 1.442695
        %v7466 = vpow.pop %v7465
        %v7467 = vmul.f32 %v7347, 1.442695
        %v7468 = vpow.pop %v7467
        %v7469 = vmul.f32 %v7348, 1.442695
        %v7470 = vpow.pop %v7469
        %v7471 = vmul.f32 %v7349, 1.442695
        %v7472 = vpow.pop %v7471
        %v7473 = vmul.f32 %v7350, 1.442695
        %v7474 = vpow.pop %v7473
        %v7475 = vmul.f32 %v7351, 1.442695
        %v7476 = vpow.pop %v7475
        %v7477 = vmul.f32 %v7352, 1.442695
        %v7478 = vpow.pop %v7477
        %v7479 = vmul.f32 %v7353, 1.442695
        %v7480 = vpow.pop %v7479
        %v7481 = vmul.f32 %v7354, 1.442695
        %v7482 = vpow.pop %v7481
        %v7483 = vadd.f32 %v7356, 1.0
        %v7484 = vadd.f32 %v7358, 1.0
        %v7485 = vadd.f32 %v7360, 1.0
        %v7486 = vadd.f32 %v7362, 1.0
        %v7487 = vadd.f32 %v7364, 1.0
        %v7488 = vadd.f32 %v7366, 1.0
        %v7489 = vadd.f32 %v7368, 1.0
        %v7490 = vadd.f32 %v7370, 1.0
        %v7491 = vadd.f32 %v7372, 1.0
        %v7492 = vadd.f32 %v7374, 1.0
        %v7493 = vadd.f32 %v7376, 1.0
        %v7494 = vadd.f32 %v7378, 1.0
        %v7495 = vadd.f32 %v7380, 1.0
        %v7496 = vadd.f32 %v7382, 1.0
        %v7497 = vadd.f32 %v7384, 1.0
        %v7498 = vadd.f32 %v7386, 1.0
        %v7499 = vadd.f32 %v7388, 1.0
        %v7500 = vadd.f32 %v7390, 1.0
        %v7501 = vadd.f32 %v7392, 1.0
        %v7502 = vadd.f32 %v7394, 1.0
        %v7503 = vadd.f32 %v7396, 1.0
        %v7504 = vadd.f32 %v7398, 1.0
        %v7505 = vadd.f32 %v7400, 1.0
        %v7506 = vadd.f32 %v7402, 1.0
        %v7507 = vadd.f32 %v7404, 1.0
        %v7508 = vadd.f32 %v7406, 1.0
        %v7509 = vadd.f32 %v7408, 1.0
        %v7510 = vadd.f32 %v7410, 1.0
        %v7511 = vadd.f32 %v7412, 1.0
        %v7512 = vadd.f32 %v7414, 1.0
        %v7513 = vadd.f32 %v7416, 1.0
        %v7514 = vadd.f32 %v7418, 1.0
        %v7515 = vadd.f32 %v7420, 1.0
        %v7516 = vadd.f32 %v7422, 1.0
        %v7517 = vadd.f32 %v7424, 1.0
        %v7518 = vadd.f32 %v7426, 1.0
        %v7519 = vadd.f32 %v7428, 1.0
        %v7520 = vadd.f32 %v7430, 1.0
        %v7521 = vadd.f32 %v7432, 1.0
        %v7522 = vadd.f32 %v7434, 1.0
        %v7523 = vadd.f32 %v7436, 1.0
        %v7524 = vadd.f32 %v7438, 1.0
        %v7525 = vadd.f32 %v7440, 1.0
        %v7526 = vadd.f32 %v7442, 1.0
        %v7527 = vadd.f32 %v7444, 1.0
        %v7528 = vadd.f32 %v7446, 1.0
        %v7529 = vadd.f32 %v7448, 1.0
        %v7530 = vadd.f32 %v7450, 1.0
        %v7531 = vadd.f32 %v7452, 1.0
        %v7532 = vadd.f32 %v7454, 1.0
        %v7533 = vadd.f32 %v7456, 1.0
        %v7534 = vadd.f32 %v7458, 1.0
        %v7535 = vadd.f32 %v7460, 1.0
        %v7536 = vadd.f32 %v7462, 1.0
        %v7537 = vadd.f32 %v7464, 1.0
        %v7538 = vadd.f32 %v7466, 1.0
        %v7539 = vadd.f32 %v7468, 1.0
        %v7540 = vadd.f32 %v7470, 1.0
        %v7541 = vadd.f32 %v7472, 1.0
        %v7542 = vadd.f32 %v7474, 1.0
        %v7543 = vadd.f32 %v7476, 1.0
        %v7544 = vadd.f32 %v7478, 1.0
        %v7545 = vadd.f32 %v7480, 1.0
        %v7546 = vadd.f32 %v7482, 1.0
        %v7547 = vrcp.pop %v7483
        %v7548 = vmul.f32 1.0, %v7547
        %v7549 = vrcp.pop %v7484
        %v7550 = vmul.f32 1.0, %v7549
        %v7551 = vrcp.pop %v7485
        %v7552 = vmul.f32 1.0, %v7551
        %v7553 = vrcp.pop %v7486
        %v7554 = vmul.f32 1.0, %v7553
        %v7555 = vrcp.pop %v7487
        %v7556 = vmul.f32 1.0, %v7555
        %v7557 = vrcp.pop %v7488
        %v7558 = vmul.f32 1.0, %v7557
        %v7559 = vrcp.pop %v7489
        %v7560 = vmul.f32 1.0, %v7559
        %v7561 = vrcp.pop %v7490
        %v7562 = vmul.f32 1.0, %v7561
        %v7563 = vrcp.pop %v7491
        %v7564 = vmul.f32 1.0, %v7563
        %v7565 = vrcp.pop %v7492
        %v7566 = vmul.f32 1.0, %v7565
        %v7567 = vrcp.pop %v7493
        %v7568 = vmul.f32 1.0, %v7567
        %v7569 = vrcp.pop %v7494
        %v7570 = vmul.f32 1.0, %v7569
        %v7571 = vrcp.pop %v7495
        %v7572 = vmul.f32 1.0, %v7571
        %v7573 = vrcp.pop %v7496
        %v7574 = vmul.f32 1.0, %v7573
        %v7575 = vrcp.pop %v7497
        %v7576 = vmul.f32 1.0, %v7575
        %v7577 = vrcp.pop %v7498
        %v7578 = vmul.f32 1.0, %v7577
        %v7579 = vrcp.pop %v7499
        %v7580 = vmul.f32 1.0, %v7579
        %v7581 = vrcp.pop %v7500
        %v7582 = vmul.f32 1.0, %v7581
        %v7583 = vrcp.pop %v7501
        %v7584 = vmul.f32 1.0, %v7583
        %v7585 = vrcp.pop %v7502
        %v7586 = vmul.f32 1.0, %v7585
        %v7587 = vrcp.pop %v7503
        %v7588 = vmul.f32 1.0, %v7587
        %v7589 = vrcp.pop %v7504
        %v7590 = vmul.f32 1.0, %v7589
        %v7591 = vrcp.pop %v7505
        %v7592 = vmul.f32 1.0, %v7591
        %v7593 = vrcp.pop %v7506
        %v7594 = vmul.f32 1.0, %v7593
        %v7595 = vrcp.pop %v7507
        %v7596 = vmul.f32 1.0, %v7595
        %v7597 = vrcp.pop %v7508
        %v7598 = vmul.f32 1.0, %v7597
        %v7599 = vrcp.pop %v7509
        %v7600 = vmul.f32 1.0, %v7599
        %v7601 = vrcp.pop %v7510
        %v7602 = vmul.f32 1.0, %v7601
        %v7603 = vrcp.pop %v7511
        %v7604 = vmul.f32 1.0, %v7603
        %v7605 = vrcp.pop %v7512
        %v7606 = vmul.f32 1.0, %v7605
        %v7607 = vrcp.pop %v7513
        %v7608 = vmul.f32 1.0, %v7607
        %v7609 = vrcp.pop %v7514
        %v7610 = vmul.f32 1.0, %v7609
        %v7611 = vrcp.pop %v7515
        %v7612 = vmul.f32 1.0, %v7611
        %v7613 = vrcp.pop %v7516
        %v7614 = vmul.f32 1.0, %v7613
        %v7615 = vrcp.pop %v7517
        %v7616 = vmul.f32 1.0, %v7615
        %v7617 = vrcp.pop %v7518
        %v7618 = vmul.f32 1.0, %v7617
        %v7619 = vrcp.pop %v7519
        %v7620 = vmul.f32 1.0, %v7619
        %v7621 = vrcp.pop %v7520
        %v7622 = vmul.f32 1.0, %v7621
        %v7623 = vrcp.pop %v7521
        %v7624 = vmul.f32 1.0, %v7623
        %v7625 = vrcp.pop %v7522
        %v7626 = vmul.f32 1.0, %v7625
        %v7627 = vrcp.pop %v7523
        %v7628 = vmul.f32 1.0, %v7627
        %v7629 = vrcp.pop %v7524
        %v7630 = vmul.f32 1.0, %v7629
        %v7631 = vrcp.pop %v7525
        %v7632 = vmul.f32 1.0, %v7631
        %v7633 = vrcp.pop %v7526
        %v7634 = vmul.f32 1.0, %v7633
        %v7635 = vrcp.pop %v7527
        %v7636 = vmul.f32 1.0, %v7635
        %v7637 = vrcp.pop %v7528
        %v7638 = vmul.f32 1.0, %v7637
        %v7639 = vrcp.pop %v7529
        %v7640 = vmul.f32 1.0, %v7639
        %v7641 = vrcp.pop %v7530
        %v7642 = vmul.f32 1.0, %v7641
        %v7643 = vrcp.pop %v7531
        %v7644 = vmul.f32 1.0, %v7643
        %v7645 = vrcp.pop %v7532
        %v7646 = vmul.f32 1.0, %v7645
        %v7647 = vrcp.pop %v7533
        %v7648 = vmul.f32 1.0, %v7647
        %v7649 = vrcp.pop %v7534
        %v7650 = vmul.f32 1.0, %v7649
        %v7651 = vrcp.pop %v7535
        %v7652 = vmul.f32 1.0, %v7651
        %v7653 = vrcp.pop %v7536
        %v7654 = vmul.f32 1.0, %v7653
        %v7655 = vrcp.pop %v7537
        %v7656 = vmul.f32 1.0, %v7655
        %v7657 = vrcp.pop %v7538
        %v7658 = vmul.f32 1.0, %v7657
        %v7659 = vrcp.pop %v7539
        %v7660 = vmul.f32 1.0, %v7659
        %v7661 = vrcp.pop %v7540
        %v7662 = vmul.f32 1.0, %v7661
        %v7663 = vrcp.pop %v7541
        %v7664 = vmul.f32 1.0, %v7663
        %v7665 = vrcp.pop %v7542
        %v7666 = vmul.f32 1.0, %v7665
        %v7667 = vrcp.pop %v7543
        %v7668 = vmul.f32 1.0, %v7667
        %v7669 = vrcp.pop %v7544
        %v7670 = vmul.f32 1.0, %v7669
        %v7671 = vrcp.pop %v7545
        %v7672 = vmul.f32 1.0, %v7671
        %v7673 = vrcp.pop %v7546
        %v7674 = vmul.f32 1.0, %v7673
        %7739 = vrot.lane.b32.xlu0 %v7227, 96
        %v7740 = vpop.permute.xlu0 %7739
        %7741 = vrot.lane.b32.xlu0 %v7228, 96
        %v7742 = vpop.permute.xlu0 %7741
        %7743 = vrot.lane.b32.xlu0 %v7229, 96
        %v7744 = vpop.permute.xlu0 %7743
        %7745 = vrot.lane.b32.xlu0 %v7230, 96
        %v7746 = vpop.permute.xlu0 %7745
        %7747 = vrot.lane.b32.xlu0 %v7231, 96
        %v7748 = vpop.permute.xlu0 %7747
        %7749 = vrot.lane.b32.xlu0 %v7232, 96
        %v7750 = vpop.permute.xlu0 %7749
        %7751 = vrot.lane.b32.xlu0 %v7233, 96
        %v7752 = vpop.permute.xlu0 %7751
        %7753 = vrot.lane.b32.xlu0 %v7234, 96
        %v7754 = vpop.permute.xlu0 %7753
        %7755 = vrot.lane.b32.xlu0 %v7235, 96
        %v7756 = vpop.permute.xlu0 %7755
        %7757 = vrot.lane.b32.xlu0 %v7236, 96
        %v7758 = vpop.permute.xlu0 %7757
        %7759 = vrot.lane.b32.xlu0 %v7237, 96
        %v7760 = vpop.permute.xlu0 %7759
        %7761 = vrot.lane.b32.xlu0 %v7238, 96
        %v7762 = vpop.permute.xlu0 %7761
        %7763 = vrot.lane.b32.xlu0 %v7239, 96
        %v7764 = vpop.permute.xlu0 %7763
        %7765 = vrot.lane.b32.xlu0 %v7240, 96
        %v7766 = vpop.permute.xlu0 %7765
        %7767 = vrot.lane.b32.xlu0 %v7241, 96
        %v7768 = vpop.permute.xlu0 %7767
        %7769 = vrot.lane.b32.xlu0 %v7242, 96
        %v7770 = vpop.permute.xlu0 %7769
        %7771 = vrot.lane.b32.xlu0 %v7243, 96
        %v7772 = vpop.permute.xlu0 %7771
        %7773 = vrot.lane.b32.xlu0 %v7244, 96
        %v7774 = vpop.permute.xlu0 %7773
        %7775 = vrot.lane.b32.xlu0 %v7245, 96
        %v7776 = vpop.permute.xlu0 %7775
        %7777 = vrot.lane.b32.xlu0 %v7246, 96
        %v7778 = vpop.permute.xlu0 %7777
        %7779 = vrot.lane.b32.xlu0 %v7247, 96
        %v7780 = vpop.permute.xlu0 %7779
        %7781 = vrot.lane.b32.xlu0 %v7248, 96
        %v7782 = vpop.permute.xlu0 %7781
        %7783 = vrot.lane.b32.xlu0 %v7249, 96
        %v7784 = vpop.permute.xlu0 %7783
        %7785 = vrot.lane.b32.xlu0 %v7250, 96
        %v7786 = vpop.permute.xlu0 %7785
        %7787 = vrot.lane.b32.xlu0 %v7251, 96
        %v7788 = vpop.permute.xlu0 %7787
        %7789 = vrot.lane.b32.xlu0 %v7252, 96
        %v7790 = vpop.permute.xlu0 %7789
        %7791 = vrot.lane.b32.xlu0 %v7253, 96
        %v7792 = vpop.permute.xlu0 %7791
        %7793 = vrot.lane.b32.xlu0 %v7254, 96
        %v7794 = vpop.permute.xlu0 %7793
        %7795 = vrot.lane.b32.xlu0 %v7255, 96
        %v7796 = vpop.permute.xlu0 %7795
        %7797 = vrot.lane.b32.xlu0 %v7256, 96
        %v7798 = vpop.permute.xlu0 %7797
        %7799 = vrot.lane.b32.xlu0 %v7257, 96
        %v7800 = vpop.permute.xlu0 %7799
        %7801 = vrot.lane.b32.xlu0 %v7258, 96
        %v7802 = vpop.permute.xlu0 %7801
        %7803 = vrot.lane.b32.xlu0 %v7259, 96
        %v7804 = vpop.permute.xlu0 %7803
        %7805 = vrot.lane.b32.xlu0 %v7260, 96
        %v7806 = vpop.permute.xlu0 %7805
        %7807 = vrot.lane.b32.xlu0 %v7261, 96
        %v7808 = vpop.permute.xlu0 %7807
        %7809 = vrot.lane.b32.xlu0 %v7262, 96
        %v7810 = vpop.permute.xlu0 %7809
        %7811 = vrot.lane.b32.xlu0 %v7263, 96
        %v7812 = vpop.permute.xlu0 %7811
        %7813 = vrot.lane.b32.xlu0 %v7264, 96
        %v7814 = vpop.permute.xlu0 %7813
        %7815 = vrot.lane.b32.xlu0 %v7265, 96
        %v7816 = vpop.permute.xlu0 %7815
        %7817 = vrot.lane.b32.xlu0 %v7266, 96
        %v7818 = vpop.permute.xlu0 %7817
        %7819 = vrot.lane.b32.xlu0 %v7267, 96
        %v7820 = vpop.permute.xlu0 %7819
        %7821 = vrot.lane.b32.xlu0 %v7268, 96
        %v7822 = vpop.permute.xlu0 %7821
        %7823 = vrot.lane.b32.xlu0 %v7269, 96
        %v7824 = vpop.permute.xlu0 %7823
        %7825 = vrot.lane.b32.xlu0 %v7270, 96
        %v7826 = vpop.permute.xlu0 %7825
        %7827 = vrot.lane.b32.xlu0 %v7271, 96
        %v7828 = vpop.permute.xlu0 %7827
        %7829 = vrot.lane.b32.xlu0 %v7272, 96
        %v7830 = vpop.permute.xlu0 %7829
        %7831 = vrot.lane.b32.xlu0 %v7273, 96
        %v7832 = vpop.permute.xlu0 %7831
        %7833 = vrot.lane.b32.xlu0 %v7274, 96
        %v7834 = vpop.permute.xlu0 %7833
        %7835 = vrot.lane.b32.xlu0 %v7275, 96
        %v7836 = vpop.permute.xlu0 %7835
        %7837 = vrot.lane.b32.xlu0 %v7276, 96
        %v7838 = vpop.permute.xlu0 %7837
        %7839 = vrot.lane.b32.xlu0 %v7277, 96
        %v7840 = vpop.permute.xlu0 %7839
        %7841 = vrot.lane.b32.xlu0 %v7278, 96
        %v7842 = vpop.permute.xlu0 %7841
        %7843 = vrot.lane.b32.xlu0 %v7279, 96
        %v7844 = vpop.permute.xlu0 %7843
        %7845 = vrot.lane.b32.xlu0 %v7280, 96
        %v7846 = vpop.permute.xlu0 %7845
        %7847 = vrot.lane.b32.xlu0 %v7281, 96
        %v7848 = vpop.permute.xlu0 %7847
        %7849 = vrot.lane.b32.xlu0 %v7282, 96
        %v7850 = vpop.permute.xlu0 %7849
        %7851 = vrot.lane.b32.xlu0 %v7283, 96
        %v7852 = vpop.permute.xlu0 %7851
        %7853 = vrot.lane.b32.xlu0 %v7284, 96
        %v7854 = vpop.permute.xlu0 %7853
        %7855 = vrot.lane.b32.xlu0 %v7285, 96
        %v7856 = vpop.permute.xlu0 %7855
        %7857 = vrot.lane.b32.xlu0 %v7286, 96
        %v7858 = vpop.permute.xlu0 %7857
        %7859 = vrot.lane.b32.xlu0 %v7287, 96
        %v7860 = vpop.permute.xlu0 %7859
        %7861 = vrot.lane.b32.xlu0 %v7288, 96
        %v7862 = vpop.permute.xlu0 %7861
        %7863 = vrot.lane.b32.xlu0 %v7289, 96
        %v7864 = vpop.permute.xlu0 %7863
        %7865 = vrot.lane.b32.xlu0 %v7290, 96
        %v7866 = vpop.permute.xlu0 %7865
        %v7931 = vmul.f32 %v7548, %v7740
        %v7932 = vmul.f32 %v7550, %v7742
        %v7933 = vmul.f32 %v7552, %v7744
        %v7934 = vmul.f32 %v7554, %v7746
        %v7935 = vmul.f32 %v7556, %v7748
        %v7936 = vmul.f32 %v7558, %v7750
        %v7937 = vmul.f32 %v7560, %v7752
        %v7938 = vmul.f32 %v7562, %v7754
        %v7939 = vmul.f32 %v7564, %v7756
        %v7940 = vmul.f32 %v7566, %v7758
        %v7941 = vmul.f32 %v7568, %v7760
        %v7942 = vmul.f32 %v7570, %v7762
        %v7943 = vmul.f32 %v7572, %v7764
        %v7944 = vmul.f32 %v7574, %v7766
        %v7945 = vmul.f32 %v7576, %v7768
        %v7946 = vmul.f32 %v7578, %v7770
        %v7947 = vmul.f32 %v7580, %v7772
        %v7948 = vmul.f32 %v7582, %v7774
        %v7949 = vmul.f32 %v7584, %v7776
        %v7950 = vmul.f32 %v7586, %v7778
        %v7951 = vmul.f32 %v7588, %v7780
        %v7952 = vmul.f32 %v7590, %v7782
        %v7953 = vmul.f32 %v7592, %v7784
        %v7954 = vmul.f32 %v7594, %v7786
        %v7955 = vmul.f32 %v7596, %v7788
        %v7956 = vmul.f32 %v7598, %v7790
        %v7957 = vmul.f32 %v7600, %v7792
        %v7958 = vmul.f32 %v7602, %v7794
        %v7959 = vmul.f32 %v7604, %v7796
        %v7960 = vmul.f32 %v7606, %v7798
        %v7961 = vmul.f32 %v7608, %v7800
        %v7962 = vmul.f32 %v7610, %v7802
        %v7963 = vmul.f32 %v7612, %v7804
        %v7964 = vmul.f32 %v7614, %v7806
        %v7965 = vmul.f32 %v7616, %v7808
        %v7966 = vmul.f32 %v7618, %v7810
        %v7967 = vmul.f32 %v7620, %v7812
        %v7968 = vmul.f32 %v7622, %v7814
        %v7969 = vmul.f32 %v7624, %v7816
        %v7970 = vmul.f32 %v7626, %v7818
        %v7971 = vmul.f32 %v7628, %v7820
        %v7972 = vmul.f32 %v7630, %v7822
        %v7973 = vmul.f32 %v7632, %v7824
        %v7974 = vmul.f32 %v7634, %v7826
        %v7975 = vmul.f32 %v7636, %v7828
        %v7976 = vmul.f32 %v7638, %v7830
        %v7977 = vmul.f32 %v7640, %v7832
        %v7978 = vmul.f32 %v7642, %v7834
        %v7979 = vmul.f32 %v7644, %v7836
        %v7980 = vmul.f32 %v7646, %v7838
        %v7981 = vmul.f32 %v7648, %v7840
        %v7982 = vmul.f32 %v7650, %v7842
        %v7983 = vmul.f32 %v7652, %v7844
        %v7984 = vmul.f32 %v7654, %v7846
        %v7985 = vmul.f32 %v7656, %v7848
        %v7986 = vmul.f32 %v7658, %v7850
        %v7987 = vmul.f32 %v7660, %v7852
        %v7988 = vmul.f32 %v7662, %v7854
        %v7989 = vmul.f32 %v7664, %v7856
        %v7990 = vmul.f32 %v7666, %v7858
        %v7991 = vmul.f32 %v7668, %v7860
        %v7992 = vmul.f32 %v7670, %v7862
        %v7993 = vmul.f32 %v7672, %v7864
        %v7994 = vmul.f32 %v7674, %v7866
        %v7995 = vld [vmem:[%s8] sm:$0xff]
        %v7996 = vld [vmem:[%s8 + $0x8] sm:$0xff]
        %v7997 = vld [vmem:[%s8 + $0x10] sm:$0xff]
        %v7998 = vld [vmem:[%s8 + $0x18] sm:$0xff]
        %8063 = vrot.lane.b32.xlu0 %v7931, 96
        %v8064 = vpop.permute.xlu0 %8063
        %8065 = vrot.lane.b32.xlu0 %v7932, 96
        %v8066 = vpop.permute.xlu0 %8065
        %8067 = vrot.lane.b32.xlu0 %v7933, 96
        %v8068 = vpop.permute.xlu0 %8067
        %8069 = vrot.lane.b32.xlu0 %v7934, 96
        %v8070 = vpop.permute.xlu0 %8069
        %8071 = vrot.lane.b32.xlu0 %v7935, 96
        %v8072 = vpop.permute.xlu0 %8071
        %8073 = vrot.lane.b32.xlu0 %v7936, 96
        %v8074 = vpop.permute.xlu0 %8073
        %8075 = vrot.lane.b32.xlu0 %v7937, 96
        %v8076 = vpop.permute.xlu0 %8075
        %8077 = vrot.lane.b32.xlu0 %v7938, 96
        %v8078 = vpop.permute.xlu0 %8077
        %8079 = vrot.lane.b32.xlu0 %v7939, 96
        %v8080 = vpop.permute.xlu0 %8079
        %8081 = vrot.lane.b32.xlu0 %v7940, 96
        %v8082 = vpop.permute.xlu0 %8081
        %8083 = vrot.lane.b32.xlu0 %v7941, 96
        %v8084 = vpop.permute.xlu0 %8083
        %8085 = vrot.lane.b32.xlu0 %v7942, 96
        %v8086 = vpop.permute.xlu0 %8085
        %8087 = vrot.lane.b32.xlu0 %v7943, 96
        %v8088 = vpop.permute.xlu0 %8087
        %8089 = vrot.lane.b32.xlu0 %v7944, 96
        %v8090 = vpop.permute.xlu0 %8089
        %8091 = vrot.lane.b32.xlu0 %v7945, 96
        %v8092 = vpop.permute.xlu0 %8091
        %8093 = vrot.lane.b32.xlu0 %v7946, 96
        %v8094 = vpop.permute.xlu0 %8093
        %8095 = vrot.lane.b32.xlu0 %v7947, 96
        %v8096 = vpop.permute.xlu0 %8095
        %8097 = vrot.lane.b32.xlu0 %v7948, 96
        %v8098 = vpop.permute.xlu0 %8097
        %8099 = vrot.lane.b32.xlu0 %v7949, 96
        %v8100 = vpop.permute.xlu0 %8099
        %8101 = vrot.lane.b32.xlu0 %v7950, 96
        %v8102 = vpop.permute.xlu0 %8101
        %8103 = vrot.lane.b32.xlu0 %v7951, 96
        %v8104 = vpop.permute.xlu0 %8103
        %8105 = vrot.lane.b32.xlu0 %v7952, 96
        %v8106 = vpop.permute.xlu0 %8105
        %8107 = vrot.lane.b32.xlu0 %v7953, 96
        %v8108 = vpop.permute.xlu0 %8107
        %8109 = vrot.lane.b32.xlu0 %v7954, 96
        %v8110 = vpop.permute.xlu0 %8109
        %8111 = vrot.lane.b32.xlu0 %v7955, 96
        %v8112 = vpop.permute.xlu0 %8111
        %8113 = vrot.lane.b32.xlu0 %v7956, 96
        %v8114 = vpop.permute.xlu0 %8113
        %8115 = vrot.lane.b32.xlu0 %v7957, 96
        %v8116 = vpop.permute.xlu0 %8115
        %8117 = vrot.lane.b32.xlu0 %v7958, 96
        %v8118 = vpop.permute.xlu0 %8117
        %8119 = vrot.lane.b32.xlu0 %v7959, 96
        %v8120 = vpop.permute.xlu0 %8119
        %8121 = vrot.lane.b32.xlu0 %v7960, 96
        %v8122 = vpop.permute.xlu0 %8121
        %8123 = vrot.lane.b32.xlu0 %v7961, 96
        %v8124 = vpop.permute.xlu0 %8123
        %8125 = vrot.lane.b32.xlu0 %v7962, 96
        %v8126 = vpop.permute.xlu0 %8125
        %8127 = vrot.lane.b32.xlu0 %v7963, 96
        %v8128 = vpop.permute.xlu0 %8127
        %8129 = vrot.lane.b32.xlu0 %v7964, 96
        %v8130 = vpop.permute.xlu0 %8129
        %8131 = vrot.lane.b32.xlu0 %v7965, 96
        %v8132 = vpop.permute.xlu0 %8131
        %8133 = vrot.lane.b32.xlu0 %v7966, 96
        %v8134 = vpop.permute.xlu0 %8133
        %8135 = vrot.lane.b32.xlu0 %v7967, 96
        %v8136 = vpop.permute.xlu0 %8135
        %8137 = vrot.lane.b32.xlu0 %v7968, 96
        %v8138 = vpop.permute.xlu0 %8137
        %8139 = vrot.lane.b32.xlu0 %v7969, 96
        %v8140 = vpop.permute.xlu0 %8139
        %8141 = vrot.lane.b32.xlu0 %v7970, 96
        %v8142 = vpop.permute.xlu0 %8141
        %8143 = vrot.lane.b32.xlu0 %v7971, 96
        %v8144 = vpop.permute.xlu0 %8143
        %8145 = vrot.lane.b32.xlu0 %v7972, 96
        %v8146 = vpop.permute.xlu0 %8145
        %8147 = vrot.lane.b32.xlu0 %v7973, 96
        %v8148 = vpop.permute.xlu0 %8147
        %8149 = vrot.lane.b32.xlu0 %v7974, 96
        %v8150 = vpop.permute.xlu0 %8149
        %8151 = vrot.lane.b32.xlu0 %v7975, 96
        %v8152 = vpop.permute.xlu0 %8151
        %8153 = vrot.lane.b32.xlu0 %v7976, 96
        %v8154 = vpop.permute.xlu0 %8153
        %8155 = vrot.lane.b32.xlu0 %v7977, 96
        %v8156 = vpop.permute.xlu0 %8155
        %8157 = vrot.lane.b32.xlu0 %v7978, 96
        %v8158 = vpop.permute.xlu0 %8157
        %8159 = vrot.lane.b32.xlu0 %v7979, 96
        %v8160 = vpop.permute.xlu0 %8159
        %8161 = vrot.lane.b32.xlu0 %v7980, 96
        %v8162 = vpop.permute.xlu0 %8161
        %8163 = vrot.lane.b32.xlu0 %v7981, 96
        %v8164 = vpop.permute.xlu0 %8163
        %8165 = vrot.lane.b32.xlu0 %v7982, 96
        %v8166 = vpop.permute.xlu0 %8165
        %8167 = vrot.lane.b32.xlu0 %v7983, 96
        %v8168 = vpop.permute.xlu0 %8167
        %8169 = vrot.lane.b32.xlu0 %v7984, 96
        %v8170 = vpop.permute.xlu0 %8169
        %8171 = vrot.lane.b32.xlu0 %v7985, 96
        %v8172 = vpop.permute.xlu0 %8171
        %8173 = vrot.lane.b32.xlu0 %v7986, 96
        %v8174 = vpop.permute.xlu0 %8173
        %8175 = vrot.lane.b32.xlu0 %v7987, 96
        %v8176 = vpop.permute.xlu0 %8175
        %8177 = vrot.lane.b32.xlu0 %v7988, 96
        %v8178 = vpop.permute.xlu0 %8177
        %8179 = vrot.lane.b32.xlu0 %v7989, 96
        %v8180 = vpop.permute.xlu0 %8179
        %8181 = vrot.lane.b32.xlu0 %v7990, 96
        %v8182 = vpop.permute.xlu0 %8181
        %8183 = vrot.lane.b32.xlu0 %v7991, 96
        %v8184 = vpop.permute.xlu0 %8183
        %8185 = vrot.lane.b32.xlu0 %v7992, 96
        %v8186 = vpop.permute.xlu0 %8185
        %8187 = vrot.lane.b32.xlu0 %v7993, 96
        %v8188 = vpop.permute.xlu0 %8187
        %8189 = vrot.lane.b32.xlu0 %v7994, 96
        %v8190 = vpop.permute.xlu0 %8189
        %v8191 = vsel %vm1185, %v8064, 0
        %v8193 = vsel %vm1185, %v8066, 0
        %v8195 = vsel %vm1185, %v8068, 0
        %v8197 = vsel %vm1185, %v8070, 0
        %v8199 = vsel %vm1185, %v8072, 0
        %v8201 = vsel %vm1185, %v8074, 0
        %v8203 = vsel %vm1185, %v8076, 0
        %v8205 = vsel %vm1185, %v8078, 0
        %v8207 = vsel %vm1185, %v8080, 0
        %v8209 = vsel %vm1185, %v8082, 0
        %v8211 = vsel %vm1185, %v8084, 0
        %v8213 = vsel %vm1185, %v8086, 0
        %v8215 = vsel %vm1185, %v8088, 0
        %v8217 = vsel %vm1185, %v8090, 0
        %v8219 = vsel %vm1185, %v8092, 0
        %v8221 = vsel %vm1185, %v8094, 0
        %v8223 = vsel %vm1185, %v8096, 0
        %v8225 = vsel %vm1185, %v8098, 0
        %v8227 = vsel %vm1185, %v8100, 0
        %v8229 = vsel %vm1185, %v8102, 0
        %v8231 = vsel %vm1185, %v8104, 0
        %v8233 = vsel %vm1185, %v8106, 0
        %v8235 = vsel %vm1185, %v8108, 0
        %v8237 = vsel %vm1185, %v8110, 0
        %v8239 = vsel %vm1185, %v8112, 0
        %v8241 = vsel %vm1185, %v8114, 0
        %v8243 = vsel %vm1185, %v8116, 0
        %v8245 = vsel %vm1185, %v8118, 0
        %v8247 = vsel %vm1185, %v8120, 0
        %v8249 = vsel %vm1185, %v8122, 0
        %v8251 = vsel %vm1185, %v8124, 0
        %v8253 = vsel %vm1185, %v8126, 0
        %v8255 = vsel %vm1185, %v8128, 0
        %v8257 = vsel %vm1185, %v8130, 0
        %v8259 = vsel %vm1185, %v8132, 0
        %v8261 = vsel %vm1185, %v8134, 0
        %v8263 = vsel %vm1185, %v8136, 0
        %v8265 = vsel %vm1185, %v8138, 0
        %v8267 = vsel %vm1185, %v8140, 0
        %v8269 = vsel %vm1185, %v8142, 0
        %v8271 = vsel %vm1185, %v8144, 0
        %v8273 = vsel %vm1185, %v8146, 0
        %v8275 = vsel %vm1185, %v8148, 0
        %v8277 = vsel %vm1185, %v8150, 0
        %v8279 = vsel %vm1185, %v8152, 0
        %v8281 = vsel %vm1185, %v8154, 0
        %v8283 = vsel %vm1185, %v8156, 0
        %v8285 = vsel %vm1185, %v8158, 0
        %v8287 = vsel %vm1185, %v8160, 0
        %v8289 = vsel %vm1185, %v8162, 0
        %v8291 = vsel %vm1185, %v8164, 0
        %v8293 = vsel %vm1185, %v8166, 0
        %v8295 = vsel %vm1185, %v8168, 0
        %v8297 = vsel %vm1185, %v8170, 0
        %v8299 = vsel %vm1185, %v8172, 0
        %v8301 = vsel %vm1185, %v8174, 0
        %v8303 = vsel %vm1185, %v8176, 0
        %v8305 = vsel %vm1185, %v8178, 0
        %v8307 = vsel %vm1185, %v8180, 0
        %v8309 = vsel %vm1185, %v8182, 0
        %v8311 = vsel %vm1185, %v8184, 0
        %v8313 = vsel %vm1185, %v8186, 0
        %v8315 = vsel %vm1185, %v8188, 0
        %v8317 = vsel %vm1185, %v8190, 0
        %8319 = vmatprep.subr.mxu0 0.0
        %8320 = vmatpush1.msra.mxu0 0.0
        %8321 = vmatprep.subr.mxu0 0.0
        %8322 = vmatpush1.msra.mxu0 0.0
        %8323 = vmatprep.subr.mxu0 0.0
        %8324 = vmatpush1.msra.mxu0 0.0
        %8325 = vmatprep.subr.mxu0 0.0
        %8326 = vmatpush1.msra.mxu0 0.0
        %8327 = vmatprep.subr.mxu0 0.0
        %8328 = vmatpush1.msra.mxu0 0.0
        %8329 = vmatprep.subr.mxu0 0.0
        %8330 = vmatpush1.msra.mxu0 0.0
        %8331 = vmatprep.subr.mxu0 0.0
        %8332 = vmatpush1.msra.mxu0 0.0
        %8333 = vmatprep.subr.mxu0 0.0
        %8334 = vmatpush1.msra.mxu0 0.0
        %8335 = vmatprep.subr.mxu0 0.0
        %8336 = vmatpush1.msra.mxu0 0.0
        %8337 = vmatprep.subr.mxu0 0.0
        %8338 = vmatpush1.msra.mxu0 0.0
        %8339 = vmatprep.subr.mxu0 0.0
        %8340 = vmatpush1.msra.mxu0 0.0
        %8341 = vmatprep.subr.mxu0 0.0
        %8342 = vmatpush1.msra.mxu0 0.0
        %8343 = vmatprep.subr.mxu0 0.0
        %8344 = vmatpush1.msra.mxu0 %v7998
        %8345 = vmatprep.subr.mxu0 0.0
        %8346 = vmatpush1.msra.mxu0 %v7997
        %8347 = vmatprep.subr.mxu0 0.0
        %8348 = vmatpush1.msra.mxu0 %v7996
        %8349 = vmatprep.subr.mxu0 0.0
        %8350 = vmatpush1.msra.mxu0 %v7995
        %8351 = vmatprep.subr.mxu0 0.0
        %8352 = vmatpush2.msra.mxu0 0.0
        %8353 = vmatprep.subr.mxu0 0.0
        %8354 = vmatpush2.msra.mxu0 0.0
        %8355 = vmatprep.subr.mxu0 0.0
        %8356 = vmatpush2.msra.mxu0 0.0
        %8357 = vmatprep.subr.mxu0 0.0
        %8358 = vmatpush2.msra.mxu0 0.0
        %8359 = vmatprep.subr.mxu0 0.0
        %8360 = vmatpush2.msra.mxu0 0.0
        %8361 = vmatprep.subr.mxu0 0.0
        %8362 = vmatpush2.msra.mxu0 0.0
        %8363 = vmatprep.subr.mxu0 0.0
        %8364 = vmatpush2.msra.mxu0 0.0
        %8365 = vmatprep.subr.mxu0 0.0
        %8366 = vmatpush2.msra.mxu0 0.0
        %8367 = vmatprep.subr.mxu0 0.0
        %8368 = vmatpush2.msra.mxu0 0.0
        %8369 = vmatprep.subr.mxu0 0.0
        %8370 = vmatpush2.msra.mxu0 0.0
        %8371 = vmatprep.subr.mxu0 0.0
        %8372 = vmatpush2.msra.mxu0 0.0
        %8373 = vmatprep.subr.mxu0 0.0
        %8374 = vmatpush2.msra.mxu0 0.0
        %8375 = vmatprep.subr.mxu0 0.0
        %8376 = vmatpush2.msra.mxu0 0.0
        %8377 = vmatprep.subr.mxu0 0.0
        %8378 = vmatpush2.msra.mxu0 0.0
        %8379 = vmatprep.subr.mxu0 0.0
        %8380 = vmatpush2.msra.mxu0 0.0
        %8381 = vmatprep.subr.mxu0 0.0
        %8382 = vmatpush2.msra.mxu0 0.0
        %8383 = vmatprep.mubr.f32.mxu0 0.0
        %8384 = vmatmul.mubr.f32.gmra.mxu0 %v8191
        %v8385 = vpop.f32.mrf.mxu0
        %v8386 = vadd.f32 0.0, %v8385
        %v8387 = vpop.f32.mrf.mxu0
        %8388 = vmatprep.mubr.f32.mxu0 0.0
        %8389 = vmatmul.mubr.f32.gmra.mxu0 %v8193
        %v8390 = vpop.f32.mrf.mxu0
        %v8391 = vadd.f32 0.0, %v8390
        %v8392 = vpop.f32.mrf.mxu0
        %8393 = vmatprep.mubr.f32.mxu0 0.0
        %8394 = vmatmul.mubr.f32.gmra.mxu0 %v8195
        %v8395 = vpop.f32.mrf.mxu0
        %v8396 = vadd.f32 0.0, %v8395
        %v8397 = vpop.f32.mrf.mxu0
        %8398 = vmatprep.mubr.f32.mxu0 0.0
        %8399 = vmatmul.mubr.f32.gmra.mxu0 %v8197
        %v8400 = vpop.f32.mrf.mxu0
        %v8401 = vadd.f32 0.0, %v8400
        %v8402 = vpop.f32.mrf.mxu0
        %8403 = vmatprep.mubr.f32.mxu0 0.0
        %8404 = vmatmul.mubr.f32.gmra.mxu0 %v8199
        %v8405 = vpop.f32.mrf.mxu0
        %v8406 = vadd.f32 0.0, %v8405
        %v8407 = vpop.f32.mrf.mxu0
        %8408 = vmatprep.mubr.f32.mxu0 0.0
        %8409 = vmatmul.mubr.f32.gmra.mxu0 %v8201
        %v8410 = vpop.f32.mrf.mxu0
        %v8411 = vadd.f32 0.0, %v8410
        %v8412 = vpop.f32.mrf.mxu0
        %8413 = vmatprep.mubr.f32.mxu0 0.0
        %8414 = vmatmul.mubr.f32.gmra.mxu0 %v8203
        %v8415 = vpop.f32.mrf.mxu0
        %v8416 = vadd.f32 0.0, %v8415
        %v8417 = vpop.f32.mrf.mxu0
        %8418 = vmatprep.mubr.f32.mxu0 0.0
        %8419 = vmatmul.mubr.f32.gmra.mxu0 %v8205
        %v8420 = vpop.f32.mrf.mxu0
        %v8421 = vadd.f32 0.0, %v8420
        %v8422 = vpop.f32.mrf.mxu0
        %8423 = vmatprep.mubr.f32.mxu0 0.0
        %8424 = vmatmul.mubr.f32.gmra.mxu0 %v8207
        %v8425 = vpop.f32.mrf.mxu0
        %v8426 = vadd.f32 0.0, %v8425
        %v8427 = vpop.f32.mrf.mxu0
        %8428 = vmatprep.mubr.f32.mxu0 0.0
        %8429 = vmatmul.mubr.f32.gmra.mxu0 %v8209
        %v8430 = vpop.f32.mrf.mxu0
        %v8431 = vadd.f32 0.0, %v8430
        %v8432 = vpop.f32.mrf.mxu0
        %8433 = vmatprep.mubr.f32.mxu0 0.0
        %8434 = vmatmul.mubr.f32.gmra.mxu0 %v8211
        %v8435 = vpop.f32.mrf.mxu0
        %v8436 = vadd.f32 0.0, %v8435
        %v8437 = vpop.f32.mrf.mxu0
        %8438 = vmatprep.mubr.f32.mxu0 0.0
        %8439 = vmatmul.mubr.f32.gmra.mxu0 %v8213
        %v8440 = vpop.f32.mrf.mxu0
        %v8441 = vadd.f32 0.0, %v8440
        %v8442 = vpop.f32.mrf.mxu0
        %8443 = vmatprep.mubr.f32.mxu0 0.0
        %8444 = vmatmul.mubr.f32.gmra.mxu0 %v8215
        %v8445 = vpop.f32.mrf.mxu0
        %v8446 = vadd.f32 0.0, %v8445
        %v8447 = vpop.f32.mrf.mxu0
        %8448 = vmatprep.mubr.f32.mxu0 0.0
        %8449 = vmatmul.mubr.f32.gmra.mxu0 %v8217
        %v8450 = vpop.f32.mrf.mxu0
        %v8451 = vadd.f32 0.0, %v8450
        %v8452 = vpop.f32.mrf.mxu0
        %8453 = vmatprep.mubr.f32.mxu0 0.0
        %8454 = vmatmul.mubr.f32.gmra.mxu0 %v8219
        %v8455 = vpop.f32.mrf.mxu0
        %v8456 = vadd.f32 0.0, %v8455
        %v8457 = vpop.f32.mrf.mxu0
        %8458 = vmatprep.mubr.f32.mxu0 0.0
        %8459 = vmatmul.mubr.f32.gmra.mxu0 %v8221
        %v8460 = vpop.f32.mrf.mxu0
        %v8461 = vadd.f32 0.0, %v8460
        %v8462 = vpop.f32.mrf.mxu0
        %8463 = vmatprep.mubr.f32.mxu0 0.0
        %8464 = vmatmul.mubr.f32.gmra.mxu0 %v8223
        %v8465 = vpop.f32.mrf.mxu0
        %v8466 = vadd.f32 0.0, %v8465
        %v8467 = vpop.f32.mrf.mxu0
        %8468 = vmatprep.mubr.f32.mxu0 0.0
        %8469 = vmatmul.mubr.f32.gmra.mxu0 %v8225
        %v8470 = vpop.f32.mrf.mxu0
        %v8471 = vadd.f32 0.0, %v8470
        %v8472 = vpop.f32.mrf.mxu0
        %8473 = vmatprep.mubr.f32.mxu0 0.0
        %8474 = vmatmul.mubr.f32.gmra.mxu0 %v8227
        %v8475 = vpop.f32.mrf.mxu0
        %v8476 = vadd.f32 0.0, %v8475
        %v8477 = vpop.f32.mrf.mxu0
        %8478 = vmatprep.mubr.f32.mxu0 0.0
        %8479 = vmatmul.mubr.f32.gmra.mxu0 %v8229
        %v8480 = vpop.f32.mrf.mxu0
        %v8481 = vadd.f32 0.0, %v8480
        %v8482 = vpop.f32.mrf.mxu0
        %8483 = vmatprep.mubr.f32.mxu0 0.0
        %8484 = vmatmul.mubr.f32.gmra.mxu0 %v8231
        %v8485 = vpop.f32.mrf.mxu0
        %v8486 = vadd.f32 0.0, %v8485
        %v8487 = vpop.f32.mrf.mxu0
        %8488 = vmatprep.mubr.f32.mxu0 0.0
        %8489 = vmatmul.mubr.f32.gmra.mxu0 %v8233
        %v8490 = vpop.f32.mrf.mxu0
        %v8491 = vadd.f32 0.0, %v8490
        %v8492 = vpop.f32.mrf.mxu0
        %8493 = vmatprep.mubr.f32.mxu0 0.0
        %8494 = vmatmul.mubr.f32.gmra.mxu0 %v8235
        %v8495 = vpop.f32.mrf.mxu0
        %v8496 = vadd.f32 0.0, %v8495
        %v8497 = vpop.f32.mrf.mxu0
        %8498 = vmatprep.mubr.f32.mxu0 0.0
        %8499 = vmatmul.mubr.f32.gmra.mxu0 %v8237
        %v8500 = vpop.f32.mrf.mxu0
        %v8501 = vadd.f32 0.0, %v8500
        %v8502 = vpop.f32.mrf.mxu0
        %8503 = vmatprep.mubr.f32.mxu0 0.0
        %8504 = vmatmul.mubr.f32.gmra.mxu0 %v8239
        %v8505 = vpop.f32.mrf.mxu0
        %v8506 = vadd.f32 0.0, %v8505
        %v8507 = vpop.f32.mrf.mxu0
        %8508 = vmatprep.mubr.f32.mxu0 0.0
        %8509 = vmatmul.mubr.f32.gmra.mxu0 %v8241
        %v8510 = vpop.f32.mrf.mxu0
        %v8511 = vadd.f32 0.0, %v8510
        %v8512 = vpop.f32.mrf.mxu0
        %8513 = vmatprep.mubr.f32.mxu0 0.0
        %8514 = vmatmul.mubr.f32.gmra.mxu0 %v8243
        %v8515 = vpop.f32.mrf.mxu0
        %v8516 = vadd.f32 0.0, %v8515
        %v8517 = vpop.f32.mrf.mxu0
        %8518 = vmatprep.mubr.f32.mxu0 0.0
        %8519 = vmatmul.mubr.f32.gmra.mxu0 %v8245
        %v8520 = vpop.f32.mrf.mxu0
        %v8521 = vadd.f32 0.0, %v8520
        %v8522 = vpop.f32.mrf.mxu0
        %8523 = vmatprep.mubr.f32.mxu0 0.0
        %8524 = vmatmul.mubr.f32.gmra.mxu0 %v8247
        %v8525 = vpop.f32.mrf.mxu0
        %v8526 = vadd.f32 0.0, %v8525
        %v8527 = vpop.f32.mrf.mxu0
        %8528 = vmatprep.mubr.f32.mxu0 0.0
        %8529 = vmatmul.mubr.f32.gmra.mxu0 %v8249
        %v8530 = vpop.f32.mrf.mxu0
        %v8531 = vadd.f32 0.0, %v8530
        %v8532 = vpop.f32.mrf.mxu0
        %8533 = vmatprep.mubr.f32.mxu0 0.0
        %8534 = vmatmul.mubr.f32.gmra.mxu0 %v8251
        %v8535 = vpop.f32.mrf.mxu0
        %v8536 = vadd.f32 0.0, %v8535
        %v8537 = vpop.f32.mrf.mxu0
        %8538 = vmatprep.mubr.f32.mxu0 0.0
        %8539 = vmatmul.mubr.f32.gmra.mxu0 %v8253
        %v8540 = vpop.f32.mrf.mxu0
        %v8541 = vadd.f32 0.0, %v8540
        %v8542 = vpop.f32.mrf.mxu0
        %8543 = vmatprep.mubr.f32.mxu0 0.0
        %8544 = vmatmul.mubr.f32.gmra.mxu0 %v8255
        %v8545 = vpop.f32.mrf.mxu0
        %v8546 = vadd.f32 0.0, %v8545
        %v8547 = vpop.f32.mrf.mxu0
        %8548 = vmatprep.mubr.f32.mxu0 0.0
        %8549 = vmatmul.mubr.f32.gmra.mxu0 %v8257
        %v8550 = vpop.f32.mrf.mxu0
        %v8551 = vadd.f32 0.0, %v8550
        %v8552 = vpop.f32.mrf.mxu0
        %8553 = vmatprep.mubr.f32.mxu0 0.0
        %8554 = vmatmul.mubr.f32.gmra.mxu0 %v8259
        %v8555 = vpop.f32.mrf.mxu0
        %v8556 = vadd.f32 0.0, %v8555
        %v8557 = vpop.f32.mrf.mxu0
        %8558 = vmatprep.mubr.f32.mxu0 0.0
        %8559 = vmatmul.mubr.f32.gmra.mxu0 %v8261
        %v8560 = vpop.f32.mrf.mxu0
        %v8561 = vadd.f32 0.0, %v8560
        %v8562 = vpop.f32.mrf.mxu0
        %8563 = vmatprep.mubr.f32.mxu0 0.0
        %8564 = vmatmul.mubr.f32.gmra.mxu0 %v8263
        %v8565 = vpop.f32.mrf.mxu0
        %v8566 = vadd.f32 0.0, %v8565
        %v8567 = vpop.f32.mrf.mxu0
        %8568 = vmatprep.mubr.f32.mxu0 0.0
        %8569 = vmatmul.mubr.f32.gmra.mxu0 %v8265
        %v8570 = vpop.f32.mrf.mxu0
        %v8571 = vadd.f32 0.0, %v8570
        %v8572 = vpop.f32.mrf.mxu0
        %8573 = vmatprep.mubr.f32.mxu0 0.0
        %8574 = vmatmul.mubr.f32.gmra.mxu0 %v8267
        %v8575 = vpop.f32.mrf.mxu0
        %v8576 = vadd.f32 0.0, %v8575
        %v8577 = vpop.f32.mrf.mxu0
        %8578 = vmatprep.mubr.f32.mxu0 0.0
        %8579 = vmatmul.mubr.f32.gmra.mxu0 %v8269
        %v8580 = vpop.f32.mrf.mxu0
        %v8581 = vadd.f32 0.0, %v8580
        %v8582 = vpop.f32.mrf.mxu0
        %8583 = vmatprep.mubr.f32.mxu0 0.0
        %8584 = vmatmul.mubr.f32.gmra.mxu0 %v8271
        %v8585 = vpop.f32.mrf.mxu0
        %v8586 = vadd.f32 0.0, %v8585
        %v8587 = vpop.f32.mrf.mxu0
        %8588 = vmatprep.mubr.f32.mxu0 0.0
        %8589 = vmatmul.mubr.f32.gmra.mxu0 %v8273
        %v8590 = vpop.f32.mrf.mxu0
        %v8591 = vadd.f32 0.0, %v8590
        %v8592 = vpop.f32.mrf.mxu0
        %8593 = vmatprep.mubr.f32.mxu0 0.0
        %8594 = vmatmul.mubr.f32.gmra.mxu0 %v8275
        %v8595 = vpop.f32.mrf.mxu0
        %v8596 = vadd.f32 0.0, %v8595
        %v8597 = vpop.f32.mrf.mxu0
        %8598 = vmatprep.mubr.f32.mxu0 0.0
        %8599 = vmatmul.mubr.f32.gmra.mxu0 %v8277
        %v8600 = vpop.f32.mrf.mxu0
        %v8601 = vadd.f32 0.0, %v8600
        %v8602 = vpop.f32.mrf.mxu0
        %8603 = vmatprep.mubr.f32.mxu0 0.0
        %8604 = vmatmul.mubr.f32.gmra.mxu0 %v8279
        %v8605 = vpop.f32.mrf.mxu0
        %v8606 = vadd.f32 0.0, %v8605
        %v8607 = vpop.f32.mrf.mxu0
        %8608 = vmatprep.mubr.f32.mxu0 0.0
        %8609 = vmatmul.mubr.f32.gmra.mxu0 %v8281
        %v8610 = vpop.f32.mrf.mxu0
        %v8611 = vadd.f32 0.0, %v8610
        %v8612 = vpop.f32.mrf.mxu0
        %8613 = vmatprep.mubr.f32.mxu0 0.0
        %8614 = vmatmul.mubr.f32.gmra.mxu0 %v8283
        %v8615 = vpop.f32.mrf.mxu0
        %v8616 = vadd.f32 0.0, %v8615
        %v8617 = vpop.f32.mrf.mxu0
        %8618 = vmatprep.mubr.f32.mxu0 0.0
        %8619 = vmatmul.mubr.f32.gmra.mxu0 %v8285
        %v8620 = vpop.f32.mrf.mxu0
        %v8621 = vadd.f32 0.0, %v8620
        %v8622 = vpop.f32.mrf.mxu0
        %8623 = vmatprep.mubr.f32.mxu0 0.0
        %8624 = vmatmul.mubr.f32.gmra.mxu0 %v8287
        %v8625 = vpop.f32.mrf.mxu0
        %v8626 = vadd.f32 0.0, %v8625
        %v8627 = vpop.f32.mrf.mxu0
        %8628 = vmatprep.mubr.f32.mxu0 0.0
        %8629 = vmatmul.mubr.f32.gmra.mxu0 %v8289
        %v8630 = vpop.f32.mrf.mxu0
        %v8631 = vadd.f32 0.0, %v8630
        %v8632 = vpop.f32.mrf.mxu0
        %8633 = vmatprep.mubr.f32.mxu0 0.0
        %8634 = vmatmul.mubr.f32.gmra.mxu0 %v8291
        %v8635 = vpop.f32.mrf.mxu0
        %v8636 = vadd.f32 0.0, %v8635
        %v8637 = vpop.f32.mrf.mxu0
        %8638 = vmatprep.mubr.f32.mxu0 0.0
        %8639 = vmatmul.mubr.f32.gmra.mxu0 %v8293
        %v8640 = vpop.f32.mrf.mxu0
        %v8641 = vadd.f32 0.0, %v8640
        %v8642 = vpop.f32.mrf.mxu0
        %8643 = vmatprep.mubr.f32.mxu0 0.0
        %8644 = vmatmul.mubr.f32.gmra.mxu0 %v8295
        %v8645 = vpop.f32.mrf.mxu0
        %v8646 = vadd.f32 0.0, %v8645
        %v8647 = vpop.f32.mrf.mxu0
        %8648 = vmatprep.mubr.f32.mxu0 0.0
        %8649 = vmatmul.mubr.f32.gmra.mxu0 %v8297
        %v8650 = vpop.f32.mrf.mxu0
        %v8651 = vadd.f32 0.0, %v8650
        %v8652 = vpop.f32.mrf.mxu0
        %8653 = vmatprep.mubr.f32.mxu0 0.0
        %8654 = vmatmul.mubr.f32.gmra.mxu0 %v8299
        %v8655 = vpop.f32.mrf.mxu0
        %v8656 = vadd.f32 0.0, %v8655
        %v8657 = vpop.f32.mrf.mxu0
        %8658 = vmatprep.mubr.f32.mxu0 0.0
        %8659 = vmatmul.mubr.f32.gmra.mxu0 %v8301
        %v8660 = vpop.f32.mrf.mxu0
        %v8661 = vadd.f32 0.0, %v8660
        %v8662 = vpop.f32.mrf.mxu0
        %8663 = vmatprep.mubr.f32.mxu0 0.0
        %8664 = vmatmul.mubr.f32.gmra.mxu0 %v8303
        %v8665 = vpop.f32.mrf.mxu0
        %v8666 = vadd.f32 0.0, %v8665
        %v8667 = vpop.f32.mrf.mxu0
        %8668 = vmatprep.mubr.f32.mxu0 0.0
        %8669 = vmatmul.mubr.f32.gmra.mxu0 %v8305
        %v8670 = vpop.f32.mrf.mxu0
        %v8671 = vadd.f32 0.0, %v8670
        %v8672 = vpop.f32.mrf.mxu0
        %8673 = vmatprep.mubr.f32.mxu0 0.0
        %8674 = vmatmul.mubr.f32.gmra.mxu0 %v8307
        %v8675 = vpop.f32.mrf.mxu0
        %v8676 = vadd.f32 0.0, %v8675
        %v8677 = vpop.f32.mrf.mxu0
        %8678 = vmatprep.mubr.f32.mxu0 0.0
        %8679 = vmatmul.mubr.f32.gmra.mxu0 %v8309
        %v8680 = vpop.f32.mrf.mxu0
        %v8681 = vadd.f32 0.0, %v8680
        %v8682 = vpop.f32.mrf.mxu0
        %8683 = vmatprep.mubr.f32.mxu0 0.0
        %8684 = vmatmul.mubr.f32.gmra.mxu0 %v8311
        %v8685 = vpop.f32.mrf.mxu0
        %v8686 = vadd.f32 0.0, %v8685
        %v8687 = vpop.f32.mrf.mxu0
        %8688 = vmatprep.mubr.f32.mxu0 0.0
        %8689 = vmatmul.mubr.f32.gmra.mxu0 %v8313
        %v8690 = vpop.f32.mrf.mxu0
        %v8691 = vadd.f32 0.0, %v8690
        %v8692 = vpop.f32.mrf.mxu0
        %8693 = vmatprep.mubr.f32.mxu0 0.0
        %8694 = vmatmul.mubr.f32.gmra.mxu0 %v8315
        %v8695 = vpop.f32.mrf.mxu0
        %v8696 = vadd.f32 0.0, %v8695
        %v8697 = vpop.f32.mrf.mxu0
        %8698 = vmatprep.mubr.f32.mxu0 0.0
        %8699 = vmatmul.mubr.f32.gmra.mxu0 %v8317
        %v8700 = vpop.f32.mrf.mxu0
        %v8701 = vadd.f32 0.0, %v8700
        %v8702 = vpop.f32.mrf.mxu0
        %8703 = vdwg.mxu0
        %8768 = vrot.lane.b32.xlu0 %v8386, 96
        %v8769 = vpop.permute.xlu0 %8768
        %8770 = vrot.lane.b32.xlu0 %v8391, 96
        %v8771 = vpop.permute.xlu0 %8770
        %8772 = vrot.lane.b32.xlu0 %v8396, 96
        %v8773 = vpop.permute.xlu0 %8772
        %8774 = vrot.lane.b32.xlu0 %v8401, 96
        %v8775 = vpop.permute.xlu0 %8774
        %8776 = vrot.lane.b32.xlu0 %v8406, 96
        %v8777 = vpop.permute.xlu0 %8776
        %8778 = vrot.lane.b32.xlu0 %v8411, 96
        %v8779 = vpop.permute.xlu0 %8778
        %8780 = vrot.lane.b32.xlu0 %v8416, 96
        %v8781 = vpop.permute.xlu0 %8780
        %8782 = vrot.lane.b32.xlu0 %v8421, 96
        %v8783 = vpop.permute.xlu0 %8782
        %8784 = vrot.lane.b32.xlu0 %v8426, 96
        %v8785 = vpop.permute.xlu0 %8784
        %8786 = vrot.lane.b32.xlu0 %v8431, 96
        %v8787 = vpop.permute.xlu0 %8786
        %8788 = vrot.lane.b32.xlu0 %v8436, 96
        %v8789 = vpop.permute.xlu0 %8788
        %8790 = vrot.lane.b32.xlu0 %v8441, 96
        %v8791 = vpop.permute.xlu0 %8790
        %8792 = vrot.lane.b32.xlu0 %v8446, 96
        %v8793 = vpop.permute.xlu0 %8792
        %8794 = vrot.lane.b32.xlu0 %v8451, 96
        %v8795 = vpop.permute.xlu0 %8794
        %8796 = vrot.lane.b32.xlu0 %v8456, 96
        %v8797 = vpop.permute.xlu0 %8796
        %8798 = vrot.lane.b32.xlu0 %v8461, 96
        %v8799 = vpop.permute.xlu0 %8798
        %8800 = vrot.lane.b32.xlu0 %v8466, 96
        %v8801 = vpop.permute.xlu0 %8800
        %8802 = vrot.lane.b32.xlu0 %v8471, 96
        %v8803 = vpop.permute.xlu0 %8802
        %8804 = vrot.lane.b32.xlu0 %v8476, 96
        %v8805 = vpop.permute.xlu0 %8804
        %8806 = vrot.lane.b32.xlu0 %v8481, 96
        %v8807 = vpop.permute.xlu0 %8806
        %8808 = vrot.lane.b32.xlu0 %v8486, 96
        %v8809 = vpop.permute.xlu0 %8808
        %8810 = vrot.lane.b32.xlu0 %v8491, 96
        %v8811 = vpop.permute.xlu0 %8810
        %8812 = vrot.lane.b32.xlu0 %v8496, 96
        %v8813 = vpop.permute.xlu0 %8812
        %8814 = vrot.lane.b32.xlu0 %v8501, 96
        %v8815 = vpop.permute.xlu0 %8814
        %8816 = vrot.lane.b32.xlu0 %v8506, 96
        %v8817 = vpop.permute.xlu0 %8816
        %8818 = vrot.lane.b32.xlu0 %v8511, 96
        %v8819 = vpop.permute.xlu0 %8818
        %8820 = vrot.lane.b32.xlu0 %v8516, 96
        %v8821 = vpop.permute.xlu0 %8820
        %8822 = vrot.lane.b32.xlu0 %v8521, 96
        %v8823 = vpop.permute.xlu0 %8822
        %8824 = vrot.lane.b32.xlu0 %v8526, 96
        %v8825 = vpop.permute.xlu0 %8824
        %8826 = vrot.lane.b32.xlu0 %v8531, 96
        %v8827 = vpop.permute.xlu0 %8826
        %8828 = vrot.lane.b32.xlu0 %v8536, 96
        %v8829 = vpop.permute.xlu0 %8828
        %8830 = vrot.lane.b32.xlu0 %v8541, 96
        %v8831 = vpop.permute.xlu0 %8830
        %8832 = vrot.lane.b32.xlu0 %v8546, 96
        %v8833 = vpop.permute.xlu0 %8832
        %8834 = vrot.lane.b32.xlu0 %v8551, 96
        %v8835 = vpop.permute.xlu0 %8834
        %8836 = vrot.lane.b32.xlu0 %v8556, 96
        %v8837 = vpop.permute.xlu0 %8836
        %8838 = vrot.lane.b32.xlu0 %v8561, 96
        %v8839 = vpop.permute.xlu0 %8838
        %8840 = vrot.lane.b32.xlu0 %v8566, 96
        %v8841 = vpop.permute.xlu0 %8840
        %8842 = vrot.lane.b32.xlu0 %v8571, 96
        %v8843 = vpop.permute.xlu0 %8842
        %8844 = vrot.lane.b32.xlu0 %v8576, 96
        %v8845 = vpop.permute.xlu0 %8844
        %8846 = vrot.lane.b32.xlu0 %v8581, 96
        %v8847 = vpop.permute.xlu0 %8846
        %8848 = vrot.lane.b32.xlu0 %v8586, 96
        %v8849 = vpop.permute.xlu0 %8848
        %8850 = vrot.lane.b32.xlu0 %v8591, 96
        %v8851 = vpop.permute.xlu0 %8850
        %8852 = vrot.lane.b32.xlu0 %v8596, 96
        %v8853 = vpop.permute.xlu0 %8852
        %8854 = vrot.lane.b32.xlu0 %v8601, 96
        %v8855 = vpop.permute.xlu0 %8854
        %8856 = vrot.lane.b32.xlu0 %v8606, 96
        %v8857 = vpop.permute.xlu0 %8856
        %8858 = vrot.lane.b32.xlu0 %v8611, 96
        %v8859 = vpop.permute.xlu0 %8858
        %8860 = vrot.lane.b32.xlu0 %v8616, 96
        %v8861 = vpop.permute.xlu0 %8860
        %8862 = vrot.lane.b32.xlu0 %v8621, 96
        %v8863 = vpop.permute.xlu0 %8862
        %8864 = vrot.lane.b32.xlu0 %v8626, 96
        %v8865 = vpop.permute.xlu0 %8864
        %8866 = vrot.lane.b32.xlu0 %v8631, 96
        %v8867 = vpop.permute.xlu0 %8866
        %8868 = vrot.lane.b32.xlu0 %v8636, 96
        %v8869 = vpop.permute.xlu0 %8868
        %8870 = vrot.lane.b32.xlu0 %v8641, 96
        %v8871 = vpop.permute.xlu0 %8870
        %8872 = vrot.lane.b32.xlu0 %v8646, 96
        %v8873 = vpop.permute.xlu0 %8872
        %8874 = vrot.lane.b32.xlu0 %v8651, 96
        %v8875 = vpop.permute.xlu0 %8874
        %8876 = vrot.lane.b32.xlu0 %v8656, 96
        %v8877 = vpop.permute.xlu0 %8876
        %8878 = vrot.lane.b32.xlu0 %v8661, 96
        %v8879 = vpop.permute.xlu0 %8878
        %8880 = vrot.lane.b32.xlu0 %v8666, 96
        %v8881 = vpop.permute.xlu0 %8880
        %8882 = vrot.lane.b32.xlu0 %v8671, 96
        %v8883 = vpop.permute.xlu0 %8882
        %8884 = vrot.lane.b32.xlu0 %v8676, 96
        %v8885 = vpop.permute.xlu0 %8884
        %8886 = vrot.lane.b32.xlu0 %v8681, 96
        %v8887 = vpop.permute.xlu0 %8886
        %8888 = vrot.lane.b32.xlu0 %v8686, 96
        %v8889 = vpop.permute.xlu0 %8888
        %8890 = vrot.lane.b32.xlu0 %v8691, 96
        %v8891 = vpop.permute.xlu0 %8890
        %8892 = vrot.lane.b32.xlu0 %v8696, 96
        %v8893 = vpop.permute.xlu0 %8892
        %8894 = vrot.lane.b32.xlu0 %v8701, 96
        %v8895 = vpop.permute.xlu0 %8894
        %v8960 = vadd.f32 %v7227, %v8769
        %v8961 = vadd.f32 %v7228, %v8771
        %v8962 = vadd.f32 %v7229, %v8773
        %v8963 = vadd.f32 %v7230, %v8775
        %v8964 = vadd.f32 %v7231, %v8777
        %v8965 = vadd.f32 %v7232, %v8779
        %v8966 = vadd.f32 %v7233, %v8781
        %v8967 = vadd.f32 %v7234, %v8783
        %v8968 = vadd.f32 %v7235, %v8785
        %v8969 = vadd.f32 %v7236, %v8787
        %v8970 = vadd.f32 %v7237, %v8789
        %v8971 = vadd.f32 %v7238, %v8791
        %v8972 = vadd.f32 %v7239, %v8793
        %v8973 = vadd.f32 %v7240, %v8795
        %v8974 = vadd.f32 %v7241, %v8797
        %v8975 = vadd.f32 %v7242, %v8799
        %v8976 = vadd.f32 %v7243, %v8801
        %v8977 = vadd.f32 %v7244, %v8803
        %v8978 = vadd.f32 %v7245, %v8805
        %v8979 = vadd.f32 %v7246, %v8807
        %v8980 = vadd.f32 %v7247, %v8809
        %v8981 = vadd.f32 %v7248, %v8811
        %v8982 = vadd.f32 %v7249, %v8813
        %v8983 = vadd.f32 %v7250, %v8815
        %v8984 = vadd.f32 %v7251, %v8817
        %v8985 = vadd.f32 %v7252, %v8819
        %v8986 = vadd.f32 %v7253, %v8821
        %v8987 = vadd.f32 %v7254, %v8823
        %v8988 = vadd.f32 %v7255, %v8825
        %v8989 = vadd.f32 %v7256, %v8827
        %v8990 = vadd.f32 %v7257, %v8829
        %v8991 = vadd.f32 %v7258, %v8831
        %v8992 = vadd.f32 %v7259, %v8833
        %v8993 = vadd.f32 %v7260, %v8835
        %v8994 = vadd.f32 %v7261, %v8837
        %v8995 = vadd.f32 %v7262, %v8839
        %v8996 = vadd.f32 %v7263, %v8841
        %v8997 = vadd.f32 %v7264, %v8843
        %v8998 = vadd.f32 %v7265, %v8845
        %v8999 = vadd.f32 %v7266, %v8847
        %v9000 = vadd.f32 %v7267, %v8849
        %v9001 = vadd.f32 %v7268, %v8851
        %v9002 = vadd.f32 %v7269, %v8853
        %v9003 = vadd.f32 %v7270, %v8855
        %v9004 = vadd.f32 %v7271, %v8857
        %v9005 = vadd.f32 %v7272, %v8859
        %v9006 = vadd.f32 %v7273, %v8861
        %v9007 = vadd.f32 %v7274, %v8863
        %v9008 = vadd.f32 %v7275, %v8865
        %v9009 = vadd.f32 %v7276, %v8867
        %v9010 = vadd.f32 %v7277, %v8869
        %v9011 = vadd.f32 %v7278, %v8871
        %v9012 = vadd.f32 %v7279, %v8873
        %v9013 = vadd.f32 %v7280, %v8875
        %v9014 = vadd.f32 %v7281, %v8877
        %v9015 = vadd.f32 %v7282, %v8879
        %v9016 = vadd.f32 %v7283, %v8881
        %v9017 = vadd.f32 %v7284, %v8883
        %v9018 = vadd.f32 %v7285, %v8885
        %v9019 = vadd.f32 %v7286, %v8887
        %v9020 = vadd.f32 %v7287, %v8889
        %v9021 = vadd.f32 %v7288, %v8891
        %v9022 = vadd.f32 %v7289, %v8893
        %v9023 = vadd.f32 %v7290, %v8895
        %v9024 = vtanh.pop %v8960
        %v9025 = vtanh.pop %v8961
        %v9026 = vtanh.pop %v8962
        %v9027 = vtanh.pop %v8963
        %v9028 = vtanh.pop %v8964
        %v9029 = vtanh.pop %v8965
        %v9030 = vtanh.pop %v8966
        %v9031 = vtanh.pop %v8967
        %v9032 = vtanh.pop %v8968
        %v9033 = vtanh.pop %v8969
        %v9034 = vtanh.pop %v8970
        %v9035 = vtanh.pop %v8971
        %v9036 = vtanh.pop %v8972
        %v9037 = vtanh.pop %v8973
        %v9038 = vtanh.pop %v8974
        %v9039 = vtanh.pop %v8975
        %v9040 = vtanh.pop %v8976
        %v9041 = vtanh.pop %v8977
        %v9042 = vtanh.pop %v8978
        %v9043 = vtanh.pop %v8979
        %v9044 = vtanh.pop %v8980
        %v9045 = vtanh.pop %v8981
        %v9046 = vtanh.pop %v8982
        %v9047 = vtanh.pop %v8983
        %v9048 = vtanh.pop %v8984
        %v9049 = vtanh.pop %v8985
        %v9050 = vtanh.pop %v8986
        %v9051 = vtanh.pop %v8987
        %v9052 = vtanh.pop %v8988
        %v9053 = vtanh.pop %v8989
        %v9054 = vtanh.pop %v8990
        %v9055 = vtanh.pop %v8991
        %v9056 = vtanh.pop %v8992
        %v9057 = vtanh.pop %v8993
        %v9058 = vtanh.pop %v8994
        %v9059 = vtanh.pop %v8995
        %v9060 = vtanh.pop %v8996
        %v9061 = vtanh.pop %v8997
        %v9062 = vtanh.pop %v8998
        %v9063 = vtanh.pop %v8999
        %v9064 = vtanh.pop %v9000
        %v9065 = vtanh.pop %v9001
        %v9066 = vtanh.pop %v9002
        %v9067 = vtanh.pop %v9003
        %v9068 = vtanh.pop %v9004
        %v9069 = vtanh.pop %v9005
        %v9070 = vtanh.pop %v9006
        %v9071 = vtanh.pop %v9007
        %v9072 = vtanh.pop %v9008
        %v9073 = vtanh.pop %v9009
        %v9074 = vtanh.pop %v9010
        %v9075 = vtanh.pop %v9011
        %v9076 = vtanh.pop %v9012
        %v9077 = vtanh.pop %v9013
        %v9078 = vtanh.pop %v9014
        %v9079 = vtanh.pop %v9015
        %v9080 = vtanh.pop %v9016
        %v9081 = vtanh.pop %v9017
        %v9082 = vtanh.pop %v9018
        %v9083 = vtanh.pop %v9019
        %v9084 = vtanh.pop %v9020
        %v9085 = vtanh.pop %v9021
        %v9086 = vtanh.pop %v9022
        %v9087 = vtanh.pop %v9023
        %9088 = vrot.lane.b32.xlu0 %v7227, 64
        %v9089 = vpop.permute.xlu0 %9088
        %9090 = vrot.lane.b32.xlu0 %v7228, 64
        %v9091 = vpop.permute.xlu0 %9090
        %9092 = vrot.lane.b32.xlu0 %v7229, 64
        %v9093 = vpop.permute.xlu0 %9092
        %9094 = vrot.lane.b32.xlu0 %v7230, 64
        %v9095 = vpop.permute.xlu0 %9094
        %9096 = vrot.lane.b32.xlu0 %v7231, 64
        %v9097 = vpop.permute.xlu0 %9096
        %9098 = vrot.lane.b32.xlu0 %v7232, 64
        %v9099 = vpop.permute.xlu0 %9098
        %9100 = vrot.lane.b32.xlu0 %v7233, 64
        %v9101 = vpop.permute.xlu0 %9100
        %9102 = vrot.lane.b32.xlu0 %v7234, 64
        %v9103 = vpop.permute.xlu0 %9102
        %9104 = vrot.lane.b32.xlu0 %v7235, 64
        %v9105 = vpop.permute.xlu0 %9104
        %9106 = vrot.lane.b32.xlu0 %v7236, 64
        %v9107 = vpop.permute.xlu0 %9106
        %9108 = vrot.lane.b32.xlu0 %v7237, 64
        %v9109 = vpop.permute.xlu0 %9108
        %9110 = vrot.lane.b32.xlu0 %v7238, 64
        %v9111 = vpop.permute.xlu0 %9110
        %9112 = vrot.lane.b32.xlu0 %v7239, 64
        %v9113 = vpop.permute.xlu0 %9112
        %9114 = vrot.lane.b32.xlu0 %v7240, 64
        %v9115 = vpop.permute.xlu0 %9114
        %9116 = vrot.lane.b32.xlu0 %v7241, 64
        %v9117 = vpop.permute.xlu0 %9116
        %9118 = vrot.lane.b32.xlu0 %v7242, 64
        %v9119 = vpop.permute.xlu0 %9118
        %9120 = vrot.lane.b32.xlu0 %v7243, 64
        %v9121 = vpop.permute.xlu0 %9120
        %9122 = vrot.lane.b32.xlu0 %v7244, 64
        %v9123 = vpop.permute.xlu0 %9122
        %9124 = vrot.lane.b32.xlu0 %v7245, 64
        %v9125 = vpop.permute.xlu0 %9124
        %9126 = vrot.lane.b32.xlu0 %v7246, 64
        %v9127 = vpop.permute.xlu0 %9126
        %9128 = vrot.lane.b32.xlu0 %v7247, 64
        %v9129 = vpop.permute.xlu0 %9128
        %9130 = vrot.lane.b32.xlu0 %v7248, 64
        %v9131 = vpop.permute.xlu0 %9130
        %9132 = vrot.lane.b32.xlu0 %v7249, 64
        %v9133 = vpop.permute.xlu0 %9132
        %9134 = vrot.lane.b32.xlu0 %v7250, 64
        %v9135 = vpop.permute.xlu0 %9134
        %9136 = vrot.lane.b32.xlu0 %v7251, 64
        %v9137 = vpop.permute.xlu0 %9136
        %9138 = vrot.lane.b32.xlu0 %v7252, 64
        %v9139 = vpop.permute.xlu0 %9138
        %9140 = vrot.lane.b32.xlu0 %v7253, 64
        %v9141 = vpop.permute.xlu0 %9140
        %9142 = vrot.lane.b32.xlu0 %v7254, 64
        %v9143 = vpop.permute.xlu0 %9142
        %9144 = vrot.lane.b32.xlu0 %v7255, 64
        %v9145 = vpop.permute.xlu0 %9144
        %9146 = vrot.lane.b32.xlu0 %v7256, 64
        %v9147 = vpop.permute.xlu0 %9146
        %9148 = vrot.lane.b32.xlu0 %v7257, 64
        %v9149 = vpop.permute.xlu0 %9148
        %9150 = vrot.lane.b32.xlu0 %v7258, 64
        %v9151 = vpop.permute.xlu0 %9150
        %9152 = vrot.lane.b32.xlu0 %v7259, 64
        %v9153 = vpop.permute.xlu0 %9152
        %9154 = vrot.lane.b32.xlu0 %v7260, 64
        %v9155 = vpop.permute.xlu0 %9154
        %9156 = vrot.lane.b32.xlu0 %v7261, 64
        %v9157 = vpop.permute.xlu0 %9156
        %9158 = vrot.lane.b32.xlu0 %v7262, 64
        %v9159 = vpop.permute.xlu0 %9158
        %9160 = vrot.lane.b32.xlu0 %v7263, 64
        %v9161 = vpop.permute.xlu0 %9160
        %9162 = vrot.lane.b32.xlu0 %v7264, 64
        %v9163 = vpop.permute.xlu0 %9162
        %9164 = vrot.lane.b32.xlu0 %v7265, 64
        %v9165 = vpop.permute.xlu0 %9164
        %9166 = vrot.lane.b32.xlu0 %v7266, 64
        %v9167 = vpop.permute.xlu0 %9166
        %9168 = vrot.lane.b32.xlu0 %v7267, 64
        %v9169 = vpop.permute.xlu0 %9168
        %9170 = vrot.lane.b32.xlu0 %v7268, 64
        %v9171 = vpop.permute.xlu0 %9170
        %9172 = vrot.lane.b32.xlu0 %v7269, 64
        %v9173 = vpop.permute.xlu0 %9172
        %9174 = vrot.lane.b32.xlu0 %v7270, 64
        %v9175 = vpop.permute.xlu0 %9174
        %9176 = vrot.lane.b32.xlu0 %v7271, 64
        %v9177 = vpop.permute.xlu0 %9176
        %9178 = vrot.lane.b32.xlu0 %v7272, 64
        %v9179 = vpop.permute.xlu0 %9178
        %9180 = vrot.lane.b32.xlu0 %v7273, 64
        %v9181 = vpop.permute.xlu0 %9180
        %9182 = vrot.lane.b32.xlu0 %v7274, 64
        %v9183 = vpop.permute.xlu0 %9182
        %9184 = vrot.lane.b32.xlu0 %v7275, 64
        %v9185 = vpop.permute.xlu0 %9184
        %9186 = vrot.lane.b32.xlu0 %v7276, 64
        %v9187 = vpop.permute.xlu0 %9186
        %9188 = vrot.lane.b32.xlu0 %v7277, 64
        %v9189 = vpop.permute.xlu0 %9188
        %9190 = vrot.lane.b32.xlu0 %v7278, 64
        %v9191 = vpop.permute.xlu0 %9190
        %9192 = vrot.lane.b32.xlu0 %v7279, 64
        %v9193 = vpop.permute.xlu0 %9192
        %9194 = vrot.lane.b32.xlu0 %v7280, 64
        %v9195 = vpop.permute.xlu0 %9194
        %9196 = vrot.lane.b32.xlu0 %v7281, 64
        %v9197 = vpop.permute.xlu0 %9196
        %9198 = vrot.lane.b32.xlu0 %v7282, 64
        %v9199 = vpop.permute.xlu0 %9198
        %9200 = vrot.lane.b32.xlu0 %v7283, 64
        %v9201 = vpop.permute.xlu0 %9200
        %9202 = vrot.lane.b32.xlu0 %v7284, 64
        %v9203 = vpop.permute.xlu0 %9202
        %9204 = vrot.lane.b32.xlu0 %v7285, 64
        %v9205 = vpop.permute.xlu0 %9204
        %9206 = vrot.lane.b32.xlu0 %v7286, 64
        %v9207 = vpop.permute.xlu0 %9206
        %9208 = vrot.lane.b32.xlu0 %v7287, 64
        %v9209 = vpop.permute.xlu0 %9208
        %9210 = vrot.lane.b32.xlu0 %v7288, 64
        %v9211 = vpop.permute.xlu0 %9210
        %9212 = vrot.lane.b32.xlu0 %v7289, 64
        %v9213 = vpop.permute.xlu0 %9212
        %9214 = vrot.lane.b32.xlu0 %v7290, 64
        %v9215 = vpop.permute.xlu0 %9214
        %v9280 = vmul.f32 %v7548, %v9089
        %v9281 = vmul.f32 %v7550, %v9091
        %v9282 = vmul.f32 %v7552, %v9093
        %v9283 = vmul.f32 %v7554, %v9095
        %v9284 = vmul.f32 %v7556, %v9097
        %v9285 = vmul.f32 %v7558, %v9099
        %v9286 = vmul.f32 %v7560, %v9101
        %v9287 = vmul.f32 %v7562, %v9103
        %v9288 = vmul.f32 %v7564, %v9105
        %v9289 = vmul.f32 %v7566, %v9107
        %v9290 = vmul.f32 %v7568, %v9109
        %v9291 = vmul.f32 %v7570, %v9111
        %v9292 = vmul.f32 %v7572, %v9113
        %v9293 = vmul.f32 %v7574, %v9115
        %v9294 = vmul.f32 %v7576, %v9117
        %v9295 = vmul.f32 %v7578, %v9119
        %v9296 = vmul.f32 %v7580, %v9121
        %v9297 = vmul.f32 %v7582, %v9123
        %v9298 = vmul.f32 %v7584, %v9125
        %v9299 = vmul.f32 %v7586, %v9127
        %v9300 = vmul.f32 %v7588, %v9129
        %v9301 = vmul.f32 %v7590, %v9131
        %v9302 = vmul.f32 %v7592, %v9133
        %v9303 = vmul.f32 %v7594, %v9135
        %v9304 = vmul.f32 %v7596, %v9137
        %v9305 = vmul.f32 %v7598, %v9139
        %v9306 = vmul.f32 %v7600, %v9141
        %v9307 = vmul.f32 %v7602, %v9143
        %v9308 = vmul.f32 %v7604, %v9145
        %v9309 = vmul.f32 %v7606, %v9147
        %v9310 = vmul.f32 %v7608, %v9149
        %v9311 = vmul.f32 %v7610, %v9151
        %v9312 = vmul.f32 %v7612, %v9153
        %v9313 = vmul.f32 %v7614, %v9155
        %v9314 = vmul.f32 %v7616, %v9157
        %v9315 = vmul.f32 %v7618, %v9159
        %v9316 = vmul.f32 %v7620, %v9161
        %v9317 = vmul.f32 %v7622, %v9163
        %v9318 = vmul.f32 %v7624, %v9165
        %v9319 = vmul.f32 %v7626, %v9167
        %v9320 = vmul.f32 %v7628, %v9169
        %v9321 = vmul.f32 %v7630, %v9171
        %v9322 = vmul.f32 %v7632, %v9173
        %v9323 = vmul.f32 %v7634, %v9175
        %v9324 = vmul.f32 %v7636, %v9177
        %v9325 = vmul.f32 %v7638, %v9179
        %v9326 = vmul.f32 %v7640, %v9181
        %v9327 = vmul.f32 %v7642, %v9183
        %v9328 = vmul.f32 %v7644, %v9185
        %v9329 = vmul.f32 %v7646, %v9187
        %v9330 = vmul.f32 %v7648, %v9189
        %v9331 = vmul.f32 %v7650, %v9191
        %v9332 = vmul.f32 %v7652, %v9193
        %v9333 = vmul.f32 %v7654, %v9195
        %v9334 = vmul.f32 %v7656, %v9197
        %v9335 = vmul.f32 %v7658, %v9199
        %v9336 = vmul.f32 %v7660, %v9201
        %v9337 = vmul.f32 %v7662, %v9203
        %v9338 = vmul.f32 %v7664, %v9205
        %v9339 = vmul.f32 %v7666, %v9207
        %v9340 = vmul.f32 %v7668, %v9209
        %v9341 = vmul.f32 %v7670, %v9211
        %v9342 = vmul.f32 %v7672, %v9213
        %v9343 = vmul.f32 %v7674, %v9215
        %v9344 = vsub.f32 1.0, %v7548
        %v9345 = vsub.f32 1.0, %v7550
        %v9346 = vsub.f32 1.0, %v7552
        %v9347 = vsub.f32 1.0, %v7554
        %v9348 = vsub.f32 1.0, %v7556
        %v9349 = vsub.f32 1.0, %v7558
        %v9350 = vsub.f32 1.0, %v7560
        %v9351 = vsub.f32 1.0, %v7562
        %v9352 = vsub.f32 1.0, %v7564
        %v9353 = vsub.f32 1.0, %v7566
        %v9354 = vsub.f32 1.0, %v7568
        %v9355 = vsub.f32 1.0, %v7570
        %v9356 = vsub.f32 1.0, %v7572
        %v9357 = vsub.f32 1.0, %v7574
        %v9358 = vsub.f32 1.0, %v7576
        %v9359 = vsub.f32 1.0, %v7578
        %v9360 = vsub.f32 1.0, %v7580
        %v9361 = vsub.f32 1.0, %v7582
        %v9362 = vsub.f32 1.0, %v7584
        %v9363 = vsub.f32 1.0, %v7586
        %v9364 = vsub.f32 1.0, %v7588
        %v9365 = vsub.f32 1.0, %v7590
        %v9366 = vsub.f32 1.0, %v7592
        %v9367 = vsub.f32 1.0, %v7594
        %v9368 = vsub.f32 1.0, %v7596
        %v9369 = vsub.f32 1.0, %v7598
        %v9370 = vsub.f32 1.0, %v7600
        %v9371 = vsub.f32 1.0, %v7602
        %v9372 = vsub.f32 1.0, %v7604
        %v9373 = vsub.f32 1.0, %v7606
        %v9374 = vsub.f32 1.0, %v7608
        %v9375 = vsub.f32 1.0, %v7610
        %v9376 = vsub.f32 1.0, %v7612
        %v9377 = vsub.f32 1.0, %v7614
        %v9378 = vsub.f32 1.0, %v7616
        %v9379 = vsub.f32 1.0, %v7618
        %v9380 = vsub.f32 1.0, %v7620
        %v9381 = vsub.f32 1.0, %v7622
        %v9382 = vsub.f32 1.0, %v7624
        %v9383 = vsub.f32 1.0, %v7626
        %v9384 = vsub.f32 1.0, %v7628
        %v9385 = vsub.f32 1.0, %v7630
        %v9386 = vsub.f32 1.0, %v7632
        %v9387 = vsub.f32 1.0, %v7634
        %v9388 = vsub.f32 1.0, %v7636
        %v9389 = vsub.f32 1.0, %v7638
        %v9390 = vsub.f32 1.0, %v7640
        %v9391 = vsub.f32 1.0, %v7642
        %v9392 = vsub.f32 1.0, %v7644
        %v9393 = vsub.f32 1.0, %v7646
        %v9394 = vsub.f32 1.0, %v7648
        %v9395 = vsub.f32 1.0, %v7650
        %v9396 = vsub.f32 1.0, %v7652
        %v9397 = vsub.f32 1.0, %v7654
        %v9398 = vsub.f32 1.0, %v7656
        %v9399 = vsub.f32 1.0, %v7658
        %v9400 = vsub.f32 1.0, %v7660
        %v9401 = vsub.f32 1.0, %v7662
        %v9402 = vsub.f32 1.0, %v7664
        %v9403 = vsub.f32 1.0, %v7666
        %v9404 = vsub.f32 1.0, %v7668
        %v9405 = vsub.f32 1.0, %v7670
        %v9406 = vsub.f32 1.0, %v7672
        %v9407 = vsub.f32 1.0, %v7674
        %9472 = vrot.lane.b32.xlu0 %v9024, 32
        %v9473 = vpop.permute.xlu0 %9472
        %9474 = vrot.lane.b32.xlu0 %v9025, 32
        %v9475 = vpop.permute.xlu0 %9474
        %9476 = vrot.lane.b32.xlu0 %v9026, 32
        %v9477 = vpop.permute.xlu0 %9476
        %9478 = vrot.lane.b32.xlu0 %v9027, 32
        %v9479 = vpop.permute.xlu0 %9478
        %9480 = vrot.lane.b32.xlu0 %v9028, 32
        %v9481 = vpop.permute.xlu0 %9480
        %9482 = vrot.lane.b32.xlu0 %v9029, 32
        %v9483 = vpop.permute.xlu0 %9482
        %9484 = vrot.lane.b32.xlu0 %v9030, 32
        %v9485 = vpop.permute.xlu0 %9484
        %9486 = vrot.lane.b32.xlu0 %v9031, 32
        %v9487 = vpop.permute.xlu0 %9486
        %9488 = vrot.lane.b32.xlu0 %v9032, 32
        %v9489 = vpop.permute.xlu0 %9488
        %9490 = vrot.lane.b32.xlu0 %v9033, 32
        %v9491 = vpop.permute.xlu0 %9490
        %9492 = vrot.lane.b32.xlu0 %v9034, 32
        %v9493 = vpop.permute.xlu0 %9492
        %9494 = vrot.lane.b32.xlu0 %v9035, 32
        %v9495 = vpop.permute.xlu0 %9494
        %9496 = vrot.lane.b32.xlu0 %v9036, 32
        %v9497 = vpop.permute.xlu0 %9496
        %9498 = vrot.lane.b32.xlu0 %v9037, 32
        %v9499 = vpop.permute.xlu0 %9498
        %9500 = vrot.lane.b32.xlu0 %v9038, 32
        %v9501 = vpop.permute.xlu0 %9500
        %9502 = vrot.lane.b32.xlu0 %v9039, 32
        %v9503 = vpop.permute.xlu0 %9502
        %9504 = vrot.lane.b32.xlu0 %v9040, 32
        %v9505 = vpop.permute.xlu0 %9504
        %9506 = vrot.lane.b32.xlu0 %v9041, 32
        %v9507 = vpop.permute.xlu0 %9506
        %9508 = vrot.lane.b32.xlu0 %v9042, 32
        %v9509 = vpop.permute.xlu0 %9508
        %9510 = vrot.lane.b32.xlu0 %v9043, 32
        %v9511 = vpop.permute.xlu0 %9510
        %9512 = vrot.lane.b32.xlu0 %v9044, 32
        %v9513 = vpop.permute.xlu0 %9512
        %9514 = vrot.lane.b32.xlu0 %v9045, 32
        %v9515 = vpop.permute.xlu0 %9514
        %9516 = vrot.lane.b32.xlu0 %v9046, 32
        %v9517 = vpop.permute.xlu0 %9516
        %9518 = vrot.lane.b32.xlu0 %v9047, 32
        %v9519 = vpop.permute.xlu0 %9518
        %9520 = vrot.lane.b32.xlu0 %v9048, 32
        %v9521 = vpop.permute.xlu0 %9520
        %9522 = vrot.lane.b32.xlu0 %v9049, 32
        %v9523 = vpop.permute.xlu0 %9522
        %9524 = vrot.lane.b32.xlu0 %v9050, 32
        %v9525 = vpop.permute.xlu0 %9524
        %9526 = vrot.lane.b32.xlu0 %v9051, 32
        %v9527 = vpop.permute.xlu0 %9526
        %9528 = vrot.lane.b32.xlu0 %v9052, 32
        %v9529 = vpop.permute.xlu0 %9528
        %9530 = vrot.lane.b32.xlu0 %v9053, 32
        %v9531 = vpop.permute.xlu0 %9530
        %9532 = vrot.lane.b32.xlu0 %v9054, 32
        %v9533 = vpop.permute.xlu0 %9532
        %9534 = vrot.lane.b32.xlu0 %v9055, 32
        %v9535 = vpop.permute.xlu0 %9534
        %9536 = vrot.lane.b32.xlu0 %v9056, 32
        %v9537 = vpop.permute.xlu0 %9536
        %9538 = vrot.lane.b32.xlu0 %v9057, 32
        %v9539 = vpop.permute.xlu0 %9538
        %9540 = vrot.lane.b32.xlu0 %v9058, 32
        %v9541 = vpop.permute.xlu0 %9540
        %9542 = vrot.lane.b32.xlu0 %v9059, 32
        %v9543 = vpop.permute.xlu0 %9542
        %9544 = vrot.lane.b32.xlu0 %v9060, 32
        %v9545 = vpop.permute.xlu0 %9544
        %9546 = vrot.lane.b32.xlu0 %v9061, 32
        %v9547 = vpop.permute.xlu0 %9546
        %9548 = vrot.lane.b32.xlu0 %v9062, 32
        %v9549 = vpop.permute.xlu0 %9548
        %9550 = vrot.lane.b32.xlu0 %v9063, 32
        %v9551 = vpop.permute.xlu0 %9550
        %9552 = vrot.lane.b32.xlu0 %v9064, 32
        %v9553 = vpop.permute.xlu0 %9552
        %9554 = vrot.lane.b32.xlu0 %v9065, 32
        %v9555 = vpop.permute.xlu0 %9554
        %9556 = vrot.lane.b32.xlu0 %v9066, 32
        %v9557 = vpop.permute.xlu0 %9556
        %9558 = vrot.lane.b32.xlu0 %v9067, 32
        %v9559 = vpop.permute.xlu0 %9558
        %9560 = vrot.lane.b32.xlu0 %v9068, 32
        %v9561 = vpop.permute.xlu0 %9560
        %9562 = vrot.lane.b32.xlu0 %v9069, 32
        %v9563 = vpop.permute.xlu0 %9562
        %9564 = vrot.lane.b32.xlu0 %v9070, 32
        %v9565 = vpop.permute.xlu0 %9564
        %9566 = vrot.lane.b32.xlu0 %v9071, 32
        %v9567 = vpop.permute.xlu0 %9566
        %9568 = vrot.lane.b32.xlu0 %v9072, 32
        %v9569 = vpop.permute.xlu0 %9568
        %9570 = vrot.lane.b32.xlu0 %v9073, 32
        %v9571 = vpop.permute.xlu0 %9570
        %9572 = vrot.lane.b32.xlu0 %v9074, 32
        %v9573 = vpop.permute.xlu0 %9572
        %9574 = vrot.lane.b32.xlu0 %v9075, 32
        %v9575 = vpop.permute.xlu0 %9574
        %9576 = vrot.lane.b32.xlu0 %v9076, 32
        %v9577 = vpop.permute.xlu0 %9576
        %9578 = vrot.lane.b32.xlu0 %v9077, 32
        %v9579 = vpop.permute.xlu0 %9578
        %9580 = vrot.lane.b32.xlu0 %v9078, 32
        %v9581 = vpop.permute.xlu0 %9580
        %9582 = vrot.lane.b32.xlu0 %v9079, 32
        %v9583 = vpop.permute.xlu0 %9582
        %9584 = vrot.lane.b32.xlu0 %v9080, 32
        %v9585 = vpop.permute.xlu0 %9584
        %9586 = vrot.lane.b32.xlu0 %v9081, 32
        %v9587 = vpop.permute.xlu0 %9586
        %9588 = vrot.lane.b32.xlu0 %v9082, 32
        %v9589 = vpop.permute.xlu0 %9588
        %9590 = vrot.lane.b32.xlu0 %v9083, 32
        %v9591 = vpop.permute.xlu0 %9590
        %9592 = vrot.lane.b32.xlu0 %v9084, 32
        %v9593 = vpop.permute.xlu0 %9592
        %9594 = vrot.lane.b32.xlu0 %v9085, 32
        %v9595 = vpop.permute.xlu0 %9594
        %9596 = vrot.lane.b32.xlu0 %v9086, 32
        %v9597 = vpop.permute.xlu0 %9596
        %9598 = vrot.lane.b32.xlu0 %v9087, 32
        %v9599 = vpop.permute.xlu0 %9598
        %v9664 = vmul.f32 %v9344, %v9473
        %v9665 = vmul.f32 %v9345, %v9475
        %v9666 = vmul.f32 %v9346, %v9477
        %v9667 = vmul.f32 %v9347, %v9479
        %v9668 = vmul.f32 %v9348, %v9481
        %v9669 = vmul.f32 %v9349, %v9483
        %v9670 = vmul.f32 %v9350, %v9485
        %v9671 = vmul.f32 %v9351, %v9487
        %v9672 = vmul.f32 %v9352, %v9489
        %v9673 = vmul.f32 %v9353, %v9491
        %v9674 = vmul.f32 %v9354, %v9493
        %v9675 = vmul.f32 %v9355, %v9495
        %v9676 = vmul.f32 %v9356, %v9497
        %v9677 = vmul.f32 %v9357, %v9499
        %v9678 = vmul.f32 %v9358, %v9501
        %v9679 = vmul.f32 %v9359, %v9503
        %v9680 = vmul.f32 %v9360, %v9505
        %v9681 = vmul.f32 %v9361, %v9507
        %v9682 = vmul.f32 %v9362, %v9509
        %v9683 = vmul.f32 %v9363, %v9511
        %v9684 = vmul.f32 %v9364, %v9513
        %v9685 = vmul.f32 %v9365, %v9515
        %v9686 = vmul.f32 %v9366, %v9517
        %v9687 = vmul.f32 %v9367, %v9519
        %v9688 = vmul.f32 %v9368, %v9521
        %v9689 = vmul.f32 %v9369, %v9523
        %v9690 = vmul.f32 %v9370, %v9525
        %v9691 = vmul.f32 %v9371, %v9527
        %v9692 = vmul.f32 %v9372, %v9529
        %v9693 = vmul.f32 %v9373, %v9531
        %v9694 = vmul.f32 %v9374, %v9533
        %v9695 = vmul.f32 %v9375, %v9535
        %v9696 = vmul.f32 %v9376, %v9537
        %v9697 = vmul.f32 %v9377, %v9539
        %v9698 = vmul.f32 %v9378, %v9541
        %v9699 = vmul.f32 %v9379, %v9543
        %v9700 = vmul.f32 %v9380, %v9545
        %v9701 = vmul.f32 %v9381, %v9547
        %v9702 = vmul.f32 %v9382, %v9549
        %v9703 = vmul.f32 %v9383, %v9551
        %v9704 = vmul.f32 %v9384, %v9553
        %v9705 = vmul.f32 %v9385, %v9555
        %v9706 = vmul.f32 %v9386, %v9557
        %v9707 = vmul.f32 %v9387, %v9559
        %v9708 = vmul.f32 %v9388, %v9561
        %v9709 = vmul.f32 %v9389, %v9563
        %v9710 = vmul.f32 %v9390, %v9565
        %v9711 = vmul.f32 %v9391, %v9567
        %v9712 = vmul.f32 %v9392, %v9569
        %v9713 = vmul.f32 %v9393, %v9571
        %v9714 = vmul.f32 %v9394, %v9573
        %v9715 = vmul.f32 %v9395, %v9575
        %v9716 = vmul.f32 %v9396, %v9577
        %v9717 = vmul.f32 %v9397, %v9579
        %v9718 = vmul.f32 %v9398, %v9581
        %v9719 = vmul.f32 %v9399, %v9583
        %v9720 = vmul.f32 %v9400, %v9585
        %v9721 = vmul.f32 %v9401, %v9587
        %v9722 = vmul.f32 %v9402, %v9589
        %v9723 = vmul.f32 %v9403, %v9591
        %v9724 = vmul.f32 %v9404, %v9593
        %v9725 = vmul.f32 %v9405, %v9595
        %v9726 = vmul.f32 %v9406, %v9597
        %v9727 = vmul.f32 %v9407, %v9599
        %v9728 = vadd.f32 %v9280, %v9664
        %v9729 = vadd.f32 %v9281, %v9665
        %v9730 = vadd.f32 %v9282, %v9666
        %v9731 = vadd.f32 %v9283, %v9667
        %v9732 = vadd.f32 %v9284, %v9668
        %v9733 = vadd.f32 %v9285, %v9669
        %v9734 = vadd.f32 %v9286, %v9670
        %v9735 = vadd.f32 %v9287, %v9671
        %v9736 = vadd.f32 %v9288, %v9672
        %v9737 = vadd.f32 %v9289, %v9673
        %v9738 = vadd.f32 %v9290, %v9674
        %v9739 = vadd.f32 %v9291, %v9675
        %v9740 = vadd.f32 %v9292, %v9676
        %v9741 = vadd.f32 %v9293, %v9677
        %v9742 = vadd.f32 %v9294, %v9678
        %v9743 = vadd.f32 %v9295, %v9679
        %v9744 = vadd.f32 %v9296, %v9680
        %v9745 = vadd.f32 %v9297, %v9681
        %v9746 = vadd.f32 %v9298, %v9682
        %v9747 = vadd.f32 %v9299, %v9683
        %v9748 = vadd.f32 %v9300, %v9684
        %v9749 = vadd.f32 %v9301, %v9685
        %v9750 = vadd.f32 %v9302, %v9686
        %v9751 = vadd.f32 %v9303, %v9687
        %v9752 = vadd.f32 %v9304, %v9688
        %v9753 = vadd.f32 %v9305, %v9689
        %v9754 = vadd.f32 %v9306, %v9690
        %v9755 = vadd.f32 %v9307, %v9691
        %v9756 = vadd.f32 %v9308, %v9692
        %v9757 = vadd.f32 %v9309, %v9693
        %v9758 = vadd.f32 %v9310, %v9694
        %v9759 = vadd.f32 %v9311, %v9695
        %v9760 = vadd.f32 %v9312, %v9696
        %v9761 = vadd.f32 %v9313, %v9697
        %v9762 = vadd.f32 %v9314, %v9698
        %v9763 = vadd.f32 %v9315, %v9699
        %v9764 = vadd.f32 %v9316, %v9700
        %v9765 = vadd.f32 %v9317, %v9701
        %v9766 = vadd.f32 %v9318, %v9702
        %v9767 = vadd.f32 %v9319, %v9703
        %v9768 = vadd.f32 %v9320, %v9704
        %v9769 = vadd.f32 %v9321, %v9705
        %v9770 = vadd.f32 %v9322, %v9706
        %v9771 = vadd.f32 %v9323, %v9707
        %v9772 = vadd.f32 %v9324, %v9708
        %v9773 = vadd.f32 %v9325, %v9709
        %v9774 = vadd.f32 %v9326, %v9710
        %v9775 = vadd.f32 %v9327, %v9711
        %v9776 = vadd.f32 %v9328, %v9712
        %v9777 = vadd.f32 %v9329, %v9713
        %v9778 = vadd.f32 %v9330, %v9714
        %v9779 = vadd.f32 %v9331, %v9715
        %v9780 = vadd.f32 %v9332, %v9716
        %v9781 = vadd.f32 %v9333, %v9717
        %v9782 = vadd.f32 %v9334, %v9718
        %v9783 = vadd.f32 %v9335, %v9719
        %v9784 = vadd.f32 %v9336, %v9720
        %v9785 = vadd.f32 %v9337, %v9721
        %v9786 = vadd.f32 %v9338, %v9722
        %v9787 = vadd.f32 %v9339, %v9723
        %v9788 = vadd.f32 %v9340, %v9724
        %v9789 = vadd.f32 %v9341, %v9725
        %v9790 = vadd.f32 %v9342, %v9726
        %v9791 = vadd.f32 %v9343, %v9727
        %9792 = vxpose.xlu0.b32.start [1/16] %v9728, 128
        %9793 = vxpose.xlu0.b32.cont [2/16] %v9729, 128
        %9794 = vxpose.xlu0.b32.cont [3/16] %v9730, 128
        %9795 = vxpose.xlu0.b32.cont [4/16] %v9731, 128
        %9796 = vxpose.xlu0.b32.cont [5/16] %v9732, 128
        %9797 = vxpose.xlu0.b32.cont [6/16] %v9733, 128
        %9798 = vxpose.xlu0.b32.cont [7/16] %v9734, 128
        %9799 = vxpose.xlu0.b32.cont [8/16] %v9735, 128
        %9800 = vxpose.xlu0.b32.cont [9/16] %v9736, 128
        %9801 = vxpose.xlu0.b32.cont [10/16] %v9737, 128
        %9802 = vxpose.xlu0.b32.cont [11/16] %v9738, 128
        %9803 = vxpose.xlu0.b32.cont [12/16] %v9739, 128
        %9804 = vxpose.xlu0.b32.cont [13/16] %v9740, 128
        %9805 = vxpose.xlu0.b32.cont [14/16] %v9741, 128
        %9806 = vxpose.xlu0.b32.cont [15/16] %v9742, 128
        %9807 = vxpose.xlu0.b32.end [16/16] %v9743, 128
        %v9808 = vpop.trf.xlu0
        %v9809 = vpop.trf.xlu0
        %v9810 = vpop.trf.xlu0
        %v9811 = vpop.trf.xlu0
        %v9812 = vpop.trf.xlu0
        %v9813 = vpop.trf.xlu0
        %v9814 = vpop.trf.xlu0
        %v9815 = vpop.trf.xlu0
        %v9816 = vpop.trf.xlu0
        %v9817 = vpop.trf.xlu0
        %v9818 = vpop.trf.xlu0
        %v9819 = vpop.trf.xlu0
        %v9820 = vpop.trf.xlu0
        %v9821 = vpop.trf.xlu0
        %v9822 = vpop.trf.xlu0
        %v9823 = vpop.trf.xlu0
        %9824 = vxpose.xlu0.b32.start [1/16] %v9744, 128
        %9825 = vxpose.xlu0.b32.cont [2/16] %v9745, 128
        %9826 = vxpose.xlu0.b32.cont [3/16] %v9746, 128
        %9827 = vxpose.xlu0.b32.cont [4/16] %v9747, 128
        %9828 = vxpose.xlu0.b32.cont [5/16] %v9748, 128
        %9829 = vxpose.xlu0.b32.cont [6/16] %v9749, 128
        %9830 = vxpose.xlu0.b32.cont [7/16] %v9750, 128
        %9831 = vxpose.xlu0.b32.cont [8/16] %v9751, 128
        %9832 = vxpose.xlu0.b32.cont [9/16] %v9752, 128
        %9833 = vxpose.xlu0.b32.cont [10/16] %v9753, 128
        %9834 = vxpose.xlu0.b32.cont [11/16] %v9754, 128
        %9835 = vxpose.xlu0.b32.cont [12/16] %v9755, 128
        %9836 = vxpose.xlu0.b32.cont [13/16] %v9756, 128
        %9837 = vxpose.xlu0.b32.cont [14/16] %v9757, 128
        %9838 = vxpose.xlu0.b32.cont [15/16] %v9758, 128
        %9839 = vxpose.xlu0.b32.end [16/16] %v9759, 128
        %v9840 = vpop.trf.xlu0
        %v9841 = vpop.trf.xlu0
        %v9842 = vpop.trf.xlu0
        %v9843 = vpop.trf.xlu0
        %v9844 = vpop.trf.xlu0
        %v9845 = vpop.trf.xlu0
        %v9846 = vpop.trf.xlu0
        %v9847 = vpop.trf.xlu0
        %v9848 = vpop.trf.xlu0
        %v9849 = vpop.trf.xlu0
        %v9850 = vpop.trf.xlu0
        %v9851 = vpop.trf.xlu0
        %v9852 = vpop.trf.xlu0
        %v9853 = vpop.trf.xlu0
        %v9854 = vpop.trf.xlu0
        %v9855 = vpop.trf.xlu0
        %9856 = vxpose.xlu0.b32.start [1/16] %v9760, 128
        %9857 = vxpose.xlu0.b32.cont [2/16] %v9761, 128
        %9858 = vxpose.xlu0.b32.cont [3/16] %v9762, 128
        %9859 = vxpose.xlu0.b32.cont [4/16] %v9763, 128
        %9860 = vxpose.xlu0.b32.cont [5/16] %v9764, 128
        %9861 = vxpose.xlu0.b32.cont [6/16] %v9765, 128
        %9862 = vxpose.xlu0.b32.cont [7/16] %v9766, 128
        %9863 = vxpose.xlu0.b32.cont [8/16] %v9767, 128
        %9864 = vxpose.xlu0.b32.cont [9/16] %v9768, 128
        %9865 = vxpose.xlu0.b32.cont [10/16] %v9769, 128
        %9866 = vxpose.xlu0.b32.cont [11/16] %v9770, 128
        %9867 = vxpose.xlu0.b32.cont [12/16] %v9771, 128
        %9868 = vxpose.xlu0.b32.cont [13/16] %v9772, 128
        %9869 = vxpose.xlu0.b32.cont [14/16] %v9773, 128
        %9870 = vxpose.xlu0.b32.cont [15/16] %v9774, 128
        %9871 = vxpose.xlu0.b32.end [16/16] %v9775, 128
        %v9872 = vpop.trf.xlu0
        %v9873 = vpop.trf.xlu0
        %v9874 = vpop.trf.xlu0
        %v9875 = vpop.trf.xlu0
        %v9876 = vpop.trf.xlu0
        %v9877 = vpop.trf.xlu0
        %v9878 = vpop.trf.xlu0
        %v9879 = vpop.trf.xlu0
        %v9880 = vpop.trf.xlu0
        %v9881 = vpop.trf.xlu0
        %v9882 = vpop.trf.xlu0
        %v9883 = vpop.trf.xlu0
        %v9884 = vpop.trf.xlu0
        %v9885 = vpop.trf.xlu0
        %v9886 = vpop.trf.xlu0
        %v9887 = vpop.trf.xlu0
        %9888 = vxpose.xlu0.b32.start [1/16] %v9776, 128
        %9889 = vxpose.xlu0.b32.cont [2/16] %v9777, 128
        %9890 = vxpose.xlu0.b32.cont [3/16] %v9778, 128
        %9891 = vxpose.xlu0.b32.cont [4/16] %v9779, 128
        %9892 = vxpose.xlu0.b32.cont [5/16] %v9780, 128
        %9893 = vxpose.xlu0.b32.cont [6/16] %v9781, 128
        %9894 = vxpose.xlu0.b32.cont [7/16] %v9782, 128
        %9895 = vxpose.xlu0.b32.cont [8/16] %v9783, 128
        %9896 = vxpose.xlu0.b32.cont [9/16] %v9784, 128
        %9897 = vxpose.xlu0.b32.cont [10/16] %v9785, 128
        %9898 = vxpose.xlu0.b32.cont [11/16] %v9786, 128
        %9899 = vxpose.xlu0.b32.cont [12/16] %v9787, 128
        %9900 = vxpose.xlu0.b32.cont [13/16] %v9788, 128
        %9901 = vxpose.xlu0.b32.cont [14/16] %v9789, 128
        %9902 = vxpose.xlu0.b32.cont [15/16] %v9790, 128
        %9903 = vxpose.xlu0.b32.end [16/16] %v9791, 128
        %v9904 = vpop.trf.xlu0
        %v9905 = vpop.trf.xlu0
        %v9906 = vpop.trf.xlu0
        %v9907 = vpop.trf.xlu0
        %v9908 = vpop.trf.xlu0
        %v9909 = vpop.trf.xlu0
        %v9910 = vpop.trf.xlu0
        %v9911 = vpop.trf.xlu0
        %v9912 = vpop.trf.xlu0
        %v9913 = vpop.trf.xlu0
        %v9914 = vpop.trf.xlu0
        %v9915 = vpop.trf.xlu0
        %v9916 = vpop.trf.xlu0
        %v9917 = vpop.trf.xlu0
        %v9918 = vpop.trf.xlu0
        %v9919 = vpop.trf.xlu0
        %9920 = vst [vmem:[%s428] sm:$0xff] %v9808
        %9921 = vst [vmem:[%s428 + $0x8] sm:$0xff] %v9840
        %9922 = vst [vmem:[%s428 + $0x10] sm:$0xff] %v9872
        %9923 = vst [vmem:[%s428 + $0x18] sm:$0xff] %v9904
        %9924 = vst [vmem:[%s428 + $0x20] sm:$0xff] %v9809
        %9925 = vst [vmem:[%s428 + $0x28] sm:$0xff] %v9841
        %9926 = vst [vmem:[%s428 + $0x30] sm:$0xff] %v9873
        %9927 = vst [vmem:[%s428 + $0x38] sm:$0xff] %v9905
        %9928 = vst [vmem:[%s428 + $0x40] sm:$0xff] %v9810
        %9929 = vst [vmem:[%s428 + $0x48] sm:$0xff] %v9842
        %9930 = vst [vmem:[%s428 + $0x50] sm:$0xff] %v9874
        %9931 = vst [vmem:[%s428 + $0x58] sm:$0xff] %v9906
        %9932 = vst [vmem:[%s428 + $0x60] sm:$0xff] %v9811
        %9933 = vst [vmem:[%s428 + $0x68] sm:$0xff] %v9843
        %9934 = vst [vmem:[%s428 + $0x70] sm:$0xff] %v9875
        %9935 = vst [vmem:[%s428 + $0x78] sm:$0xff] %v9907
        %s9936 = sand.u32 %s262, 1
        %s9937 = scalar_lea.sflag [#allocation3], %s9936
        %s9938 = sand.u32 %s262, 1
        %s9939 = smul.addr %s9938, 128
        %s9940 = scalar_lea.vmem [#allocation2], %s9939
        // Predicated region
        $region57: #{tpu_custom_call.1} parent=55 // pred_check
          %p9941 = pneg %p272
        $region58: #{tpu_custom_call.1} parent=55 // pred_check_branch
          %9943 = sbr.rel (%p9941) target = $region60
        $region59: #{tpu_custom_call.1} parent=55 // pred_region
          %s9944 = smul.u32 4, %s28
          %s9946 = ssub.s32 2048, 2048
          %9947 = vsyncadd %s9937, %s9946
          %s9948 = smul.addr %s27, 16
          %s9949 = sadd.s32 %s9944, %s9948
          %s9950 = smul.addr %s9949, 128
          %s9951 = scalar_lea.hbm %s9, %s9950
          %s9952 = sshll.u32 %s9940, 4
          %s9953 = int_to_ptr.vmem [resolvable:$true] %s9952
          %9958 = dma.vmem_to_hbm [thread:$0]  %s9953, 2048, %s9951, %s9937, 512, 512, 32
        $region60: #{tpu_custom_call.1} parent=55 // pred_fallthru
          _
      $region56: #{tpu_custom_call.1} parent=5 // pred_fallthru
        _
      %p9959 = scmp.le.s32.totalorder 2, %s18
      // Predicated region
      $region61: #{tpu_custom_call.1} parent=5 // pred_check
        %p9960 = pneg %p9959
      $region62: #{tpu_custom_call.1} parent=5 // pred_check_branch
        %9962 = sbr.rel (%p9960) target = $region64
      $region63: #{tpu_custom_call.1} parent=5 // pred_region
        %s9963 = ssub.s32 %s18, 2
        // Predicated region
        $region65: #{tpu_custom_call.1} parent=63 // pred_check
          %p9964 = pneg %p278
        $region66: #{tpu_custom_call.1} parent=63 // pred_check_branch
          %9966 = sbr.rel (%p9964) target = $region68
        $region67: #{tpu_custom_call.1} parent=63 // pred_region
          %s9967 = sand.u32 %s263, 1
          %s9968 = scalar_lea.sflag [#allocation3], %s9967
          %s9969 = sand.u32 %s263, 1
          %s9970 = smul.addr %s9969, 128
          %s9971 = scalar_lea.vmem [#allocation2], %s9970
          %9972 = dma.done %s9968, 2048
        $region68: #{tpu_custom_call.1} parent=63 // pred_fallthru
          _
      $region64: #{tpu_custom_call.1} parent=5 // pred_fallthru
        _
    $region6: #{tpu_custom_call.1} parent=1 // loop_footer
      %s22 = sadd.s32 1, %s18
    $region7: #{tpu_custom_call.1} parent=1 // loop_footer_branch
      %17 = sbr.rel target = $region3
    $region8: #{tpu_custom_call.1} parent=1 // loop_exit
      _
    %9973 = vsyncpa [#allocation3], 1
    %s9974 = scalar_lea.sflag [#allocation3], 1
    %9975 = vsyncpa %s9974, 1

</llo_original>
